<compile_context>
chip_gen: v5e
topology: v5e:2x2
jax: 0.10.0
libtpu: 0.0.40
codegen_flags: <defaults>
</compile_context>

<pallas_src>
import numpy as np

import jax
import jax.numpy as jnp
from jax.experimental import pallas as pl
from jax.experimental.pallas import tpu as pltpu


# ----------------------------- Pallas kernels ------------------------------ #

def _relu_pool(y, b, n):
    """y: (rows, 4n) pre-activation, column block q=2*dh+dw holds the conv
    output at pool-window offset (dh, dw).  Returns ReLU(y+b) max-pooled over
    the 4 blocks -> (rows, n)."""
    p0 = jnp.maximum(y[:, 0 * n:1 * n] + b, 0.0)
    p1 = jnp.maximum(y[:, 1 * n:2 * n] + b, 0.0)
    p2 = jnp.maximum(y[:, 2 * n:3 * n] + b, 0.0)
    p3 = jnp.maximum(y[:, 3 * n:4 * n] + b, 0.0)
    return jnp.maximum(jnp.maximum(p0, p1), jnp.maximum(p2, p3))


def _fused_conv_kernel(xq_ref, w1e_ref, w1ol_ref, w1oh_ref, b1_ref,
                       w2al_ref, w2ah_ref, w2bl_ref, w2bh_ref, b2_ref, o_ref):
    """Fused conv1+relu+pool followed by conv2+relu+pool for a batch block.

    xq_ref : (bb, 17, 256)  stage-1 input, 4 padded rows packed per matmul row
    w1*    : (256, 1024)    stage-1 banded weights (even rows / odd-lo / odd-hi)
    b1     : (1, 256)       conv1 bias tiled over Wo=32
    w2*    : (256, 1024)    stage-2 banded weight quarters (row offsets 0..3)
    b2     : (1, 256)       conv2 bias tiled over Wo=16
    o_ref  : (bb, 16, 256)  pooled stage-2 activations (lane-dense, bf16)
    """
    bb = xq_ref.shape[0]
    n1 = b1_ref.shape[1]
    n2 = b2_ref.shape[1]
    f32 = jnp.float32
    cdt = w2al_ref.dtype
    b1 = b1_ref[...]
    b2 = b2_ref[...]
    zrow = jnp.zeros((1, n1), cdt)            # hoisted out of the loop
    for i in range(bb):
        xq = xq_ref[i]                        # (17, 256)
        a = xq[0:16, :]                       # quads 0..15
        bv = xq[1:17, :]                      # quads 1..16
        # ---- stage 1: even / odd pooled rows via separate banded weights ----
        ye = jnp.dot(a, w1e_ref[...], preferred_element_type=f32)
        yo = (jnp.dot(a, w1ol_ref[...], preferred_element_type=f32) +
              jnp.dot(bv, w1oh_ref[...], preferred_element_type=f32))
        pe = _relu_pool(ye, b1, n1).astype(cdt)   # pooled rows 0,2,...,30
        po = _relu_pool(yo, b1, n1).astype(cdt)   # pooled rows 1,3,...,31
        # ---- stage 2: one-row shifts provide the +-1 conv halo in H ----
        po_dn = jnp.concatenate([zrow, po[0:15, :]], axis=0)   # row r -> po[r-1]
        pe_up = jnp.concatenate([pe[1:16, :], zrow], axis=0)   # row r -> pe[r+1]
        y2 = (jnp.dot(po_dn, w2al_ref[...], preferred_element_type=f32) +
              jnp.dot(pe,    w2ah_ref[...], preferred_element_type=f32) +
              jnp.dot(po,    w2bl_ref[...], preferred_element_type=f32) +
              jnp.dot(pe_up, w2bh_ref[...], preferred_element_type=f32))
        o_ref[i] = _relu_pool(y2, b2, n2).astype(o_ref.dtype)  # (16, 256)


def _mlp_kernel(x_ref, w1_ref, b1_ref, w2_ref, b2_ref, o_ref):
    """Fused fc1(+ReLU) and fc2 (fc2 zero-padded to 128 output lanes)."""
    h = jnp.dot(x_ref[...], w1_ref[...], preferred_element_type=jnp.float32)
    h = jnp.maximum(h + b1_ref[...], 0.0)
    y = jnp.dot(h.astype(w2_ref.dtype), w2_ref[...],
                preferred_element_type=jnp.float32) + b2_ref[...]
    o_ref[...] = y


# ------------------------------ layer wrappers ------------------------------ #

def fused_conv(xq, kp):
    """xq: (B, 17, 256) bf16 quad-packed input -> (B, 16, 256) bf16 pooled."""
    B = xq.shape[0]
    bb = max(1, min(8, (B + 1) // 2))     # keep >=2 grid steps when possible

    def w_spec(shape):
        return pl.BlockSpec(shape, lambda i: (0, 0))

    return pl.pallas_call(
        _fused_conv_kernel,
        out_shape=jax.ShapeDtypeStruct((B, 16, 256), jnp.bfloat16),
        grid=(pl.cdiv(B, bb),),
        in_specs=[
            pl.BlockSpec((bb, 17, 256), lambda i: (i, 0, 0)),
            w_spec((256, 1024)), w_spec((256, 1024)), w_spec((256, 1024)),
            w_spec((1, 256)),
            w_spec((256, 1024)), w_spec((256, 1024)),
            w_spec((256, 1024)), w_spec((256, 1024)),
            w_spec((1, 256)),
        ],
        out_specs=pl.BlockSpec((bb, 16, 256), lambda i: (i, 0, 0)),
        compiler_params=pltpu.CompilerParams(
            dimension_semantics=("parallel",)),
    )(xq, kp["w1e"], kp["w1ol"], kp["w1oh"], kp["b1"],
      kp["w2al"], kp["w2ah"], kp["w2bl"], kp["w2bh"], kp["b2"])


def mlp(x, w1, b1, w2, b2):
    """x: (B, 4096) bf16 NHWC-flattened activations -> (B, 128) f32 logits."""
    B, K = x.shape
    N = w2.shape[1]
    bb = min(B, 256)                      # bf16 input keeps this v5e-safe
    return pl.pallas_call(
        _mlp_kernel,
        out_shape=jax.ShapeDtypeStruct((B, N), jnp.float32),
        grid=(pl.cdiv(B, bb),),
        in_specs=[
            pl.BlockSpec((bb, K), lambda i: (i, 0)),
            pl.BlockSpec(w1.shape, lambda i: (0, 0)),
            pl.BlockSpec(b1.shape, lambda i: (0, 0)),
            pl.BlockSpec(w2.shape, lambda i: (0, 0)),
            pl.BlockSpec(b2.shape, lambda i: (0, 0)),
        ],
        out_specs=pl.BlockSpec((bb, N), lambda i: (i, 0)),
        compiler_params=pltpu.CompilerParams(
            dimension_semantics=("parallel",)),
    )(x, w1, b1, w2, b2)


# ------------------------------ params & packing ---------------------------- #

def init_params(key):
    """PyTorch-convention parameters (conv weights HWIO, fc1 rows in torch's
    (C,H,W) flatten order)."""
    keys = jax.random.split(key, 8)

    def u(k, shape, fan_in):
        bound = 1.0 / float(np.sqrt(fan_in))
        return jax.random.uniform(k, shape, jnp.float32, -bound, bound)

    return {
        "conv1_w": u(keys[0], (3, 3, 1, 8), 1 * 9),
        "conv1_b": u(keys[1], (8,), 1 * 9),
        "conv2_w": u(keys[2], (3, 3, 8, 16), 8 * 9),
        "conv2_b": u(keys[3], (16,), 8 * 9),
        "fc1_w": u(keys[4], (16 * 16 * 16, 64), 16 * 16 * 16),
        "fc1_b": u(keys[5], (64,), 16 * 16 * 16),
        "fc2_w": u(keys[6], (64, 5), 64),
        "fc2_b": u(keys[7], (5,), 64),
    }


def _banded_halves(wc, b, W):
    """Banded conv3x3(pad=1)+maxpool2 weights per source-row offset.

    The pre-pool conv outputs feeding pooled row `ho` read padded input rows
    2ho .. 2ho+3.  For offset d = dh+kh (source padded row = 2ho + d) this
    builds the (W*Cin, 4*Wo*Cout) matrix mapping one stored input row
    (unpadded columns, layout w*Cin+ci) to the pre-pool lanes
    (layout q*Wo*Cout + wo*Cout + co, q = 2*dh+dw).  Left/right zero padding
    is folded in by skipping out-of-range source columns.
    Returns (d0, d1, d2, d3, bias_row).
    """
    Cin, Cout = wc.shape[2], wc.shape[3]
    Wo = W // 2
    out = np.zeros((4, W, Cin, 4, Wo, Cout), np.float32)
    for dh in range(2):
        for dw in range(2):
            q = 2 * dh + dw
            for kh in range(3):
                d = dh + kh
                for kw in range(3):
                    for wo in range(Wo):
                        w = 2 * wo + dw + kw - 1
                        if 0 <= w < W:
                            out[d, w, :, q, wo, :] = wc[kh, kw]
    out = out.reshape(4, W * Cin, 4 * Wo * Cout)
    b_row = np.tile(np.asarray(b, np.float32), Wo).reshape(1, Wo * Cout)
    return out[0], out[1], out[2], out[3], b_row


def prepare_params(params):
    """One-time packing of torch-convention params into kernel-ready params."""
    # stage 1 (W=64, Cin=1, Cout=8): halves are (64, 1024)
    d0, d1, d2, d3, b1row = _banded_halves(
        np.asarray(params["conv1_w"]), np.asarray(params["conv1_b"]), 64)
    z = np.zeros_like(d0)
    # even pooled rows: the whole quad (padded rows 2ho..2ho+3) is quad m
    w1e = np.concatenate([d0, d1, d2, d3], axis=0)          # (256, 1024)
    # odd pooled rows: offsets 0,1 live in quad m at positions 2,3 ...
    w1ol = np.concatenate([z, z, d0, d1], axis=0)
    # ... offsets 2,3 live in quad m+1 at positions 0,1
    w1oh = np.concatenate([d2, d3, z, z], axis=0)
    # stage 2 (W=32, Cin=8, Cout=16): halves are (256, 1024), used directly
    e0, e1, e2, e3, b2row = _banded_halves(
        np.asarray(params["conv2_w"]), np.asarray(params["conv2_b"]), 32)
    # fold torch's NCHW flatten order into fc1 weight rows (NHWC flatten order)
    fc1 = np.asarray(params["fc1_w"])                      # rows: c*256+h*16+w
    fc1_nhwc = fc1.reshape(16, 16, 16, 64).transpose(1, 2, 0, 3).reshape(4096, 64)
    # fc2 zero-padded to 128 lane-dense output columns
    fc2_w = np.zeros((64, 128), np.float32)
    fc2_w[:, :5] = np.asarray(params["fc2_w"])
    fc2_b = np.zeros((1, 128), np.float32)
    fc2_b[0, :5] = np.asarray(params["fc2_b"])

    bf16 = jnp.bfloat16
    return {
        "w1e": jnp.asarray(w1e, bf16),
        "w1ol": jnp.asarray(w1ol, bf16),
        "w1oh": jnp.asarray(w1oh, bf16),
        "b1": jnp.asarray(b1row),
        "w2al": jnp.asarray(e0, bf16),
        "w2ah": jnp.asarray(e1, bf16),
        "w2bl": jnp.asarray(e2, bf16),
        "w2bh": jnp.asarray(e3, bf16),
        "b2": jnp.asarray(b2row),
        "fc1_w": jnp.asarray(fc1_nhwc, bf16),
        "fc1_b": jnp.asarray(params["fc1_b"], jnp.float32).reshape(1, 64),
        "fc2_w": jnp.asarray(fc2_w, bf16),
        "fc2_b": jnp.asarray(fc2_b),
    }


# --------------------------------- forward ---------------------------------- #

@jax.jit
def cnn_forward(kp, x_nchw):
    # x_nchw: (B, 1, 64, 64) float32 (PyTorch layout)
    B = x_nchw.shape[0]
    x = x_nchw.reshape(B, 64, 64)                          # C = 1
    # quad-pack padded rows: pad H by (1, 3) -> 68 rows, 4 rows per matmul row.
    # W padding is folded into the banded weights, so lanes are 4*64 = 256.
    xq = jnp.pad(x, ((0, 0), (1, 3), (0, 0))).reshape(B, 17, 256)
    xq = xq.astype(jnp.bfloat16)
    act = fused_conv(xq, kp)                               # (B, 16, 256) bf16
    flat = act.reshape(B, 16 * 256)                        # free, contiguous
    out = mlp(flat, kp["fc1_w"], kp["fc1_b"], kp["fc2_w"], kp["fc2_b"])
    return out[:, :5]


# ------------------------- pure-JAX reference (spec) ------------------------- #

@jax.jit
def reference_forward(params, x_nchw):
    hi = jax.lax.Precision.HIGHEST
    x = jnp.transpose(x_nchw, (0, 2, 3, 1))

    def conv3x3_relu(x, w, b):
        B, H, W, Cin = x.shape
        Cout = w.shape[-1]
        xp = jnp.pad(x, ((0, 0), (1, 1), (1, 1), (0, 0)))
        acc = jnp.zeros((B, H, W, Cout), jnp.float32)
        for kh in range(3):
            for kw in range(3):
                acc = acc + jnp.einsum("bhwi,io->bhwo",
                                       xp[:, kh:kh + H, kw:kw + W, :],
                                       w[kh, kw], precision=hi)
        return jnp.maximum(acc + b, 0.0)

    def pool2(x):
        B, H, W, C = x.shape
        return jnp.max(x.reshape(B, H // 2, 2, W // 2, 2, C), axis=(2, 4))

    x = pool2(conv3x3_relu(x, params["conv1_w"], params["conv1_b"]))
    x = pool2(conv3x3_relu(x, params["conv2_w"], params["conv2_b"]))
    x = jnp.transpose(x, (0, 3, 1, 2)).reshape(x.shape[0], -1)   # torch flatten
    x = jnp.maximum(jnp.dot(x, params["fc1_w"], precision=hi) + params["fc1_b"], 0.0)
    return jnp.dot(x, params["fc2_w"], precision=hi) + params["fc2_b"]


# ----------------------------------- main ------------------------------------ #

if __name__ == "__main__":
    key = jax.random.PRNGKey(0)
    pkey, xkey = jax.random.split(key)
    params = init_params(pkey)
    kparams = prepare_params(params)

    x = jax.random.normal(xkey, (2, 1, 64, 64), dtype=jnp.float32)

    out = jax.block_until_ready(cnn_forward(kparams, x))
    assert out.shape == (2, 5), out.shape
    assert bool(jnp.all(jnp.isfinite(out)))

    ref = jax.block_until_ready(reference_forward(params, x))
    err = float(jnp.max(jnp.abs(out - ref)))
    assert err < 3e-2, f"mismatch vs reference: {err}"

    print("KERNEL_OK")
</pallas_src>

<mosaic_0001>
module attributes {stable_mosaic.version = 11 : i64} {
  func.func @_fused_conv_kernel(%arg0: i32, %arg1: memref<1x17x256xbf16, #tpu.memory_space<vmem>>, %arg2: memref<256x1024xbf16, #tpu.memory_space<vmem>>, %arg3: memref<256x1024xbf16, #tpu.memory_space<vmem>>, %arg4: memref<256x1024xbf16, #tpu.memory_space<vmem>>, %arg5: memref<1x256xf32, #tpu.memory_space<vmem>>, %arg6: memref<256x1024xbf16, #tpu.memory_space<vmem>>, %arg7: memref<256x1024xbf16, #tpu.memory_space<vmem>>, %arg8: memref<256x1024xbf16, #tpu.memory_space<vmem>>, %arg9: memref<256x1024xbf16, #tpu.memory_space<vmem>>, %arg10: memref<1x256xf32, #tpu.memory_space<vmem>>, %arg11: memref<1x16x256xbf16, #tpu.memory_space<vmem>>) attributes {dimension_semantics = [#tpu.dimension_semantics<parallel>], iteration_bounds = array<i64: 2>, scalar_prefetch = 0 : i64, scratch_operands = 0 : i64, tpu.core_type = #tpu.core_type<tc>, window_params = [{transform_indices = @transform_0, window_bounds = array<i64: 1, 17, 256>}, {pipeline_mode = #tpu.pipeline_mode<synchronous>, transform_indices = @transform_1, window_bounds = array<i64: 256, 1024>}, {pipeline_mode = #tpu.pipeline_mode<synchronous>, transform_indices = @transform_2, window_bounds = array<i64: 256, 1024>}, {pipeline_mode = #tpu.pipeline_mode<synchronous>, transform_indices = @transform_3, window_bounds = array<i64: 256, 1024>}, {pipeline_mode = #tpu.pipeline_mode<synchronous>, transform_indices = @transform_4, window_bounds = array<i64: 1, 256>}, {pipeline_mode = #tpu.pipeline_mode<synchronous>, transform_indices = @transform_5, window_bounds = array<i64: 256, 1024>}, {pipeline_mode = #tpu.pipeline_mode<synchronous>, transform_indices = @transform_6, window_bounds = array<i64: 256, 1024>}, {pipeline_mode = #tpu.pipeline_mode<synchronous>, transform_indices = @transform_7, window_bounds = array<i64: 256, 1024>}, {pipeline_mode = #tpu.pipeline_mode<synchronous>, transform_indices = @transform_8, window_bounds = array<i64: 256, 1024>}, {pipeline_mode = #tpu.pipeline_mode<synchronous>, transform_indices = @transform_9, window_bounds = array<i64: 1, 256>}, {transform_indices = @transform_10, window_bounds = array<i64: 1, 16, 256>}]} {
    %c0 = arith.constant 0 : index
    %c0_0 = arith.constant 0 : index
    %0 = vector.load %arg5[%c0, %c0_0] : memref<1x256xf32, #tpu.memory_space<vmem>>, vector<1x256xf32>
    %c0_1 = arith.constant 0 : index
    %c0_2 = arith.constant 0 : index
    %1 = vector.load %arg10[%c0_1, %c0_2] : memref<1x256xf32, #tpu.memory_space<vmem>>, vector<1x256xf32>
    %cst = arith.constant 0.000000e+00 : bf16
    %2 = vector.broadcast %cst : bf16 to vector<1x256xbf16>
    %c0_3 = arith.constant 0 : index
    %c0_4 = arith.constant 0 : index
    %c0_5 = arith.constant 0 : index
    %3 = vector.load %arg1[%c0_3, %c0_4, %c0_5] : memref<1x17x256xbf16, #tpu.memory_space<vmem>>, vector<1x17x256xbf16>
    %4 = vector.shape_cast %3 : vector<1x17x256xbf16> to vector<17x256xbf16>
    %5 = vector.extract_strided_slice %4 {offsets = [0, 0], sizes = [16, 256], strides = [1, 1]} : vector<17x256xbf16> to vector<16x256xbf16>
    %6 = vector.extract_strided_slice %4 {offsets = [1, 0], sizes = [16, 256], strides = [1, 1]} : vector<17x256xbf16> to vector<16x256xbf16>
    %c0_6 = arith.constant 0 : index
    %c0_7 = arith.constant 0 : index
    %7 = vector.load %arg2[%c0_6, %c0_7] : memref<256x1024xbf16, #tpu.memory_space<vmem>>, vector<256x1024xbf16>
    %cst_8 = arith.constant dense<0.000000e+00> : vector<16x1024xf32>
    %8 = tpu.matmul %5, %7, %cst_8 {dimension_numbers = #tpu.dot_dimension_numbers<[1], [0], [0], [1], [0, 0, 1, 1], [], []>} : vector<16x256xbf16>, vector<256x1024xbf16>, vector<16x1024xf32> -> vector<16x1024xf32>
    %c0_9 = arith.constant 0 : index
    %c0_10 = arith.constant 0 : index
    %9 = vector.load %arg3[%c0_9, %c0_10] : memref<256x1024xbf16, #tpu.memory_space<vmem>>, vector<256x1024xbf16>
    %cst_11 = arith.constant dense<0.000000e+00> : vector<16x1024xf32>
    %10 = tpu.matmul %5, %9, %cst_11 {dimension_numbers = #tpu.dot_dimension_numbers<[1], [0], [0], [1], [0, 0, 1, 1], [], []>} : vector<16x256xbf16>, vector<256x1024xbf16>, vector<16x1024xf32> -> vector<16x1024xf32>
    %c0_12 = arith.constant 0 : index
    %c0_13 = arith.constant 0 : index
    %11 = vector.load %arg4[%c0_12, %c0_13] : memref<256x1024xbf16, #tpu.memory_space<vmem>>, vector<256x1024xbf16>
    %cst_14 = arith.constant dense<0.000000e+00> : vector<16x1024xf32>
    %12 = tpu.matmul %6, %11, %cst_14 {dimension_numbers = #tpu.dot_dimension_numbers<[1], [0], [0], [1], [0, 0, 1, 1], [], []>} : vector<16x256xbf16>, vector<256x1024xbf16>, vector<16x1024xf32> -> vector<16x1024xf32>
    %13 = arith.addf %10, %12 : vector<16x1024xf32>
    %14 = vector.extract_strided_slice %8 {offsets = [0, 0], sizes = [16, 256], strides = [1, 1]} : vector<16x1024xf32> to vector<16x256xf32>
    %15 = vector.broadcast %0 : vector<1x256xf32> to vector<16x256xf32>
    %16 = arith.addf %14, %15 : vector<16x256xf32>
    %cst_15 = arith.constant 0.000000e+00 : f32
    %17 = vector.broadcast %cst_15 : f32 to vector<16x256xf32>
    %18 = arith.maximumf %16, %17 : vector<16x256xf32>
    %19 = vector.extract_strided_slice %8 {offsets = [0, 256], sizes = [16, 256], strides = [1, 1]} : vector<16x1024xf32> to vector<16x256xf32>
    %20 = vector.broadcast %0 : vector<1x256xf32> to vector<16x256xf32>
    %21 = arith.addf %19, %20 : vector<16x256xf32>
    %cst_16 = arith.constant 0.000000e+00 : f32
    %22 = vector.broadcast %cst_16 : f32 to vector<16x256xf32>
    %23 = arith.maximumf %21, %22 : vector<16x256xf32>
    %24 = vector.extract_strided_slice %8 {offsets = [0, 512], sizes = [16, 256], strides = [1, 1]} : vector<16x1024xf32> to vector<16x256xf32>
    %25 = vector.broadcast %0 : vector<1x256xf32> to vector<16x256xf32>
    %26 = arith.addf %24, %25 : vector<16x256xf32>
    %cst_17 = arith.constant 0.000000e+00 : f32
    %27 = vector.broadcast %cst_17 : f32 to vector<16x256xf32>
    %28 = arith.maximumf %26, %27 : vector<16x256xf32>
    %29 = vector.extract_strided_slice %8 {offsets = [0, 768], sizes = [16, 256], strides = [1, 1]} : vector<16x1024xf32> to vector<16x256xf32>
    %30 = vector.broadcast %0 : vector<1x256xf32> to vector<16x256xf32>
    %31 = arith.addf %29, %30 : vector<16x256xf32>
    %cst_18 = arith.constant 0.000000e+00 : f32
    %32 = vector.broadcast %cst_18 : f32 to vector<16x256xf32>
    %33 = arith.maximumf %31, %32 : vector<16x256xf32>
    %34 = arith.maximumf %18, %23 : vector<16x256xf32>
    %35 = arith.maximumf %28, %33 : vector<16x256xf32>
    %36 = arith.maximumf %34, %35 : vector<16x256xf32>
    %37 = arith.truncf %36 : vector<16x256xf32> to vector<16x256xbf16>
    %38 = vector.extract_strided_slice %13 {offsets = [0, 0], sizes = [16, 256], strides = [1, 1]} : vector<16x1024xf32> to vector<16x256xf32>
    %39 = vector.broadcast %0 : vector<1x256xf32> to vector<16x256xf32>
    %40 = arith.addf %38, %39 : vector<16x256xf32>
    %cst_19 = arith.constant 0.000000e+00 : f32
    %41 = vector.broadcast %cst_19 : f32 to vector<16x256xf32>
    %42 = arith.maximumf %40, %41 : vector<16x256xf32>
    %43 = vector.extract_strided_slice %13 {offsets = [0, 256], sizes = [16, 256], strides = [1, 1]} : vector<16x1024xf32> to vector<16x256xf32>
    %44 = vector.broadcast %0 : vector<1x256xf32> to vector<16x256xf32>
    %45 = arith.addf %43, %44 : vector<16x256xf32>
    %cst_20 = arith.constant 0.000000e+00 : f32
    %46 = vector.broadcast %cst_20 : f32 to vector<16x256xf32>
    %47 = arith.maximumf %45, %46 : vector<16x256xf32>
    %48 = vector.extract_strided_slice %13 {offsets = [0, 512], sizes = [16, 256], strides = [1, 1]} : vector<16x1024xf32> to vector<16x256xf32>
    %49 = vector.broadcast %0 : vector<1x256xf32> to vector<16x256xf32>
    %50 = arith.addf %48, %49 : vector<16x256xf32>
    %cst_21 = arith.constant 0.000000e+00 : f32
    %51 = vector.broadcast %cst_21 : f32 to vector<16x256xf32>
    %52 = arith.maximumf %50, %51 : vector<16x256xf32>
    %53 = vector.extract_strided_slice %13 {offsets = [0, 768], sizes = [16, 256], strides = [1, 1]} : vector<16x1024xf32> to vector<16x256xf32>
    %54 = vector.broadcast %0 : vector<1x256xf32> to vector<16x256xf32>
    %55 = arith.addf %53, %54 : vector<16x256xf32>
    %cst_22 = arith.constant 0.000000e+00 : f32
    %56 = vector.broadcast %cst_22 : f32 to vector<16x256xf32>
    %57 = arith.maximumf %55, %56 : vector<16x256xf32>
    %58 = arith.maximumf %42, %47 : vector<16x256xf32>
    %59 = arith.maximumf %52, %57 : vector<16x256xf32>
    %60 = arith.maximumf %58, %59 : vector<16x256xf32>
    %61 = arith.truncf %60 : vector<16x256xf32> to vector<16x256xbf16>
    %62 = vector.extract_strided_slice %61 {offsets = [0, 0], sizes = [15, 256], strides = [1, 1]} : vector<16x256xbf16> to vector<15x256xbf16>
    %63 = tpu.concatenate %2, %62 in 0 : vector<1x256xbf16>, vector<15x256xbf16> -> vector<16x256xbf16>
    %64 = vector.extract_strided_slice %37 {offsets = [1, 0], sizes = [15, 256], strides = [1, 1]} : vector<16x256xbf16> to vector<15x256xbf16>
    %65 = tpu.concatenate %64, %2 in 0 : vector<15x256xbf16>, vector<1x256xbf16> -> vector<16x256xbf16>
    %c0_23 = arith.constant 0 : index
    %c0_24 = arith.constant 0 : index
    %66 = vector.load %arg6[%c0_23, %c0_24] : memref<256x1024xbf16, #tpu.memory_space<vmem>>, vector<256x1024xbf16>
    %cst_25 = arith.constant dense<0.000000e+00> : vector<16x1024xf32>
    %67 = tpu.matmul %63, %66, %cst_25 {dimension_numbers = #tpu.dot_dimension_numbers<[1], [0], [0], [1], [0, 0, 1, 1], [], []>} : vector<16x256xbf16>, vector<256x1024xbf16>, vector<16x1024xf32> -> vector<16x1024xf32>
    %c0_26 = arith.constant 0 : index
    %c0_27 = arith.constant 0 : index
    %68 = vector.load %arg7[%c0_26, %c0_27] : memref<256x1024xbf16, #tpu.memory_space<vmem>>, vector<256x1024xbf16>
    %cst_28 = arith.constant dense<0.000000e+00> : vector<16x1024xf32>
    %69 = tpu.matmul %37, %68, %cst_28 {dimension_numbers = #tpu.dot_dimension_numbers<[1], [0], [0], [1], [0, 0, 1, 1], [], []>} : vector<16x256xbf16>, vector<256x1024xbf16>, vector<16x1024xf32> -> vector<16x1024xf32>
    %70 = arith.addf %67, %69 : vector<16x1024xf32>
    %c0_29 = arith.constant 0 : index
    %c0_30 = arith.constant 0 : index
    %71 = vector.load %arg8[%c0_29, %c0_30] : memref<256x1024xbf16, #tpu.memory_space<vmem>>, vector<256x1024xbf16>
    %cst_31 = arith.constant dense<0.000000e+00> : vector<16x1024xf32>
    %72 = tpu.matmul %61, %71, %cst_31 {dimension_numbers = #tpu.dot_dimension_numbers<[1], [0], [0], [1], [0, 0, 1, 1], [], []>} : vector<16x256xbf16>, vector<256x1024xbf16>, vector<16x1024xf32> -> vector<16x1024xf32>
    %73 = arith.addf %70, %72 : vector<16x1024xf32>
    %c0_32 = arith.constant 0 : index
    %c0_33 = arith.constant 0 : index
    %74 = vector.load %arg9[%c0_32, %c0_33] : memref<256x1024xbf16, #tpu.memory_space<vmem>>, vector<256x1024xbf16>
    %cst_34 = arith.constant dense<0.000000e+00> : vector<16x1024xf32>
    %75 = tpu.matmul %65, %74, %cst_34 {dimension_numbers = #tpu.dot_dimension_numbers<[1], [0], [0], [1], [0, 0, 1, 1], [], []>} : vector<16x256xbf16>, vector<256x1024xbf16>, vector<16x1024xf32> -> vector<16x1024xf32>
    %76 = arith.addf %73, %75 : vector<16x1024xf32>
    %77 = vector.extract_strided_slice %76 {offsets = [0, 0], sizes = [16, 256], strides = [1, 1]} : vector<16x1024xf32> to vector<16x256xf32>
    %78 = vector.broadcast %1 : vector<1x256xf32> to vector<16x256xf32>
    %79 = arith.addf %77, %78 : vector<16x256xf32>
    %cst_35 = arith.constant 0.000000e+00 : f32
    %80 = vector.broadcast %cst_35 : f32 to vector<16x256xf32>
    %81 = arith.maximumf %79, %80 : vector<16x256xf32>
    %82 = vector.extract_strided_slice %76 {offsets = [0, 256], sizes = [16, 256], strides = [1, 1]} : vector<16x1024xf32> to vector<16x256xf32>
    %83 = vector.broadcast %1 : vector<1x256xf32> to vector<16x256xf32>
    %84 = arith.addf %82, %83 : vector<16x256xf32>
    %cst_36 = arith.constant 0.000000e+00 : f32
    %85 = vector.broadcast %cst_36 : f32 to vector<16x256xf32>
    %86 = arith.maximumf %84, %85 : vector<16x256xf32>
    %87 = vector.extract_strided_slice %76 {offsets = [0, 512], sizes = [16, 256], strides = [1, 1]} : vector<16x1024xf32> to vector<16x256xf32>
    %88 = vector.broadcast %1 : vector<1x256xf32> to vector<16x256xf32>
    %89 = arith.addf %87, %88 : vector<16x256xf32>
    %cst_37 = arith.constant 0.000000e+00 : f32
    %90 = vector.broadcast %cst_37 : f32 to vector<16x256xf32>
    %91 = arith.maximumf %89, %90 : vector<16x256xf32>
    %92 = vector.extract_strided_slice %76 {offsets = [0, 768], sizes = [16, 256], strides = [1, 1]} : vector<16x1024xf32> to vector<16x256xf32>
    %93 = vector.broadcast %1 : vector<1x256xf32> to vector<16x256xf32>
    %94 = arith.addf %92, %93 : vector<16x256xf32>
    %cst_38 = arith.constant 0.000000e+00 : f32
    %95 = vector.broadcast %cst_38 : f32 to vector<16x256xf32>
    %96 = arith.maximumf %94, %95 : vector<16x256xf32>
    %97 = arith.maximumf %81, %86 : vector<16x256xf32>
    %98 = arith.maximumf %91, %96 : vector<16x256xf32>
    %99 = arith.maximumf %97, %98 : vector<16x256xf32>
    %100 = arith.truncf %99 : vector<16x256xf32> to vector<16x256xbf16>
    %c0_39 = arith.constant 0 : index
    %c0_40 = arith.constant 0 : index
    %c0_41 = arith.constant 0 : index
    %101 = vector.load %arg11[%c0_39, %c0_40, %c0_41] : memref<1x16x256xbf16, #tpu.memory_space<vmem>>, vector<1x16x256xbf16>
    %102 = vector.shape_cast %101 : vector<1x16x256xbf16> to vector<16x256xbf16>
    %103 = vector.shape_cast %100 : vector<16x256xbf16> to vector<1x16x256xbf16>
    tpu.vector_store %arg11[%c0_39, %c0_40, %c0_41], %103 {strides = array<i32>} : memref<1x16x256xbf16, #tpu.memory_space<vmem>>, vector<1x16x256xbf16>,
    return
  }
  func.func @transform_0(%arg0: i32) -> (i32, i32, i32) {
    %c0_i32 = arith.constant 0 : i32
    %c0_i32_0 = arith.constant 0 : i32
    %c0_i32_1 = arith.constant 0 : i32
    return %arg0, %c0_i32, %c0_i32_0 : i32, i32, i32
  }
  func.func @transform_1(%arg0: i32) -> (i32, i32) {
    %c0_i32 = arith.constant 0 : i32
    %c0_i32_0 = arith.constant 0 : i32
    %c0_i32_1 = arith.constant 0 : i32
    return %c0_i32, %c0_i32_0 : i32, i32
  }
  func.func @transform_2(%arg0: i32) -> (i32, i32) {
    %c0_i32 = arith.constant 0 : i32
    %c0_i32_0 = arith.constant 0 : i32
    %c0_i32_1 = arith.constant 0 : i32
    return %c0_i32, %c0_i32_0 : i32, i32
  }
  func.func @transform_3(%arg0: i32) -> (i32, i32) {
    %c0_i32 = arith.constant 0 : i32
    %c0_i32_0 = arith.constant 0 : i32
    %c0_i32_1 = arith.constant 0 : i32
    return %c0_i32, %c0_i32_0 : i32, i32
  }
  func.func @transform_4(%arg0: i32) -> (i32, i32) {
    %c0_i32 = arith.constant 0 : i32
    %c0_i32_0 = arith.constant 0 : i32
    %c0_i32_1 = arith.constant 0 : i32
    return %c0_i32, %c0_i32_0 : i32, i32
  }
  func.func @transform_5(%arg0: i32) -> (i32, i32) {
    %c0_i32 = arith.constant 0 : i32
    %c0_i32_0 = arith.constant 0 : i32
    %c0_i32_1 = arith.constant 0 : i32
    return %c0_i32, %c0_i32_0 : i32, i32
  }
  func.func @transform_6(%arg0: i32) -> (i32, i32) {
    %c0_i32 = arith.constant 0 : i32
    %c0_i32_0 = arith.constant 0 : i32
    %c0_i32_1 = arith.constant 0 : i32
    return %c0_i32, %c0_i32_0 : i32, i32
  }
  func.func @transform_7(%arg0: i32) -> (i32, i32) {
    %c0_i32 = arith.constant 0 : i32
    %c0_i32_0 = arith.constant 0 : i32
    %c0_i32_1 = arith.constant 0 : i32
    return %c0_i32, %c0_i32_0 : i32, i32
  }
  func.func @transform_8(%arg0: i32) -> (i32, i32) {
    %c0_i32 = arith.constant 0 : i32
    %c0_i32_0 = arith.constant 0 : i32
    %c0_i32_1 = arith.constant 0 : i32
    return %c0_i32, %c0_i32_0 : i32, i32
  }
  func.func @transform_9(%arg0: i32) -> (i32, i32) {
    %c0_i32 = arith.constant 0 : i32
    %c0_i32_0 = arith.constant 0 : i32
    %c0_i32_1 = arith.constant 0 : i32
    return %c0_i32, %c0_i32_0 : i32, i32
  }
  func.func @transform_10(%arg0: i32) -> (i32, i32, i32) {
    %c0_i32 = arith.constant 0 : i32
    %c0_i32_0 = arith.constant 0 : i32
    %c0_i32_1 = arith.constant 0 : i32
    return %arg0, %c0_i32, %c0_i32_0 : i32, i32, i32
  }
}

module attributes {stable_mosaic.version = 11 : i64} {
  func.func @_mlp_kernel(%arg0: i32, %arg1: memref<2x4096xbf16, #tpu.memory_space<vmem>>, %arg2: memref<4096x64xbf16, #tpu.memory_space<vmem>>, %arg3: memref<1x64xf32, #tpu.memory_space<vmem>>, %arg4: memref<64x128xbf16, #tpu.memory_space<vmem>>, %arg5: memref<1x128xf32, #tpu.memory_space<vmem>>, %arg6: memref<2x128xf32, #tpu.memory_space<vmem>>) attributes {dimension_semantics = [#tpu.dimension_semantics<parallel>], iteration_bounds = array<i64: 1>, scalar_prefetch = 0 : i64, scratch_operands = 0 : i64, tpu.core_type = #tpu.core_type<tc>, window_params = [{transform_indices = @transform_0, window_bounds = array<i64: 2, 4096>}, {pipeline_mode = #tpu.pipeline_mode<synchronous>, transform_indices = @transform_1, window_bounds = array<i64: 4096, 64>}, {pipeline_mode = #tpu.pipeline_mode<synchronous>, transform_indices = @transform_2, window_bounds = array<i64: 1, 64>}, {pipeline_mode = #tpu.pipeline_mode<synchronous>, transform_indices = @transform_3, window_bounds = array<i64: 64, 128>}, {pipeline_mode = #tpu.pipeline_mode<synchronous>, transform_indices = @transform_4, window_bounds = array<i64: 1, 128>}, {transform_indices = @transform_5, window_bounds = array<i64: 2, 128>}]} {
    %c0 = arith.constant 0 : index
    %c0_0 = arith.constant 0 : index
    %0 = vector.load %arg1[%c0, %c0_0] : memref<2x4096xbf16, #tpu.memory_space<vmem>>, vector<2x4096xbf16>
    %c0_1 = arith.constant 0 : index
    %c0_2 = arith.constant 0 : index
    %1 = vector.load %arg2[%c0_1, %c0_2] : memref<4096x64xbf16, #tpu.memory_space<vmem>>, vector<4096x64xbf16>
    %cst = arith.constant dense<0.000000e+00> : vector<2x64xf32>
    %2 = tpu.matmul %0, %1, %cst {dimension_numbers = #tpu.dot_dimension_numbers<[1], [0], [0], [1], [0, 0, 1, 1], [], []>} : vector<2x4096xbf16>, vector<4096x64xbf16>, vector<2x64xf32> -> vector<2x64xf32>
    %c0_3 = arith.constant 0 : index
    %c0_4 = arith.constant 0 : index
    %3 = vector.load %arg3[%c0_3, %c0_4] : memref<1x64xf32, #tpu.memory_space<vmem>>, vector<1x64xf32>
    %4 = vector.broadcast %3 : vector<1x64xf32> to vector<2x64xf32>
    %5 = arith.addf %2, %4 : vector<2x64xf32>
    %cst_5 = arith.constant 0.000000e+00 : f32
    %6 = vector.broadcast %cst_5 : f32 to vector<2x64xf32>
    %7 = arith.maximumf %5, %6 : vector<2x64xf32>
    %8 = arith.truncf %7 : vector<2x64xf32> to vector<2x64xbf16>
    %c0_6 = arith.constant 0 : index
    %c0_7 = arith.constant 0 : index
    %9 = vector.load %arg4[%c0_6, %c0_7] : memref<64x128xbf16, #tpu.memory_space<vmem>>, vector<64x128xbf16>
    %cst_8 = arith.constant dense<0.000000e+00> : vector<2x128xf32>
    %10 = tpu.matmul %8, %9, %cst_8 {dimension_numbers = #tpu.dot_dimension_numbers<[1], [0], [0], [1], [0, 0, 1, 1], [], []>} : vector<2x64xbf16>, vector<64x128xbf16>, vector<2x128xf32> -> vector<2x128xf32>
    %c0_9 = arith.constant 0 : index
    %c0_10 = arith.constant 0 : index
    %11 = vector.load %arg5[%c0_9, %c0_10] : memref<1x128xf32, #tpu.memory_space<vmem>>, vector<1x128xf32>
    %12 = vector.broadcast %11 : vector<1x128xf32> to vector<2x128xf32>
    %13 = arith.addf %10, %12 : vector<2x128xf32>
    %c0_11 = arith.constant 0 : index
    %c0_12 = arith.constant 0 : index
    %14 = vector.load %arg6[%c0_11, %c0_12] : memref<2x128xf32, #tpu.memory_space<vmem>>, vector<2x128xf32>
    tpu.vector_store %arg6[%c0_11, %c0_12], %13 {strides = array<i32>} : memref<2x128xf32, #tpu.memory_space<vmem>>, vector<2x128xf32>,
    return
  }
  func.func @transform_0(%arg0: i32) -> (i32, i32) {
    %c0_i32 = arith.constant 0 : i32
    %c0_i32_0 = arith.constant 0 : i32
    return %arg0, %c0_i32 : i32, i32
  }
  func.func @transform_1(%arg0: i32) -> (i32, i32) {
    %c0_i32 = arith.constant 0 : i32
    %c0_i32_0 = arith.constant 0 : i32
    %c0_i32_1 = arith.constant 0 : i32
    return %c0_i32, %c0_i32_0 : i32, i32
  }
  func.func @transform_2(%arg0: i32) -> (i32, i32) {
    %c0_i32 = arith.constant 0 : i32
    %c0_i32_0 = arith.constant 0 : i32
    %c0_i32_1 = arith.constant 0 : i32
    return %c0_i32, %c0_i32_0 : i32, i32
  }
  func.func @transform_3(%arg0: i32) -> (i32, i32) {
    %c0_i32 = arith.constant 0 : i32
    %c0_i32_0 = arith.constant 0 : i32
    %c0_i32_1 = arith.constant 0 : i32
    return %c0_i32, %c0_i32_0 : i32, i32
  }
  func.func @transform_4(%arg0: i32) -> (i32, i32) {
    %c0_i32 = arith.constant 0 : i32
    %c0_i32_0 = arith.constant 0 : i32
    %c0_i32_1 = arith.constant 0 : i32
    return %c0_i32, %c0_i32_0 : i32, i32
  }
  func.func @transform_5(%arg0: i32) -> (i32, i32) {
    %c0_i32 = arith.constant 0 : i32
    %c0_i32_0 = arith.constant 0 : i32
    return %arg0, %c0_i32 : i32, i32
  }
}

</mosaic_0001>

<llo_original>
// kernel: cnn_forward.3
$region0: #{cnn_forward.3}
  #allocation0 [shape = 'u32[]', space=smem, size = 0x4, offset = 0x4, fixed_abs, tag = 'smem constant byte address 0x4 - core index']
  #allocation1 [shape = 'u32[72,128]{1,0:T(1,128)}', space=vmem, size = 0x9000, scoped, tag = 'internal scratch']
  %s0 = inlined_call_operand.vmem [shape: bf16[2,4096], index: 0, kind: input, shape index: {}]
  %s1 = inlined_call_operand.vmem [shape: bf16[4096,64], index: 1, kind: input, shape index: {}]
  %s2 = inlined_call_operand.vmem [shape: f32[1,64], index: 2, kind: input, shape index: {}]
  %s3 = inlined_call_operand.vmem [shape: bf16[64,128], index: 3, kind: input, shape index: {}]
  %s4 = inlined_call_operand.vmem [shape: f32[1,128], index: 4, kind: input, shape index: {}]
  %s5 = inlined_call_operand.hbm [shape: f32[2,128], index: 5, kind: output, shape index: {}]
  %s6 = sld [smem:[#allocation0]]
  $region30: #{cnn_forward.3} parent=0
    _
  %s8 = ssub.s32 1, %s6
  %s9 = scalar_select 0, %s8, %s6
  $region1: #{cnn_forward.3} parent=0
    #allocation2 [shape = 'u8[1024]{0}', space=vmem, size = 0x400, scoped, tag = 'output window, operand 0, single buffered']
    #allocation3 [shape = 's32[1]{0}', space=sflag, size = 0x4, scoped, tag = 'scoped memory for cnn_forward.3']
    %10 = vsyncpa [#allocation3], 0
    // Predicated region
    $region2: #{cnn_forward.3} parent=1 // pred_check
      _
    $region3: #{cnn_forward.3} parent=1 // pred_check_branch
      %12 = sbr.rel (0) target = $region5
    $region4: #{cnn_forward.3} parent=1 // pred_region
      _
    $region5: #{cnn_forward.3} parent=1 // pred_fallthru
      _
    // Predicated region
    $region6: #{cnn_forward.3} parent=1 // pred_check
      _
    $region7: #{cnn_forward.3} parent=1 // pred_check_branch
      %14 = sbr.rel (0) target = $region9
    $region8: #{cnn_forward.3} parent=1 // pred_region
      _
    $region9: #{cnn_forward.3} parent=1 // pred_fallthru
      _
    // Predicated region
    $region10: #{cnn_forward.3} parent=1 // pred_check
      _
    $region11: #{cnn_forward.3} parent=1 // pred_check_branch
      %16 = sbr.rel (0) target = $region13
    $region12: #{cnn_forward.3} parent=1 // pred_region
      _
    $region13: #{cnn_forward.3} parent=1 // pred_fallthru
      _
    // Predicated region
    $region14: #{cnn_forward.3} parent=1 // pred_check
      _
    $region15: #{cnn_forward.3} parent=1 // pred_check_branch
      %18 = sbr.rel (0) target = $region17
    $region16: #{cnn_forward.3} parent=1 // pred_region
      _
    $region17: #{cnn_forward.3} parent=1 // pred_fallthru
      _
    // Predicated region
    $region18: #{cnn_forward.3} parent=1 // pred_check
      _
    $region19: #{cnn_forward.3} parent=1 // pred_check_branch
      %20 = sbr.rel (0) target = $region21
    $region20: #{cnn_forward.3} parent=1 // pred_region
      _
    $region21: #{cnn_forward.3} parent=1 // pred_fallthru
      _
    %v22 = vld [vmem:[%s0] sm:$0xff]
    %v23 = vld [vmem:[%s0 + $0x8] sm:$0xff]
    %v24 = vld [vmem:[%s0 + $0x10] sm:$0xff]
    %v25 = vld [vmem:[%s0 + $0x18] sm:$0xff]
    %v26 = vld [vmem:[%s1] sm:$0xf]
    %v27 = vld [vmem:[%s1 + $0x4] sm:$0xf]
    %v28 = vld [vmem:[%s1 + $0x8] sm:$0xf]
    %v29 = vld [vmem:[%s1 + $0xc] sm:$0xf]
    %v30 = vld [vmem:[%s1 + $0x10] sm:$0xf]
    %v31 = vld [vmem:[%s1 + $0x14] sm:$0xf]
    %v32 = vld [vmem:[%s1 + $0x18] sm:$0xf]
    %v33 = vld [vmem:[%s1 + $0x1c] sm:$0xf]
    %v34 = vld [vmem:[%s1 + $0x20] sm:$0xf]
    %v35 = vld [vmem:[%s1 + $0x24] sm:$0xf]
    %v36 = vld [vmem:[%s1 + $0x28] sm:$0xf]
    %v37 = vld [vmem:[%s1 + $0x2c] sm:$0xf]
    %v38 = vld [vmem:[%s1 + $0x30] sm:$0xf]
    %v39 = vld [vmem:[%s1 + $0x34] sm:$0xf]
    %v40 = vld [vmem:[%s1 + $0x38] sm:$0xf]
    %v41 = vld [vmem:[%s1 + $0x3c] sm:$0xf]
    %v42 = vld [vmem:[%s1 + $0x40] sm:$0xf]
    %v43 = vld [vmem:[%s1 + $0x44] sm:$0xf]
    %v44 = vld [vmem:[%s1 + $0x48] sm:$0xf]
    %v45 = vld [vmem:[%s1 + $0x4c] sm:$0xf]
    %v46 = vld [vmem:[%s1 + $0x50] sm:$0xf]
    %v47 = vld [vmem:[%s1 + $0x54] sm:$0xf]
    %v48 = vld [vmem:[%s1 + $0x58] sm:$0xf]
    %v49 = vld [vmem:[%s1 + $0x5c] sm:$0xf]
    %v50 = vld [vmem:[%s1 + $0x60] sm:$0xf]
    %v51 = vld [vmem:[%s1 + $0x64] sm:$0xf]
    %v52 = vld [vmem:[%s1 + $0x68] sm:$0xf]
    %v53 = vld [vmem:[%s1 + $0x6c] sm:$0xf]
    %v54 = vld [vmem:[%s1 + $0x70] sm:$0xf]
    %v55 = vld [vmem:[%s1 + $0x74] sm:$0xf]
    %v56 = vld [vmem:[%s1 + $0x78] sm:$0xf]
    %v57 = vld [vmem:[%s1 + $0x7c] sm:$0xf]
    %v58 = vld [vmem:[%s1 + $0x80] sm:$0xf]
    %v59 = vld [vmem:[%s1 + $0x84] sm:$0xf]
    %v60 = vld [vmem:[%s1 + $0x88] sm:$0xf]
    %v61 = vld [vmem:[%s1 + $0x8c] sm:$0xf]
    %v62 = vld [vmem:[%s1 + $0x90] sm:$0xf]
    %v63 = vld [vmem:[%s1 + $0x94] sm:$0xf]
    %v64 = vld [vmem:[%s1 + $0x98] sm:$0xf]
    %v65 = vld [vmem:[%s1 + $0x9c] sm:$0xf]
    %v66 = vld [vmem:[%s1 + $0xa0] sm:$0xf]
    %v67 = vld [vmem:[%s1 + $0xa4] sm:$0xf]
    %v68 = vld [vmem:[%s1 + $0xa8] sm:$0xf]
    %v69 = vld [vmem:[%s1 + $0xac] sm:$0xf]
    %v70 = vld [vmem:[%s1 + $0xb0] sm:$0xf]
    %v71 = vld [vmem:[%s1 + $0xb4] sm:$0xf]
    %v72 = vld [vmem:[%s1 + $0xb8] sm:$0xf]
    %v73 = vld [vmem:[%s1 + $0xbc] sm:$0xf]
    %v74 = vld [vmem:[%s1 + $0xc0] sm:$0xf]
    %v75 = vld [vmem:[%s1 + $0xc4] sm:$0xf]
    %v76 = vld [vmem:[%s1 + $0xc8] sm:$0xf]
    %v77 = vld [vmem:[%s1 + $0xcc] sm:$0xf]
    %v78 = vld [vmem:[%s1 + $0xd0] sm:$0xf]
    %v79 = vld [vmem:[%s1 + $0xd4] sm:$0xf]
    %v80 = vld [vmem:[%s1 + $0xd8] sm:$0xf]
    %v81 = vld [vmem:[%s1 + $0xdc] sm:$0xf]
    %v82 = vld [vmem:[%s1 + $0xe0] sm:$0xf]
    %v83 = vld [vmem:[%s1 + $0xe4] sm:$0xf]
    %v84 = vld [vmem:[%s1 + $0xe8] sm:$0xf]
    %v85 = vld [vmem:[%s1 + $0xec] sm:$0xf]
    %v86 = vld [vmem:[%s1 + $0xf0] sm:$0xf]
    %v87 = vld [vmem:[%s1 + $0xf4] sm:$0xf]
    %v88 = vld [vmem:[%s1 + $0xf8] sm:$0xf]
    %v89 = vld [vmem:[%s1 + $0xfc] sm:$0xf]
    %v90 = vld [vmem:[%s1 + $0x100] sm:$0xf]
    %v91 = vld [vmem:[%s1 + $0x104] sm:$0xf]
    %v92 = vld [vmem:[%s1 + $0x108] sm:$0xf]
    %v93 = vld [vmem:[%s1 + $0x10c] sm:$0xf]
    %v94 = vld [vmem:[%s1 + $0x110] sm:$0xf]
    %v95 = vld [vmem:[%s1 + $0x114] sm:$0xf]
    %v96 = vld [vmem:[%s1 + $0x118] sm:$0xf]
    %v97 = vld [vmem:[%s1 + $0x11c] sm:$0xf]
    %v98 = vld [vmem:[%s1 + $0x120] sm:$0xf]
    %v99 = vld [vmem:[%s1 + $0x124] sm:$0xf]
    %v100 = vld [vmem:[%s1 + $0x128] sm:$0xf]
    %v101 = vld [vmem:[%s1 + $0x12c] sm:$0xf]
    %v102 = vld [vmem:[%s1 + $0x130] sm:$0xf]
    %v103 = vld [vmem:[%s1 + $0x134] sm:$0xf]
    %v104 = vld [vmem:[%s1 + $0x138] sm:$0xf]
    %v105 = vld [vmem:[%s1 + $0x13c] sm:$0xf]
    %v106 = vld [vmem:[%s1 + $0x140] sm:$0xf]
    %v107 = vld [vmem:[%s1 + $0x144] sm:$0xf]
    %v108 = vld [vmem:[%s1 + $0x148] sm:$0xf]
    %v109 = vld [vmem:[%s1 + $0x14c] sm:$0xf]
    %v110 = vld [vmem:[%s1 + $0x150] sm:$0xf]
    %v111 = vld [vmem:[%s1 + $0x154] sm:$0xf]
    %v112 = vld [vmem:[%s1 + $0x158] sm:$0xf]
    %v113 = vld [vmem:[%s1 + $0x15c] sm:$0xf]
    %v114 = vld [vmem:[%s1 + $0x160] sm:$0xf]
    %v115 = vld [vmem:[%s1 + $0x164] sm:$0xf]
    %v116 = vld [vmem:[%s1 + $0x168] sm:$0xf]
    %v117 = vld [vmem:[%s1 + $0x16c] sm:$0xf]
    %v118 = vld [vmem:[%s1 + $0x170] sm:$0xf]
    %v119 = vld [vmem:[%s1 + $0x174] sm:$0xf]
    %v120 = vld [vmem:[%s1 + $0x178] sm:$0xf]
    %v121 = vld [vmem:[%s1 + $0x17c] sm:$0xf]
    %v122 = vld [vmem:[%s1 + $0x180] sm:$0xf]
    %v123 = vld [vmem:[%s1 + $0x184] sm:$0xf]
    %v124 = vld [vmem:[%s1 + $0x188] sm:$0xf]
    %v125 = vld [vmem:[%s1 + $0x18c] sm:$0xf]
    %v126 = vld [vmem:[%s1 + $0x190] sm:$0xf]
    %v127 = vld [vmem:[%s1 + $0x194] sm:$0xf]
    %v128 = vld [vmem:[%s1 + $0x198] sm:$0xf]
    %v129 = vld [vmem:[%s1 + $0x19c] sm:$0xf]
    %v130 = vld [vmem:[%s1 + $0x1a0] sm:$0xf]
    %v131 = vld [vmem:[%s1 + $0x1a4] sm:$0xf]
    %v132 = vld [vmem:[%s1 + $0x1a8] sm:$0xf]
    %v133 = vld [vmem:[%s1 + $0x1ac] sm:$0xf]
    %v134 = vld [vmem:[%s1 + $0x1b0] sm:$0xf]
    %v135 = vld [vmem:[%s1 + $0x1b4] sm:$0xf]
    %v136 = vld [vmem:[%s1 + $0x1b8] sm:$0xf]
    %v137 = vld [vmem:[%s1 + $0x1bc] sm:$0xf]
    %v138 = vld [vmem:[%s1 + $0x1c0] sm:$0xf]
    %v139 = vld [vmem:[%s1 + $0x1c4] sm:$0xf]
    %v140 = vld [vmem:[%s1 + $0x1c8] sm:$0xf]
    %v141 = vld [vmem:[%s1 + $0x1cc] sm:$0xf]
    %v142 = vld [vmem:[%s1 + $0x1d0] sm:$0xf]
    %v143 = vld [vmem:[%s1 + $0x1d4] sm:$0xf]
    %v144 = vld [vmem:[%s1 + $0x1d8] sm:$0xf]
    %v145 = vld [vmem:[%s1 + $0x1dc] sm:$0xf]
    %v146 = vld [vmem:[%s1 + $0x1e0] sm:$0xf]
    %v147 = vld [vmem:[%s1 + $0x1e4] sm:$0xf]
    %v148 = vld [vmem:[%s1 + $0x1e8] sm:$0xf]
    %v149 = vld [vmem:[%s1 + $0x1ec] sm:$0xf]
    %v150 = vld [vmem:[%s1 + $0x1f0] sm:$0xf]
    %v151 = vld [vmem:[%s1 + $0x1f4] sm:$0xf]
    %v152 = vld [vmem:[%s1 + $0x1f8] sm:$0xf]
    %v153 = vld [vmem:[%s1 + $0x1fc] sm:$0xf]
    %v154 = vld [vmem:[%s1 + $0x200] sm:$0xf]
    %v155 = vld [vmem:[%s1 + $0x204] sm:$0xf]
    %v156 = vld [vmem:[%s1 + $0x208] sm:$0xf]
    %v157 = vld [vmem:[%s1 + $0x20c] sm:$0xf]
    %v158 = vld [vmem:[%s1 + $0x210] sm:$0xf]
    %v159 = vld [vmem:[%s1 + $0x214] sm:$0xf]
    %v160 = vld [vmem:[%s1 + $0x218] sm:$0xf]
    %v161 = vld [vmem:[%s1 + $0x21c] sm:$0xf]
    %v162 = vld [vmem:[%s1 + $0x220] sm:$0xf]
    %v163 = vld [vmem:[%s1 + $0x224] sm:$0xf]
    %v164 = vld [vmem:[%s1 + $0x228] sm:$0xf]
    %v165 = vld [vmem:[%s1 + $0x22c] sm:$0xf]
    %v166 = vld [vmem:[%s1 + $0x230] sm:$0xf]
    %v167 = vld [vmem:[%s1 + $0x234] sm:$0xf]
    %v168 = vld [vmem:[%s1 + $0x238] sm:$0xf]
    %v169 = vld [vmem:[%s1 + $0x23c] sm:$0xf]
    %v170 = vld [vmem:[%s1 + $0x240] sm:$0xf]
    %v171 = vld [vmem:[%s1 + $0x244] sm:$0xf]
    %v172 = vld [vmem:[%s1 + $0x248] sm:$0xf]
    %v173 = vld [vmem:[%s1 + $0x24c] sm:$0xf]
    %v174 = vld [vmem:[%s1 + $0x250] sm:$0xf]
    %v175 = vld [vmem:[%s1 + $0x254] sm:$0xf]
    %v176 = vld [vmem:[%s1 + $0x258] sm:$0xf]
    %v177 = vld [vmem:[%s1 + $0x25c] sm:$0xf]
    %v178 = vld [vmem:[%s1 + $0x260] sm:$0xf]
    %v179 = vld [vmem:[%s1 + $0x264] sm:$0xf]
    %v180 = vld [vmem:[%s1 + $0x268] sm:$0xf]
    %v181 = vld [vmem:[%s1 + $0x26c] sm:$0xf]
    %v182 = vld [vmem:[%s1 + $0x270] sm:$0xf]
    %v183 = vld [vmem:[%s1 + $0x274] sm:$0xf]
    %v184 = vld [vmem:[%s1 + $0x278] sm:$0xf]
    %v185 = vld [vmem:[%s1 + $0x27c] sm:$0xf]
    %v186 = vld [vmem:[%s1 + $0x280] sm:$0xf]
    %v187 = vld [vmem:[%s1 + $0x284] sm:$0xf]
    %v188 = vld [vmem:[%s1 + $0x288] sm:$0xf]
    %v189 = vld [vmem:[%s1 + $0x28c] sm:$0xf]
    %v190 = vld [vmem:[%s1 + $0x290] sm:$0xf]
    %v191 = vld [vmem:[%s1 + $0x294] sm:$0xf]
    %v192 = vld [vmem:[%s1 + $0x298] sm:$0xf]
    %v193 = vld [vmem:[%s1 + $0x29c] sm:$0xf]
    %v194 = vld [vmem:[%s1 + $0x2a0] sm:$0xf]
    %v195 = vld [vmem:[%s1 + $0x2a4] sm:$0xf]
    %v196 = vld [vmem:[%s1 + $0x2a8] sm:$0xf]
    %v197 = vld [vmem:[%s1 + $0x2ac] sm:$0xf]
    %v198 = vld [vmem:[%s1 + $0x2b0] sm:$0xf]
    %v199 = vld [vmem:[%s1 + $0x2b4] sm:$0xf]
    %v200 = vld [vmem:[%s1 + $0x2b8] sm:$0xf]
    %v201 = vld [vmem:[%s1 + $0x2bc] sm:$0xf]
    %v202 = vld [vmem:[%s1 + $0x2c0] sm:$0xf]
    %v203 = vld [vmem:[%s1 + $0x2c4] sm:$0xf]
    %v204 = vld [vmem:[%s1 + $0x2c8] sm:$0xf]
    %v205 = vld [vmem:[%s1 + $0x2cc] sm:$0xf]
    %v206 = vld [vmem:[%s1 + $0x2d0] sm:$0xf]
    %v207 = vld [vmem:[%s1 + $0x2d4] sm:$0xf]
    %v208 = vld [vmem:[%s1 + $0x2d8] sm:$0xf]
    %v209 = vld [vmem:[%s1 + $0x2dc] sm:$0xf]
    %v210 = vld [vmem:[%s1 + $0x2e0] sm:$0xf]
    %v211 = vld [vmem:[%s1 + $0x2e4] sm:$0xf]
    %v212 = vld [vmem:[%s1 + $0x2e8] sm:$0xf]
    %v213 = vld [vmem:[%s1 + $0x2ec] sm:$0xf]
    %v214 = vld [vmem:[%s1 + $0x2f0] sm:$0xf]
    %v215 = vld [vmem:[%s1 + $0x2f4] sm:$0xf]
    %v216 = vld [vmem:[%s1 + $0x2f8] sm:$0xf]
    %v217 = vld [vmem:[%s1 + $0x2fc] sm:$0xf]
    %v218 = vld [vmem:[%s1 + $0x300] sm:$0xf]
    %v219 = vld [vmem:[%s1 + $0x304] sm:$0xf]
    %v220 = vld [vmem:[%s1 + $0x308] sm:$0xf]
    %v221 = vld [vmem:[%s1 + $0x30c] sm:$0xf]
    %v222 = vld [vmem:[%s1 + $0x310] sm:$0xf]
    %v223 = vld [vmem:[%s1 + $0x314] sm:$0xf]
    %v224 = vld [vmem:[%s1 + $0x318] sm:$0xf]
    %v225 = vld [vmem:[%s1 + $0x31c] sm:$0xf]
    %v226 = vld [vmem:[%s1 + $0x320] sm:$0xf]
    %v227 = vld [vmem:[%s1 + $0x324] sm:$0xf]
    %v228 = vld [vmem:[%s1 + $0x328] sm:$0xf]
    %v229 = vld [vmem:[%s1 + $0x32c] sm:$0xf]
    %v230 = vld [vmem:[%s1 + $0x330] sm:$0xf]
    %v231 = vld [vmem:[%s1 + $0x334] sm:$0xf]
    %v232 = vld [vmem:[%s1 + $0x338] sm:$0xf]
    %v233 = vld [vmem:[%s1 + $0x33c] sm:$0xf]
    %v234 = vld [vmem:[%s1 + $0x340] sm:$0xf]
    %v235 = vld [vmem:[%s1 + $0x344] sm:$0xf]
    %v236 = vld [vmem:[%s1 + $0x348] sm:$0xf]
    %v237 = vld [vmem:[%s1 + $0x34c] sm:$0xf]
    %v238 = vld [vmem:[%s1 + $0x350] sm:$0xf]
    %v239 = vld [vmem:[%s1 + $0x354] sm:$0xf]
    %v240 = vld [vmem:[%s1 + $0x358] sm:$0xf]
    %v241 = vld [vmem:[%s1 + $0x35c] sm:$0xf]
    %v242 = vld [vmem:[%s1 + $0x360] sm:$0xf]
    %v243 = vld [vmem:[%s1 + $0x364] sm:$0xf]
    %v244 = vld [vmem:[%s1 + $0x368] sm:$0xf]
    %v245 = vld [vmem:[%s1 + $0x36c] sm:$0xf]
    %v246 = vld [vmem:[%s1 + $0x370] sm:$0xf]
    %v247 = vld [vmem:[%s1 + $0x374] sm:$0xf]
    %v248 = vld [vmem:[%s1 + $0x378] sm:$0xf]
    %v249 = vld [vmem:[%s1 + $0x37c] sm:$0xf]
    %v250 = vld [vmem:[%s1 + $0x380] sm:$0xf]
    %v251 = vld [vmem:[%s1 + $0x384] sm:$0xf]
    %v252 = vld [vmem:[%s1 + $0x388] sm:$0xf]
    %v253 = vld [vmem:[%s1 + $0x38c] sm:$0xf]
    %v254 = vld [vmem:[%s1 + $0x390] sm:$0xf]
    %v255 = vld [vmem:[%s1 + $0x394] sm:$0xf]
    %v256 = vld [vmem:[%s1 + $0x398] sm:$0xf]
    %v257 = vld [vmem:[%s1 + $0x39c] sm:$0xf]
    %v258 = vld [vmem:[%s1 + $0x3a0] sm:$0xf]
    %v259 = vld [vmem:[%s1 + $0x3a4] sm:$0xf]
    %v260 = vld [vmem:[%s1 + $0x3a8] sm:$0xf]
    %v261 = vld [vmem:[%s1 + $0x3ac] sm:$0xf]
    %v262 = vld [vmem:[%s1 + $0x3b0] sm:$0xf]
    %v263 = vld [vmem:[%s1 + $0x3b4] sm:$0xf]
    %v264 = vld [vmem:[%s1 + $0x3b8] sm:$0xf]
    %v265 = vld [vmem:[%s1 + $0x3bc] sm:$0xf]
    %v266 = vld [vmem:[%s1 + $0x3c0] sm:$0xf]
    %v267 = vld [vmem:[%s1 + $0x3c4] sm:$0xf]
    %v268 = vld [vmem:[%s1 + $0x3c8] sm:$0xf]
    %v269 = vld [vmem:[%s1 + $0x3cc] sm:$0xf]
    %v270 = vld [vmem:[%s1 + $0x3d0] sm:$0xf]
    %v271 = vld [vmem:[%s1 + $0x3d4] sm:$0xf]
    %v272 = vld [vmem:[%s1 + $0x3d8] sm:$0xf]
    %v273 = vld [vmem:[%s1 + $0x3dc] sm:$0xf]
    %v274 = vld [vmem:[%s1 + $0x3e0] sm:$0xf]
    %v275 = vld [vmem:[%s1 + $0x3e4] sm:$0xf]
    %v276 = vld [vmem:[%s1 + $0x3e8] sm:$0xf]
    %v277 = vld [vmem:[%s1 + $0x3ec] sm:$0xf]
    %v278 = vld [vmem:[%s1 + $0x3f0] sm:$0xf]
    %v279 = vld [vmem:[%s1 + $0x3f4] sm:$0xf]
    %v280 = vld [vmem:[%s1 + $0x3f8] sm:$0xf]
    %v281 = vld [vmem:[%s1 + $0x3fc] sm:$0xf]
    %v282 = vld [vmem:[%s1 + $0x400] sm:$0xf]
    %v283 = vld [vmem:[%s1 + $0x404] sm:$0xf]
    %v284 = vld [vmem:[%s1 + $0x408] sm:$0xf]
    %v285 = vld [vmem:[%s1 + $0x40c] sm:$0xf]
    %v286 = vld [vmem:[%s1 + $0x410] sm:$0xf]
    %v287 = vld [vmem:[%s1 + $0x414] sm:$0xf]
    %v288 = vld [vmem:[%s1 + $0x418] sm:$0xf]
    %v289 = vld [vmem:[%s1 + $0x41c] sm:$0xf]
    %v290 = vld [vmem:[%s1 + $0x420] sm:$0xf]
    %v291 = vld [vmem:[%s1 + $0x424] sm:$0xf]
    %v292 = vld [vmem:[%s1 + $0x428] sm:$0xf]
    %v293 = vld [vmem:[%s1 + $0x42c] sm:$0xf]
    %v294 = vld [vmem:[%s1 + $0x430] sm:$0xf]
    %v295 = vld [vmem:[%s1 + $0x434] sm:$0xf]
    %v296 = vld [vmem:[%s1 + $0x438] sm:$0xf]
    %v297 = vld [vmem:[%s1 + $0x43c] sm:$0xf]
    %v298 = vld [vmem:[%s1 + $0x440] sm:$0xf]
    %v299 = vld [vmem:[%s1 + $0x444] sm:$0xf]
    %v300 = vld [vmem:[%s1 + $0x448] sm:$0xf]
    %v301 = vld [vmem:[%s1 + $0x44c] sm:$0xf]
    %v302 = vld [vmem:[%s1 + $0x450] sm:$0xf]
    %v303 = vld [vmem:[%s1 + $0x454] sm:$0xf]
    %v304 = vld [vmem:[%s1 + $0x458] sm:$0xf]
    %v305 = vld [vmem:[%s1 + $0x45c] sm:$0xf]
    %v306 = vld [vmem:[%s1 + $0x460] sm:$0xf]
    %v307 = vld [vmem:[%s1 + $0x464] sm:$0xf]
    %v308 = vld [vmem:[%s1 + $0x468] sm:$0xf]
    %v309 = vld [vmem:[%s1 + $0x46c] sm:$0xf]
    %v310 = vld [vmem:[%s1 + $0x470] sm:$0xf]
    %v311 = vld [vmem:[%s1 + $0x474] sm:$0xf]
    %v312 = vld [vmem:[%s1 + $0x478] sm:$0xf]
    %v313 = vld [vmem:[%s1 + $0x47c] sm:$0xf]
    %v314 = vld [vmem:[%s1 + $0x480] sm:$0xf]
    %v315 = vld [vmem:[%s1 + $0x484] sm:$0xf]
    %v316 = vld [vmem:[%s1 + $0x488] sm:$0xf]
    %v317 = vld [vmem:[%s1 + $0x48c] sm:$0xf]
    %v318 = vld [vmem:[%s1 + $0x490] sm:$0xf]
    %v319 = vld [vmem:[%s1 + $0x494] sm:$0xf]
    %v320 = vld [vmem:[%s1 + $0x498] sm:$0xf]
    %v321 = vld [vmem:[%s1 + $0x49c] sm:$0xf]
    %v322 = vld [vmem:[%s1 + $0x4a0] sm:$0xf]
    %v323 = vld [vmem:[%s1 + $0x4a4] sm:$0xf]
    %v324 = vld [vmem:[%s1 + $0x4a8] sm:$0xf]
    %v325 = vld [vmem:[%s1 + $0x4ac] sm:$0xf]
    %v326 = vld [vmem:[%s1 + $0x4b0] sm:$0xf]
    %v327 = vld [vmem:[%s1 + $0x4b4] sm:$0xf]
    %v328 = vld [vmem:[%s1 + $0x4b8] sm:$0xf]
    %v329 = vld [vmem:[%s1 + $0x4bc] sm:$0xf]
    %v330 = vld [vmem:[%s1 + $0x4c0] sm:$0xf]
    %v331 = vld [vmem:[%s1 + $0x4c4] sm:$0xf]
    %v332 = vld [vmem:[%s1 + $0x4c8] sm:$0xf]
    %v333 = vld [vmem:[%s1 + $0x4cc] sm:$0xf]
    %v334 = vld [vmem:[%s1 + $0x4d0] sm:$0xf]
    %v335 = vld [vmem:[%s1 + $0x4d4] sm:$0xf]
    %v336 = vld [vmem:[%s1 + $0x4d8] sm:$0xf]
    %v337 = vld [vmem:[%s1 + $0x4dc] sm:$0xf]
    %v338 = vld [vmem:[%s1 + $0x4e0] sm:$0xf]
    %v339 = vld [vmem:[%s1 + $0x4e4] sm:$0xf]
    %v340 = vld [vmem:[%s1 + $0x4e8] sm:$0xf]
    %v341 = vld [vmem:[%s1 + $0x4ec] sm:$0xf]
    %v342 = vld [vmem:[%s1 + $0x4f0] sm:$0xf]
    %v343 = vld [vmem:[%s1 + $0x4f4] sm:$0xf]
    %v344 = vld [vmem:[%s1 + $0x4f8] sm:$0xf]
    %v345 = vld [vmem:[%s1 + $0x4fc] sm:$0xf]
    %v346 = vld [vmem:[%s1 + $0x500] sm:$0xf]
    %v347 = vld [vmem:[%s1 + $0x504] sm:$0xf]
    %v348 = vld [vmem:[%s1 + $0x508] sm:$0xf]
    %v349 = vld [vmem:[%s1 + $0x50c] sm:$0xf]
    %v350 = vld [vmem:[%s1 + $0x510] sm:$0xf]
    %v351 = vld [vmem:[%s1 + $0x514] sm:$0xf]
    %v352 = vld [vmem:[%s1 + $0x518] sm:$0xf]
    %v353 = vld [vmem:[%s1 + $0x51c] sm:$0xf]
    %v354 = vld [vmem:[%s1 + $0x520] sm:$0xf]
    %v355 = vld [vmem:[%s1 + $0x524] sm:$0xf]
    %v356 = vld [vmem:[%s1 + $0x528] sm:$0xf]
    %v357 = vld [vmem:[%s1 + $0x52c] sm:$0xf]
    %v358 = vld [vmem:[%s1 + $0x530] sm:$0xf]
    %v359 = vld [vmem:[%s1 + $0x534] sm:$0xf]
    %v360 = vld [vmem:[%s1 + $0x538] sm:$0xf]
    %v361 = vld [vmem:[%s1 + $0x53c] sm:$0xf]
    %v362 = vld [vmem:[%s1 + $0x540] sm:$0xf]
    %v363 = vld [vmem:[%s1 + $0x544] sm:$0xf]
    %v364 = vld [vmem:[%s1 + $0x548] sm:$0xf]
    %v365 = vld [vmem:[%s1 + $0x54c] sm:$0xf]
    %v366 = vld [vmem:[%s1 + $0x550] sm:$0xf]
    %v367 = vld [vmem:[%s1 + $0x554] sm:$0xf]
    %v368 = vld [vmem:[%s1 + $0x558] sm:$0xf]
    %v369 = vld [vmem:[%s1 + $0x55c] sm:$0xf]
    %v370 = vld [vmem:[%s1 + $0x560] sm:$0xf]
    %v371 = vld [vmem:[%s1 + $0x564] sm:$0xf]
    %v372 = vld [vmem:[%s1 + $0x568] sm:$0xf]
    %v373 = vld [vmem:[%s1 + $0x56c] sm:$0xf]
    %v374 = vld [vmem:[%s1 + $0x570] sm:$0xf]
    %v375 = vld [vmem:[%s1 + $0x574] sm:$0xf]
    %v376 = vld [vmem:[%s1 + $0x578] sm:$0xf]
    %v377 = vld [vmem:[%s1 + $0x57c] sm:$0xf]
    %v378 = vld [vmem:[%s1 + $0x580] sm:$0xf]
    %v379 = vld [vmem:[%s1 + $0x584] sm:$0xf]
    %v380 = vld [vmem:[%s1 + $0x588] sm:$0xf]
    %v381 = vld [vmem:[%s1 + $0x58c] sm:$0xf]
    %v382 = vld [vmem:[%s1 + $0x590] sm:$0xf]
    %v383 = vld [vmem:[%s1 + $0x594] sm:$0xf]
    %v384 = vld [vmem:[%s1 + $0x598] sm:$0xf]
    %v385 = vld [vmem:[%s1 + $0x59c] sm:$0xf]
    %v386 = vld [vmem:[%s1 + $0x5a0] sm:$0xf]
    %v387 = vld [vmem:[%s1 + $0x5a4] sm:$0xf]
    %v388 = vld [vmem:[%s1 + $0x5a8] sm:$0xf]
    %v389 = vld [vmem:[%s1 + $0x5ac] sm:$0xf]
    %v390 = vld [vmem:[%s1 + $0x5b0] sm:$0xf]
    %v391 = vld [vmem:[%s1 + $0x5b4] sm:$0xf]
    %v392 = vld [vmem:[%s1 + $0x5b8] sm:$0xf]
    %v393 = vld [vmem:[%s1 + $0x5bc] sm:$0xf]
    %v394 = vld [vmem:[%s1 + $0x5c0] sm:$0xf]
    %v395 = vld [vmem:[%s1 + $0x5c4] sm:$0xf]
    %v396 = vld [vmem:[%s1 + $0x5c8] sm:$0xf]
    %v397 = vld [vmem:[%s1 + $0x5cc] sm:$0xf]
    %v398 = vld [vmem:[%s1 + $0x5d0] sm:$0xf]
    %v399 = vld [vmem:[%s1 + $0x5d4] sm:$0xf]
    %v400 = vld [vmem:[%s1 + $0x5d8] sm:$0xf]
    %v401 = vld [vmem:[%s1 + $0x5dc] sm:$0xf]
    %v402 = vld [vmem:[%s1 + $0x5e0] sm:$0xf]
    %v403 = vld [vmem:[%s1 + $0x5e4] sm:$0xf]
    %v404 = vld [vmem:[%s1 + $0x5e8] sm:$0xf]
    %v405 = vld [vmem:[%s1 + $0x5ec] sm:$0xf]
    %v406 = vld [vmem:[%s1 + $0x5f0] sm:$0xf]
    %v407 = vld [vmem:[%s1 + $0x5f4] sm:$0xf]
    %v408 = vld [vmem:[%s1 + $0x5f8] sm:$0xf]
    %v409 = vld [vmem:[%s1 + $0x5fc] sm:$0xf]
    %v410 = vld [vmem:[%s1 + $0x600] sm:$0xf]
    %v411 = vld [vmem:[%s1 + $0x604] sm:$0xf]
    %v412 = vld [vmem:[%s1 + $0x608] sm:$0xf]
    %v413 = vld [vmem:[%s1 + $0x60c] sm:$0xf]
    %v414 = vld [vmem:[%s1 + $0x610] sm:$0xf]
    %v415 = vld [vmem:[%s1 + $0x614] sm:$0xf]
    %v416 = vld [vmem:[%s1 + $0x618] sm:$0xf]
    %v417 = vld [vmem:[%s1 + $0x61c] sm:$0xf]
    %v418 = vld [vmem:[%s1 + $0x620] sm:$0xf]
    %v419 = vld [vmem:[%s1 + $0x624] sm:$0xf]
    %v420 = vld [vmem:[%s1 + $0x628] sm:$0xf]
    %v421 = vld [vmem:[%s1 + $0x62c] sm:$0xf]
    %v422 = vld [vmem:[%s1 + $0x630] sm:$0xf]
    %v423 = vld [vmem:[%s1 + $0x634] sm:$0xf]
    %v424 = vld [vmem:[%s1 + $0x638] sm:$0xf]
    %v425 = vld [vmem:[%s1 + $0x63c] sm:$0xf]
    %v426 = vld [vmem:[%s1 + $0x640] sm:$0xf]
    %v427 = vld [vmem:[%s1 + $0x644] sm:$0xf]
    %v428 = vld [vmem:[%s1 + $0x648] sm:$0xf]
    %v429 = vld [vmem:[%s1 + $0x64c] sm:$0xf]
    %v430 = vld [vmem:[%s1 + $0x650] sm:$0xf]
    %v431 = vld [vmem:[%s1 + $0x654] sm:$0xf]
    %v432 = vld [vmem:[%s1 + $0x658] sm:$0xf]
    %v433 = vld [vmem:[%s1 + $0x65c] sm:$0xf]
    %v434 = vld [vmem:[%s1 + $0x660] sm:$0xf]
    %v435 = vld [vmem:[%s1 + $0x664] sm:$0xf]
    %v436 = vld [vmem:[%s1 + $0x668] sm:$0xf]
    %v437 = vld [vmem:[%s1 + $0x66c] sm:$0xf]
    %v438 = vld [vmem:[%s1 + $0x670] sm:$0xf]
    %v439 = vld [vmem:[%s1 + $0x674] sm:$0xf]
    %v440 = vld [vmem:[%s1 + $0x678] sm:$0xf]
    %v441 = vld [vmem:[%s1 + $0x67c] sm:$0xf]
    %v442 = vld [vmem:[%s1 + $0x680] sm:$0xf]
    %v443 = vld [vmem:[%s1 + $0x684] sm:$0xf]
    %v444 = vld [vmem:[%s1 + $0x688] sm:$0xf]
    %v445 = vld [vmem:[%s1 + $0x68c] sm:$0xf]
    %v446 = vld [vmem:[%s1 + $0x690] sm:$0xf]
    %v447 = vld [vmem:[%s1 + $0x694] sm:$0xf]
    %v448 = vld [vmem:[%s1 + $0x698] sm:$0xf]
    %v449 = vld [vmem:[%s1 + $0x69c] sm:$0xf]
    %v450 = vld [vmem:[%s1 + $0x6a0] sm:$0xf]
    %v451 = vld [vmem:[%s1 + $0x6a4] sm:$0xf]
    %v452 = vld [vmem:[%s1 + $0x6a8] sm:$0xf]
    %v453 = vld [vmem:[%s1 + $0x6ac] sm:$0xf]
    %v454 = vld [vmem:[%s1 + $0x6b0] sm:$0xf]
    %v455 = vld [vmem:[%s1 + $0x6b4] sm:$0xf]
    %v456 = vld [vmem:[%s1 + $0x6b8] sm:$0xf]
    %v457 = vld [vmem:[%s1 + $0x6bc] sm:$0xf]
    %v458 = vld [vmem:[%s1 + $0x6c0] sm:$0xf]
    %v459 = vld [vmem:[%s1 + $0x6c4] sm:$0xf]
    %v460 = vld [vmem:[%s1 + $0x6c8] sm:$0xf]
    %v461 = vld [vmem:[%s1 + $0x6cc] sm:$0xf]
    %v462 = vld [vmem:[%s1 + $0x6d0] sm:$0xf]
    %v463 = vld [vmem:[%s1 + $0x6d4] sm:$0xf]
    %v464 = vld [vmem:[%s1 + $0x6d8] sm:$0xf]
    %v465 = vld [vmem:[%s1 + $0x6dc] sm:$0xf]
    %v466 = vld [vmem:[%s1 + $0x6e0] sm:$0xf]
    %v467 = vld [vmem:[%s1 + $0x6e4] sm:$0xf]
    %v468 = vld [vmem:[%s1 + $0x6e8] sm:$0xf]
    %v469 = vld [vmem:[%s1 + $0x6ec] sm:$0xf]
    %v470 = vld [vmem:[%s1 + $0x6f0] sm:$0xf]
    %v471 = vld [vmem:[%s1 + $0x6f4] sm:$0xf]
    %v472 = vld [vmem:[%s1 + $0x6f8] sm:$0xf]
    %v473 = vld [vmem:[%s1 + $0x6fc] sm:$0xf]
    %v474 = vld [vmem:[%s1 + $0x700] sm:$0xf]
    %v475 = vld [vmem:[%s1 + $0x704] sm:$0xf]
    %v476 = vld [vmem:[%s1 + $0x708] sm:$0xf]
    %v477 = vld [vmem:[%s1 + $0x70c] sm:$0xf]
    %v478 = vld [vmem:[%s1 + $0x710] sm:$0xf]
    %v479 = vld [vmem:[%s1 + $0x714] sm:$0xf]
    %v480 = vld [vmem:[%s1 + $0x718] sm:$0xf]
    %v481 = vld [vmem:[%s1 + $0x71c] sm:$0xf]
    %v482 = vld [vmem:[%s1 + $0x720] sm:$0xf]
    %v483 = vld [vmem:[%s1 + $0x724] sm:$0xf]
    %v484 = vld [vmem:[%s1 + $0x728] sm:$0xf]
    %v485 = vld [vmem:[%s1 + $0x72c] sm:$0xf]
    %v486 = vld [vmem:[%s1 + $0x730] sm:$0xf]
    %v487 = vld [vmem:[%s1 + $0x734] sm:$0xf]
    %v488 = vld [vmem:[%s1 + $0x738] sm:$0xf]
    %v489 = vld [vmem:[%s1 + $0x73c] sm:$0xf]
    %v490 = vld [vmem:[%s1 + $0x740] sm:$0xf]
    %v491 = vld [vmem:[%s1 + $0x744] sm:$0xf]
    %v492 = vld [vmem:[%s1 + $0x748] sm:$0xf]
    %v493 = vld [vmem:[%s1 + $0x74c] sm:$0xf]
    %v494 = vld [vmem:[%s1 + $0x750] sm:$0xf]
    %v495 = vld [vmem:[%s1 + $0x754] sm:$0xf]
    %v496 = vld [vmem:[%s1 + $0x758] sm:$0xf]
    %v497 = vld [vmem:[%s1 + $0x75c] sm:$0xf]
    %v498 = vld [vmem:[%s1 + $0x760] sm:$0xf]
    %v499 = vld [vmem:[%s1 + $0x764] sm:$0xf]
    %v500 = vld [vmem:[%s1 + $0x768] sm:$0xf]
    %v501 = vld [vmem:[%s1 + $0x76c] sm:$0xf]
    %v502 = vld [vmem:[%s1 + $0x770] sm:$0xf]
    %v503 = vld [vmem:[%s1 + $0x774] sm:$0xf]
    %v504 = vld [vmem:[%s1 + $0x778] sm:$0xf]
    %v505 = vld [vmem:[%s1 + $0x77c] sm:$0xf]
    %v506 = vld [vmem:[%s1 + $0x780] sm:$0xf]
    %v507 = vld [vmem:[%s1 + $0x784] sm:$0xf]
    %v508 = vld [vmem:[%s1 + $0x788] sm:$0xf]
    %v509 = vld [vmem:[%s1 + $0x78c] sm:$0xf]
    %v510 = vld [vmem:[%s1 + $0x790] sm:$0xf]
    %v511 = vld [vmem:[%s1 + $0x794] sm:$0xf]
    %v512 = vld [vmem:[%s1 + $0x798] sm:$0xf]
    %v513 = vld [vmem:[%s1 + $0x79c] sm:$0xf]
    %v514 = vld [vmem:[%s1 + $0x7a0] sm:$0xf]
    %v515 = vld [vmem:[%s1 + $0x7a4] sm:$0xf]
    %v516 = vld [vmem:[%s1 + $0x7a8] sm:$0xf]
    %v517 = vld [vmem:[%s1 + $0x7ac] sm:$0xf]
    %v518 = vld [vmem:[%s1 + $0x7b0] sm:$0xf]
    %v519 = vld [vmem:[%s1 + $0x7b4] sm:$0xf]
    %v520 = vld [vmem:[%s1 + $0x7b8] sm:$0xf]
    %v521 = vld [vmem:[%s1 + $0x7bc] sm:$0xf]
    %v522 = vld [vmem:[%s1 + $0x7c0] sm:$0xf]
    %v523 = vld [vmem:[%s1 + $0x7c4] sm:$0xf]
    %v524 = vld [vmem:[%s1 + $0x7c8] sm:$0xf]
    %v525 = vld [vmem:[%s1 + $0x7cc] sm:$0xf]
    %v526 = vld [vmem:[%s1 + $0x7d0] sm:$0xf]
    %v527 = vld [vmem:[%s1 + $0x7d4] sm:$0xf]
    %v528 = vld [vmem:[%s1 + $0x7d8] sm:$0xf]
    %v529 = vld [vmem:[%s1 + $0x7dc] sm:$0xf]
    %v530 = vld [vmem:[%s1 + $0x7e0] sm:$0xf]
    %v531 = vld [vmem:[%s1 + $0x7e4] sm:$0xf]
    %v532 = vld [vmem:[%s1 + $0x7e8] sm:$0xf]
    %v533 = vld [vmem:[%s1 + $0x7ec] sm:$0xf]
    %v534 = vld [vmem:[%s1 + $0x7f0] sm:$0xf]
    %v535 = vld [vmem:[%s1 + $0x7f4] sm:$0xf]
    %v536 = vld [vmem:[%s1 + $0x7f8] sm:$0xf]
    %v537 = vld [vmem:[%s1 + $0x7fc] sm:$0xf]
    %v538 = vld [vmem:[%s2] sm:$0x1]
    %v540 = vperm.slane %v538, 0
    %543 = vst [vmem:[#allocation1] ss:$9 sm:$0xff] %v22
    %v544 = vld [vmem:[#allocation1] sm:$0xff]
    %v545 = vld [vmem:[#allocation1 + $0x9] sm:$0xff]
    %v546 = vld [vmem:[#allocation1 + $0x12] sm:$0xff]
    %v547 = vld [vmem:[#allocation1 + $0x1b] sm:$0xff]
    %v548 = vld [vmem:[#allocation1 + $0x24] sm:$0xff]
    %v549 = vld [vmem:[#allocation1 + $0x2d] sm:$0xff]
    %v550 = vld [vmem:[#allocation1 + $0x36] sm:$0xff]
    %v551 = vld [vmem:[#allocation1 + $0x3f] sm:$0xff]
    %553 = vst [vmem:[#allocation1] ss:$9 sm:$0xff] %v23
    %v554 = vld [vmem:[#allocation1] sm:$0xff]
    %v555 = vld [vmem:[#allocation1 + $0x9] sm:$0xff]
    %v556 = vld [vmem:[#allocation1 + $0x12] sm:$0xff]
    %v557 = vld [vmem:[#allocation1 + $0x1b] sm:$0xff]
    %v558 = vld [vmem:[#allocation1 + $0x24] sm:$0xff]
    %v559 = vld [vmem:[#allocation1 + $0x2d] sm:$0xff]
    %v560 = vld [vmem:[#allocation1 + $0x36] sm:$0xff]
    %v561 = vld [vmem:[#allocation1 + $0x3f] sm:$0xff]
    %563 = vst [vmem:[#allocation1] ss:$9 sm:$0xff] %v24
    %v564 = vld [vmem:[#allocation1] sm:$0xff]
    %v565 = vld [vmem:[#allocation1 + $0x9] sm:$0xff]
    %v566 = vld [vmem:[#allocation1 + $0x12] sm:$0xff]
    %v567 = vld [vmem:[#allocation1 + $0x1b] sm:$0xff]
    %v568 = vld [vmem:[#allocation1 + $0x24] sm:$0xff]
    %v569 = vld [vmem:[#allocation1 + $0x2d] sm:$0xff]
    %v570 = vld [vmem:[#allocation1 + $0x36] sm:$0xff]
    %v571 = vld [vmem:[#allocation1 + $0x3f] sm:$0xff]
    %573 = vst [vmem:[#allocation1] ss:$9 sm:$0xff] %v25
    %v574 = vld [vmem:[#allocation1] sm:$0xff]
    %v575 = vld [vmem:[#allocation1 + $0x9] sm:$0xff]
    %v576 = vld [vmem:[#allocation1 + $0x12] sm:$0xff]
    %v577 = vld [vmem:[#allocation1 + $0x1b] sm:$0xff]
    %v578 = vld [vmem:[#allocation1 + $0x24] sm:$0xff]
    %v579 = vld [vmem:[#allocation1 + $0x2d] sm:$0xff]
    %v580 = vld [vmem:[#allocation1 + $0x36] sm:$0xff]
    %v581 = vld [vmem:[#allocation1 + $0x3f] sm:$0xff]
    %v1126 = vunpack.c.l.b16 %v26
    %v1127 = vunpack.c.l.b16 %v27
    %v1128 = vunpack.c.l.b16 %v28
    %v1129 = vunpack.c.l.b16 %v29
    %v1130 = vunpack.c.l.b16 %v30
    %v1131 = vunpack.c.l.b16 %v31
    %v1132 = vunpack.c.l.b16 %v32
    %v1133 = vunpack.c.l.b16 %v33
    %v1134 = vunpack.c.l.b16 %v34
    %v1135 = vunpack.c.l.b16 %v35
    %v1136 = vunpack.c.l.b16 %v36
    %v1137 = vunpack.c.l.b16 %v37
    %v1138 = vunpack.c.l.b16 %v38
    %v1139 = vunpack.c.l.b16 %v39
    %v1140 = vunpack.c.l.b16 %v40
    %v1141 = vunpack.c.l.b16 %v41
    %v1142 = vunpack.c.l.b16 %v42
    %v1143 = vunpack.c.l.b16 %v43
    %v1144 = vunpack.c.l.b16 %v44
    %v1145 = vunpack.c.l.b16 %v45
    %v1146 = vunpack.c.l.b16 %v46
    %v1147 = vunpack.c.l.b16 %v47
    %v1148 = vunpack.c.l.b16 %v48
    %v1149 = vunpack.c.l.b16 %v49
    %v1150 = vunpack.c.l.b16 %v50
    %v1151 = vunpack.c.l.b16 %v51
    %v1152 = vunpack.c.l.b16 %v52
    %v1153 = vunpack.c.l.b16 %v53
    %v1154 = vunpack.c.l.b16 %v54
    %v1155 = vunpack.c.l.b16 %v55
    %v1156 = vunpack.c.l.b16 %v56
    %v1157 = vunpack.c.l.b16 %v57
    %v1158 = vunpack.c.l.b16 %v58
    %v1159 = vunpack.c.l.b16 %v59
    %v1160 = vunpack.c.l.b16 %v60
    %v1161 = vunpack.c.l.b16 %v61
    %v1162 = vunpack.c.l.b16 %v62
    %v1163 = vunpack.c.l.b16 %v63
    %v1164 = vunpack.c.l.b16 %v64
    %v1165 = vunpack.c.l.b16 %v65
    %v1166 = vunpack.c.l.b16 %v66
    %v1167 = vunpack.c.l.b16 %v67
    %v1168 = vunpack.c.l.b16 %v68
    %v1169 = vunpack.c.l.b16 %v69
    %v1170 = vunpack.c.l.b16 %v70
    %v1171 = vunpack.c.l.b16 %v71
    %v1172 = vunpack.c.l.b16 %v72
    %v1173 = vunpack.c.l.b16 %v73
    %v1174 = vunpack.c.l.b16 %v74
    %v1175 = vunpack.c.l.b16 %v75
    %v1176 = vunpack.c.l.b16 %v76
    %v1177 = vunpack.c.l.b16 %v77
    %v1178 = vunpack.c.l.b16 %v78
    %v1179 = vunpack.c.l.b16 %v79
    %v1180 = vunpack.c.l.b16 %v80
    %v1181 = vunpack.c.l.b16 %v81
    %v1182 = vunpack.c.l.b16 %v82
    %v1183 = vunpack.c.l.b16 %v83
    %v1184 = vunpack.c.l.b16 %v84
    %v1185 = vunpack.c.l.b16 %v85
    %v1186 = vunpack.c.l.b16 %v86
    %v1187 = vunpack.c.l.b16 %v87
    %v1188 = vunpack.c.l.b16 %v88
    %v1189 = vunpack.c.l.b16 %v89
    %v1190 = vunpack.c.l.b16 %v90
    %v1191 = vunpack.c.l.b16 %v91
    %v1192 = vunpack.c.l.b16 %v92
    %v1193 = vunpack.c.l.b16 %v93
    %v1194 = vunpack.c.l.b16 %v94
    %v1195 = vunpack.c.l.b16 %v95
    %v1196 = vunpack.c.l.b16 %v96
    %v1197 = vunpack.c.l.b16 %v97
    %v1198 = vunpack.c.l.b16 %v98
    %v1199 = vunpack.c.l.b16 %v99
    %v1200 = vunpack.c.l.b16 %v100
    %v1201 = vunpack.c.l.b16 %v101
    %v1202 = vunpack.c.l.b16 %v102
    %v1203 = vunpack.c.l.b16 %v103
    %v1204 = vunpack.c.l.b16 %v104
    %v1205 = vunpack.c.l.b16 %v105
    %v1206 = vunpack.c.l.b16 %v106
    %v1207 = vunpack.c.l.b16 %v107
    %v1208 = vunpack.c.l.b16 %v108
    %v1209 = vunpack.c.l.b16 %v109
    %v1210 = vunpack.c.l.b16 %v110
    %v1211 = vunpack.c.l.b16 %v111
    %v1212 = vunpack.c.l.b16 %v112
    %v1213 = vunpack.c.l.b16 %v113
    %v1214 = vunpack.c.l.b16 %v114
    %v1215 = vunpack.c.l.b16 %v115
    %v1216 = vunpack.c.l.b16 %v116
    %v1217 = vunpack.c.l.b16 %v117
    %v1218 = vunpack.c.l.b16 %v118
    %v1219 = vunpack.c.l.b16 %v119
    %v1220 = vunpack.c.l.b16 %v120
    %v1221 = vunpack.c.l.b16 %v121
    %v1222 = vunpack.c.l.b16 %v122
    %v1223 = vunpack.c.l.b16 %v123
    %v1224 = vunpack.c.l.b16 %v124
    %v1225 = vunpack.c.l.b16 %v125
    %v1226 = vunpack.c.l.b16 %v126
    %v1227 = vunpack.c.l.b16 %v127
    %v1228 = vunpack.c.l.b16 %v128
    %v1229 = vunpack.c.l.b16 %v129
    %v1230 = vunpack.c.l.b16 %v130
    %v1231 = vunpack.c.l.b16 %v131
    %v1232 = vunpack.c.l.b16 %v132
    %v1233 = vunpack.c.l.b16 %v133
    %v1234 = vunpack.c.l.b16 %v134
    %v1235 = vunpack.c.l.b16 %v135
    %v1236 = vunpack.c.l.b16 %v136
    %v1237 = vunpack.c.l.b16 %v137
    %v1238 = vunpack.c.l.b16 %v138
    %v1239 = vunpack.c.l.b16 %v139
    %v1240 = vunpack.c.l.b16 %v140
    %v1241 = vunpack.c.l.b16 %v141
    %v1242 = vunpack.c.l.b16 %v142
    %v1243 = vunpack.c.l.b16 %v143
    %v1244 = vunpack.c.l.b16 %v144
    %v1245 = vunpack.c.l.b16 %v145
    %v1246 = vunpack.c.l.b16 %v146
    %v1247 = vunpack.c.l.b16 %v147
    %v1248 = vunpack.c.l.b16 %v148
    %v1249 = vunpack.c.l.b16 %v149
    %v1250 = vunpack.c.l.b16 %v150
    %v1251 = vunpack.c.l.b16 %v151
    %v1252 = vunpack.c.l.b16 %v152
    %v1253 = vunpack.c.l.b16 %v153
    %v1254 = vunpack.c.l.b16 %v154
    %v1255 = vunpack.c.l.b16 %v155
    %v1256 = vunpack.c.l.b16 %v156
    %v1257 = vunpack.c.l.b16 %v157
    %v1258 = vunpack.c.l.b16 %v158
    %v1259 = vunpack.c.l.b16 %v159
    %v1260 = vunpack.c.l.b16 %v160
    %v1261 = vunpack.c.l.b16 %v161
    %v1262 = vunpack.c.l.b16 %v162
    %v1263 = vunpack.c.l.b16 %v163
    %v1264 = vunpack.c.l.b16 %v164
    %v1265 = vunpack.c.l.b16 %v165
    %v1266 = vunpack.c.l.b16 %v166
    %v1267 = vunpack.c.l.b16 %v167
    %v1268 = vunpack.c.l.b16 %v168
    %v1269 = vunpack.c.l.b16 %v169
    %v1270 = vunpack.c.l.b16 %v170
    %v1271 = vunpack.c.l.b16 %v171
    %v1272 = vunpack.c.l.b16 %v172
    %v1273 = vunpack.c.l.b16 %v173
    %v1274 = vunpack.c.l.b16 %v174
    %v1275 = vunpack.c.l.b16 %v175
    %v1276 = vunpack.c.l.b16 %v176
    %v1277 = vunpack.c.l.b16 %v177
    %v1278 = vunpack.c.l.b16 %v178
    %v1279 = vunpack.c.l.b16 %v179
    %v1280 = vunpack.c.l.b16 %v180
    %v1281 = vunpack.c.l.b16 %v181
    %v1282 = vunpack.c.l.b16 %v182
    %v1283 = vunpack.c.l.b16 %v183
    %v1284 = vunpack.c.l.b16 %v184
    %v1285 = vunpack.c.l.b16 %v185
    %v1286 = vunpack.c.l.b16 %v186
    %v1287 = vunpack.c.l.b16 %v187
    %v1288 = vunpack.c.l.b16 %v188
    %v1289 = vunpack.c.l.b16 %v189
    %v1290 = vunpack.c.l.b16 %v190
    %v1291 = vunpack.c.l.b16 %v191
    %v1292 = vunpack.c.l.b16 %v192
    %v1293 = vunpack.c.l.b16 %v193
    %v1294 = vunpack.c.l.b16 %v194
    %v1295 = vunpack.c.l.b16 %v195
    %v1296 = vunpack.c.l.b16 %v196
    %v1297 = vunpack.c.l.b16 %v197
    %v1298 = vunpack.c.l.b16 %v198
    %v1299 = vunpack.c.l.b16 %v199
    %v1300 = vunpack.c.l.b16 %v200
    %v1301 = vunpack.c.l.b16 %v201
    %v1302 = vunpack.c.l.b16 %v202
    %v1303 = vunpack.c.l.b16 %v203
    %v1304 = vunpack.c.l.b16 %v204
    %v1305 = vunpack.c.l.b16 %v205
    %v1306 = vunpack.c.l.b16 %v206
    %v1307 = vunpack.c.l.b16 %v207
    %v1308 = vunpack.c.l.b16 %v208
    %v1309 = vunpack.c.l.b16 %v209
    %v1310 = vunpack.c.l.b16 %v210
    %v1311 = vunpack.c.l.b16 %v211
    %v1312 = vunpack.c.l.b16 %v212
    %v1313 = vunpack.c.l.b16 %v213
    %v1314 = vunpack.c.l.b16 %v214
    %v1315 = vunpack.c.l.b16 %v215
    %v1316 = vunpack.c.l.b16 %v216
    %v1317 = vunpack.c.l.b16 %v217
    %v1318 = vunpack.c.l.b16 %v218
    %v1319 = vunpack.c.l.b16 %v219
    %v1320 = vunpack.c.l.b16 %v220
    %v1321 = vunpack.c.l.b16 %v221
    %v1322 = vunpack.c.l.b16 %v222
    %v1323 = vunpack.c.l.b16 %v223
    %v1324 = vunpack.c.l.b16 %v224
    %v1325 = vunpack.c.l.b16 %v225
    %v1326 = vunpack.c.l.b16 %v226
    %v1327 = vunpack.c.l.b16 %v227
    %v1328 = vunpack.c.l.b16 %v228
    %v1329 = vunpack.c.l.b16 %v229
    %v1330 = vunpack.c.l.b16 %v230
    %v1331 = vunpack.c.l.b16 %v231
    %v1332 = vunpack.c.l.b16 %v232
    %v1333 = vunpack.c.l.b16 %v233
    %v1334 = vunpack.c.l.b16 %v234
    %v1335 = vunpack.c.l.b16 %v235
    %v1336 = vunpack.c.l.b16 %v236
    %v1337 = vunpack.c.l.b16 %v237
    %v1338 = vunpack.c.l.b16 %v238
    %v1339 = vunpack.c.l.b16 %v239
    %v1340 = vunpack.c.l.b16 %v240
    %v1341 = vunpack.c.l.b16 %v241
    %v1342 = vunpack.c.l.b16 %v242
    %v1343 = vunpack.c.l.b16 %v243
    %v1344 = vunpack.c.l.b16 %v244
    %v1345 = vunpack.c.l.b16 %v245
    %v1346 = vunpack.c.l.b16 %v246
    %v1347 = vunpack.c.l.b16 %v247
    %v1348 = vunpack.c.l.b16 %v248
    %v1349 = vunpack.c.l.b16 %v249
    %v1350 = vunpack.c.l.b16 %v250
    %v1351 = vunpack.c.l.b16 %v251
    %v1352 = vunpack.c.l.b16 %v252
    %v1353 = vunpack.c.l.b16 %v253
    %v1354 = vunpack.c.l.b16 %v254
    %v1355 = vunpack.c.l.b16 %v255
    %v1356 = vunpack.c.l.b16 %v256
    %v1357 = vunpack.c.l.b16 %v257
    %v1358 = vunpack.c.l.b16 %v258
    %v1359 = vunpack.c.l.b16 %v259
    %v1360 = vunpack.c.l.b16 %v260
    %v1361 = vunpack.c.l.b16 %v261
    %v1362 = vunpack.c.l.b16 %v262
    %v1363 = vunpack.c.l.b16 %v263
    %v1364 = vunpack.c.l.b16 %v264
    %v1365 = vunpack.c.l.b16 %v265
    %v1366 = vunpack.c.l.b16 %v266
    %v1367 = vunpack.c.l.b16 %v267
    %v1368 = vunpack.c.l.b16 %v268
    %v1369 = vunpack.c.l.b16 %v269
    %v1370 = vunpack.c.l.b16 %v270
    %v1371 = vunpack.c.l.b16 %v271
    %v1372 = vunpack.c.l.b16 %v272
    %v1373 = vunpack.c.l.b16 %v273
    %v1374 = vunpack.c.l.b16 %v274
    %v1375 = vunpack.c.l.b16 %v275
    %v1376 = vunpack.c.l.b16 %v276
    %v1377 = vunpack.c.l.b16 %v277
    %v1378 = vunpack.c.l.b16 %v278
    %v1379 = vunpack.c.l.b16 %v279
    %v1380 = vunpack.c.l.b16 %v280
    %v1381 = vunpack.c.l.b16 %v281
    %v1382 = vunpack.c.l.b16 %v282
    %v1383 = vunpack.c.l.b16 %v283
    %v1384 = vunpack.c.l.b16 %v284
    %v1385 = vunpack.c.l.b16 %v285
    %v1386 = vunpack.c.l.b16 %v286
    %v1387 = vunpack.c.l.b16 %v287
    %v1388 = vunpack.c.l.b16 %v288
    %v1389 = vunpack.c.l.b16 %v289
    %v1390 = vunpack.c.l.b16 %v290
    %v1391 = vunpack.c.l.b16 %v291
    %v1392 = vunpack.c.l.b16 %v292
    %v1393 = vunpack.c.l.b16 %v293
    %v1394 = vunpack.c.l.b16 %v294
    %v1395 = vunpack.c.l.b16 %v295
    %v1396 = vunpack.c.l.b16 %v296
    %v1397 = vunpack.c.l.b16 %v297
    %v1398 = vunpack.c.l.b16 %v298
    %v1399 = vunpack.c.l.b16 %v299
    %v1400 = vunpack.c.l.b16 %v300
    %v1401 = vunpack.c.l.b16 %v301
    %v1402 = vunpack.c.l.b16 %v302
    %v1403 = vunpack.c.l.b16 %v303
    %v1404 = vunpack.c.l.b16 %v304
    %v1405 = vunpack.c.l.b16 %v305
    %v1406 = vunpack.c.l.b16 %v306
    %v1407 = vunpack.c.l.b16 %v307
    %v1408 = vunpack.c.l.b16 %v308
    %v1409 = vunpack.c.l.b16 %v309
    %v1410 = vunpack.c.l.b16 %v310
    %v1411 = vunpack.c.l.b16 %v311
    %v1412 = vunpack.c.l.b16 %v312
    %v1413 = vunpack.c.l.b16 %v313
    %v1414 = vunpack.c.l.b16 %v314
    %v1415 = vunpack.c.l.b16 %v315
    %v1416 = vunpack.c.l.b16 %v316
    %v1417 = vunpack.c.l.b16 %v317
    %v1418 = vunpack.c.l.b16 %v318
    %v1419 = vunpack.c.l.b16 %v319
    %v1420 = vunpack.c.l.b16 %v320
    %v1421 = vunpack.c.l.b16 %v321
    %v1422 = vunpack.c.l.b16 %v322
    %v1423 = vunpack.c.l.b16 %v323
    %v1424 = vunpack.c.l.b16 %v324
    %v1425 = vunpack.c.l.b16 %v325
    %v1426 = vunpack.c.l.b16 %v326
    %v1427 = vunpack.c.l.b16 %v327
    %v1428 = vunpack.c.l.b16 %v328
    %v1429 = vunpack.c.l.b16 %v329
    %v1430 = vunpack.c.l.b16 %v330
    %v1431 = vunpack.c.l.b16 %v331
    %v1432 = vunpack.c.l.b16 %v332
    %v1433 = vunpack.c.l.b16 %v333
    %v1434 = vunpack.c.l.b16 %v334
    %v1435 = vunpack.c.l.b16 %v335
    %v1436 = vunpack.c.l.b16 %v336
    %v1437 = vunpack.c.l.b16 %v337
    %v1438 = vunpack.c.l.b16 %v338
    %v1439 = vunpack.c.l.b16 %v339
    %v1440 = vunpack.c.l.b16 %v340
    %v1441 = vunpack.c.l.b16 %v341
    %v1442 = vunpack.c.l.b16 %v342
    %v1443 = vunpack.c.l.b16 %v343
    %v1444 = vunpack.c.l.b16 %v344
    %v1445 = vunpack.c.l.b16 %v345
    %v1446 = vunpack.c.l.b16 %v346
    %v1447 = vunpack.c.l.b16 %v347
    %v1448 = vunpack.c.l.b16 %v348
    %v1449 = vunpack.c.l.b16 %v349
    %v1450 = vunpack.c.l.b16 %v350
    %v1451 = vunpack.c.l.b16 %v351
    %v1452 = vunpack.c.l.b16 %v352
    %v1453 = vunpack.c.l.b16 %v353
    %v1454 = vunpack.c.l.b16 %v354
    %v1455 = vunpack.c.l.b16 %v355
    %v1456 = vunpack.c.l.b16 %v356
    %v1457 = vunpack.c.l.b16 %v357
    %v1458 = vunpack.c.l.b16 %v358
    %v1459 = vunpack.c.l.b16 %v359
    %v1460 = vunpack.c.l.b16 %v360
    %v1461 = vunpack.c.l.b16 %v361
    %v1462 = vunpack.c.l.b16 %v362
    %v1463 = vunpack.c.l.b16 %v363
    %v1464 = vunpack.c.l.b16 %v364
    %v1465 = vunpack.c.l.b16 %v365
    %v1466 = vunpack.c.l.b16 %v366
    %v1467 = vunpack.c.l.b16 %v367
    %v1468 = vunpack.c.l.b16 %v368
    %v1469 = vunpack.c.l.b16 %v369
    %v1470 = vunpack.c.l.b16 %v370
    %v1471 = vunpack.c.l.b16 %v371
    %v1472 = vunpack.c.l.b16 %v372
    %v1473 = vunpack.c.l.b16 %v373
    %v1474 = vunpack.c.l.b16 %v374
    %v1475 = vunpack.c.l.b16 %v375
    %v1476 = vunpack.c.l.b16 %v376
    %v1477 = vunpack.c.l.b16 %v377
    %v1478 = vunpack.c.l.b16 %v378
    %v1479 = vunpack.c.l.b16 %v379
    %v1480 = vunpack.c.l.b16 %v380
    %v1481 = vunpack.c.l.b16 %v381
    %v1482 = vunpack.c.l.b16 %v382
    %v1483 = vunpack.c.l.b16 %v383
    %v1484 = vunpack.c.l.b16 %v384
    %v1485 = vunpack.c.l.b16 %v385
    %v1486 = vunpack.c.l.b16 %v386
    %v1487 = vunpack.c.l.b16 %v387
    %v1488 = vunpack.c.l.b16 %v388
    %v1489 = vunpack.c.l.b16 %v389
    %v1490 = vunpack.c.l.b16 %v390
    %v1491 = vunpack.c.l.b16 %v391
    %v1492 = vunpack.c.l.b16 %v392
    %v1493 = vunpack.c.l.b16 %v393
    %v1494 = vunpack.c.l.b16 %v394
    %v1495 = vunpack.c.l.b16 %v395
    %v1496 = vunpack.c.l.b16 %v396
    %v1497 = vunpack.c.l.b16 %v397
    %v1498 = vunpack.c.l.b16 %v398
    %v1499 = vunpack.c.l.b16 %v399
    %v1500 = vunpack.c.l.b16 %v400
    %v1501 = vunpack.c.l.b16 %v401
    %v1502 = vunpack.c.l.b16 %v402
    %v1503 = vunpack.c.l.b16 %v403
    %v1504 = vunpack.c.l.b16 %v404
    %v1505 = vunpack.c.l.b16 %v405
    %v1506 = vunpack.c.l.b16 %v406
    %v1507 = vunpack.c.l.b16 %v407
    %v1508 = vunpack.c.l.b16 %v408
    %v1509 = vunpack.c.l.b16 %v409
    %v1510 = vunpack.c.l.b16 %v410
    %v1511 = vunpack.c.l.b16 %v411
    %v1512 = vunpack.c.l.b16 %v412
    %v1513 = vunpack.c.l.b16 %v413
    %v1514 = vunpack.c.l.b16 %v414
    %v1515 = vunpack.c.l.b16 %v415
    %v1516 = vunpack.c.l.b16 %v416
    %v1517 = vunpack.c.l.b16 %v417
    %v1518 = vunpack.c.l.b16 %v418
    %v1519 = vunpack.c.l.b16 %v419
    %v1520 = vunpack.c.l.b16 %v420
    %v1521 = vunpack.c.l.b16 %v421
    %v1522 = vunpack.c.l.b16 %v422
    %v1523 = vunpack.c.l.b16 %v423
    %v1524 = vunpack.c.l.b16 %v424
    %v1525 = vunpack.c.l.b16 %v425
    %v1526 = vunpack.c.l.b16 %v426
    %v1527 = vunpack.c.l.b16 %v427
    %v1528 = vunpack.c.l.b16 %v428
    %v1529 = vunpack.c.l.b16 %v429
    %v1530 = vunpack.c.l.b16 %v430
    %v1531 = vunpack.c.l.b16 %v431
    %v1532 = vunpack.c.l.b16 %v432
    %v1533 = vunpack.c.l.b16 %v433
    %v1534 = vunpack.c.l.b16 %v434
    %v1535 = vunpack.c.l.b16 %v435
    %v1536 = vunpack.c.l.b16 %v436
    %v1537 = vunpack.c.l.b16 %v437
    %v1538 = vunpack.c.l.b16 %v438
    %v1539 = vunpack.c.l.b16 %v439
    %v1540 = vunpack.c.l.b16 %v440
    %v1541 = vunpack.c.l.b16 %v441
    %v1542 = vunpack.c.l.b16 %v442
    %v1543 = vunpack.c.l.b16 %v443
    %v1544 = vunpack.c.l.b16 %v444
    %v1545 = vunpack.c.l.b16 %v445
    %v1546 = vunpack.c.l.b16 %v446
    %v1547 = vunpack.c.l.b16 %v447
    %v1548 = vunpack.c.l.b16 %v448
    %v1549 = vunpack.c.l.b16 %v449
    %v1550 = vunpack.c.l.b16 %v450
    %v1551 = vunpack.c.l.b16 %v451
    %v1552 = vunpack.c.l.b16 %v452
    %v1553 = vunpack.c.l.b16 %v453
    %v1554 = vunpack.c.l.b16 %v454
    %v1555 = vunpack.c.l.b16 %v455
    %v1556 = vunpack.c.l.b16 %v456
    %v1557 = vunpack.c.l.b16 %v457
    %v1558 = vunpack.c.l.b16 %v458
    %v1559 = vunpack.c.l.b16 %v459
    %v1560 = vunpack.c.l.b16 %v460
    %v1561 = vunpack.c.l.b16 %v461
    %v1562 = vunpack.c.l.b16 %v462
    %v1563 = vunpack.c.l.b16 %v463
    %v1564 = vunpack.c.l.b16 %v464
    %v1565 = vunpack.c.l.b16 %v465
    %v1566 = vunpack.c.l.b16 %v466
    %v1567 = vunpack.c.l.b16 %v467
    %v1568 = vunpack.c.l.b16 %v468
    %v1569 = vunpack.c.l.b16 %v469
    %v1570 = vunpack.c.l.b16 %v470
    %v1571 = vunpack.c.l.b16 %v471
    %v1572 = vunpack.c.l.b16 %v472
    %v1573 = vunpack.c.l.b16 %v473
    %v1574 = vunpack.c.l.b16 %v474
    %v1575 = vunpack.c.l.b16 %v475
    %v1576 = vunpack.c.l.b16 %v476
    %v1577 = vunpack.c.l.b16 %v477
    %v1578 = vunpack.c.l.b16 %v478
    %v1579 = vunpack.c.l.b16 %v479
    %v1580 = vunpack.c.l.b16 %v480
    %v1581 = vunpack.c.l.b16 %v481
    %v1582 = vunpack.c.l.b16 %v482
    %v1583 = vunpack.c.l.b16 %v483
    %v1584 = vunpack.c.l.b16 %v484
    %v1585 = vunpack.c.l.b16 %v485
    %v1586 = vunpack.c.l.b16 %v486
    %v1587 = vunpack.c.l.b16 %v487
    %v1588 = vunpack.c.l.b16 %v488
    %v1589 = vunpack.c.l.b16 %v489
    %v1590 = vunpack.c.l.b16 %v490
    %v1591 = vunpack.c.l.b16 %v491
    %v1592 = vunpack.c.l.b16 %v492
    %v1593 = vunpack.c.l.b16 %v493
    %v1594 = vunpack.c.l.b16 %v494
    %v1595 = vunpack.c.l.b16 %v495
    %v1596 = vunpack.c.l.b16 %v496
    %v1597 = vunpack.c.l.b16 %v497
    %v1598 = vunpack.c.l.b16 %v498
    %v1599 = vunpack.c.l.b16 %v499
    %v1600 = vunpack.c.l.b16 %v500
    %v1601 = vunpack.c.l.b16 %v501
    %v1602 = vunpack.c.l.b16 %v502
    %v1603 = vunpack.c.l.b16 %v503
    %v1604 = vunpack.c.l.b16 %v504
    %v1605 = vunpack.c.l.b16 %v505
    %v1606 = vunpack.c.l.b16 %v506
    %v1607 = vunpack.c.l.b16 %v507
    %v1608 = vunpack.c.l.b16 %v508
    %v1609 = vunpack.c.l.b16 %v509
    %v1610 = vunpack.c.l.b16 %v510
    %v1611 = vunpack.c.l.b16 %v511
    %v1612 = vunpack.c.l.b16 %v512
    %v1613 = vunpack.c.l.b16 %v513
    %v1614 = vunpack.c.l.b16 %v514
    %v1615 = vunpack.c.l.b16 %v515
    %v1616 = vunpack.c.l.b16 %v516
    %v1617 = vunpack.c.l.b16 %v517
    %v1618 = vunpack.c.l.b16 %v518
    %v1619 = vunpack.c.l.b16 %v519
    %v1620 = vunpack.c.l.b16 %v520
    %v1621 = vunpack.c.l.b16 %v521
    %v1622 = vunpack.c.l.b16 %v522
    %v1623 = vunpack.c.l.b16 %v523
    %v1624 = vunpack.c.l.b16 %v524
    %v1625 = vunpack.c.l.b16 %v525
    %v1626 = vunpack.c.l.b16 %v526
    %v1627 = vunpack.c.l.b16 %v527
    %v1628 = vunpack.c.l.b16 %v528
    %v1629 = vunpack.c.l.b16 %v529
    %v1630 = vunpack.c.l.b16 %v530
    %v1631 = vunpack.c.l.b16 %v531
    %v1632 = vunpack.c.l.b16 %v532
    %v1633 = vunpack.c.l.b16 %v533
    %v1634 = vunpack.c.l.b16 %v534
    %v1635 = vunpack.c.l.b16 %v535
    %v1636 = vunpack.c.l.b16 %v536
    %v1637 = vunpack.c.l.b16 %v537
    %v1638 = vpack.c.b16 %v1127, %v1126
    %v1639 = vpack.c.b16 %v1129, %v1128
    %v1640 = vpack.c.b16 %v1131, %v1130
    %v1641 = vpack.c.b16 %v1133, %v1132
    %v1642 = vpack.c.b16 %v1135, %v1134
    %v1643 = vpack.c.b16 %v1137, %v1136
    %v1644 = vpack.c.b16 %v1139, %v1138
    %v1645 = vpack.c.b16 %v1141, %v1140
    %v1646 = vpack.c.b16 %v1143, %v1142
    %v1647 = vpack.c.b16 %v1145, %v1144
    %v1648 = vpack.c.b16 %v1147, %v1146
    %v1649 = vpack.c.b16 %v1149, %v1148
    %v1650 = vpack.c.b16 %v1151, %v1150
    %v1651 = vpack.c.b16 %v1153, %v1152
    %v1652 = vpack.c.b16 %v1155, %v1154
    %v1653 = vpack.c.b16 %v1157, %v1156
    %v1654 = vpack.c.b16 %v1159, %v1158
    %v1655 = vpack.c.b16 %v1161, %v1160
    %v1656 = vpack.c.b16 %v1163, %v1162
    %v1657 = vpack.c.b16 %v1165, %v1164
    %v1658 = vpack.c.b16 %v1167, %v1166
    %v1659 = vpack.c.b16 %v1169, %v1168
    %v1660 = vpack.c.b16 %v1171, %v1170
    %v1661 = vpack.c.b16 %v1173, %v1172
    %v1662 = vpack.c.b16 %v1175, %v1174
    %v1663 = vpack.c.b16 %v1177, %v1176
    %v1664 = vpack.c.b16 %v1179, %v1178
    %v1665 = vpack.c.b16 %v1181, %v1180
    %v1666 = vpack.c.b16 %v1183, %v1182
    %v1667 = vpack.c.b16 %v1185, %v1184
    %v1668 = vpack.c.b16 %v1187, %v1186
    %v1669 = vpack.c.b16 %v1189, %v1188
    %v1670 = vpack.c.b16 %v1191, %v1190
    %v1671 = vpack.c.b16 %v1193, %v1192
    %v1672 = vpack.c.b16 %v1195, %v1194
    %v1673 = vpack.c.b16 %v1197, %v1196
    %v1674 = vpack.c.b16 %v1199, %v1198
    %v1675 = vpack.c.b16 %v1201, %v1200
    %v1676 = vpack.c.b16 %v1203, %v1202
    %v1677 = vpack.c.b16 %v1205, %v1204
    %v1678 = vpack.c.b16 %v1207, %v1206
    %v1679 = vpack.c.b16 %v1209, %v1208
    %v1680 = vpack.c.b16 %v1211, %v1210
    %v1681 = vpack.c.b16 %v1213, %v1212
    %v1682 = vpack.c.b16 %v1215, %v1214
    %v1683 = vpack.c.b16 %v1217, %v1216
    %v1684 = vpack.c.b16 %v1219, %v1218
    %v1685 = vpack.c.b16 %v1221, %v1220
    %v1686 = vpack.c.b16 %v1223, %v1222
    %v1687 = vpack.c.b16 %v1225, %v1224
    %v1688 = vpack.c.b16 %v1227, %v1226
    %v1689 = vpack.c.b16 %v1229, %v1228
    %v1690 = vpack.c.b16 %v1231, %v1230
    %v1691 = vpack.c.b16 %v1233, %v1232
    %v1692 = vpack.c.b16 %v1235, %v1234
    %v1693 = vpack.c.b16 %v1237, %v1236
    %v1694 = vpack.c.b16 %v1239, %v1238
    %v1695 = vpack.c.b16 %v1241, %v1240
    %v1696 = vpack.c.b16 %v1243, %v1242
    %v1697 = vpack.c.b16 %v1245, %v1244
    %v1698 = vpack.c.b16 %v1247, %v1246
    %v1699 = vpack.c.b16 %v1249, %v1248
    %v1700 = vpack.c.b16 %v1251, %v1250
    %v1701 = vpack.c.b16 %v1253, %v1252
    %v1702 = vpack.c.b16 %v1255, %v1254
    %v1703 = vpack.c.b16 %v1257, %v1256
    %v1704 = vpack.c.b16 %v1259, %v1258
    %v1705 = vpack.c.b16 %v1261, %v1260
    %v1706 = vpack.c.b16 %v1263, %v1262
    %v1707 = vpack.c.b16 %v1265, %v1264
    %v1708 = vpack.c.b16 %v1267, %v1266
    %v1709 = vpack.c.b16 %v1269, %v1268
    %v1710 = vpack.c.b16 %v1271, %v1270
    %v1711 = vpack.c.b16 %v1273, %v1272
    %v1712 = vpack.c.b16 %v1275, %v1274
    %v1713 = vpack.c.b16 %v1277, %v1276
    %v1714 = vpack.c.b16 %v1279, %v1278
    %v1715 = vpack.c.b16 %v1281, %v1280
    %v1716 = vpack.c.b16 %v1283, %v1282
    %v1717 = vpack.c.b16 %v1285, %v1284
    %v1718 = vpack.c.b16 %v1287, %v1286
    %v1719 = vpack.c.b16 %v1289, %v1288
    %v1720 = vpack.c.b16 %v1291, %v1290
    %v1721 = vpack.c.b16 %v1293, %v1292
    %v1722 = vpack.c.b16 %v1295, %v1294
    %v1723 = vpack.c.b16 %v1297, %v1296
    %v1724 = vpack.c.b16 %v1299, %v1298
    %v1725 = vpack.c.b16 %v1301, %v1300
    %v1726 = vpack.c.b16 %v1303, %v1302
    %v1727 = vpack.c.b16 %v1305, %v1304
    %v1728 = vpack.c.b16 %v1307, %v1306
    %v1729 = vpack.c.b16 %v1309, %v1308
    %v1730 = vpack.c.b16 %v1311, %v1310
    %v1731 = vpack.c.b16 %v1313, %v1312
    %v1732 = vpack.c.b16 %v1315, %v1314
    %v1733 = vpack.c.b16 %v1317, %v1316
    %v1734 = vpack.c.b16 %v1319, %v1318
    %v1735 = vpack.c.b16 %v1321, %v1320
    %v1736 = vpack.c.b16 %v1323, %v1322
    %v1737 = vpack.c.b16 %v1325, %v1324
    %v1738 = vpack.c.b16 %v1327, %v1326
    %v1739 = vpack.c.b16 %v1329, %v1328
    %v1740 = vpack.c.b16 %v1331, %v1330
    %v1741 = vpack.c.b16 %v1333, %v1332
    %v1742 = vpack.c.b16 %v1335, %v1334
    %v1743 = vpack.c.b16 %v1337, %v1336
    %v1744 = vpack.c.b16 %v1339, %v1338
    %v1745 = vpack.c.b16 %v1341, %v1340
    %v1746 = vpack.c.b16 %v1343, %v1342
    %v1747 = vpack.c.b16 %v1345, %v1344
    %v1748 = vpack.c.b16 %v1347, %v1346
    %v1749 = vpack.c.b16 %v1349, %v1348
    %v1750 = vpack.c.b16 %v1351, %v1350
    %v1751 = vpack.c.b16 %v1353, %v1352
    %v1752 = vpack.c.b16 %v1355, %v1354
    %v1753 = vpack.c.b16 %v1357, %v1356
    %v1754 = vpack.c.b16 %v1359, %v1358
    %v1755 = vpack.c.b16 %v1361, %v1360
    %v1756 = vpack.c.b16 %v1363, %v1362
    %v1757 = vpack.c.b16 %v1365, %v1364
    %v1758 = vpack.c.b16 %v1367, %v1366
    %v1759 = vpack.c.b16 %v1369, %v1368
    %v1760 = vpack.c.b16 %v1371, %v1370
    %v1761 = vpack.c.b16 %v1373, %v1372
    %v1762 = vpack.c.b16 %v1375, %v1374
    %v1763 = vpack.c.b16 %v1377, %v1376
    %v1764 = vpack.c.b16 %v1379, %v1378
    %v1765 = vpack.c.b16 %v1381, %v1380
    %v1766 = vpack.c.b16 %v1383, %v1382
    %v1767 = vpack.c.b16 %v1385, %v1384
    %v1768 = vpack.c.b16 %v1387, %v1386
    %v1769 = vpack.c.b16 %v1389, %v1388
    %v1770 = vpack.c.b16 %v1391, %v1390
    %v1771 = vpack.c.b16 %v1393, %v1392
    %v1772 = vpack.c.b16 %v1395, %v1394
    %v1773 = vpack.c.b16 %v1397, %v1396
    %v1774 = vpack.c.b16 %v1399, %v1398
    %v1775 = vpack.c.b16 %v1401, %v1400
    %v1776 = vpack.c.b16 %v1403, %v1402
    %v1777 = vpack.c.b16 %v1405, %v1404
    %v1778 = vpack.c.b16 %v1407, %v1406
    %v1779 = vpack.c.b16 %v1409, %v1408
    %v1780 = vpack.c.b16 %v1411, %v1410
    %v1781 = vpack.c.b16 %v1413, %v1412
    %v1782 = vpack.c.b16 %v1415, %v1414
    %v1783 = vpack.c.b16 %v1417, %v1416
    %v1784 = vpack.c.b16 %v1419, %v1418
    %v1785 = vpack.c.b16 %v1421, %v1420
    %v1786 = vpack.c.b16 %v1423, %v1422
    %v1787 = vpack.c.b16 %v1425, %v1424
    %v1788 = vpack.c.b16 %v1427, %v1426
    %v1789 = vpack.c.b16 %v1429, %v1428
    %v1790 = vpack.c.b16 %v1431, %v1430
    %v1791 = vpack.c.b16 %v1433, %v1432
    %v1792 = vpack.c.b16 %v1435, %v1434
    %v1793 = vpack.c.b16 %v1437, %v1436
    %v1794 = vpack.c.b16 %v1439, %v1438
    %v1795 = vpack.c.b16 %v1441, %v1440
    %v1796 = vpack.c.b16 %v1443, %v1442
    %v1797 = vpack.c.b16 %v1445, %v1444
    %v1798 = vpack.c.b16 %v1447, %v1446
    %v1799 = vpack.c.b16 %v1449, %v1448
    %v1800 = vpack.c.b16 %v1451, %v1450
    %v1801 = vpack.c.b16 %v1453, %v1452
    %v1802 = vpack.c.b16 %v1455, %v1454
    %v1803 = vpack.c.b16 %v1457, %v1456
    %v1804 = vpack.c.b16 %v1459, %v1458
    %v1805 = vpack.c.b16 %v1461, %v1460
    %v1806 = vpack.c.b16 %v1463, %v1462
    %v1807 = vpack.c.b16 %v1465, %v1464
    %v1808 = vpack.c.b16 %v1467, %v1466
    %v1809 = vpack.c.b16 %v1469, %v1468
    %v1810 = vpack.c.b16 %v1471, %v1470
    %v1811 = vpack.c.b16 %v1473, %v1472
    %v1812 = vpack.c.b16 %v1475, %v1474
    %v1813 = vpack.c.b16 %v1477, %v1476
    %v1814 = vpack.c.b16 %v1479, %v1478
    %v1815 = vpack.c.b16 %v1481, %v1480
    %v1816 = vpack.c.b16 %v1483, %v1482
    %v1817 = vpack.c.b16 %v1485, %v1484
    %v1818 = vpack.c.b16 %v1487, %v1486
    %v1819 = vpack.c.b16 %v1489, %v1488
    %v1820 = vpack.c.b16 %v1491, %v1490
    %v1821 = vpack.c.b16 %v1493, %v1492
    %v1822 = vpack.c.b16 %v1495, %v1494
    %v1823 = vpack.c.b16 %v1497, %v1496
    %v1824 = vpack.c.b16 %v1499, %v1498
    %v1825 = vpack.c.b16 %v1501, %v1500
    %v1826 = vpack.c.b16 %v1503, %v1502
    %v1827 = vpack.c.b16 %v1505, %v1504
    %v1828 = vpack.c.b16 %v1507, %v1506
    %v1829 = vpack.c.b16 %v1509, %v1508
    %v1830 = vpack.c.b16 %v1511, %v1510
    %v1831 = vpack.c.b16 %v1513, %v1512
    %v1832 = vpack.c.b16 %v1515, %v1514
    %v1833 = vpack.c.b16 %v1517, %v1516
    %v1834 = vpack.c.b16 %v1519, %v1518
    %v1835 = vpack.c.b16 %v1521, %v1520
    %v1836 = vpack.c.b16 %v1523, %v1522
    %v1837 = vpack.c.b16 %v1525, %v1524
    %v1838 = vpack.c.b16 %v1527, %v1526
    %v1839 = vpack.c.b16 %v1529, %v1528
    %v1840 = vpack.c.b16 %v1531, %v1530
    %v1841 = vpack.c.b16 %v1533, %v1532
    %v1842 = vpack.c.b16 %v1535, %v1534
    %v1843 = vpack.c.b16 %v1537, %v1536
    %v1844 = vpack.c.b16 %v1539, %v1538
    %v1845 = vpack.c.b16 %v1541, %v1540
    %v1846 = vpack.c.b16 %v1543, %v1542
    %v1847 = vpack.c.b16 %v1545, %v1544
    %v1848 = vpack.c.b16 %v1547, %v1546
    %v1849 = vpack.c.b16 %v1549, %v1548
    %v1850 = vpack.c.b16 %v1551, %v1550
    %v1851 = vpack.c.b16 %v1553, %v1552
    %v1852 = vpack.c.b16 %v1555, %v1554
    %v1853 = vpack.c.b16 %v1557, %v1556
    %v1854 = vpack.c.b16 %v1559, %v1558
    %v1855 = vpack.c.b16 %v1561, %v1560
    %v1856 = vpack.c.b16 %v1563, %v1562
    %v1857 = vpack.c.b16 %v1565, %v1564
    %v1858 = vpack.c.b16 %v1567, %v1566
    %v1859 = vpack.c.b16 %v1569, %v1568
    %v1860 = vpack.c.b16 %v1571, %v1570
    %v1861 = vpack.c.b16 %v1573, %v1572
    %v1862 = vpack.c.b16 %v1575, %v1574
    %v1863 = vpack.c.b16 %v1577, %v1576
    %v1864 = vpack.c.b16 %v1579, %v1578
    %v1865 = vpack.c.b16 %v1581, %v1580
    %v1866 = vpack.c.b16 %v1583, %v1582
    %v1867 = vpack.c.b16 %v1585, %v1584
    %v1868 = vpack.c.b16 %v1587, %v1586
    %v1869 = vpack.c.b16 %v1589, %v1588
    %v1870 = vpack.c.b16 %v1591, %v1590
    %v1871 = vpack.c.b16 %v1593, %v1592
    %v1872 = vpack.c.b16 %v1595, %v1594
    %v1873 = vpack.c.b16 %v1597, %v1596
    %v1874 = vpack.c.b16 %v1599, %v1598
    %v1875 = vpack.c.b16 %v1601, %v1600
    %v1876 = vpack.c.b16 %v1603, %v1602
    %v1877 = vpack.c.b16 %v1605, %v1604
    %v1878 = vpack.c.b16 %v1607, %v1606
    %v1879 = vpack.c.b16 %v1609, %v1608
    %v1880 = vpack.c.b16 %v1611, %v1610
    %v1881 = vpack.c.b16 %v1613, %v1612
    %v1882 = vpack.c.b16 %v1615, %v1614
    %v1883 = vpack.c.b16 %v1617, %v1616
    %v1884 = vpack.c.b16 %v1619, %v1618
    %v1885 = vpack.c.b16 %v1621, %v1620
    %v1886 = vpack.c.b16 %v1623, %v1622
    %v1887 = vpack.c.b16 %v1625, %v1624
    %v1888 = vpack.c.b16 %v1627, %v1626
    %v1889 = vpack.c.b16 %v1629, %v1628
    %v1890 = vpack.c.b16 %v1631, %v1630
    %v1891 = vpack.c.b16 %v1633, %v1632
    %v1892 = vpack.c.b16 %v1635, %v1634
    %v1893 = vpack.c.b16 %v1637, %v1636
    %2150 = vmatpush.bf16.msra.mxu0 %v1645
    %2151 = vmatpush.bf16.msra.mxu0 %v1644
    %2152 = vmatpush.bf16.msra.mxu0 %v1643
    %2153 = vmatpush.bf16.msra.mxu0 %v1642
    %2154 = vmatpush.bf16.msra.mxu0 %v1641
    %2155 = vmatpush.bf16.msra.mxu0 %v1640
    %2156 = vmatpush.bf16.msra.mxu0 %v1639
    %2157 = vmatpush.bf16.msra.mxu0 %v1638
    %2158 = vmatmul.bf16.gmra.mxu0 %v544
    %v2159 = vpop.f32.mrf.mxu0
    %v2160 = vadd.f32 %v540, %v2159
    %v2161 = vpop.f32.mrf.mxu0
    %2162 = vdwg.mxu0
    %2163 = vmatpush.bf16.msra.mxu0 %v1653
    %2164 = vmatpush.bf16.msra.mxu0 %v1652
    %2165 = vmatpush.bf16.msra.mxu0 %v1651
    %2166 = vmatpush.bf16.msra.mxu0 %v1650
    %2167 = vmatpush.bf16.msra.mxu0 %v1649
    %2168 = vmatpush.bf16.msra.mxu0 %v1648
    %2169 = vmatpush.bf16.msra.mxu0 %v1647
    %2170 = vmatpush.bf16.msra.mxu0 %v1646
    %2171 = vmatmul.bf16.gmra.mxu0 %v545
    %v2172 = vpop.f32.mrf.mxu0
    %v2173 = vadd.f32 %v2160, %v2172
    %v2174 = vpop.f32.mrf.mxu0
    %2175 = vdwg.mxu0
    %2176 = vmatpush.bf16.msra.mxu0 %v1661
    %2177 = vmatpush.bf16.msra.mxu0 %v1660
    %2178 = vmatpush.bf16.msra.mxu0 %v1659
    %2179 = vmatpush.bf16.msra.mxu0 %v1658
    %2180 = vmatpush.bf16.msra.mxu0 %v1657
    %2181 = vmatpush.bf16.msra.mxu0 %v1656
    %2182 = vmatpush.bf16.msra.mxu0 %v1655
    %2183 = vmatpush.bf16.msra.mxu0 %v1654
    %2184 = vmatmul.bf16.gmra.mxu0 %v546
    %v2185 = vpop.f32.mrf.mxu0
    %v2186 = vadd.f32 %v2173, %v2185
    %v2187 = vpop.f32.mrf.mxu0
    %2188 = vdwg.mxu0
    %2189 = vmatpush.bf16.msra.mxu0 %v1669
    %2190 = vmatpush.bf16.msra.mxu0 %v1668
    %2191 = vmatpush.bf16.msra.mxu0 %v1667
    %2192 = vmatpush.bf16.msra.mxu0 %v1666
    %2193 = vmatpush.bf16.msra.mxu0 %v1665
    %2194 = vmatpush.bf16.msra.mxu0 %v1664
    %2195 = vmatpush.bf16.msra.mxu0 %v1663
    %2196 = vmatpush.bf16.msra.mxu0 %v1662
    %2197 = vmatmul.bf16.gmra.mxu0 %v547
    %v2198 = vpop.f32.mrf.mxu0
    %v2199 = vadd.f32 %v2186, %v2198
    %v2200 = vpop.f32.mrf.mxu0
    %2201 = vdwg.mxu0
    %2202 = vmatpush.bf16.msra.mxu0 %v1677
    %2203 = vmatpush.bf16.msra.mxu0 %v1676
    %2204 = vmatpush.bf16.msra.mxu0 %v1675
    %2205 = vmatpush.bf16.msra.mxu0 %v1674
    %2206 = vmatpush.bf16.msra.mxu0 %v1673
    %2207 = vmatpush.bf16.msra.mxu0 %v1672
    %2208 = vmatpush.bf16.msra.mxu0 %v1671
    %2209 = vmatpush.bf16.msra.mxu0 %v1670
    %2210 = vmatmul.bf16.gmra.mxu0 %v548
    %v2211 = vpop.f32.mrf.mxu0
    %v2212 = vadd.f32 %v2199, %v2211
    %v2213 = vpop.f32.mrf.mxu0
    %2214 = vdwg.mxu0
    %2215 = vmatpush.bf16.msra.mxu0 %v1685
    %2216 = vmatpush.bf16.msra.mxu0 %v1684
    %2217 = vmatpush.bf16.msra.mxu0 %v1683
    %2218 = vmatpush.bf16.msra.mxu0 %v1682
    %2219 = vmatpush.bf16.msra.mxu0 %v1681
    %2220 = vmatpush.bf16.msra.mxu0 %v1680
    %2221 = vmatpush.bf16.msra.mxu0 %v1679
    %2222 = vmatpush.bf16.msra.mxu0 %v1678
    %2223 = vmatmul.bf16.gmra.mxu0 %v549
    %v2224 = vpop.f32.mrf.mxu0
    %v2225 = vadd.f32 %v2212, %v2224
    %v2226 = vpop.f32.mrf.mxu0
    %2227 = vdwg.mxu0
    %2228 = vmatpush.bf16.msra.mxu0 %v1693
    %2229 = vmatpush.bf16.msra.mxu0 %v1692
    %2230 = vmatpush.bf16.msra.mxu0 %v1691
    %2231 = vmatpush.bf16.msra.mxu0 %v1690
    %2232 = vmatpush.bf16.msra.mxu0 %v1689
    %2233 = vmatpush.bf16.msra.mxu0 %v1688
    %2234 = vmatpush.bf16.msra.mxu0 %v1687
    %2235 = vmatpush.bf16.msra.mxu0 %v1686
    %2236 = vmatmul.bf16.gmra.mxu0 %v550
    %v2237 = vpop.f32.mrf.mxu0
    %v2238 = vadd.f32 %v2225, %v2237
    %v2239 = vpop.f32.mrf.mxu0
    %2240 = vdwg.mxu0
    %2241 = vmatpush.bf16.msra.mxu0 %v1701
    %2242 = vmatpush.bf16.msra.mxu0 %v1700
    %2243 = vmatpush.bf16.msra.mxu0 %v1699
    %2244 = vmatpush.bf16.msra.mxu0 %v1698
    %2245 = vmatpush.bf16.msra.mxu0 %v1697
    %2246 = vmatpush.bf16.msra.mxu0 %v1696
    %2247 = vmatpush.bf16.msra.mxu0 %v1695
    %2248 = vmatpush.bf16.msra.mxu0 %v1694
    %2249 = vmatmul.bf16.gmra.mxu0 %v551
    %v2250 = vpop.f32.mrf.mxu0
    %v2251 = vadd.f32 %v2238, %v2250
    %v2252 = vpop.f32.mrf.mxu0
    %2253 = vdwg.mxu0
    %2254 = vmatpush.bf16.msra.mxu0 %v1709
    %2255 = vmatpush.bf16.msra.mxu0 %v1708
    %2256 = vmatpush.bf16.msra.mxu0 %v1707
    %2257 = vmatpush.bf16.msra.mxu0 %v1706
    %2258 = vmatpush.bf16.msra.mxu0 %v1705
    %2259 = vmatpush.bf16.msra.mxu0 %v1704
    %2260 = vmatpush.bf16.msra.mxu0 %v1703
    %2261 = vmatpush.bf16.msra.mxu0 %v1702
    %2262 = vmatmul.bf16.gmra.mxu0 %v554
    %v2263 = vpop.f32.mrf.mxu0
    %v2264 = vadd.f32 %v2251, %v2263
    %v2265 = vpop.f32.mrf.mxu0
    %2266 = vdwg.mxu0
    %2267 = vmatpush.bf16.msra.mxu0 %v1717
    %2268 = vmatpush.bf16.msra.mxu0 %v1716
    %2269 = vmatpush.bf16.msra.mxu0 %v1715
    %2270 = vmatpush.bf16.msra.mxu0 %v1714
    %2271 = vmatpush.bf16.msra.mxu0 %v1713
    %2272 = vmatpush.bf16.msra.mxu0 %v1712
    %2273 = vmatpush.bf16.msra.mxu0 %v1711
    %2274 = vmatpush.bf16.msra.mxu0 %v1710
    %2275 = vmatmul.bf16.gmra.mxu0 %v555
    %v2276 = vpop.f32.mrf.mxu0
    %v2277 = vadd.f32 %v2264, %v2276
    %v2278 = vpop.f32.mrf.mxu0
    %2279 = vdwg.mxu0
    %2280 = vmatpush.bf16.msra.mxu0 %v1725
    %2281 = vmatpush.bf16.msra.mxu0 %v1724
    %2282 = vmatpush.bf16.msra.mxu0 %v1723
    %2283 = vmatpush.bf16.msra.mxu0 %v1722
    %2284 = vmatpush.bf16.msra.mxu0 %v1721
    %2285 = vmatpush.bf16.msra.mxu0 %v1720
    %2286 = vmatpush.bf16.msra.mxu0 %v1719
    %2287 = vmatpush.bf16.msra.mxu0 %v1718
    %2288 = vmatmul.bf16.gmra.mxu0 %v556
    %v2289 = vpop.f32.mrf.mxu0
    %v2290 = vadd.f32 %v2277, %v2289
    %v2291 = vpop.f32.mrf.mxu0
    %2292 = vdwg.mxu0
    %2293 = vmatpush.bf16.msra.mxu0 %v1733
    %2294 = vmatpush.bf16.msra.mxu0 %v1732
    %2295 = vmatpush.bf16.msra.mxu0 %v1731
    %2296 = vmatpush.bf16.msra.mxu0 %v1730
    %2297 = vmatpush.bf16.msra.mxu0 %v1729
    %2298 = vmatpush.bf16.msra.mxu0 %v1728
    %2299 = vmatpush.bf16.msra.mxu0 %v1727
    %2300 = vmatpush.bf16.msra.mxu0 %v1726
    %2301 = vmatmul.bf16.gmra.mxu0 %v557
    %v2302 = vpop.f32.mrf.mxu0
    %v2303 = vadd.f32 %v2290, %v2302
    %v2304 = vpop.f32.mrf.mxu0
    %2305 = vdwg.mxu0
    %2306 = vmatpush.bf16.msra.mxu0 %v1741
    %2307 = vmatpush.bf16.msra.mxu0 %v1740
    %2308 = vmatpush.bf16.msra.mxu0 %v1739
    %2309 = vmatpush.bf16.msra.mxu0 %v1738
    %2310 = vmatpush.bf16.msra.mxu0 %v1737
    %2311 = vmatpush.bf16.msra.mxu0 %v1736
    %2312 = vmatpush.bf16.msra.mxu0 %v1735
    %2313 = vmatpush.bf16.msra.mxu0 %v1734
    %2314 = vmatmul.bf16.gmra.mxu0 %v558
    %v2315 = vpop.f32.mrf.mxu0
    %v2316 = vadd.f32 %v2303, %v2315
    %v2317 = vpop.f32.mrf.mxu0
    %2318 = vdwg.mxu0
    %2319 = vmatpush.bf16.msra.mxu0 %v1749
    %2320 = vmatpush.bf16.msra.mxu0 %v1748
    %2321 = vmatpush.bf16.msra.mxu0 %v1747
    %2322 = vmatpush.bf16.msra.mxu0 %v1746
    %2323 = vmatpush.bf16.msra.mxu0 %v1745
    %2324 = vmatpush.bf16.msra.mxu0 %v1744
    %2325 = vmatpush.bf16.msra.mxu0 %v1743
    %2326 = vmatpush.bf16.msra.mxu0 %v1742
    %2327 = vmatmul.bf16.gmra.mxu0 %v559
    %v2328 = vpop.f32.mrf.mxu0
    %v2329 = vadd.f32 %v2316, %v2328
    %v2330 = vpop.f32.mrf.mxu0
    %2331 = vdwg.mxu0
    %2332 = vmatpush.bf16.msra.mxu0 %v1757
    %2333 = vmatpush.bf16.msra.mxu0 %v1756
    %2334 = vmatpush.bf16.msra.mxu0 %v1755
    %2335 = vmatpush.bf16.msra.mxu0 %v1754
    %2336 = vmatpush.bf16.msra.mxu0 %v1753
    %2337 = vmatpush.bf16.msra.mxu0 %v1752
    %2338 = vmatpush.bf16.msra.mxu0 %v1751
    %2339 = vmatpush.bf16.msra.mxu0 %v1750
    %2340 = vmatmul.bf16.gmra.mxu0 %v560
    %v2341 = vpop.f32.mrf.mxu0
    %v2342 = vadd.f32 %v2329, %v2341
    %v2343 = vpop.f32.mrf.mxu0
    %2344 = vdwg.mxu0
    %2345 = vmatpush.bf16.msra.mxu0 %v1765
    %2346 = vmatpush.bf16.msra.mxu0 %v1764
    %2347 = vmatpush.bf16.msra.mxu0 %v1763
    %2348 = vmatpush.bf16.msra.mxu0 %v1762
    %2349 = vmatpush.bf16.msra.mxu0 %v1761
    %2350 = vmatpush.bf16.msra.mxu0 %v1760
    %2351 = vmatpush.bf16.msra.mxu0 %v1759
    %2352 = vmatpush.bf16.msra.mxu0 %v1758
    %2353 = vmatmul.bf16.gmra.mxu0 %v561
    %v2354 = vpop.f32.mrf.mxu0
    %v2355 = vadd.f32 %v2342, %v2354
    %v2356 = vpop.f32.mrf.mxu0
    %2357 = vdwg.mxu0
    %2358 = vmatpush.bf16.msra.mxu0 %v1773
    %2359 = vmatpush.bf16.msra.mxu0 %v1772
    %2360 = vmatpush.bf16.msra.mxu0 %v1771
    %2361 = vmatpush.bf16.msra.mxu0 %v1770
    %2362 = vmatpush.bf16.msra.mxu0 %v1769
    %2363 = vmatpush.bf16.msra.mxu0 %v1768
    %2364 = vmatpush.bf16.msra.mxu0 %v1767
    %2365 = vmatpush.bf16.msra.mxu0 %v1766
    %2366 = vmatmul.bf16.gmra.mxu0 %v564
    %v2367 = vpop.f32.mrf.mxu0
    %v2368 = vadd.f32 %v2355, %v2367
    %v2369 = vpop.f32.mrf.mxu0
    %2370 = vdwg.mxu0
    %2371 = vmatpush.bf16.msra.mxu0 %v1781
    %2372 = vmatpush.bf16.msra.mxu0 %v1780
    %2373 = vmatpush.bf16.msra.mxu0 %v1779
    %2374 = vmatpush.bf16.msra.mxu0 %v1778
    %2375 = vmatpush.bf16.msra.mxu0 %v1777
    %2376 = vmatpush.bf16.msra.mxu0 %v1776
    %2377 = vmatpush.bf16.msra.mxu0 %v1775
    %2378 = vmatpush.bf16.msra.mxu0 %v1774
    %2379 = vmatmul.bf16.gmra.mxu0 %v565
    %v2380 = vpop.f32.mrf.mxu0
    %v2381 = vadd.f32 %v2368, %v2380
    %v2382 = vpop.f32.mrf.mxu0
    %2383 = vdwg.mxu0
    %2384 = vmatpush.bf16.msra.mxu0 %v1789
    %2385 = vmatpush.bf16.msra.mxu0 %v1788
    %2386 = vmatpush.bf16.msra.mxu0 %v1787
    %2387 = vmatpush.bf16.msra.mxu0 %v1786
    %2388 = vmatpush.bf16.msra.mxu0 %v1785
    %2389 = vmatpush.bf16.msra.mxu0 %v1784
    %2390 = vmatpush.bf16.msra.mxu0 %v1783
    %2391 = vmatpush.bf16.msra.mxu0 %v1782
    %2392 = vmatmul.bf16.gmra.mxu0 %v566
    %v2393 = vpop.f32.mrf.mxu0
    %v2394 = vadd.f32 %v2381, %v2393
    %v2395 = vpop.f32.mrf.mxu0
    %2396 = vdwg.mxu0
    %2397 = vmatpush.bf16.msra.mxu0 %v1797
    %2398 = vmatpush.bf16.msra.mxu0 %v1796
    %2399 = vmatpush.bf16.msra.mxu0 %v1795
    %2400 = vmatpush.bf16.msra.mxu0 %v1794
    %2401 = vmatpush.bf16.msra.mxu0 %v1793
    %2402 = vmatpush.bf16.msra.mxu0 %v1792
    %2403 = vmatpush.bf16.msra.mxu0 %v1791
    %2404 = vmatpush.bf16.msra.mxu0 %v1790
    %2405 = vmatmul.bf16.gmra.mxu0 %v567
    %v2406 = vpop.f32.mrf.mxu0
    %v2407 = vadd.f32 %v2394, %v2406
    %v2408 = vpop.f32.mrf.mxu0
    %2409 = vdwg.mxu0
    %2410 = vmatpush.bf16.msra.mxu0 %v1805
    %2411 = vmatpush.bf16.msra.mxu0 %v1804
    %2412 = vmatpush.bf16.msra.mxu0 %v1803
    %2413 = vmatpush.bf16.msra.mxu0 %v1802
    %2414 = vmatpush.bf16.msra.mxu0 %v1801
    %2415 = vmatpush.bf16.msra.mxu0 %v1800
    %2416 = vmatpush.bf16.msra.mxu0 %v1799
    %2417 = vmatpush.bf16.msra.mxu0 %v1798
    %2418 = vmatmul.bf16.gmra.mxu0 %v568
    %v2419 = vpop.f32.mrf.mxu0
    %v2420 = vadd.f32 %v2407, %v2419
    %v2421 = vpop.f32.mrf.mxu0
    %2422 = vdwg.mxu0
    %2423 = vmatpush.bf16.msra.mxu0 %v1813
    %2424 = vmatpush.bf16.msra.mxu0 %v1812
    %2425 = vmatpush.bf16.msra.mxu0 %v1811
    %2426 = vmatpush.bf16.msra.mxu0 %v1810
    %2427 = vmatpush.bf16.msra.mxu0 %v1809
    %2428 = vmatpush.bf16.msra.mxu0 %v1808
    %2429 = vmatpush.bf16.msra.mxu0 %v1807
    %2430 = vmatpush.bf16.msra.mxu0 %v1806
    %2431 = vmatmul.bf16.gmra.mxu0 %v569
    %v2432 = vpop.f32.mrf.mxu0
    %v2433 = vadd.f32 %v2420, %v2432
    %v2434 = vpop.f32.mrf.mxu0
    %2435 = vdwg.mxu0
    %2436 = vmatpush.bf16.msra.mxu0 %v1821
    %2437 = vmatpush.bf16.msra.mxu0 %v1820
    %2438 = vmatpush.bf16.msra.mxu0 %v1819
    %2439 = vmatpush.bf16.msra.mxu0 %v1818
    %2440 = vmatpush.bf16.msra.mxu0 %v1817
    %2441 = vmatpush.bf16.msra.mxu0 %v1816
    %2442 = vmatpush.bf16.msra.mxu0 %v1815
    %2443 = vmatpush.bf16.msra.mxu0 %v1814
    %2444 = vmatmul.bf16.gmra.mxu0 %v570
    %v2445 = vpop.f32.mrf.mxu0
    %v2446 = vadd.f32 %v2433, %v2445
    %v2447 = vpop.f32.mrf.mxu0
    %2448 = vdwg.mxu0
    %2449 = vmatpush.bf16.msra.mxu0 %v1829
    %2450 = vmatpush.bf16.msra.mxu0 %v1828
    %2451 = vmatpush.bf16.msra.mxu0 %v1827
    %2452 = vmatpush.bf16.msra.mxu0 %v1826
    %2453 = vmatpush.bf16.msra.mxu0 %v1825
    %2454 = vmatpush.bf16.msra.mxu0 %v1824
    %2455 = vmatpush.bf16.msra.mxu0 %v1823
    %2456 = vmatpush.bf16.msra.mxu0 %v1822
    %2457 = vmatmul.bf16.gmra.mxu0 %v571
    %v2458 = vpop.f32.mrf.mxu0
    %v2459 = vadd.f32 %v2446, %v2458
    %v2460 = vpop.f32.mrf.mxu0
    %2461 = vdwg.mxu0
    %2462 = vmatpush.bf16.msra.mxu0 %v1837
    %2463 = vmatpush.bf16.msra.mxu0 %v1836
    %2464 = vmatpush.bf16.msra.mxu0 %v1835
    %2465 = vmatpush.bf16.msra.mxu0 %v1834
    %2466 = vmatpush.bf16.msra.mxu0 %v1833
    %2467 = vmatpush.bf16.msra.mxu0 %v1832
    %2468 = vmatpush.bf16.msra.mxu0 %v1831
    %2469 = vmatpush.bf16.msra.mxu0 %v1830
    %2470 = vmatmul.bf16.gmra.mxu0 %v574
    %v2471 = vpop.f32.mrf.mxu0
    %v2472 = vadd.f32 %v2459, %v2471
    %v2473 = vpop.f32.mrf.mxu0
    %2474 = vdwg.mxu0
    %2475 = vmatpush.bf16.msra.mxu0 %v1845
    %2476 = vmatpush.bf16.msra.mxu0 %v1844
    %2477 = vmatpush.bf16.msra.mxu0 %v1843
    %2478 = vmatpush.bf16.msra.mxu0 %v1842
    %2479 = vmatpush.bf16.msra.mxu0 %v1841
    %2480 = vmatpush.bf16.msra.mxu0 %v1840
    %2481 = vmatpush.bf16.msra.mxu0 %v1839
    %2482 = vmatpush.bf16.msra.mxu0 %v1838
    %2483 = vmatmul.bf16.gmra.mxu0 %v575
    %v2484 = vpop.f32.mrf.mxu0
    %v2485 = vadd.f32 %v2472, %v2484
    %v2486 = vpop.f32.mrf.mxu0
    %2487 = vdwg.mxu0
    %2488 = vmatpush.bf16.msra.mxu0 %v1853
    %2489 = vmatpush.bf16.msra.mxu0 %v1852
    %2490 = vmatpush.bf16.msra.mxu0 %v1851
    %2491 = vmatpush.bf16.msra.mxu0 %v1850
    %2492 = vmatpush.bf16.msra.mxu0 %v1849
    %2493 = vmatpush.bf16.msra.mxu0 %v1848
    %2494 = vmatpush.bf16.msra.mxu0 %v1847
    %2495 = vmatpush.bf16.msra.mxu0 %v1846
    %2496 = vmatmul.bf16.gmra.mxu0 %v576
    %v2497 = vpop.f32.mrf.mxu0
    %v2498 = vadd.f32 %v2485, %v2497
    %v2499 = vpop.f32.mrf.mxu0
    %2500 = vdwg.mxu0
    %2501 = vmatpush.bf16.msra.mxu0 %v1861
    %2502 = vmatpush.bf16.msra.mxu0 %v1860
    %2503 = vmatpush.bf16.msra.mxu0 %v1859
    %2504 = vmatpush.bf16.msra.mxu0 %v1858
    %2505 = vmatpush.bf16.msra.mxu0 %v1857
    %2506 = vmatpush.bf16.msra.mxu0 %v1856
    %2507 = vmatpush.bf16.msra.mxu0 %v1855
    %2508 = vmatpush.bf16.msra.mxu0 %v1854
    %2509 = vmatmul.bf16.gmra.mxu0 %v577
    %v2510 = vpop.f32.mrf.mxu0
    %v2511 = vadd.f32 %v2498, %v2510
    %v2512 = vpop.f32.mrf.mxu0
    %2513 = vdwg.mxu0
    %2514 = vmatpush.bf16.msra.mxu0 %v1869
    %2515 = vmatpush.bf16.msra.mxu0 %v1868
    %2516 = vmatpush.bf16.msra.mxu0 %v1867
    %2517 = vmatpush.bf16.msra.mxu0 %v1866
    %2518 = vmatpush.bf16.msra.mxu0 %v1865
    %2519 = vmatpush.bf16.msra.mxu0 %v1864
    %2520 = vmatpush.bf16.msra.mxu0 %v1863
    %2521 = vmatpush.bf16.msra.mxu0 %v1862
    %2522 = vmatmul.bf16.gmra.mxu0 %v578
    %v2523 = vpop.f32.mrf.mxu0
    %v2524 = vadd.f32 %v2511, %v2523
    %v2525 = vpop.f32.mrf.mxu0
    %2526 = vdwg.mxu0
    %2527 = vmatpush.bf16.msra.mxu0 %v1877
    %2528 = vmatpush.bf16.msra.mxu0 %v1876
    %2529 = vmatpush.bf16.msra.mxu0 %v1875
    %2530 = vmatpush.bf16.msra.mxu0 %v1874
    %2531 = vmatpush.bf16.msra.mxu0 %v1873
    %2532 = vmatpush.bf16.msra.mxu0 %v1872
    %2533 = vmatpush.bf16.msra.mxu0 %v1871
    %2534 = vmatpush.bf16.msra.mxu0 %v1870
    %2535 = vmatmul.bf16.gmra.mxu0 %v579
    %v2536 = vpop.f32.mrf.mxu0
    %v2537 = vadd.f32 %v2524, %v2536
    %v2538 = vpop.f32.mrf.mxu0
    %2539 = vdwg.mxu0
    %2540 = vmatpush.bf16.msra.mxu0 %v1885
    %2541 = vmatpush.bf16.msra.mxu0 %v1884
    %2542 = vmatpush.bf16.msra.mxu0 %v1883
    %2543 = vmatpush.bf16.msra.mxu0 %v1882
    %2544 = vmatpush.bf16.msra.mxu0 %v1881
    %2545 = vmatpush.bf16.msra.mxu0 %v1880
    %2546 = vmatpush.bf16.msra.mxu0 %v1879
    %2547 = vmatpush.bf16.msra.mxu0 %v1878
    %2548 = vmatmul.bf16.gmra.mxu0 %v580
    %v2549 = vpop.f32.mrf.mxu0
    %v2550 = vadd.f32 %v2537, %v2549
    %v2551 = vpop.f32.mrf.mxu0
    %2552 = vdwg.mxu0
    %2553 = vmatpush.bf16.msra.mxu0 %v1893
    %2554 = vmatpush.bf16.msra.mxu0 %v1892
    %2555 = vmatpush.bf16.msra.mxu0 %v1891
    %2556 = vmatpush.bf16.msra.mxu0 %v1890
    %2557 = vmatpush.bf16.msra.mxu0 %v1889
    %2558 = vmatpush.bf16.msra.mxu0 %v1888
    %2559 = vmatpush.bf16.msra.mxu0 %v1887
    %2560 = vmatpush.bf16.msra.mxu0 %v1886
    %2561 = vmatmul.bf16.gmra.mxu0 %v581
    %v2562 = vpop.f32.mrf.mxu0
    %v2563 = vadd.f32 %v2550, %v2562
    %v2564 = vpop.f32.mrf.mxu0
    %2565 = vdwg.mxu0
    %v2566 = vmax.f32 %v2563, 0.0
    %v2567 = vpack.c.bf16 %v2566, %v2566
    %v2568 = vld [vmem:[%s3] sm:$0xf]
    %v2569 = vld [vmem:[%s3 + $0x4] sm:$0xf]
    %v2570 = vld [vmem:[%s3 + $0x8] sm:$0xf]
    %v2571 = vld [vmem:[%s3 + $0xc] sm:$0xf]
    %v2572 = vld [vmem:[%s3 + $0x10] sm:$0xf]
    %v2573 = vld [vmem:[%s3 + $0x14] sm:$0xf]
    %v2574 = vld [vmem:[%s3 + $0x18] sm:$0xf]
    %v2575 = vld [vmem:[%s3 + $0x1c] sm:$0xf]
    %v2576 = vld [vmem:[%s4] sm:$0x1]
    %v2578 = vperm.slane %v2576, 0
    %v2588 = vunpack.c.l.b16 %v2568
    %v2589 = vunpack.c.l.b16 %v2569
    %v2590 = vunpack.c.l.b16 %v2570
    %v2591 = vunpack.c.l.b16 %v2571
    %v2592 = vunpack.c.l.b16 %v2572
    %v2593 = vunpack.c.l.b16 %v2573
    %v2594 = vunpack.c.l.b16 %v2574
    %v2595 = vunpack.c.l.b16 %v2575
    %v2596 = vpack.c.b16 %v2589, %v2588
    %v2597 = vpack.c.b16 %v2591, %v2590
    %v2598 = vpack.c.b16 %v2593, %v2592
    %v2599 = vpack.c.b16 %v2595, %v2594
    %vm2604 = vcmask 523264
    %v2606 = vsel %vm2604, %v2567, 0
    %2608 = vmatpush.bf16.msra.mxu0 0
    %2609 = vmatpush.bf16.msra.mxu0 0
    %2610 = vmatpush.bf16.msra.mxu0 0
    %2611 = vmatpush.bf16.msra.mxu0 0
    %2612 = vmatpush.bf16.msra.mxu0 %v2599
    %2613 = vmatpush.bf16.msra.mxu0 %v2598
    %2614 = vmatpush.bf16.msra.mxu0 %v2597
    %2615 = vmatpush.bf16.msra.mxu0 %v2596
    %2616 = vmatmul.bf16.gmra.mxu0 %v2606
    %v2617 = vpop.f32.mrf.mxu0
    %v2618 = vadd.f32 %v2578, %v2617
    %v2619 = vpop.f32.mrf.mxu0
    %2620 = vdwg.mxu0
    %2621 = vst [vmem:[#allocation2] sm:$0x3] %v2618
    // Predicated region
    $region22: #{cnn_forward.3} parent=1 // pred_check
      _
    $region23: #{cnn_forward.3} parent=1 // pred_check_branch
      %2623 = sbr.rel (0) target = $region25
    $region24: #{cnn_forward.3} parent=1 // pred_region
      %2625 = vsyncadd [#allocation3], 0
      %s2627 = sshll.u32 [#allocation2], 4
      %s2628 = int_to_ptr.vmem [resolvable:$true] %s2627
      %s2629 = sshll.u32 %s5, 4
      %s2630 = int_to_ptr.hbm [resolvable:$true] %s2629
      %2632 = dma.vmem_to_hbm [thread:$0]  %s2628, 32, %s2630, [#allocation3]
    $region25: #{cnn_forward.3} parent=1 // pred_fallthru
      _
    // Predicated region
    $region26: #{cnn_forward.3} parent=1 // pred_check
      _
    $region27: #{cnn_forward.3} parent=1 // pred_check_branch
      %2634 = sbr.rel (0) target = $region29
    $region28: #{cnn_forward.3} parent=1 // pred_region
      %2636 = dma.done [#allocation3], 32
    $region29: #{cnn_forward.3} parent=1 // pred_fallthru
      _
    %2637 = vsyncpa [#allocation3], 1

// kernel: cnn_forward.2
$region0: #{cnn_forward.2}
  #allocation0 [shape = 'u32[]', space=smem, size = 0x4, offset = 0x4, fixed_abs, tag = 'smem constant byte address 0x4 - core index']
  #allocation1 [shape = 'u32[72,128]{1,0:T(1,128)}', space=vmem, size = 0x9000, scoped, tag = 'internal scratch']
  %s0 = inlined_call_operand.vmem [shape: bf16[2,17,256], index: 0, kind: input, shape index: {}]
  %s1 = inlined_call_operand.hbm [shape: bf16[256,1024], index: 1, kind: input, shape index: {}]
  %s2 = inlined_call_operand.hbm [shape: bf16[256,1024], index: 2, kind: input, shape index: {}]
  %s3 = inlined_call_operand.hbm [shape: bf16[256,1024], index: 3, kind: input, shape index: {}]
  %s4 = inlined_call_operand.vmem [shape: f32[1,256], index: 4, kind: input, shape index: {}]
  %s5 = inlined_call_operand.hbm [shape: bf16[256,1024], index: 5, kind: input, shape index: {}]
  %s6 = inlined_call_operand.hbm [shape: bf16[256,1024], index: 6, kind: input, shape index: {}]
  %s7 = inlined_call_operand.hbm [shape: bf16[256,1024], index: 7, kind: input, shape index: {}]
  %s8 = inlined_call_operand.hbm [shape: bf16[256,1024], index: 8, kind: input, shape index: {}]
  %s9 = inlined_call_operand.vmem [shape: f32[1,256], index: 9, kind: input, shape index: {}]
  %s10 = inlined_call_operand.vmem [shape: bf16[2,16,256], index: 10, kind: output, shape index: {}]
  %s11 = sld [smem:[#allocation0]]
  $region101: #{cnn_forward.2} parent=0
    _
  %s13 = ssub.s32 1, %s11
  %s14 = scalar_select 0, %s13, %s11
  $region1: #{cnn_forward.2} parent=0
    #allocation2 [shape = 'u8[524288]{0}', space=vmem, size = 0x80000, scoped, tag = 'input window, operand 1, single buffered']
    #allocation3 [shape = 's32[2]{0}', space=sflag, size = 0x8, scoped, tag = 'scoped memory for cnn_forward.2']
    #allocation4 [shape = 'u8[524288]{0}', space=vmem, size = 0x80000, scoped, tag = 'input window, operand 2, single buffered']
    #allocation5 [shape = 's32[1]{0}', space=sflag, size = 0x4, scoped, tag = 'scoped memory for cnn_forward.2']
    #allocation6 [shape = 'u8[524288]{0}', space=vmem, size = 0x80000, scoped, tag = 'input window, operand 3, single buffered']
    #allocation7 [shape = 'u8[524288]{0}', space=vmem, size = 0x80000, scoped, tag = 'input window, operand 5, single buffered']
    #allocation8 [shape = 's32[1]{0}', space=sflag, size = 0x4, scoped, tag = 'scoped memory for cnn_forward.2']
    #allocation9 [shape = 'u8[524288]{0}', space=vmem, size = 0x80000, scoped, tag = 'input window, operand 6, single buffered']
    #allocation10 [shape = 'u8[524288]{0}', space=vmem, size = 0x80000, scoped, tag = 'input window, operand 7, single buffered']
    #allocation11 [shape = 's32[1]{0}', space=sflag, size = 0x4, scoped, tag = 'scoped memory for cnn_forward.2']
    #allocation12 [shape = 'u8[524288]{0}', space=vmem, size = 0x80000, scoped, tag = 'input window, operand 8, single buffered']
    %15 = vsyncpa [#allocation3], 0
    %16 = vsyncpa [#allocation5], 0
    %17 = vsyncpa [#allocation8], 0
    %18 = vsyncpa [#allocation11], 0
    loop: start=0, step=1, limit=4
    $region2: #{cnn_forward.2} parent=1 // loop_pre_header
      _
    $region3: #{cnn_forward.2} parent=1 // loop_header
      %s20 = sphi 0, %s24
      %p21 = scmp.ge.s32.totalorder %s20, 4
      %s30 = sphi 0, %s32
      %s33 = sphi 0, %s30
      %s34 = sphi 0, %s33
      %s50 = sphi 0, %s34
      %s54 = sphi 0, %s54
      %s56 = sphi 0, %s54
      %s57 = sphi 0, %s56
      %s71 = sphi 0, %s57
      %s75 = sphi 0, %s75
      %s77 = sphi 0, %s75
      %s78 = sphi 0, %s77
      %s92 = sphi 0, %s78
      %s96 = sphi 0, %s96
      %s98 = sphi 0, %s96
      %s99 = sphi 0, %s98
      %s113 = sphi 0, %s99
      %s117 = sphi 0, %s117
      %s119 = sphi 0, %s117
      %s120 = sphi 0, %s119
      %s134 = sphi 0, %s120
      %s138 = sphi 0, %s138
      %s140 = sphi 0, %s138
      %s141 = sphi 0, %s140
      %s155 = sphi 0, %s141
      %s159 = sphi 0, %s159
      %s161 = sphi 0, %s159
      %s162 = sphi 0, %s161
      %s176 = sphi 0, %s162
      %s180 = sphi 0, %s180
      %s182 = sphi 0, %s180
      %s183 = sphi 0, %s182
      %s197 = sphi 0, %s183
      %s201 = sphi 0, %s201
      %s203 = sphi 0, %s201
      %s204 = sphi 0, %s203
      %s218 = sphi 0, %s204
      %s222 = sphi 0, %s222
      %s224 = sphi 0, %s222
      %s225 = sphi 0, %s224
      %s239 = sphi 0, %s225
      %s245 = sphi 0, %s247
      %s248 = sphi 0, %s245
      %s249 = sphi 0, %s248
      %s265 = sphi 0, %s249
    $region4: #{cnn_forward.2} parent=1 // loop_header_branch
      %23 = sbr.rel (%p21) target = $region8
    $region5: #{cnn_forward.2} parent=1 // loop_body
      %s25 = ssub.s32 %s20, 1
      %s26 = ssub.s32 %s20, 2
      %s27 = sadd.s32 %s20, 1
      %s28 = ssub.s32 %s20, %s27
      %p29 = scmp.eq.s32.totalorder %s28, 0
      %s31 = sadd.s32 %s30, 1
      %s32 = scalar_select %p29, %s30, %s31
      %p35 = pneg %p29
      %p36 = scmp.eq.s32.totalorder %s20, 1
      %p37 = por %p35, %p36
      %p38 = scmp.ne.s32.totalorder %s30, %s33
      %p39 = scmp.eq.s32.totalorder %s20, 0
      %p40 = por %p38, %p39
      %p41 = scmp.ne.s32.totalorder %s30, %s33
      %p42 = scmp.eq.s32.totalorder %s25, 1
      %p43 = por %p41, %p42
      %p44 = scmp.ne.s32.totalorder %s33, %s34
      %p45 = scmp.eq.s32.totalorder %s25, 0
      %p46 = por %p44, %p45
      %p47 = scmp.ne.s32.totalorder %s33, %s34
      %p48 = scmp.eq.s32.totalorder %s26, 1
      %p49 = por %p47, %p48
      %p51 = scmp.ne.s32.totalorder %s34, %s50
      %p52 = scmp.eq.s32.totalorder %s26, 0
      %p53 = por %p51, %p52
      %s55 = sadd.s32 %s54, 1
      %p58 = scmp.eq.s32.totalorder %s20, 1
      %p59 = scmp.ne.s32.totalorder %s54, %s56
      %p60 = scmp.eq.s32.totalorder %s20, 0
      %p61 = por %p59, %p60
      %p62 = scmp.ne.s32.totalorder %s54, %s56
      %p63 = scmp.eq.s32.totalorder %s25, 1
      %p64 = por %p62, %p63
      %p65 = scmp.ne.s32.totalorder %s56, %s57
      %p66 = scmp.eq.s32.totalorder %s25, 0
      %p67 = por %p65, %p66
      %p68 = scmp.ne.s32.totalorder %s56, %s57
      %p69 = scmp.eq.s32.totalorder %s26, 1
      %p70 = por %p68, %p69
      %p72 = scmp.ne.s32.totalorder %s57, %s71
      %p73 = scmp.eq.s32.totalorder %s26, 0
      %p74 = por %p72, %p73
      %s76 = sadd.s32 %s75, 1
      %p79 = scmp.eq.s32.totalorder %s20, 1
      %p80 = scmp.ne.s32.totalorder %s75, %s77
      %p81 = scmp.eq.s32.totalorder %s20, 0
      %p82 = por %p80, %p81
      %p83 = scmp.ne.s32.totalorder %s75, %s77
      %p84 = scmp.eq.s32.totalorder %s25, 1
      %p85 = por %p83, %p84
      %p86 = scmp.ne.s32.totalorder %s77, %s78
      %p87 = scmp.eq.s32.totalorder %s25, 0
      %p88 = por %p86, %p87
      %p89 = scmp.ne.s32.totalorder %s77, %s78
      %p90 = scmp.eq.s32.totalorder %s26, 1
      %p91 = por %p89, %p90
      %p93 = scmp.ne.s32.totalorder %s78, %s92
      %p94 = scmp.eq.s32.totalorder %s26, 0
      %p95 = por %p93, %p94
      %s97 = sadd.s32 %s96, 1
      %p100 = scmp.eq.s32.totalorder %s20, 1
      %p101 = scmp.ne.s32.totalorder %s96, %s98
      %p102 = scmp.eq.s32.totalorder %s20, 0
      %p103 = por %p101, %p102
      %p104 = scmp.ne.s32.totalorder %s96, %s98
      %p105 = scmp.eq.s32.totalorder %s25, 1
      %p106 = por %p104, %p105
      %p107 = scmp.ne.s32.totalorder %s98, %s99
      %p108 = scmp.eq.s32.totalorder %s25, 0
      %p109 = por %p107, %p108
      %p110 = scmp.ne.s32.totalorder %s98, %s99
      %p111 = scmp.eq.s32.totalorder %s26, 1
      %p112 = por %p110, %p111
      %p114 = scmp.ne.s32.totalorder %s99, %s113
      %p115 = scmp.eq.s32.totalorder %s26, 0
      %p116 = por %p114, %p115
      %s118 = sadd.s32 %s117, 1
      %p121 = scmp.eq.s32.totalorder %s20, 1
      %p122 = scmp.ne.s32.totalorder %s117, %s119
      %p123 = scmp.eq.s32.totalorder %s20, 0
      %p124 = por %p122, %p123
      %p125 = scmp.ne.s32.totalorder %s117, %s119
      %p126 = scmp.eq.s32.totalorder %s25, 1
      %p127 = por %p125, %p126
      %p128 = scmp.ne.s32.totalorder %s119, %s120
      %p129 = scmp.eq.s32.totalorder %s25, 0
      %p130 = por %p128, %p129
      %p131 = scmp.ne.s32.totalorder %s119, %s120
      %p132 = scmp.eq.s32.totalorder %s26, 1
      %p133 = por %p131, %p132
      %p135 = scmp.ne.s32.totalorder %s120, %s134
      %p136 = scmp.eq.s32.totalorder %s26, 0
      %p137 = por %p135, %p136
      %s139 = sadd.s32 %s138, 1
      %p142 = scmp.eq.s32.totalorder %s20, 1
      %p143 = scmp.ne.s32.totalorder %s138, %s140
      %p144 = scmp.eq.s32.totalorder %s20, 0
      %p145 = por %p143, %p144
      %p146 = scmp.ne.s32.totalorder %s138, %s140
      %p147 = scmp.eq.s32.totalorder %s25, 1
      %p148 = por %p146, %p147
      %p149 = scmp.ne.s32.totalorder %s140, %s141
      %p150 = scmp.eq.s32.totalorder %s25, 0
      %p151 = por %p149, %p150
      %p152 = scmp.ne.s32.totalorder %s140, %s141
      %p153 = scmp.eq.s32.totalorder %s26, 1
      %p154 = por %p152, %p153
      %p156 = scmp.ne.s32.totalorder %s141, %s155
      %p157 = scmp.eq.s32.totalorder %s26, 0
      %p158 = por %p156, %p157
      %s160 = sadd.s32 %s159, 1
      %p163 = scmp.eq.s32.totalorder %s20, 1
      %p164 = scmp.ne.s32.totalorder %s159, %s161
      %p165 = scmp.eq.s32.totalorder %s20, 0
      %p166 = por %p164, %p165
      %p167 = scmp.ne.s32.totalorder %s159, %s161
      %p168 = scmp.eq.s32.totalorder %s25, 1
      %p169 = por %p167, %p168
      %p170 = scmp.ne.s32.totalorder %s161, %s162
      %p171 = scmp.eq.s32.totalorder %s25, 0
      %p172 = por %p170, %p171
      %p173 = scmp.ne.s32.totalorder %s161, %s162
      %p174 = scmp.eq.s32.totalorder %s26, 1
      %p175 = por %p173, %p174
      %p177 = scmp.ne.s32.totalorder %s162, %s176
      %p178 = scmp.eq.s32.totalorder %s26, 0
      %p179 = por %p177, %p178
      %s181 = sadd.s32 %s180, 1
      %p184 = scmp.eq.s32.totalorder %s20, 1
      %p185 = scmp.ne.s32.totalorder %s180, %s182
      %p186 = scmp.eq.s32.totalorder %s20, 0
      %p187 = por %p185, %p186
      %p188 = scmp.ne.s32.totalorder %s180, %s182
      %p189 = scmp.eq.s32.totalorder %s25, 1
      %p190 = por %p188, %p189
      %p191 = scmp.ne.s32.totalorder %s182, %s183
      %p192 = scmp.eq.s32.totalorder %s25, 0
      %p193 = por %p191, %p192
      %p194 = scmp.ne.s32.totalorder %s182, %s183
      %p195 = scmp.eq.s32.totalorder %s26, 1
      %p196 = por %p194, %p195
      %p198 = scmp.ne.s32.totalorder %s183, %s197
      %p199 = scmp.eq.s32.totalorder %s26, 0
      %p200 = por %p198, %p199
      %s202 = sadd.s32 %s201, 1
      %p205 = scmp.eq.s32.totalorder %s20, 1
      %p206 = scmp.ne.s32.totalorder %s201, %s203
      %p207 = scmp.eq.s32.totalorder %s20, 0
      %p208 = por %p206, %p207
      %p209 = scmp.ne.s32.totalorder %s201, %s203
      %p210 = scmp.eq.s32.totalorder %s25, 1
      %p211 = por %p209, %p210
      %p212 = scmp.ne.s32.totalorder %s203, %s204
      %p213 = scmp.eq.s32.totalorder %s25, 0
      %p214 = por %p212, %p213
      %p215 = scmp.ne.s32.totalorder %s203, %s204
      %p216 = scmp.eq.s32.totalorder %s26, 1
      %p217 = por %p215, %p216
      %p219 = scmp.ne.s32.totalorder %s204, %s218
      %p220 = scmp.eq.s32.totalorder %s26, 0
      %p221 = por %p219, %p220
      %s223 = sadd.s32 %s222, 1
      %p226 = scmp.eq.s32.totalorder %s20, 1
      %p227 = scmp.ne.s32.totalorder %s222, %s224
      %p228 = scmp.eq.s32.totalorder %s20, 0
      %p229 = por %p227, %p228
      %p230 = scmp.ne.s32.totalorder %s222, %s224
      %p231 = scmp.eq.s32.totalorder %s25, 1
      %p232 = por %p230, %p231
      %p233 = scmp.ne.s32.totalorder %s224, %s225
      %p234 = scmp.eq.s32.totalorder %s25, 0
      %p235 = por %p233, %p234
      %p236 = scmp.ne.s32.totalorder %s224, %s225
      %p237 = scmp.eq.s32.totalorder %s26, 1
      %p238 = por %p236, %p237
      %p240 = scmp.ne.s32.totalorder %s225, %s239
      %p241 = scmp.eq.s32.totalorder %s26, 0
      %p242 = por %p240, %p241
      %s243 = ssub.s32 %s20, %s27
      %p244 = scmp.eq.s32.totalorder %s243, 0
      %s246 = sadd.s32 %s245, 1
      %s247 = scalar_select %p244, %s245, %s246
      %p250 = pneg %p244
      %p251 = scmp.eq.s32.totalorder %s20, 1
      %p252 = por %p250, %p251
      %p253 = scmp.ne.s32.totalorder %s245, %s248
      %p254 = scmp.eq.s32.totalorder %s20, 0
      %p255 = por %p253, %p254
      %p256 = scmp.ne.s32.totalorder %s245, %s248
      %p257 = scmp.eq.s32.totalorder %s25, 1
      %p258 = por %p256, %p257
      %p259 = scmp.ne.s32.totalorder %s248, %s249
      %p260 = scmp.eq.s32.totalorder %s25, 0
      %p261 = por %p259, %p260
      %p262 = scmp.ne.s32.totalorder %s248, %s249
      %p263 = scmp.eq.s32.totalorder %s26, 1
      %p264 = por %p262, %p263
      %p266 = scmp.ne.s32.totalorder %s249, %s265
      %p267 = scmp.eq.s32.totalorder %s26, 0
      %p268 = por %p266, %p267
      %p269 = scmp.le.s32.totalorder 1, %s20
      %p270 = scmp.lt.s32.totalorder %s20, 3
      %p271 = pnand %p269, %p270
      %p272 = pneg %p271
      // Predicated region
      $region9: #{cnn_forward.2} parent=5 // pred_check
        _
      $region10: #{cnn_forward.2} parent=5 // pred_check_branch
        %274 = sbr.rel (%p271) target = $region12
      $region11: #{cnn_forward.2} parent=5 // pred_region
        %s275 = ssub.s32 %s20, 1
        // Predicated region
        $region13: #{cnn_forward.2} parent=11 // pred_check
          %p276 = pneg %p67
        $region14: #{cnn_forward.2} parent=11 // pred_check_branch
          %278 = sbr.rel (%p276) target = $region16
        $region15: #{cnn_forward.2} parent=11 // pred_region
          %280 = vsyncadd [#allocation3], 0
          %s281 = sshll.u32 %s1, 4
          %s282 = int_to_ptr.hbm [resolvable:$true] %s281
          %s283 = sshll.u32 [#allocation2], 4
          %s284 = int_to_ptr.vmem [resolvable:$true] %s283
          %289 = dma.hbm_to_vmem [thread:$0]  %s282, 16384, %s284, [#allocation3], 512, 512, 32
        $region16: #{cnn_forward.2} parent=11 // pred_fallthru
          _
        // Predicated region
        $region17: #{cnn_forward.2} parent=11 // pred_check
          %p290 = pneg %p88
        $region18: #{cnn_forward.2} parent=11 // pred_check_branch
          %292 = sbr.rel (%p290) target = $region20
        $region19: #{cnn_forward.2} parent=11 // pred_region
          %294 = vsyncadd [#allocation5], 0
          %s295 = sshll.u32 %s2, 4
          %s296 = int_to_ptr.hbm [resolvable:$true] %s295
          %s297 = sshll.u32 [#allocation4], 4
          %s298 = int_to_ptr.vmem [resolvable:$true] %s297
          %303 = dma.hbm_to_vmem [thread:$0]  %s296, 16384, %s298, [#allocation5], 512, 512, 32
        $region20: #{cnn_forward.2} parent=11 // pred_fallthru
          _
        // Predicated region
        $region21: #{cnn_forward.2} parent=11 // pred_check
          %p304 = pneg %p109
        $region22: #{cnn_forward.2} parent=11 // pred_check_branch
          %306 = sbr.rel (%p304) target = $region24
        $region23: #{cnn_forward.2} parent=11 // pred_region
          %308 = vsyncadd [#allocation5], 0
          %s309 = sshll.u32 %s3, 4
          %s310 = int_to_ptr.hbm [resolvable:$true] %s309
          %s311 = sshll.u32 [#allocation6], 4
          %s312 = int_to_ptr.vmem [resolvable:$true] %s311
          %317 = dma.hbm_to_vmem [thread:$0]  %s310, 16384, %s312, [#allocation5], 512, 512, 32
        $region24: #{cnn_forward.2} parent=11 // pred_fallthru
          _
        // Predicated region
        $region25: #{cnn_forward.2} parent=11 // pred_check
          %p318 = pneg %p130
        $region26: #{cnn_forward.2} parent=11 // pred_check_branch
          %320 = sbr.rel (%p318) target = $region28
        $region27: #{cnn_forward.2} parent=11 // pred_region
          _
        $region28: #{cnn_forward.2} parent=11 // pred_fallthru
          _
        // Predicated region
        $region29: #{cnn_forward.2} parent=11 // pred_check
          %p321 = pneg %p151
        $region30: #{cnn_forward.2} parent=11 // pred_check_branch
          %323 = sbr.rel (%p321) target = $region32
        $region31: #{cnn_forward.2} parent=11 // pred_region
          %325 = vsyncadd [#allocation8], 0
          %s326 = sshll.u32 %s5, 4
          %s327 = int_to_ptr.hbm [resolvable:$true] %s326
          %s328 = sshll.u32 [#allocation7], 4
          %s329 = int_to_ptr.vmem [resolvable:$true] %s328
          %334 = dma.hbm_to_vmem [thread:$0]  %s327, 16384, %s329, [#allocation8], 512, 512, 32
        $region32: #{cnn_forward.2} parent=11 // pred_fallthru
          _
        // Predicated region
        $region33: #{cnn_forward.2} parent=11 // pred_check
          %p335 = pneg %p172
        $region34: #{cnn_forward.2} parent=11 // pred_check_branch
          %337 = sbr.rel (%p335) target = $region36
        $region35: #{cnn_forward.2} parent=11 // pred_region
          %339 = vsyncadd [#allocation8], 0
          %s340 = sshll.u32 %s6, 4
          %s341 = int_to_ptr.hbm [resolvable:$true] %s340
          %s342 = sshll.u32 [#allocation9], 4
          %s343 = int_to_ptr.vmem [resolvable:$true] %s342
          %348 = dma.hbm_to_vmem [thread:$0]  %s341, 16384, %s343, [#allocation8], 512, 512, 32
        $region36: #{cnn_forward.2} parent=11 // pred_fallthru
          _
        // Predicated region
        $region37: #{cnn_forward.2} parent=11 // pred_check
          %p349 = pneg %p193
        $region38: #{cnn_forward.2} parent=11 // pred_check_branch
          %351 = sbr.rel (%p349) target = $region40
        $region39: #{cnn_forward.2} parent=11 // pred_region
          %353 = vsyncadd [#allocation11], 0
          %s354 = sshll.u32 %s7, 4
          %s355 = int_to_ptr.hbm [resolvable:$true] %s354
          %s356 = sshll.u32 [#allocation10], 4
          %s357 = int_to_ptr.vmem [resolvable:$true] %s356
          %362 = dma.hbm_to_vmem [thread:$0]  %s355, 16384, %s357, [#allocation11], 512, 512, 32
        $region40: #{cnn_forward.2} parent=11 // pred_fallthru
          _
        // Predicated region
        $region41: #{cnn_forward.2} parent=11 // pred_check
          %p363 = pneg %p214
        $region42: #{cnn_forward.2} parent=11 // pred_check_branch
          %365 = sbr.rel (%p363) target = $region44
        $region43: #{cnn_forward.2} parent=11 // pred_region
          %367 = vsyncadd [#allocation11], 0
          %s368 = sshll.u32 %s8, 4
          %s369 = int_to_ptr.hbm [resolvable:$true] %s368
          %s370 = sshll.u32 [#allocation12], 4
          %s371 = int_to_ptr.vmem [resolvable:$true] %s370
          %376 = dma.hbm_to_vmem [thread:$0]  %s369, 16384, %s371, [#allocation11], 512, 512, 32
        $region44: #{cnn_forward.2} parent=11 // pred_fallthru
          _
        // Predicated region
        $region45: #{cnn_forward.2} parent=11 // pred_check
          %p377 = pneg %p235
        $region46: #{cnn_forward.2} parent=11 // pred_check_branch
          %379 = sbr.rel (%p377) target = $region48
        $region47: #{cnn_forward.2} parent=11 // pred_region
          _
        $region48: #{cnn_forward.2} parent=11 // pred_fallthru
          _
      $region12: #{cnn_forward.2} parent=5 // pred_fallthru
        _
      %p380 = scmp.lt.s32.totalorder %s20, 2
      // Predicated region
      $region49: #{cnn_forward.2} parent=5 // pred_check
        %p381 = pneg %p380
      $region50: #{cnn_forward.2} parent=5 // pred_check_branch
        %383 = sbr.rel (%p381) target = $region52
      $region51: #{cnn_forward.2} parent=5 // pred_region
        // Predicated region
        $region53: #{cnn_forward.2} parent=51 // pred_check
          %p384 = pneg %p40
        $region54: #{cnn_forward.2} parent=51 // pred_check_branch
          %386 = sbr.rel (%p384) target = $region56
        $region55: #{cnn_forward.2} parent=51 // pred_region
          %p387 = scmp.lt.s32.totalorder %s20, 1
          %s388 = scalar_select %p387, %s20, 1
          %s389 = smul.addr %s388, 6
          %s390 = smul.addr %s389, 4
          %s391 = scalar_lea.vmem %s0, %s390
        $region56: #{cnn_forward.2} parent=51 // pred_fallthru
          _
      $region52: #{cnn_forward.2} parent=5 // pred_fallthru
        _
      %p392 = scmp.le.s32.totalorder 1, %s20
      %p393 = scmp.lt.s32.totalorder %s20, 3
      %p394 = pnand %p392, %p393
      %p395 = pneg %p394
      // Predicated region
      $region57: #{cnn_forward.2} parent=5 // pred_check
        _
      $region58: #{cnn_forward.2} parent=5 // pred_check_branch
        %397 = sbr.rel (%p394) target = $region60
      $region59: #{cnn_forward.2} parent=5 // pred_region
        %s398 = ssub.s32 %s20, 1
        // Predicated region
        $region61: #{cnn_forward.2} parent=59 // pred_check
          %p399 = pneg %p67
        $region62: #{cnn_forward.2} parent=59 // pred_check_branch
          %401 = sbr.rel (%p399) target = $region64
        $region63: #{cnn_forward.2} parent=59 // pred_region
          %403 = dma.done [#allocation3], 16384
        $region64: #{cnn_forward.2} parent=59 // pred_fallthru
          _
        // Predicated region
        $region65: #{cnn_forward.2} parent=59 // pred_check
          %p404 = pneg %p88
        $region66: #{cnn_forward.2} parent=59 // pred_check_branch
          %406 = sbr.rel (%p404) target = $region68
        $region67: #{cnn_forward.2} parent=59 // pred_region
          %408 = dma.done [#allocation5], 16384
        $region68: #{cnn_forward.2} parent=59 // pred_fallthru
          _
        // Predicated region
        $region69: #{cnn_forward.2} parent=59 // pred_check
          %p409 = pneg %p109
        $region70: #{cnn_forward.2} parent=59 // pred_check_branch
          %411 = sbr.rel (%p409) target = $region72
        $region71: #{cnn_forward.2} parent=59 // pred_region
          %413 = dma.done [#allocation5], 16384
        $region72: #{cnn_forward.2} parent=59 // pred_fallthru
          _
        // Predicated region
        $region73: #{cnn_forward.2} parent=59 // pred_check
          %p414 = pneg %p151
        $region74: #{cnn_forward.2} parent=59 // pred_check_branch
          %416 = sbr.rel (%p414) target = $region76
        $region75: #{cnn_forward.2} parent=59 // pred_region
          %418 = dma.done [#allocation8], 16384
        $region76: #{cnn_forward.2} parent=59 // pred_fallthru
          _
        // Predicated region
        $region77: #{cnn_forward.2} parent=59 // pred_check
          %p419 = pneg %p172
        $region78: #{cnn_forward.2} parent=59 // pred_check_branch
          %421 = sbr.rel (%p419) target = $region80
        $region79: #{cnn_forward.2} parent=59 // pred_region
          %423 = dma.done [#allocation8], 16384
        $region80: #{cnn_forward.2} parent=59 // pred_fallthru
          _
        // Predicated region
        $region81: #{cnn_forward.2} parent=59 // pred_check
          %p424 = pneg %p193
        $region82: #{cnn_forward.2} parent=59 // pred_check_branch
          %426 = sbr.rel (%p424) target = $region84
        $region83: #{cnn_forward.2} parent=59 // pred_region
          %428 = dma.done [#allocation11], 16384
        $region84: #{cnn_forward.2} parent=59 // pred_fallthru
          _
        // Predicated region
        $region85: #{cnn_forward.2} parent=59 // pred_check
          %p429 = pneg %p214
        $region86: #{cnn_forward.2} parent=59 // pred_check_branch
          %431 = sbr.rel (%p429) target = $region88
        $region87: #{cnn_forward.2} parent=59 // pred_region
          %433 = dma.done [#allocation11], 16384
        $region88: #{cnn_forward.2} parent=59 // pred_fallthru
          _
        %p434 = scmp.lt.s32.totalorder %s25, 1
        %s435 = scalar_select %p434, %s25, 1
        %s436 = smul.addr %s435, 6
        %s437 = smul.addr %s436, 4
        %s438 = scalar_lea.vmem %s0, %s437
        %p439 = pneg %p46
        %p440 = pneg %p43
        %p441 = pneg %p67
        %p442 = pneg %p64
        %p443 = pneg %p88
        %p444 = pneg %p85
        %p445 = pneg %p109
        %p446 = pneg %p106
        %p447 = pneg %p130
        %p448 = pneg %p127
        %p449 = pneg %p151
        %p450 = pneg %p148
        %p451 = pneg %p172
        %p452 = pneg %p169
        %p453 = pneg %p193
        %p454 = pneg %p190
        %p455 = pneg %p214
        %p456 = pneg %p211
        %p457 = pneg %p235
        %p458 = pneg %p232
        %p459 = pneg %p261
        %p460 = pneg %p258
        %p461 = scmp.lt.s32.totalorder %s25, 1
        %s462 = scalar_select %p461, %s25, 1
        %s463 = smul.addr %s462, 4
        %s464 = smul.addr %s463, 4
        %s465 = scalar_lea.vmem %s10, %s464
        %p466 = scmp.lt.s32.totalorder %s25, 1
        %s467 = scalar_select %p466, %s25, 1
        %s468 = smul.addr %s467, 6
        %s469 = smul.addr %s468, 4
        %s470 = scalar_lea.vmem %s0, %s469
        %p471 = scmp.lt.s32.totalorder %s25, 1
        %s472 = scalar_select %p471, %s25, 1
        %s473 = smul.addr %s472, 4
        %s474 = smul.addr %s473, 4
        %s475 = scalar_lea.vmem %s10, %s474
        %v477 = vld [vmem:[%s4] sm:$0x3]
        %v478 = vld [vmem:[%s9] sm:$0x3]
        %v479 = vld [vmem:[%s470] sm:$0xff]
        %v480 = vld [vmem:[%s470 + $0x8] sm:$0xff]
        %v481 = vld [vmem:[%s470 + $0x10] sm:$0x11]
        %v482 = vld [vmem:[#allocation2] sm:$0xff]
        %v483 = vld [vmem:[#allocation2 + $0x8] sm:$0xff]
        %v484 = vld [vmem:[#allocation2 + $0x10] sm:$0xff]
        %v485 = vld [vmem:[#allocation2 + $0x18] sm:$0xff]
        %v486 = vld [vmem:[#allocation2 + $0x20] sm:$0xff]
        %v487 = vld [vmem:[#allocation2 + $0x28] sm:$0xff]
        %v488 = vld [vmem:[#allocation2 + $0x30] sm:$0xff]
        %v489 = vld [vmem:[#allocation2 + $0x38] sm:$0xff]
        %v490 = vld [vmem:[#allocation2 + $0x40] sm:$0xff]
        %v491 = vld [vmem:[#allocation2 + $0x48] sm:$0xff]
        %v492 = vld [vmem:[#allocation2 + $0x50] sm:$0xff]
        %v493 = vld [vmem:[#allocation2 + $0x58] sm:$0xff]
        %v494 = vld [vmem:[#allocation2 + $0x60] sm:$0xff]
        %v495 = vld [vmem:[#allocation2 + $0x68] sm:$0xff]
        %v496 = vld [vmem:[#allocation2 + $0x70] sm:$0xff]
        %v497 = vld [vmem:[#allocation2 + $0x78] sm:$0xff]
        %v498 = vld [vmem:[#allocation2 + $0x80] sm:$0xff]
        %v499 = vld [vmem:[#allocation2 + $0x88] sm:$0xff]
        %v500 = vld [vmem:[#allocation2 + $0x90] sm:$0xff]
        %v501 = vld [vmem:[#allocation2 + $0x98] sm:$0xff]
        %v502 = vld [vmem:[#allocation2 + $0xa0] sm:$0xff]
        %v503 = vld [vmem:[#allocation2 + $0xa8] sm:$0xff]
        %v504 = vld [vmem:[#allocation2 + $0xb0] sm:$0xff]
        %v505 = vld [vmem:[#allocation2 + $0xb8] sm:$0xff]
        %v506 = vld [vmem:[#allocation2 + $0xc0] sm:$0xff]
        %v507 = vld [vmem:[#allocation2 + $0xc8] sm:$0xff]
        %v508 = vld [vmem:[#allocation2 + $0xd0] sm:$0xff]
        %v509 = vld [vmem:[#allocation2 + $0xd8] sm:$0xff]
        %v510 = vld [vmem:[#allocation2 + $0xe0] sm:$0xff]
        %v511 = vld [vmem:[#allocation2 + $0xe8] sm:$0xff]
        %v512 = vld [vmem:[#allocation2 + $0xf0] sm:$0xff]
        %v513 = vld [vmem:[#allocation2 + $0xf8] sm:$0xff]
        %v514 = vld [vmem:[#allocation2 + $0x100] sm:$0xff]
        %v515 = vld [vmem:[#allocation2 + $0x108] sm:$0xff]
        %v516 = vld [vmem:[#allocation2 + $0x110] sm:$0xff]
        %v517 = vld [vmem:[#allocation2 + $0x118] sm:$0xff]
        %v518 = vld [vmem:[#allocation2 + $0x120] sm:$0xff]
        %v519 = vld [vmem:[#allocation2 + $0x128] sm:$0xff]
        %v520 = vld [vmem:[#allocation2 + $0x130] sm:$0xff]
        %v521 = vld [vmem:[#allocation2 + $0x138] sm:$0xff]
        %v522 = vld [vmem:[#allocation2 + $0x140] sm:$0xff]
        %v523 = vld [vmem:[#allocation2 + $0x148] sm:$0xff]
        %v524 = vld [vmem:[#allocation2 + $0x150] sm:$0xff]
        %v525 = vld [vmem:[#allocation2 + $0x158] sm:$0xff]
        %v526 = vld [vmem:[#allocation2 + $0x160] sm:$0xff]
        %v527 = vld [vmem:[#allocation2 + $0x168] sm:$0xff]
        %v528 = vld [vmem:[#allocation2 + $0x170] sm:$0xff]
        %v529 = vld [vmem:[#allocation2 + $0x178] sm:$0xff]
        %v530 = vld [vmem:[#allocation2 + $0x180] sm:$0xff]
        %v531 = vld [vmem:[#allocation2 + $0x188] sm:$0xff]
        %v532 = vld [vmem:[#allocation2 + $0x190] sm:$0xff]
        %v533 = vld [vmem:[#allocation2 + $0x198] sm:$0xff]
        %v534 = vld [vmem:[#allocation2 + $0x1a0] sm:$0xff]
        %v535 = vld [vmem:[#allocation2 + $0x1a8] sm:$0xff]
        %v536 = vld [vmem:[#allocation2 + $0x1b0] sm:$0xff]
        %v537 = vld [vmem:[#allocation2 + $0x1b8] sm:$0xff]
        %v538 = vld [vmem:[#allocation2 + $0x1c0] sm:$0xff]
        %v539 = vld [vmem:[#allocation2 + $0x1c8] sm:$0xff]
        %v540 = vld [vmem:[#allocation2 + $0x1d0] sm:$0xff]
        %v541 = vld [vmem:[#allocation2 + $0x1d8] sm:$0xff]
        %v542 = vld [vmem:[#allocation2 + $0x1e0] sm:$0xff]
        %v543 = vld [vmem:[#allocation2 + $0x1e8] sm:$0xff]
        %v544 = vld [vmem:[#allocation2 + $0x1f0] sm:$0xff]
        %v545 = vld [vmem:[#allocation2 + $0x1f8] sm:$0xff]
        %v546 = vld [vmem:[#allocation2 + $0x200] sm:$0xff]
        %v547 = vld [vmem:[#allocation2 + $0x208] sm:$0xff]
        %v548 = vld [vmem:[#allocation2 + $0x210] sm:$0xff]
        %v549 = vld [vmem:[#allocation2 + $0x218] sm:$0xff]
        %v550 = vld [vmem:[#allocation2 + $0x220] sm:$0xff]
        %v551 = vld [vmem:[#allocation2 + $0x228] sm:$0xff]
        %v552 = vld [vmem:[#allocation2 + $0x230] sm:$0xff]
        %v553 = vld [vmem:[#allocation2 + $0x238] sm:$0xff]
        %v554 = vld [vmem:[#allocation2 + $0x240] sm:$0xff]
        %v555 = vld [vmem:[#allocation2 + $0x248] sm:$0xff]
        %v556 = vld [vmem:[#allocation2 + $0x250] sm:$0xff]
        %v557 = vld [vmem:[#allocation2 + $0x258] sm:$0xff]
        %v558 = vld [vmem:[#allocation2 + $0x260] sm:$0xff]
        %v559 = vld [vmem:[#allocation2 + $0x268] sm:$0xff]
        %v560 = vld [vmem:[#allocation2 + $0x270] sm:$0xff]
        %v561 = vld [vmem:[#allocation2 + $0x278] sm:$0xff]
        %v562 = vld [vmem:[#allocation2 + $0x280] sm:$0xff]
        %v563 = vld [vmem:[#allocation2 + $0x288] sm:$0xff]
        %v564 = vld [vmem:[#allocation2 + $0x290] sm:$0xff]
        %v565 = vld [vmem:[#allocation2 + $0x298] sm:$0xff]
        %v566 = vld [vmem:[#allocation2 + $0x2a0] sm:$0xff]
        %v567 = vld [vmem:[#allocation2 + $0x2a8] sm:$0xff]
        %v568 = vld [vmem:[#allocation2 + $0x2b0] sm:$0xff]
        %v569 = vld [vmem:[#allocation2 + $0x2b8] sm:$0xff]
        %v570 = vld [vmem:[#allocation2 + $0x2c0] sm:$0xff]
        %v571 = vld [vmem:[#allocation2 + $0x2c8] sm:$0xff]
        %v572 = vld [vmem:[#allocation2 + $0x2d0] sm:$0xff]
        %v573 = vld [vmem:[#allocation2 + $0x2d8] sm:$0xff]
        %v574 = vld [vmem:[#allocation2 + $0x2e0] sm:$0xff]
        %v575 = vld [vmem:[#allocation2 + $0x2e8] sm:$0xff]
        %v576 = vld [vmem:[#allocation2 + $0x2f0] sm:$0xff]
        %v577 = vld [vmem:[#allocation2 + $0x2f8] sm:$0xff]
        %v578 = vld [vmem:[#allocation2 + $0x300] sm:$0xff]
        %v579 = vld [vmem:[#allocation2 + $0x308] sm:$0xff]
        %v580 = vld [vmem:[#allocation2 + $0x310] sm:$0xff]
        %v581 = vld [vmem:[#allocation2 + $0x318] sm:$0xff]
        %v582 = vld [vmem:[#allocation2 + $0x320] sm:$0xff]
        %v583 = vld [vmem:[#allocation2 + $0x328] sm:$0xff]
        %v584 = vld [vmem:[#allocation2 + $0x330] sm:$0xff]
        %v585 = vld [vmem:[#allocation2 + $0x338] sm:$0xff]
        %v586 = vld [vmem:[#allocation2 + $0x340] sm:$0xff]
        %v587 = vld [vmem:[#allocation2 + $0x348] sm:$0xff]
        %v588 = vld [vmem:[#allocation2 + $0x350] sm:$0xff]
        %v589 = vld [vmem:[#allocation2 + $0x358] sm:$0xff]
        %v590 = vld [vmem:[#allocation2 + $0x360] sm:$0xff]
        %v591 = vld [vmem:[#allocation2 + $0x368] sm:$0xff]
        %v592 = vld [vmem:[#allocation2 + $0x370] sm:$0xff]
        %v593 = vld [vmem:[#allocation2 + $0x378] sm:$0xff]
        %v594 = vld [vmem:[#allocation2 + $0x380] sm:$0xff]
        %v595 = vld [vmem:[#allocation2 + $0x388] sm:$0xff]
        %v596 = vld [vmem:[#allocation2 + $0x390] sm:$0xff]
        %v597 = vld [vmem:[#allocation2 + $0x398] sm:$0xff]
        %v598 = vld [vmem:[#allocation2 + $0x3a0] sm:$0xff]
        %v599 = vld [vmem:[#allocation2 + $0x3a8] sm:$0xff]
        %v600 = vld [vmem:[#allocation2 + $0x3b0] sm:$0xff]
        %v601 = vld [vmem:[#allocation2 + $0x3b8] sm:$0xff]
        %v602 = vld [vmem:[#allocation2 + $0x3c0] sm:$0xff]
        %v603 = vld [vmem:[#allocation2 + $0x3c8] sm:$0xff]
        %v604 = vld [vmem:[#allocation2 + $0x3d0] sm:$0xff]
        %v605 = vld [vmem:[#allocation2 + $0x3d8] sm:$0xff]
        %v606 = vld [vmem:[#allocation2 + $0x3e0] sm:$0xff]
        %v607 = vld [vmem:[#allocation2 + $0x3e8] sm:$0xff]
        %v608 = vld [vmem:[#allocation2 + $0x3f0] sm:$0xff]
        %v609 = vld [vmem:[#allocation2 + $0x3f8] sm:$0xff]
        %v612 = vunpack.c.l.b16 %v479
        %v613 = vunpack.c.h.b16 %v479
        %v614 = vunpack.c.l.b16 %v480
        %v615 = vunpack.c.h.b16 %v480
        %v616 = vpack.c.b16 %v614, %v612
        %v617 = vpack.c.b16 %v615, %v613
        %v748 = vunpack.c.l.b16 %v482
        %v749 = vunpack.c.h.b16 %v482
        %v750 = vunpack.c.l.b16 %v483
        %v751 = vunpack.c.h.b16 %v483
        %v752 = vunpack.c.l.b16 %v484
        %v753 = vunpack.c.h.b16 %v484
        %v754 = vunpack.c.l.b16 %v485
        %v755 = vunpack.c.h.b16 %v485
        %v756 = vunpack.c.l.b16 %v486
        %v757 = vunpack.c.h.b16 %v486
        %v758 = vunpack.c.l.b16 %v487
        %v759 = vunpack.c.h.b16 %v487
        %v760 = vunpack.c.l.b16 %v488
        %v761 = vunpack.c.h.b16 %v488
        %v762 = vunpack.c.l.b16 %v489
        %v763 = vunpack.c.h.b16 %v489
        %v764 = vunpack.c.l.b16 %v490
        %v765 = vunpack.c.h.b16 %v490
        %v766 = vunpack.c.l.b16 %v491
        %v767 = vunpack.c.h.b16 %v491
        %v768 = vunpack.c.l.b16 %v492
        %v769 = vunpack.c.h.b16 %v492
        %v770 = vunpack.c.l.b16 %v493
        %v771 = vunpack.c.h.b16 %v493
        %v772 = vunpack.c.l.b16 %v494
        %v773 = vunpack.c.h.b16 %v494
        %v774 = vunpack.c.l.b16 %v495
        %v775 = vunpack.c.h.b16 %v495
        %v776 = vunpack.c.l.b16 %v496
        %v777 = vunpack.c.h.b16 %v496
        %v778 = vunpack.c.l.b16 %v497
        %v779 = vunpack.c.h.b16 %v497
        %v780 = vunpack.c.l.b16 %v498
        %v781 = vunpack.c.h.b16 %v498
        %v782 = vunpack.c.l.b16 %v499
        %v783 = vunpack.c.h.b16 %v499
        %v784 = vunpack.c.l.b16 %v500
        %v785 = vunpack.c.h.b16 %v500
        %v786 = vunpack.c.l.b16 %v501
        %v787 = vunpack.c.h.b16 %v501
        %v788 = vunpack.c.l.b16 %v502
        %v789 = vunpack.c.h.b16 %v502
        %v790 = vunpack.c.l.b16 %v503
        %v791 = vunpack.c.h.b16 %v503
        %v792 = vunpack.c.l.b16 %v504
        %v793 = vunpack.c.h.b16 %v504
        %v794 = vunpack.c.l.b16 %v505
        %v795 = vunpack.c.h.b16 %v505
        %v796 = vunpack.c.l.b16 %v506
        %v797 = vunpack.c.h.b16 %v506
        %v798 = vunpack.c.l.b16 %v507
        %v799 = vunpack.c.h.b16 %v507
        %v800 = vunpack.c.l.b16 %v508
        %v801 = vunpack.c.h.b16 %v508
        %v802 = vunpack.c.l.b16 %v509
        %v803 = vunpack.c.h.b16 %v509
        %v804 = vunpack.c.l.b16 %v510
        %v805 = vunpack.c.h.b16 %v510
        %v806 = vunpack.c.l.b16 %v511
        %v807 = vunpack.c.h.b16 %v511
        %v808 = vunpack.c.l.b16 %v512
        %v809 = vunpack.c.h.b16 %v512
        %v810 = vunpack.c.l.b16 %v513
        %v811 = vunpack.c.h.b16 %v513
        %v812 = vunpack.c.l.b16 %v514
        %v813 = vunpack.c.h.b16 %v514
        %v814 = vunpack.c.l.b16 %v515
        %v815 = vunpack.c.h.b16 %v515
        %v816 = vunpack.c.l.b16 %v516
        %v817 = vunpack.c.h.b16 %v516
        %v818 = vunpack.c.l.b16 %v517
        %v819 = vunpack.c.h.b16 %v517
        %v820 = vunpack.c.l.b16 %v518
        %v821 = vunpack.c.h.b16 %v518
        %v822 = vunpack.c.l.b16 %v519
        %v823 = vunpack.c.h.b16 %v519
        %v824 = vunpack.c.l.b16 %v520
        %v825 = vunpack.c.h.b16 %v520
        %v826 = vunpack.c.l.b16 %v521
        %v827 = vunpack.c.h.b16 %v521
        %v828 = vunpack.c.l.b16 %v522
        %v829 = vunpack.c.h.b16 %v522
        %v830 = vunpack.c.l.b16 %v523
        %v831 = vunpack.c.h.b16 %v523
        %v832 = vunpack.c.l.b16 %v524
        %v833 = vunpack.c.h.b16 %v524
        %v834 = vunpack.c.l.b16 %v525
        %v835 = vunpack.c.h.b16 %v525
        %v836 = vunpack.c.l.b16 %v526
        %v837 = vunpack.c.h.b16 %v526
        %v838 = vunpack.c.l.b16 %v527
        %v839 = vunpack.c.h.b16 %v527
        %v840 = vunpack.c.l.b16 %v528
        %v841 = vunpack.c.h.b16 %v528
        %v842 = vunpack.c.l.b16 %v529
        %v843 = vunpack.c.h.b16 %v529
        %v844 = vunpack.c.l.b16 %v530
        %v845 = vunpack.c.h.b16 %v530
        %v846 = vunpack.c.l.b16 %v531
        %v847 = vunpack.c.h.b16 %v531
        %v848 = vunpack.c.l.b16 %v532
        %v849 = vunpack.c.h.b16 %v532
        %v850 = vunpack.c.l.b16 %v533
        %v851 = vunpack.c.h.b16 %v533
        %v852 = vunpack.c.l.b16 %v534
        %v853 = vunpack.c.h.b16 %v534
        %v854 = vunpack.c.l.b16 %v535
        %v855 = vunpack.c.h.b16 %v535
        %v856 = vunpack.c.l.b16 %v536
        %v857 = vunpack.c.h.b16 %v536
        %v858 = vunpack.c.l.b16 %v537
        %v859 = vunpack.c.h.b16 %v537
        %v860 = vunpack.c.l.b16 %v538
        %v861 = vunpack.c.h.b16 %v538
        %v862 = vunpack.c.l.b16 %v539
        %v863 = vunpack.c.h.b16 %v539
        %v864 = vunpack.c.l.b16 %v540
        %v865 = vunpack.c.h.b16 %v540
        %v866 = vunpack.c.l.b16 %v541
        %v867 = vunpack.c.h.b16 %v541
        %v868 = vunpack.c.l.b16 %v542
        %v869 = vunpack.c.h.b16 %v542
        %v870 = vunpack.c.l.b16 %v543
        %v871 = vunpack.c.h.b16 %v543
        %v872 = vunpack.c.l.b16 %v544
        %v873 = vunpack.c.h.b16 %v544
        %v874 = vunpack.c.l.b16 %v545
        %v875 = vunpack.c.h.b16 %v545
        %v876 = vunpack.c.l.b16 %v546
        %v877 = vunpack.c.h.b16 %v546
        %v878 = vunpack.c.l.b16 %v547
        %v879 = vunpack.c.h.b16 %v547
        %v880 = vunpack.c.l.b16 %v548
        %v881 = vunpack.c.h.b16 %v548
        %v882 = vunpack.c.l.b16 %v549
        %v883 = vunpack.c.h.b16 %v549
        %v884 = vunpack.c.l.b16 %v550
        %v885 = vunpack.c.h.b16 %v550
        %v886 = vunpack.c.l.b16 %v551
        %v887 = vunpack.c.h.b16 %v551
        %v888 = vunpack.c.l.b16 %v552
        %v889 = vunpack.c.h.b16 %v552
        %v890 = vunpack.c.l.b16 %v553
        %v891 = vunpack.c.h.b16 %v553
        %v892 = vunpack.c.l.b16 %v554
        %v893 = vunpack.c.h.b16 %v554
        %v894 = vunpack.c.l.b16 %v555
        %v895 = vunpack.c.h.b16 %v555
        %v896 = vunpack.c.l.b16 %v556
        %v897 = vunpack.c.h.b16 %v556
        %v898 = vunpack.c.l.b16 %v557
        %v899 = vunpack.c.h.b16 %v557
        %v900 = vunpack.c.l.b16 %v558
        %v901 = vunpack.c.h.b16 %v558
        %v902 = vunpack.c.l.b16 %v559
        %v903 = vunpack.c.h.b16 %v559
        %v904 = vunpack.c.l.b16 %v560
        %v905 = vunpack.c.h.b16 %v560
        %v906 = vunpack.c.l.b16 %v561
        %v907 = vunpack.c.h.b16 %v561
        %v908 = vunpack.c.l.b16 %v562
        %v909 = vunpack.c.h.b16 %v562
        %v910 = vunpack.c.l.b16 %v563
        %v911 = vunpack.c.h.b16 %v563
        %v912 = vunpack.c.l.b16 %v564
        %v913 = vunpack.c.h.b16 %v564
        %v914 = vunpack.c.l.b16 %v565
        %v915 = vunpack.c.h.b16 %v565
        %v916 = vunpack.c.l.b16 %v566
        %v917 = vunpack.c.h.b16 %v566
        %v918 = vunpack.c.l.b16 %v567
        %v919 = vunpack.c.h.b16 %v567
        %v920 = vunpack.c.l.b16 %v568
        %v921 = vunpack.c.h.b16 %v568
        %v922 = vunpack.c.l.b16 %v569
        %v923 = vunpack.c.h.b16 %v569
        %v924 = vunpack.c.l.b16 %v570
        %v925 = vunpack.c.h.b16 %v570
        %v926 = vunpack.c.l.b16 %v571
        %v927 = vunpack.c.h.b16 %v571
        %v928 = vunpack.c.l.b16 %v572
        %v929 = vunpack.c.h.b16 %v572
        %v930 = vunpack.c.l.b16 %v573
        %v931 = vunpack.c.h.b16 %v573
        %v932 = vunpack.c.l.b16 %v574
        %v933 = vunpack.c.h.b16 %v574
        %v934 = vunpack.c.l.b16 %v575
        %v935 = vunpack.c.h.b16 %v575
        %v936 = vunpack.c.l.b16 %v576
        %v937 = vunpack.c.h.b16 %v576
        %v938 = vunpack.c.l.b16 %v577
        %v939 = vunpack.c.h.b16 %v577
        %v940 = vunpack.c.l.b16 %v578
        %v941 = vunpack.c.h.b16 %v578
        %v942 = vunpack.c.l.b16 %v579
        %v943 = vunpack.c.h.b16 %v579
        %v944 = vunpack.c.l.b16 %v580
        %v945 = vunpack.c.h.b16 %v580
        %v946 = vunpack.c.l.b16 %v581
        %v947 = vunpack.c.h.b16 %v581
        %v948 = vunpack.c.l.b16 %v582
        %v949 = vunpack.c.h.b16 %v582
        %v950 = vunpack.c.l.b16 %v583
        %v951 = vunpack.c.h.b16 %v583
        %v952 = vunpack.c.l.b16 %v584
        %v953 = vunpack.c.h.b16 %v584
        %v954 = vunpack.c.l.b16 %v585
        %v955 = vunpack.c.h.b16 %v585
        %v956 = vunpack.c.l.b16 %v586
        %v957 = vunpack.c.h.b16 %v586
        %v958 = vunpack.c.l.b16 %v587
        %v959 = vunpack.c.h.b16 %v587
        %v960 = vunpack.c.l.b16 %v588
        %v961 = vunpack.c.h.b16 %v588
        %v962 = vunpack.c.l.b16 %v589
        %v963 = vunpack.c.h.b16 %v589
        %v964 = vunpack.c.l.b16 %v590
        %v965 = vunpack.c.h.b16 %v590
        %v966 = vunpack.c.l.b16 %v591
        %v967 = vunpack.c.h.b16 %v591
        %v968 = vunpack.c.l.b16 %v592
        %v969 = vunpack.c.h.b16 %v592
        %v970 = vunpack.c.l.b16 %v593
        %v971 = vunpack.c.h.b16 %v593
        %v972 = vunpack.c.l.b16 %v594
        %v973 = vunpack.c.h.b16 %v594
        %v974 = vunpack.c.l.b16 %v595
        %v975 = vunpack.c.h.b16 %v595
        %v976 = vunpack.c.l.b16 %v596
        %v977 = vunpack.c.h.b16 %v596
        %v978 = vunpack.c.l.b16 %v597
        %v979 = vunpack.c.h.b16 %v597
        %v980 = vunpack.c.l.b16 %v598
        %v981 = vunpack.c.h.b16 %v598
        %v982 = vunpack.c.l.b16 %v599
        %v983 = vunpack.c.h.b16 %v599
        %v984 = vunpack.c.l.b16 %v600
        %v985 = vunpack.c.h.b16 %v600
        %v986 = vunpack.c.l.b16 %v601
        %v987 = vunpack.c.h.b16 %v601
        %v988 = vunpack.c.l.b16 %v602
        %v989 = vunpack.c.h.b16 %v602
        %v990 = vunpack.c.l.b16 %v603
        %v991 = vunpack.c.h.b16 %v603
        %v992 = vunpack.c.l.b16 %v604
        %v993 = vunpack.c.h.b16 %v604
        %v994 = vunpack.c.l.b16 %v605
        %v995 = vunpack.c.h.b16 %v605
        %v996 = vunpack.c.l.b16 %v606
        %v997 = vunpack.c.h.b16 %v606
        %v998 = vunpack.c.l.b16 %v607
        %v999 = vunpack.c.h.b16 %v607
        %v1000 = vunpack.c.l.b16 %v608
        %v1001 = vunpack.c.h.b16 %v608
        %v1002 = vunpack.c.l.b16 %v609
        %v1003 = vunpack.c.h.b16 %v609
        %v1004 = vpack.c.b16 %v756, %v748
        %v1005 = vpack.c.b16 %v757, %v749
        %v1006 = vpack.c.b16 %v758, %v750
        %v1007 = vpack.c.b16 %v759, %v751
        %v1008 = vpack.c.b16 %v760, %v752
        %v1009 = vpack.c.b16 %v761, %v753
        %v1010 = vpack.c.b16 %v762, %v754
        %v1011 = vpack.c.b16 %v763, %v755
        %v1012 = vpack.c.b16 %v772, %v764
        %v1013 = vpack.c.b16 %v773, %v765
        %v1014 = vpack.c.b16 %v774, %v766
        %v1015 = vpack.c.b16 %v775, %v767
        %v1016 = vpack.c.b16 %v776, %v768
        %v1017 = vpack.c.b16 %v777, %v769
        %v1018 = vpack.c.b16 %v778, %v770
        %v1019 = vpack.c.b16 %v779, %v771
        %v1020 = vpack.c.b16 %v788, %v780
        %v1021 = vpack.c.b16 %v789, %v781
        %v1022 = vpack.c.b16 %v790, %v782
        %v1023 = vpack.c.b16 %v791, %v783
        %v1024 = vpack.c.b16 %v792, %v784
        %v1025 = vpack.c.b16 %v793, %v785
        %v1026 = vpack.c.b16 %v794, %v786
        %v1027 = vpack.c.b16 %v795, %v787
        %v1028 = vpack.c.b16 %v804, %v796
        %v1029 = vpack.c.b16 %v805, %v797
        %v1030 = vpack.c.b16 %v806, %v798
        %v1031 = vpack.c.b16 %v807, %v799
        %v1032 = vpack.c.b16 %v808, %v800
        %v1033 = vpack.c.b16 %v809, %v801
        %v1034 = vpack.c.b16 %v810, %v802
        %v1035 = vpack.c.b16 %v811, %v803
        %v1036 = vpack.c.b16 %v820, %v812
        %v1037 = vpack.c.b16 %v821, %v813
        %v1038 = vpack.c.b16 %v822, %v814
        %v1039 = vpack.c.b16 %v823, %v815
        %v1040 = vpack.c.b16 %v824, %v816
        %v1041 = vpack.c.b16 %v825, %v817
        %v1042 = vpack.c.b16 %v826, %v818
        %v1043 = vpack.c.b16 %v827, %v819
        %v1044 = vpack.c.b16 %v836, %v828
        %v1045 = vpack.c.b16 %v837, %v829
        %v1046 = vpack.c.b16 %v838, %v830
        %v1047 = vpack.c.b16 %v839, %v831
        %v1048 = vpack.c.b16 %v840, %v832
        %v1049 = vpack.c.b16 %v841, %v833
        %v1050 = vpack.c.b16 %v842, %v834
        %v1051 = vpack.c.b16 %v843, %v835
        %v1052 = vpack.c.b16 %v852, %v844
        %v1053 = vpack.c.b16 %v853, %v845
        %v1054 = vpack.c.b16 %v854, %v846
        %v1055 = vpack.c.b16 %v855, %v847
        %v1056 = vpack.c.b16 %v856, %v848
        %v1057 = vpack.c.b16 %v857, %v849
        %v1058 = vpack.c.b16 %v858, %v850
        %v1059 = vpack.c.b16 %v859, %v851
        %v1060 = vpack.c.b16 %v868, %v860
        %v1061 = vpack.c.b16 %v869, %v861
        %v1062 = vpack.c.b16 %v870, %v862
        %v1063 = vpack.c.b16 %v871, %v863
        %v1064 = vpack.c.b16 %v872, %v864
        %v1065 = vpack.c.b16 %v873, %v865
        %v1066 = vpack.c.b16 %v874, %v866
        %v1067 = vpack.c.b16 %v875, %v867
        %v1068 = vpack.c.b16 %v884, %v876
        %v1069 = vpack.c.b16 %v885, %v877
        %v1070 = vpack.c.b16 %v886, %v878
        %v1071 = vpack.c.b16 %v887, %v879
        %v1072 = vpack.c.b16 %v888, %v880
        %v1073 = vpack.c.b16 %v889, %v881
        %v1074 = vpack.c.b16 %v890, %v882
        %v1075 = vpack.c.b16 %v891, %v883
        %v1076 = vpack.c.b16 %v900, %v892
        %v1077 = vpack.c.b16 %v901, %v893
        %v1078 = vpack.c.b16 %v902, %v894
        %v1079 = vpack.c.b16 %v903, %v895
        %v1080 = vpack.c.b16 %v904, %v896
        %v1081 = vpack.c.b16 %v905, %v897
        %v1082 = vpack.c.b16 %v906, %v898
        %v1083 = vpack.c.b16 %v907, %v899
        %v1084 = vpack.c.b16 %v916, %v908
        %v1085 = vpack.c.b16 %v917, %v909
        %v1086 = vpack.c.b16 %v918, %v910
        %v1087 = vpack.c.b16 %v919, %v911
        %v1088 = vpack.c.b16 %v920, %v912
        %v1089 = vpack.c.b16 %v921, %v913
        %v1090 = vpack.c.b16 %v922, %v914
        %v1091 = vpack.c.b16 %v923, %v915
        %v1092 = vpack.c.b16 %v932, %v924
        %v1093 = vpack.c.b16 %v933, %v925
        %v1094 = vpack.c.b16 %v934, %v926
        %v1095 = vpack.c.b16 %v935, %v927
        %v1096 = vpack.c.b16 %v936, %v928
        %v1097 = vpack.c.b16 %v937, %v929
        %v1098 = vpack.c.b16 %v938, %v930
        %v1099 = vpack.c.b16 %v939, %v931
        %v1100 = vpack.c.b16 %v948, %v940
        %v1101 = vpack.c.b16 %v949, %v941
        %v1102 = vpack.c.b16 %v950, %v942
        %v1103 = vpack.c.b16 %v951, %v943
        %v1104 = vpack.c.b16 %v952, %v944
        %v1105 = vpack.c.b16 %v953, %v945
        %v1106 = vpack.c.b16 %v954, %v946
        %v1107 = vpack.c.b16 %v955, %v947
        %v1108 = vpack.c.b16 %v964, %v956
        %v1109 = vpack.c.b16 %v965, %v957
        %v1110 = vpack.c.b16 %v966, %v958
        %v1111 = vpack.c.b16 %v967, %v959
        %v1112 = vpack.c.b16 %v968, %v960
        %v1113 = vpack.c.b16 %v969, %v961
        %v1114 = vpack.c.b16 %v970, %v962
        %v1115 = vpack.c.b16 %v971, %v963
        %v1116 = vpack.c.b16 %v980, %v972
        %v1117 = vpack.c.b16 %v981, %v973
        %v1118 = vpack.c.b16 %v982, %v974
        %v1119 = vpack.c.b16 %v983, %v975
        %v1120 = vpack.c.b16 %v984, %v976
        %v1121 = vpack.c.b16 %v985, %v977
        %v1122 = vpack.c.b16 %v986, %v978
        %v1123 = vpack.c.b16 %v987, %v979
        %v1124 = vpack.c.b16 %v996, %v988
        %v1125 = vpack.c.b16 %v997, %v989
        %v1126 = vpack.c.b16 %v998, %v990
        %v1127 = vpack.c.b16 %v999, %v991
        %v1128 = vpack.c.b16 %v1000, %v992
        %v1129 = vpack.c.b16 %v1001, %v993
        %v1130 = vpack.c.b16 %v1002, %v994
        %v1131 = vpack.c.b16 %v1003, %v995
        %1260 = vmatpush.bf16.msra.mxu0 %v1060
        %1261 = vmatpush.bf16.msra.mxu0 %v1052
        %1262 = vmatpush.bf16.msra.mxu0 %v1044
        %1263 = vmatpush.bf16.msra.mxu0 %v1036
        %1264 = vmatpush.bf16.msra.mxu0 %v1028
        %1265 = vmatpush.bf16.msra.mxu0 %v1020
        %1266 = vmatpush.bf16.msra.mxu0 %v1012
        %1267 = vmatpush.bf16.msra.mxu0 %v1004
        %1268 = vmatmul.bf16.gmra.mxu0 %v616
        %v1269 = vpop.f32.mrf.mxu0
        %v1270 = vadd.f32 0.0, %v1269
        %v1271 = vpop.f32.mrf.mxu0
        %v1272 = vadd.f32 0.0, %v1271
        %1273 = vdwg.mxu0
        %1274 = vmatpush.bf16.msra.mxu0 %v1124
        %1275 = vmatpush.bf16.msra.mxu0 %v1116
        %1276 = vmatpush.bf16.msra.mxu0 %v1108
        %1277 = vmatpush.bf16.msra.mxu0 %v1100
        %1278 = vmatpush.bf16.msra.mxu0 %v1092
        %1279 = vmatpush.bf16.msra.mxu0 %v1084
        %1280 = vmatpush.bf16.msra.mxu0 %v1076
        %1281 = vmatpush.bf16.msra.mxu0 %v1068
        %1282 = vmatmul.bf16.gmra.mxu0 %v617
        %v1283 = vpop.f32.mrf.mxu0
        %v1284 = vadd.f32 %v1270, %v1283
        %v1285 = vpop.f32.mrf.mxu0
        %v1286 = vadd.f32 %v1272, %v1285
        %1287 = vdwg.mxu0
        %1288 = vmatpush.bf16.msra.mxu0 %v1061
        %1289 = vmatpush.bf16.msra.mxu0 %v1053
        %1290 = vmatpush.bf16.msra.mxu0 %v1045
        %1291 = vmatpush.bf16.msra.mxu0 %v1037
        %1292 = vmatpush.bf16.msra.mxu0 %v1029
        %1293 = vmatpush.bf16.msra.mxu0 %v1021
        %1294 = vmatpush.bf16.msra.mxu0 %v1013
        %1295 = vmatpush.bf16.msra.mxu0 %v1005
        %1296 = vmatmul.bf16.gmra.mxu0 %v616
        %v1297 = vpop.f32.mrf.mxu0
        %v1298 = vadd.f32 0.0, %v1297
        %v1299 = vpop.f32.mrf.mxu0
        %v1300 = vadd.f32 0.0, %v1299
        %1301 = vdwg.mxu0
        %1302 = vmatpush.bf16.msra.mxu0 %v1125
        %1303 = vmatpush.bf16.msra.mxu0 %v1117
        %1304 = vmatpush.bf16.msra.mxu0 %v1109
        %1305 = vmatpush.bf16.msra.mxu0 %v1101
        %1306 = vmatpush.bf16.msra.mxu0 %v1093
        %1307 = vmatpush.bf16.msra.mxu0 %v1085
        %1308 = vmatpush.bf16.msra.mxu0 %v1077
        %1309 = vmatpush.bf16.msra.mxu0 %v1069
        %1310 = vmatmul.bf16.gmra.mxu0 %v617
        %v1311 = vpop.f32.mrf.mxu0
        %v1312 = vadd.f32 %v1298, %v1311
        %v1313 = vpop.f32.mrf.mxu0
        %v1314 = vadd.f32 %v1300, %v1313
        %1315 = vdwg.mxu0
        %1316 = vmatpush.bf16.msra.mxu0 %v1062
        %1317 = vmatpush.bf16.msra.mxu0 %v1054
        %1318 = vmatpush.bf16.msra.mxu0 %v1046
        %1319 = vmatpush.bf16.msra.mxu0 %v1038
        %1320 = vmatpush.bf16.msra.mxu0 %v1030
        %1321 = vmatpush.bf16.msra.mxu0 %v1022
        %1322 = vmatpush.bf16.msra.mxu0 %v1014
        %1323 = vmatpush.bf16.msra.mxu0 %v1006
        %1324 = vmatmul.bf16.gmra.mxu0 %v616
        %v1325 = vpop.f32.mrf.mxu0
        %v1326 = vadd.f32 0.0, %v1325
        %v1327 = vpop.f32.mrf.mxu0
        %v1328 = vadd.f32 0.0, %v1327
        %1329 = vdwg.mxu0
        %1330 = vmatpush.bf16.msra.mxu0 %v1126
        %1331 = vmatpush.bf16.msra.mxu0 %v1118
        %1332 = vmatpush.bf16.msra.mxu0 %v1110
        %1333 = vmatpush.bf16.msra.mxu0 %v1102
        %1334 = vmatpush.bf16.msra.mxu0 %v1094
        %1335 = vmatpush.bf16.msra.mxu0 %v1086
        %1336 = vmatpush.bf16.msra.mxu0 %v1078
        %1337 = vmatpush.bf16.msra.mxu0 %v1070
        %1338 = vmatmul.bf16.gmra.mxu0 %v617
        %v1339 = vpop.f32.mrf.mxu0
        %v1340 = vadd.f32 %v1326, %v1339
        %v1341 = vpop.f32.mrf.mxu0
        %v1342 = vadd.f32 %v1328, %v1341
        %1343 = vdwg.mxu0
        %1344 = vmatpush.bf16.msra.mxu0 %v1063
        %1345 = vmatpush.bf16.msra.mxu0 %v1055
        %1346 = vmatpush.bf16.msra.mxu0 %v1047
        %1347 = vmatpush.bf16.msra.mxu0 %v1039
        %1348 = vmatpush.bf16.msra.mxu0 %v1031
        %1349 = vmatpush.bf16.msra.mxu0 %v1023
        %1350 = vmatpush.bf16.msra.mxu0 %v1015
        %1351 = vmatpush.bf16.msra.mxu0 %v1007
        %1352 = vmatmul.bf16.gmra.mxu0 %v616
        %v1353 = vpop.f32.mrf.mxu0
        %v1354 = vadd.f32 0.0, %v1353
        %v1355 = vpop.f32.mrf.mxu0
        %v1356 = vadd.f32 0.0, %v1355
        %1357 = vdwg.mxu0
        %1358 = vmatpush.bf16.msra.mxu0 %v1127
        %1359 = vmatpush.bf16.msra.mxu0 %v1119
        %1360 = vmatpush.bf16.msra.mxu0 %v1111
        %1361 = vmatpush.bf16.msra.mxu0 %v1103
        %1362 = vmatpush.bf16.msra.mxu0 %v1095
        %1363 = vmatpush.bf16.msra.mxu0 %v1087
        %1364 = vmatpush.bf16.msra.mxu0 %v1079
        %1365 = vmatpush.bf16.msra.mxu0 %v1071
        %1366 = vmatmul.bf16.gmra.mxu0 %v617
        %v1367 = vpop.f32.mrf.mxu0
        %v1368 = vadd.f32 %v1354, %v1367
        %v1369 = vpop.f32.mrf.mxu0
        %v1370 = vadd.f32 %v1356, %v1369
        %1371 = vdwg.mxu0
        %1372 = vmatpush.bf16.msra.mxu0 %v1064
        %1373 = vmatpush.bf16.msra.mxu0 %v1056
        %1374 = vmatpush.bf16.msra.mxu0 %v1048
        %1375 = vmatpush.bf16.msra.mxu0 %v1040
        %1376 = vmatpush.bf16.msra.mxu0 %v1032
        %1377 = vmatpush.bf16.msra.mxu0 %v1024
        %1378 = vmatpush.bf16.msra.mxu0 %v1016
        %1379 = vmatpush.bf16.msra.mxu0 %v1008
        %1380 = vmatmul.bf16.gmra.mxu0 %v616
        %v1381 = vpop.f32.mrf.mxu0
        %v1382 = vadd.f32 0.0, %v1381
        %v1383 = vpop.f32.mrf.mxu0
        %v1384 = vadd.f32 0.0, %v1383
        %1385 = vdwg.mxu0
        %1386 = vmatpush.bf16.msra.mxu0 %v1128
        %1387 = vmatpush.bf16.msra.mxu0 %v1120
        %1388 = vmatpush.bf16.msra.mxu0 %v1112
        %1389 = vmatpush.bf16.msra.mxu0 %v1104
        %1390 = vmatpush.bf16.msra.mxu0 %v1096
        %1391 = vmatpush.bf16.msra.mxu0 %v1088
        %1392 = vmatpush.bf16.msra.mxu0 %v1080
        %1393 = vmatpush.bf16.msra.mxu0 %v1072
        %1394 = vmatmul.bf16.gmra.mxu0 %v617
        %v1395 = vpop.f32.mrf.mxu0
        %v1396 = vadd.f32 %v1382, %v1395
        %v1397 = vpop.f32.mrf.mxu0
        %v1398 = vadd.f32 %v1384, %v1397
        %1399 = vdwg.mxu0
        %1400 = vmatpush.bf16.msra.mxu0 %v1065
        %1401 = vmatpush.bf16.msra.mxu0 %v1057
        %1402 = vmatpush.bf16.msra.mxu0 %v1049
        %1403 = vmatpush.bf16.msra.mxu0 %v1041
        %1404 = vmatpush.bf16.msra.mxu0 %v1033
        %1405 = vmatpush.bf16.msra.mxu0 %v1025
        %1406 = vmatpush.bf16.msra.mxu0 %v1017
        %1407 = vmatpush.bf16.msra.mxu0 %v1009
        %1408 = vmatmul.bf16.gmra.mxu0 %v616
        %v1409 = vpop.f32.mrf.mxu0
        %v1410 = vadd.f32 0.0, %v1409
        %v1411 = vpop.f32.mrf.mxu0
        %v1412 = vadd.f32 0.0, %v1411
        %1413 = vdwg.mxu0
        %1414 = vmatpush.bf16.msra.mxu0 %v1129
        %1415 = vmatpush.bf16.msra.mxu0 %v1121
        %1416 = vmatpush.bf16.msra.mxu0 %v1113
        %1417 = vmatpush.bf16.msra.mxu0 %v1105
        %1418 = vmatpush.bf16.msra.mxu0 %v1097
        %1419 = vmatpush.bf16.msra.mxu0 %v1089
        %1420 = vmatpush.bf16.msra.mxu0 %v1081
        %1421 = vmatpush.bf16.msra.mxu0 %v1073
        %1422 = vmatmul.bf16.gmra.mxu0 %v617
        %v1423 = vpop.f32.mrf.mxu0
        %v1424 = vadd.f32 %v1410, %v1423
        %v1425 = vpop.f32.mrf.mxu0
        %v1426 = vadd.f32 %v1412, %v1425
        %1427 = vdwg.mxu0
        %1428 = vmatpush.bf16.msra.mxu0 %v1066
        %1429 = vmatpush.bf16.msra.mxu0 %v1058
        %1430 = vmatpush.bf16.msra.mxu0 %v1050
        %1431 = vmatpush.bf16.msra.mxu0 %v1042
        %1432 = vmatpush.bf16.msra.mxu0 %v1034
        %1433 = vmatpush.bf16.msra.mxu0 %v1026
        %1434 = vmatpush.bf16.msra.mxu0 %v1018
        %1435 = vmatpush.bf16.msra.mxu0 %v1010
        %1436 = vmatmul.bf16.gmra.mxu0 %v616
        %v1437 = vpop.f32.mrf.mxu0
        %v1438 = vadd.f32 0.0, %v1437
        %v1439 = vpop.f32.mrf.mxu0
        %v1440 = vadd.f32 0.0, %v1439
        %1441 = vdwg.mxu0
        %1442 = vmatpush.bf16.msra.mxu0 %v1130
        %1443 = vmatpush.bf16.msra.mxu0 %v1122
        %1444 = vmatpush.bf16.msra.mxu0 %v1114
        %1445 = vmatpush.bf16.msra.mxu0 %v1106
        %1446 = vmatpush.bf16.msra.mxu0 %v1098
        %1447 = vmatpush.bf16.msra.mxu0 %v1090
        %1448 = vmatpush.bf16.msra.mxu0 %v1082
        %1449 = vmatpush.bf16.msra.mxu0 %v1074
        %1450 = vmatmul.bf16.gmra.mxu0 %v617
        %v1451 = vpop.f32.mrf.mxu0
        %v1452 = vadd.f32 %v1438, %v1451
        %v1453 = vpop.f32.mrf.mxu0
        %v1454 = vadd.f32 %v1440, %v1453
        %1455 = vdwg.mxu0
        %1456 = vmatpush.bf16.msra.mxu0 %v1067
        %1457 = vmatpush.bf16.msra.mxu0 %v1059
        %1458 = vmatpush.bf16.msra.mxu0 %v1051
        %1459 = vmatpush.bf16.msra.mxu0 %v1043
        %1460 = vmatpush.bf16.msra.mxu0 %v1035
        %1461 = vmatpush.bf16.msra.mxu0 %v1027
        %1462 = vmatpush.bf16.msra.mxu0 %v1019
        %1463 = vmatpush.bf16.msra.mxu0 %v1011
        %1464 = vmatmul.bf16.gmra.mxu0 %v616
        %v1465 = vpop.f32.mrf.mxu0
        %v1466 = vadd.f32 0.0, %v1465
        %v1467 = vpop.f32.mrf.mxu0
        %v1468 = vadd.f32 0.0, %v1467
        %1469 = vdwg.mxu0
        %1470 = vmatpush.bf16.msra.mxu0 %v1131
        %1471 = vmatpush.bf16.msra.mxu0 %v1123
        %1472 = vmatpush.bf16.msra.mxu0 %v1115
        %1473 = vmatpush.bf16.msra.mxu0 %v1107
        %1474 = vmatpush.bf16.msra.mxu0 %v1099
        %1475 = vmatpush.bf16.msra.mxu0 %v1091
        %1476 = vmatpush.bf16.msra.mxu0 %v1083
        %1477 = vmatpush.bf16.msra.mxu0 %v1075
        %1478 = vmatmul.bf16.gmra.mxu0 %v617
        %v1479 = vpop.f32.mrf.mxu0
        %v1480 = vadd.f32 %v1466, %v1479
        %v1481 = vpop.f32.mrf.mxu0
        %v1482 = vadd.f32 %v1468, %v1481
        %1483 = vdwg.mxu0
        %v1484 = vld [vmem:[#allocation4] sm:$0xff]
        %v1485 = vld [vmem:[#allocation4 + $0x8] sm:$0xff]
        %v1486 = vld [vmem:[#allocation4 + $0x10] sm:$0xff]
        %v1487 = vld [vmem:[#allocation4 + $0x18] sm:$0xff]
        %v1488 = vld [vmem:[#allocation4 + $0x20] sm:$0xff]
        %v1489 = vld [vmem:[#allocation4 + $0x28] sm:$0xff]
        %v1490 = vld [vmem:[#allocation4 + $0x30] sm:$0xff]
        %v1491 = vld [vmem:[#allocation4 + $0x38] sm:$0xff]
        %v1492 = vld [vmem:[#allocation4 + $0x40] sm:$0xff]
        %v1493 = vld [vmem:[#allocation4 + $0x48] sm:$0xff]
        %v1494 = vld [vmem:[#allocation4 + $0x50] sm:$0xff]
        %v1495 = vld [vmem:[#allocation4 + $0x58] sm:$0xff]
        %v1496 = vld [vmem:[#allocation4 + $0x60] sm:$0xff]
        %v1497 = vld [vmem:[#allocation4 + $0x68] sm:$0xff]
        %v1498 = vld [vmem:[#allocation4 + $0x70] sm:$0xff]
        %v1499 = vld [vmem:[#allocation4 + $0x78] sm:$0xff]
        %v1500 = vld [vmem:[#allocation4 + $0x80] sm:$0xff]
        %v1501 = vld [vmem:[#allocation4 + $0x88] sm:$0xff]
        %v1502 = vld [vmem:[#allocation4 + $0x90] sm:$0xff]
        %v1503 = vld [vmem:[#allocation4 + $0x98] sm:$0xff]
        %v1504 = vld [vmem:[#allocation4 + $0xa0] sm:$0xff]
        %v1505 = vld [vmem:[#allocation4 + $0xa8] sm:$0xff]
        %v1506 = vld [vmem:[#allocation4 + $0xb0] sm:$0xff]
        %v1507 = vld [vmem:[#allocation4 + $0xb8] sm:$0xff]
        %v1508 = vld [vmem:[#allocation4 + $0xc0] sm:$0xff]
        %v1509 = vld [vmem:[#allocation4 + $0xc8] sm:$0xff]
        %v1510 = vld [vmem:[#allocation4 + $0xd0] sm:$0xff]
        %v1511 = vld [vmem:[#allocation4 + $0xd8] sm:$0xff]
        %v1512 = vld [vmem:[#allocation4 + $0xe0] sm:$0xff]
        %v1513 = vld [vmem:[#allocation4 + $0xe8] sm:$0xff]
        %v1514 = vld [vmem:[#allocation4 + $0xf0] sm:$0xff]
        %v1515 = vld [vmem:[#allocation4 + $0xf8] sm:$0xff]
        %v1516 = vld [vmem:[#allocation4 + $0x100] sm:$0xff]
        %v1517 = vld [vmem:[#allocation4 + $0x108] sm:$0xff]
        %v1518 = vld [vmem:[#allocation4 + $0x110] sm:$0xff]
        %v1519 = vld [vmem:[#allocation4 + $0x118] sm:$0xff]
        %v1520 = vld [vmem:[#allocation4 + $0x120] sm:$0xff]
        %v1521 = vld [vmem:[#allocation4 + $0x128] sm:$0xff]
        %v1522 = vld [vmem:[#allocation4 + $0x130] sm:$0xff]
        %v1523 = vld [vmem:[#allocation4 + $0x138] sm:$0xff]
        %v1524 = vld [vmem:[#allocation4 + $0x140] sm:$0xff]
        %v1525 = vld [vmem:[#allocation4 + $0x148] sm:$0xff]
        %v1526 = vld [vmem:[#allocation4 + $0x150] sm:$0xff]
        %v1527 = vld [vmem:[#allocation4 + $0x158] sm:$0xff]
        %v1528 = vld [vmem:[#allocation4 + $0x160] sm:$0xff]
        %v1529 = vld [vmem:[#allocation4 + $0x168] sm:$0xff]
        %v1530 = vld [vmem:[#allocation4 + $0x170] sm:$0xff]
        %v1531 = vld [vmem:[#allocation4 + $0x178] sm:$0xff]
        %v1532 = vld [vmem:[#allocation4 + $0x180] sm:$0xff]
        %v1533 = vld [vmem:[#allocation4 + $0x188] sm:$0xff]
        %v1534 = vld [vmem:[#allocation4 + $0x190] sm:$0xff]
        %v1535 = vld [vmem:[#allocation4 + $0x198] sm:$0xff]
        %v1536 = vld [vmem:[#allocation4 + $0x1a0] sm:$0xff]
        %v1537 = vld [vmem:[#allocation4 + $0x1a8] sm:$0xff]
        %v1538 = vld [vmem:[#allocation4 + $0x1b0] sm:$0xff]
        %v1539 = vld [vmem:[#allocation4 + $0x1b8] sm:$0xff]
        %v1540 = vld [vmem:[#allocation4 + $0x1c0] sm:$0xff]
        %v1541 = vld [vmem:[#allocation4 + $0x1c8] sm:$0xff]
        %v1542 = vld [vmem:[#allocation4 + $0x1d0] sm:$0xff]
        %v1543 = vld [vmem:[#allocation4 + $0x1d8] sm:$0xff]
        %v1544 = vld [vmem:[#allocation4 + $0x1e0] sm:$0xff]
        %v1545 = vld [vmem:[#allocation4 + $0x1e8] sm:$0xff]
        %v1546 = vld [vmem:[#allocation4 + $0x1f0] sm:$0xff]
        %v1547 = vld [vmem:[#allocation4 + $0x1f8] sm:$0xff]
        %v1548 = vld [vmem:[#allocation4 + $0x200] sm:$0xff]
        %v1549 = vld [vmem:[#allocation4 + $0x208] sm:$0xff]
        %v1550 = vld [vmem:[#allocation4 + $0x210] sm:$0xff]
        %v1551 = vld [vmem:[#allocation4 + $0x218] sm:$0xff]
        %v1552 = vld [vmem:[#allocation4 + $0x220] sm:$0xff]
        %v1553 = vld [vmem:[#allocation4 + $0x228] sm:$0xff]
        %v1554 = vld [vmem:[#allocation4 + $0x230] sm:$0xff]
        %v1555 = vld [vmem:[#allocation4 + $0x238] sm:$0xff]
        %v1556 = vld [vmem:[#allocation4 + $0x240] sm:$0xff]
        %v1557 = vld [vmem:[#allocation4 + $0x248] sm:$0xff]
        %v1558 = vld [vmem:[#allocation4 + $0x250] sm:$0xff]
        %v1559 = vld [vmem:[#allocation4 + $0x258] sm:$0xff]
        %v1560 = vld [vmem:[#allocation4 + $0x260] sm:$0xff]
        %v1561 = vld [vmem:[#allocation4 + $0x268] sm:$0xff]
        %v1562 = vld [vmem:[#allocation4 + $0x270] sm:$0xff]
        %v1563 = vld [vmem:[#allocation4 + $0x278] sm:$0xff]
        %v1564 = vld [vmem:[#allocation4 + $0x280] sm:$0xff]
        %v1565 = vld [vmem:[#allocation4 + $0x288] sm:$0xff]
        %v1566 = vld [vmem:[#allocation4 + $0x290] sm:$0xff]
        %v1567 = vld [vmem:[#allocation4 + $0x298] sm:$0xff]
        %v1568 = vld [vmem:[#allocation4 + $0x2a0] sm:$0xff]
        %v1569 = vld [vmem:[#allocation4 + $0x2a8] sm:$0xff]
        %v1570 = vld [vmem:[#allocation4 + $0x2b0] sm:$0xff]
        %v1571 = vld [vmem:[#allocation4 + $0x2b8] sm:$0xff]
        %v1572 = vld [vmem:[#allocation4 + $0x2c0] sm:$0xff]
        %v1573 = vld [vmem:[#allocation4 + $0x2c8] sm:$0xff]
        %v1574 = vld [vmem:[#allocation4 + $0x2d0] sm:$0xff]
        %v1575 = vld [vmem:[#allocation4 + $0x2d8] sm:$0xff]
        %v1576 = vld [vmem:[#allocation4 + $0x2e0] sm:$0xff]
        %v1577 = vld [vmem:[#allocation4 + $0x2e8] sm:$0xff]
        %v1578 = vld [vmem:[#allocation4 + $0x2f0] sm:$0xff]
        %v1579 = vld [vmem:[#allocation4 + $0x2f8] sm:$0xff]
        %v1580 = vld [vmem:[#allocation4 + $0x300] sm:$0xff]
        %v1581 = vld [vmem:[#allocation4 + $0x308] sm:$0xff]
        %v1582 = vld [vmem:[#allocation4 + $0x310] sm:$0xff]
        %v1583 = vld [vmem:[#allocation4 + $0x318] sm:$0xff]
        %v1584 = vld [vmem:[#allocation4 + $0x320] sm:$0xff]
        %v1585 = vld [vmem:[#allocation4 + $0x328] sm:$0xff]
        %v1586 = vld [vmem:[#allocation4 + $0x330] sm:$0xff]
        %v1587 = vld [vmem:[#allocation4 + $0x338] sm:$0xff]
        %v1588 = vld [vmem:[#allocation4 + $0x340] sm:$0xff]
        %v1589 = vld [vmem:[#allocation4 + $0x348] sm:$0xff]
        %v1590 = vld [vmem:[#allocation4 + $0x350] sm:$0xff]
        %v1591 = vld [vmem:[#allocation4 + $0x358] sm:$0xff]
        %v1592 = vld [vmem:[#allocation4 + $0x360] sm:$0xff]
        %v1593 = vld [vmem:[#allocation4 + $0x368] sm:$0xff]
        %v1594 = vld [vmem:[#allocation4 + $0x370] sm:$0xff]
        %v1595 = vld [vmem:[#allocation4 + $0x378] sm:$0xff]
        %v1596 = vld [vmem:[#allocation4 + $0x380] sm:$0xff]
        %v1597 = vld [vmem:[#allocation4 + $0x388] sm:$0xff]
        %v1598 = vld [vmem:[#allocation4 + $0x390] sm:$0xff]
        %v1599 = vld [vmem:[#allocation4 + $0x398] sm:$0xff]
        %v1600 = vld [vmem:[#allocation4 + $0x3a0] sm:$0xff]
        %v1601 = vld [vmem:[#allocation4 + $0x3a8] sm:$0xff]
        %v1602 = vld [vmem:[#allocation4 + $0x3b0] sm:$0xff]
        %v1603 = vld [vmem:[#allocation4 + $0x3b8] sm:$0xff]
        %v1604 = vld [vmem:[#allocation4 + $0x3c0] sm:$0xff]
        %v1605 = vld [vmem:[#allocation4 + $0x3c8] sm:$0xff]
        %v1606 = vld [vmem:[#allocation4 + $0x3d0] sm:$0xff]
        %v1607 = vld [vmem:[#allocation4 + $0x3d8] sm:$0xff]
        %v1608 = vld [vmem:[#allocation4 + $0x3e0] sm:$0xff]
        %v1609 = vld [vmem:[#allocation4 + $0x3e8] sm:$0xff]
        %v1610 = vld [vmem:[#allocation4 + $0x3f0] sm:$0xff]
        %v1611 = vld [vmem:[#allocation4 + $0x3f8] sm:$0xff]
        %v1612 = vld [vmem:[#allocation6] sm:$0xff]
        %v1613 = vld [vmem:[#allocation6 + $0x8] sm:$0xff]
        %v1614 = vld [vmem:[#allocation6 + $0x10] sm:$0xff]
        %v1615 = vld [vmem:[#allocation6 + $0x18] sm:$0xff]
        %v1616 = vld [vmem:[#allocation6 + $0x20] sm:$0xff]
        %v1617 = vld [vmem:[#allocation6 + $0x28] sm:$0xff]
        %v1618 = vld [vmem:[#allocation6 + $0x30] sm:$0xff]
        %v1619 = vld [vmem:[#allocation6 + $0x38] sm:$0xff]
        %v1620 = vld [vmem:[#allocation6 + $0x40] sm:$0xff]
        %v1621 = vld [vmem:[#allocation6 + $0x48] sm:$0xff]
        %v1622 = vld [vmem:[#allocation6 + $0x50] sm:$0xff]
        %v1623 = vld [vmem:[#allocation6 + $0x58] sm:$0xff]
        %v1624 = vld [vmem:[#allocation6 + $0x60] sm:$0xff]
        %v1625 = vld [vmem:[#allocation6 + $0x68] sm:$0xff]
        %v1626 = vld [vmem:[#allocation6 + $0x70] sm:$0xff]
        %v1627 = vld [vmem:[#allocation6 + $0x78] sm:$0xff]
        %v1628 = vld [vmem:[#allocation6 + $0x80] sm:$0xff]
        %v1629 = vld [vmem:[#allocation6 + $0x88] sm:$0xff]
        %v1630 = vld [vmem:[#allocation6 + $0x90] sm:$0xff]
        %v1631 = vld [vmem:[#allocation6 + $0x98] sm:$0xff]
        %v1632 = vld [vmem:[#allocation6 + $0xa0] sm:$0xff]
        %v1633 = vld [vmem:[#allocation6 + $0xa8] sm:$0xff]
        %v1634 = vld [vmem:[#allocation6 + $0xb0] sm:$0xff]
        %v1635 = vld [vmem:[#allocation6 + $0xb8] sm:$0xff]
        %v1636 = vld [vmem:[#allocation6 + $0xc0] sm:$0xff]
        %v1637 = vld [vmem:[#allocation6 + $0xc8] sm:$0xff]
        %v1638 = vld [vmem:[#allocation6 + $0xd0] sm:$0xff]
        %v1639 = vld [vmem:[#allocation6 + $0xd8] sm:$0xff]
        %v1640 = vld [vmem:[#allocation6 + $0xe0] sm:$0xff]
        %v1641 = vld [vmem:[#allocation6 + $0xe8] sm:$0xff]
        %v1642 = vld [vmem:[#allocation6 + $0xf0] sm:$0xff]
        %v1643 = vld [vmem:[#allocation6 + $0xf8] sm:$0xff]
        %v1644 = vld [vmem:[#allocation6 + $0x100] sm:$0xff]
        %v1645 = vld [vmem:[#allocation6 + $0x108] sm:$0xff]
        %v1646 = vld [vmem:[#allocation6 + $0x110] sm:$0xff]
        %v1647 = vld [vmem:[#allocation6 + $0x118] sm:$0xff]
        %v1648 = vld [vmem:[#allocation6 + $0x120] sm:$0xff]
        %v1649 = vld [vmem:[#allocation6 + $0x128] sm:$0xff]
        %v1650 = vld [vmem:[#allocation6 + $0x130] sm:$0xff]
        %v1651 = vld [vmem:[#allocation6 + $0x138] sm:$0xff]
        %v1652 = vld [vmem:[#allocation6 + $0x140] sm:$0xff]
        %v1653 = vld [vmem:[#allocation6 + $0x148] sm:$0xff]
        %v1654 = vld [vmem:[#allocation6 + $0x150] sm:$0xff]
        %v1655 = vld [vmem:[#allocation6 + $0x158] sm:$0xff]
        %v1656 = vld [vmem:[#allocation6 + $0x160] sm:$0xff]
        %v1657 = vld [vmem:[#allocation6 + $0x168] sm:$0xff]
        %v1658 = vld [vmem:[#allocation6 + $0x170] sm:$0xff]
        %v1659 = vld [vmem:[#allocation6 + $0x178] sm:$0xff]
        %v1660 = vld [vmem:[#allocation6 + $0x180] sm:$0xff]
        %v1661 = vld [vmem:[#allocation6 + $0x188] sm:$0xff]
        %v1662 = vld [vmem:[#allocation6 + $0x190] sm:$0xff]
        %v1663 = vld [vmem:[#allocation6 + $0x198] sm:$0xff]
        %v1664 = vld [vmem:[#allocation6 + $0x1a0] sm:$0xff]
        %v1665 = vld [vmem:[#allocation6 + $0x1a8] sm:$0xff]
        %v1666 = vld [vmem:[#allocation6 + $0x1b0] sm:$0xff]
        %v1667 = vld [vmem:[#allocation6 + $0x1b8] sm:$0xff]
        %v1668 = vld [vmem:[#allocation6 + $0x1c0] sm:$0xff]
        %v1669 = vld [vmem:[#allocation6 + $0x1c8] sm:$0xff]
        %v1670 = vld [vmem:[#allocation6 + $0x1d0] sm:$0xff]
        %v1671 = vld [vmem:[#allocation6 + $0x1d8] sm:$0xff]
        %v1672 = vld [vmem:[#allocation6 + $0x1e0] sm:$0xff]
        %v1673 = vld [vmem:[#allocation6 + $0x1e8] sm:$0xff]
        %v1674 = vld [vmem:[#allocation6 + $0x1f0] sm:$0xff]
        %v1675 = vld [vmem:[#allocation6 + $0x1f8] sm:$0xff]
        %v1676 = vld [vmem:[#allocation6 + $0x200] sm:$0xff]
        %v1677 = vld [vmem:[#allocation6 + $0x208] sm:$0xff]
        %v1678 = vld [vmem:[#allocation6 + $0x210] sm:$0xff]
        %v1679 = vld [vmem:[#allocation6 + $0x218] sm:$0xff]
        %v1680 = vld [vmem:[#allocation6 + $0x220] sm:$0xff]
        %v1681 = vld [vmem:[#allocation6 + $0x228] sm:$0xff]
        %v1682 = vld [vmem:[#allocation6 + $0x230] sm:$0xff]
        %v1683 = vld [vmem:[#allocation6 + $0x238] sm:$0xff]
        %v1684 = vld [vmem:[#allocation6 + $0x240] sm:$0xff]
        %v1685 = vld [vmem:[#allocation6 + $0x248] sm:$0xff]
        %v1686 = vld [vmem:[#allocation6 + $0x250] sm:$0xff]
        %v1687 = vld [vmem:[#allocation6 + $0x258] sm:$0xff]
        %v1688 = vld [vmem:[#allocation6 + $0x260] sm:$0xff]
        %v1689 = vld [vmem:[#allocation6 + $0x268] sm:$0xff]
        %v1690 = vld [vmem:[#allocation6 + $0x270] sm:$0xff]
        %v1691 = vld [vmem:[#allocation6 + $0x278] sm:$0xff]
        %v1692 = vld [vmem:[#allocation6 + $0x280] sm:$0xff]
        %v1693 = vld [vmem:[#allocation6 + $0x288] sm:$0xff]
        %v1694 = vld [vmem:[#allocation6 + $0x290] sm:$0xff]
        %v1695 = vld [vmem:[#allocation6 + $0x298] sm:$0xff]
        %v1696 = vld [vmem:[#allocation6 + $0x2a0] sm:$0xff]
        %v1697 = vld [vmem:[#allocation6 + $0x2a8] sm:$0xff]
        %v1698 = vld [vmem:[#allocation6 + $0x2b0] sm:$0xff]
        %v1699 = vld [vmem:[#allocation6 + $0x2b8] sm:$0xff]
        %v1700 = vld [vmem:[#allocation6 + $0x2c0] sm:$0xff]
        %v1701 = vld [vmem:[#allocation6 + $0x2c8] sm:$0xff]
        %v1702 = vld [vmem:[#allocation6 + $0x2d0] sm:$0xff]
        %v1703 = vld [vmem:[#allocation6 + $0x2d8] sm:$0xff]
        %v1704 = vld [vmem:[#allocation6 + $0x2e0] sm:$0xff]
        %v1705 = vld [vmem:[#allocation6 + $0x2e8] sm:$0xff]
        %v1706 = vld [vmem:[#allocation6 + $0x2f0] sm:$0xff]
        %v1707 = vld [vmem:[#allocation6 + $0x2f8] sm:$0xff]
        %v1708 = vld [vmem:[#allocation6 + $0x300] sm:$0xff]
        %v1709 = vld [vmem:[#allocation6 + $0x308] sm:$0xff]
        %v1710 = vld [vmem:[#allocation6 + $0x310] sm:$0xff]
        %v1711 = vld [vmem:[#allocation6 + $0x318] sm:$0xff]
        %v1712 = vld [vmem:[#allocation6 + $0x320] sm:$0xff]
        %v1713 = vld [vmem:[#allocation6 + $0x328] sm:$0xff]
        %v1714 = vld [vmem:[#allocation6 + $0x330] sm:$0xff]
        %v1715 = vld [vmem:[#allocation6 + $0x338] sm:$0xff]
        %v1716 = vld [vmem:[#allocation6 + $0x340] sm:$0xff]
        %v1717 = vld [vmem:[#allocation6 + $0x348] sm:$0xff]
        %v1718 = vld [vmem:[#allocation6 + $0x350] sm:$0xff]
        %v1719 = vld [vmem:[#allocation6 + $0x358] sm:$0xff]
        %v1720 = vld [vmem:[#allocation6 + $0x360] sm:$0xff]
        %v1721 = vld [vmem:[#allocation6 + $0x368] sm:$0xff]
        %v1722 = vld [vmem:[#allocation6 + $0x370] sm:$0xff]
        %v1723 = vld [vmem:[#allocation6 + $0x378] sm:$0xff]
        %v1724 = vld [vmem:[#allocation6 + $0x380] sm:$0xff]
        %v1725 = vld [vmem:[#allocation6 + $0x388] sm:$0xff]
        %v1726 = vld [vmem:[#allocation6 + $0x390] sm:$0xff]
        %v1727 = vld [vmem:[#allocation6 + $0x398] sm:$0xff]
        %v1728 = vld [vmem:[#allocation6 + $0x3a0] sm:$0xff]
        %v1729 = vld [vmem:[#allocation6 + $0x3a8] sm:$0xff]
        %v1730 = vld [vmem:[#allocation6 + $0x3b0] sm:$0xff]
        %v1731 = vld [vmem:[#allocation6 + $0x3b8] sm:$0xff]
        %v1732 = vld [vmem:[#allocation6 + $0x3c0] sm:$0xff]
        %v1733 = vld [vmem:[#allocation6 + $0x3c8] sm:$0xff]
        %v1734 = vld [vmem:[#allocation6 + $0x3d0] sm:$0xff]
        %v1735 = vld [vmem:[#allocation6 + $0x3d8] sm:$0xff]
        %v1736 = vld [vmem:[#allocation6 + $0x3e0] sm:$0xff]
        %v1737 = vld [vmem:[#allocation6 + $0x3e8] sm:$0xff]
        %v1738 = vld [vmem:[#allocation6 + $0x3f0] sm:$0xff]
        %v1739 = vld [vmem:[#allocation6 + $0x3f8] sm:$0xff]
        %v1741 = vunpack.c.l.b16 %v481
        %v1742 = vunpack.c.h.b16 %v481
        %v1743 = vpack.c.b16 %v1741, %v1741
        %v1744 = vpack.c.b16 %v1742, %v1742
        %vm1745 = vsmask.f32 7424
        %v1747 = vshrl.u32 %v616, 16
        %v1749 = vshll.u32 %v616, 16
        %v1751 = vrot.slane %v1749, 1
        %v1752 = vor.u32 %v1747, %v1751
        %v1754 = vshll.u32 %v1743, 16
        %v1756 = vrot.slane %v1754, 1
        %v1757 = vsel %vm1745, %v1752, %v1756
        %v1759 = vshrl.u32 %v617, 16
        %v1761 = vshll.u32 %v617, 16
        %v1763 = vrot.slane %v1761, 1
        %v1764 = vor.u32 %v1759, %v1763
        %v1766 = vshll.u32 %v1744, 16
        %v1768 = vrot.slane %v1766, 1
        %v1769 = vsel %vm1745, %v1764, %v1768
        %v1900 = vunpack.c.l.b16 %v1612
        %v1901 = vunpack.c.h.b16 %v1612
        %v1902 = vunpack.c.l.b16 %v1613
        %v1903 = vunpack.c.h.b16 %v1613
        %v1904 = vunpack.c.l.b16 %v1614
        %v1905 = vunpack.c.h.b16 %v1614
        %v1906 = vunpack.c.l.b16 %v1615
        %v1907 = vunpack.c.h.b16 %v1615
        %v1908 = vunpack.c.l.b16 %v1616
        %v1909 = vunpack.c.h.b16 %v1616
        %v1910 = vunpack.c.l.b16 %v1617
        %v1911 = vunpack.c.h.b16 %v1617
        %v1912 = vunpack.c.l.b16 %v1618
        %v1913 = vunpack.c.h.b16 %v1618
        %v1914 = vunpack.c.l.b16 %v1619
        %v1915 = vunpack.c.h.b16 %v1619
        %v1916 = vunpack.c.l.b16 %v1620
        %v1917 = vunpack.c.h.b16 %v1620
        %v1918 = vunpack.c.l.b16 %v1621
        %v1919 = vunpack.c.h.b16 %v1621
        %v1920 = vunpack.c.l.b16 %v1622
        %v1921 = vunpack.c.h.b16 %v1622
        %v1922 = vunpack.c.l.b16 %v1623
        %v1923 = vunpack.c.h.b16 %v1623
        %v1924 = vunpack.c.l.b16 %v1624
        %v1925 = vunpack.c.h.b16 %v1624
        %v1926 = vunpack.c.l.b16 %v1625
        %v1927 = vunpack.c.h.b16 %v1625
        %v1928 = vunpack.c.l.b16 %v1626
        %v1929 = vunpack.c.h.b16 %v1626
        %v1930 = vunpack.c.l.b16 %v1627
        %v1931 = vunpack.c.h.b16 %v1627
        %v1932 = vunpack.c.l.b16 %v1628
        %v1933 = vunpack.c.h.b16 %v1628
        %v1934 = vunpack.c.l.b16 %v1629
        %v1935 = vunpack.c.h.b16 %v1629
        %v1936 = vunpack.c.l.b16 %v1630
        %v1937 = vunpack.c.h.b16 %v1630
        %v1938 = vunpack.c.l.b16 %v1631
        %v1939 = vunpack.c.h.b16 %v1631
        %v1940 = vunpack.c.l.b16 %v1632
        %v1941 = vunpack.c.h.b16 %v1632
        %v1942 = vunpack.c.l.b16 %v1633
        %v1943 = vunpack.c.h.b16 %v1633
        %v1944 = vunpack.c.l.b16 %v1634
        %v1945 = vunpack.c.h.b16 %v1634
        %v1946 = vunpack.c.l.b16 %v1635
        %v1947 = vunpack.c.h.b16 %v1635
        %v1948 = vunpack.c.l.b16 %v1636
        %v1949 = vunpack.c.h.b16 %v1636
        %v1950 = vunpack.c.l.b16 %v1637
        %v1951 = vunpack.c.h.b16 %v1637
        %v1952 = vunpack.c.l.b16 %v1638
        %v1953 = vunpack.c.h.b16 %v1638
        %v1954 = vunpack.c.l.b16 %v1639
        %v1955 = vunpack.c.h.b16 %v1639
        %v1956 = vunpack.c.l.b16 %v1640
        %v1957 = vunpack.c.h.b16 %v1640
        %v1958 = vunpack.c.l.b16 %v1641
        %v1959 = vunpack.c.h.b16 %v1641
        %v1960 = vunpack.c.l.b16 %v1642
        %v1961 = vunpack.c.h.b16 %v1642
        %v1962 = vunpack.c.l.b16 %v1643
        %v1963 = vunpack.c.h.b16 %v1643
        %v1964 = vunpack.c.l.b16 %v1644
        %v1965 = vunpack.c.h.b16 %v1644
        %v1966 = vunpack.c.l.b16 %v1645
        %v1967 = vunpack.c.h.b16 %v1645
        %v1968 = vunpack.c.l.b16 %v1646
        %v1969 = vunpack.c.h.b16 %v1646
        %v1970 = vunpack.c.l.b16 %v1647
        %v1971 = vunpack.c.h.b16 %v1647
        %v1972 = vunpack.c.l.b16 %v1648
        %v1973 = vunpack.c.h.b16 %v1648
        %v1974 = vunpack.c.l.b16 %v1649
        %v1975 = vunpack.c.h.b16 %v1649
        %v1976 = vunpack.c.l.b16 %v1650
        %v1977 = vunpack.c.h.b16 %v1650
        %v1978 = vunpack.c.l.b16 %v1651
        %v1979 = vunpack.c.h.b16 %v1651
        %v1980 = vunpack.c.l.b16 %v1652
        %v1981 = vunpack.c.h.b16 %v1652
        %v1982 = vunpack.c.l.b16 %v1653
        %v1983 = vunpack.c.h.b16 %v1653
        %v1984 = vunpack.c.l.b16 %v1654
        %v1985 = vunpack.c.h.b16 %v1654
        %v1986 = vunpack.c.l.b16 %v1655
        %v1987 = vunpack.c.h.b16 %v1655
        %v1988 = vunpack.c.l.b16 %v1656
        %v1989 = vunpack.c.h.b16 %v1656
        %v1990 = vunpack.c.l.b16 %v1657
        %v1991 = vunpack.c.h.b16 %v1657
        %v1992 = vunpack.c.l.b16 %v1658
        %v1993 = vunpack.c.h.b16 %v1658
        %v1994 = vunpack.c.l.b16 %v1659
        %v1995 = vunpack.c.h.b16 %v1659
        %v1996 = vunpack.c.l.b16 %v1660
        %v1997 = vunpack.c.h.b16 %v1660
        %v1998 = vunpack.c.l.b16 %v1661
        %v1999 = vunpack.c.h.b16 %v1661
        %v2000 = vunpack.c.l.b16 %v1662
        %v2001 = vunpack.c.h.b16 %v1662
        %v2002 = vunpack.c.l.b16 %v1663
        %v2003 = vunpack.c.h.b16 %v1663
        %v2004 = vunpack.c.l.b16 %v1664
        %v2005 = vunpack.c.h.b16 %v1664
        %v2006 = vunpack.c.l.b16 %v1665
        %v2007 = vunpack.c.h.b16 %v1665
        %v2008 = vunpack.c.l.b16 %v1666
        %v2009 = vunpack.c.h.b16 %v1666
        %v2010 = vunpack.c.l.b16 %v1667
        %v2011 = vunpack.c.h.b16 %v1667
        %v2012 = vunpack.c.l.b16 %v1668
        %v2013 = vunpack.c.h.b16 %v1668
        %v2014 = vunpack.c.l.b16 %v1669
        %v2015 = vunpack.c.h.b16 %v1669
        %v2016 = vunpack.c.l.b16 %v1670
        %v2017 = vunpack.c.h.b16 %v1670
        %v2018 = vunpack.c.l.b16 %v1671
        %v2019 = vunpack.c.h.b16 %v1671
        %v2020 = vunpack.c.l.b16 %v1672
        %v2021 = vunpack.c.h.b16 %v1672
        %v2022 = vunpack.c.l.b16 %v1673
        %v2023 = vunpack.c.h.b16 %v1673
        %v2024 = vunpack.c.l.b16 %v1674
        %v2025 = vunpack.c.h.b16 %v1674
        %v2026 = vunpack.c.l.b16 %v1675
        %v2027 = vunpack.c.h.b16 %v1675
        %v2028 = vunpack.c.l.b16 %v1676
        %v2029 = vunpack.c.h.b16 %v1676
        %v2030 = vunpack.c.l.b16 %v1677
        %v2031 = vunpack.c.h.b16 %v1677
        %v2032 = vunpack.c.l.b16 %v1678
        %v2033 = vunpack.c.h.b16 %v1678
        %v2034 = vunpack.c.l.b16 %v1679
        %v2035 = vunpack.c.h.b16 %v1679
        %v2036 = vunpack.c.l.b16 %v1680
        %v2037 = vunpack.c.h.b16 %v1680
        %v2038 = vunpack.c.l.b16 %v1681
        %v2039 = vunpack.c.h.b16 %v1681
        %v2040 = vunpack.c.l.b16 %v1682
        %v2041 = vunpack.c.h.b16 %v1682
        %v2042 = vunpack.c.l.b16 %v1683
        %v2043 = vunpack.c.h.b16 %v1683
        %v2044 = vunpack.c.l.b16 %v1684
        %v2045 = vunpack.c.h.b16 %v1684
        %v2046 = vunpack.c.l.b16 %v1685
        %v2047 = vunpack.c.h.b16 %v1685
        %v2048 = vunpack.c.l.b16 %v1686
        %v2049 = vunpack.c.h.b16 %v1686
        %v2050 = vunpack.c.l.b16 %v1687
        %v2051 = vunpack.c.h.b16 %v1687
        %v2052 = vunpack.c.l.b16 %v1688
        %v2053 = vunpack.c.h.b16 %v1688
        %v2054 = vunpack.c.l.b16 %v1689
        %v2055 = vunpack.c.h.b16 %v1689
        %v2056 = vunpack.c.l.b16 %v1690
        %v2057 = vunpack.c.h.b16 %v1690
        %v2058 = vunpack.c.l.b16 %v1691
        %v2059 = vunpack.c.h.b16 %v1691
        %v2060 = vunpack.c.l.b16 %v1692
        %v2061 = vunpack.c.h.b16 %v1692
        %v2062 = vunpack.c.l.b16 %v1693
        %v2063 = vunpack.c.h.b16 %v1693
        %v2064 = vunpack.c.l.b16 %v1694
        %v2065 = vunpack.c.h.b16 %v1694
        %v2066 = vunpack.c.l.b16 %v1695
        %v2067 = vunpack.c.h.b16 %v1695
        %v2068 = vunpack.c.l.b16 %v1696
        %v2069 = vunpack.c.h.b16 %v1696
        %v2070 = vunpack.c.l.b16 %v1697
        %v2071 = vunpack.c.h.b16 %v1697
        %v2072 = vunpack.c.l.b16 %v1698
        %v2073 = vunpack.c.h.b16 %v1698
        %v2074 = vunpack.c.l.b16 %v1699
        %v2075 = vunpack.c.h.b16 %v1699
        %v2076 = vunpack.c.l.b16 %v1700
        %v2077 = vunpack.c.h.b16 %v1700
        %v2078 = vunpack.c.l.b16 %v1701
        %v2079 = vunpack.c.h.b16 %v1701
        %v2080 = vunpack.c.l.b16 %v1702
        %v2081 = vunpack.c.h.b16 %v1702
        %v2082 = vunpack.c.l.b16 %v1703
        %v2083 = vunpack.c.h.b16 %v1703
        %v2084 = vunpack.c.l.b16 %v1704
        %v2085 = vunpack.c.h.b16 %v1704
        %v2086 = vunpack.c.l.b16 %v1705
        %v2087 = vunpack.c.h.b16 %v1705
        %v2088 = vunpack.c.l.b16 %v1706
        %v2089 = vunpack.c.h.b16 %v1706
        %v2090 = vunpack.c.l.b16 %v1707
        %v2091 = vunpack.c.h.b16 %v1707
        %v2092 = vunpack.c.l.b16 %v1708
        %v2093 = vunpack.c.h.b16 %v1708
        %v2094 = vunpack.c.l.b16 %v1709
        %v2095 = vunpack.c.h.b16 %v1709
        %v2096 = vunpack.c.l.b16 %v1710
        %v2097 = vunpack.c.h.b16 %v1710
        %v2098 = vunpack.c.l.b16 %v1711
        %v2099 = vunpack.c.h.b16 %v1711
        %v2100 = vunpack.c.l.b16 %v1712
        %v2101 = vunpack.c.h.b16 %v1712
        %v2102 = vunpack.c.l.b16 %v1713
        %v2103 = vunpack.c.h.b16 %v1713
        %v2104 = vunpack.c.l.b16 %v1714
        %v2105 = vunpack.c.h.b16 %v1714
        %v2106 = vunpack.c.l.b16 %v1715
        %v2107 = vunpack.c.h.b16 %v1715
        %v2108 = vunpack.c.l.b16 %v1716
        %v2109 = vunpack.c.h.b16 %v1716
        %v2110 = vunpack.c.l.b16 %v1717
        %v2111 = vunpack.c.h.b16 %v1717
        %v2112 = vunpack.c.l.b16 %v1718
        %v2113 = vunpack.c.h.b16 %v1718
        %v2114 = vunpack.c.l.b16 %v1719
        %v2115 = vunpack.c.h.b16 %v1719
        %v2116 = vunpack.c.l.b16 %v1720
        %v2117 = vunpack.c.h.b16 %v1720
        %v2118 = vunpack.c.l.b16 %v1721
        %v2119 = vunpack.c.h.b16 %v1721
        %v2120 = vunpack.c.l.b16 %v1722
        %v2121 = vunpack.c.h.b16 %v1722
        %v2122 = vunpack.c.l.b16 %v1723
        %v2123 = vunpack.c.h.b16 %v1723
        %v2124 = vunpack.c.l.b16 %v1724
        %v2125 = vunpack.c.h.b16 %v1724
        %v2126 = vunpack.c.l.b16 %v1725
        %v2127 = vunpack.c.h.b16 %v1725
        %v2128 = vunpack.c.l.b16 %v1726
        %v2129 = vunpack.c.h.b16 %v1726
        %v2130 = vunpack.c.l.b16 %v1727
        %v2131 = vunpack.c.h.b16 %v1727
        %v2132 = vunpack.c.l.b16 %v1728
        %v2133 = vunpack.c.h.b16 %v1728
        %v2134 = vunpack.c.l.b16 %v1729
        %v2135 = vunpack.c.h.b16 %v1729
        %v2136 = vunpack.c.l.b16 %v1730
        %v2137 = vunpack.c.h.b16 %v1730
        %v2138 = vunpack.c.l.b16 %v1731
        %v2139 = vunpack.c.h.b16 %v1731
        %v2140 = vunpack.c.l.b16 %v1732
        %v2141 = vunpack.c.h.b16 %v1732
        %v2142 = vunpack.c.l.b16 %v1733
        %v2143 = vunpack.c.h.b16 %v1733
        %v2144 = vunpack.c.l.b16 %v1734
        %v2145 = vunpack.c.h.b16 %v1734
        %v2146 = vunpack.c.l.b16 %v1735
        %v2147 = vunpack.c.h.b16 %v1735
        %v2148 = vunpack.c.l.b16 %v1736
        %v2149 = vunpack.c.h.b16 %v1736
        %v2150 = vunpack.c.l.b16 %v1737
        %v2151 = vunpack.c.h.b16 %v1737
        %v2152 = vunpack.c.l.b16 %v1738
        %v2153 = vunpack.c.h.b16 %v1738
        %v2154 = vunpack.c.l.b16 %v1739
        %v2155 = vunpack.c.h.b16 %v1739
        %v2156 = vpack.c.b16 %v1908, %v1900
        %v2157 = vpack.c.b16 %v1909, %v1901
        %v2158 = vpack.c.b16 %v1910, %v1902
        %v2159 = vpack.c.b16 %v1911, %v1903
        %v2160 = vpack.c.b16 %v1912, %v1904
        %v2161 = vpack.c.b16 %v1913, %v1905
        %v2162 = vpack.c.b16 %v1914, %v1906
        %v2163 = vpack.c.b16 %v1915, %v1907
        %v2164 = vpack.c.b16 %v1924, %v1916
        %v2165 = vpack.c.b16 %v1925, %v1917
        %v2166 = vpack.c.b16 %v1926, %v1918
        %v2167 = vpack.c.b16 %v1927, %v1919
        %v2168 = vpack.c.b16 %v1928, %v1920
        %v2169 = vpack.c.b16 %v1929, %v1921
        %v2170 = vpack.c.b16 %v1930, %v1922
        %v2171 = vpack.c.b16 %v1931, %v1923
        %v2172 = vpack.c.b16 %v1940, %v1932
        %v2173 = vpack.c.b16 %v1941, %v1933
        %v2174 = vpack.c.b16 %v1942, %v1934
        %v2175 = vpack.c.b16 %v1943, %v1935
        %v2176 = vpack.c.b16 %v1944, %v1936
        %v2177 = vpack.c.b16 %v1945, %v1937
        %v2178 = vpack.c.b16 %v1946, %v1938
        %v2179 = vpack.c.b16 %v1947, %v1939
        %v2180 = vpack.c.b16 %v1956, %v1948
        %v2181 = vpack.c.b16 %v1957, %v1949
        %v2182 = vpack.c.b16 %v1958, %v1950
        %v2183 = vpack.c.b16 %v1959, %v1951
        %v2184 = vpack.c.b16 %v1960, %v1952
        %v2185 = vpack.c.b16 %v1961, %v1953
        %v2186 = vpack.c.b16 %v1962, %v1954
        %v2187 = vpack.c.b16 %v1963, %v1955
        %v2188 = vpack.c.b16 %v1972, %v1964
        %v2189 = vpack.c.b16 %v1973, %v1965
        %v2190 = vpack.c.b16 %v1974, %v1966
        %v2191 = vpack.c.b16 %v1975, %v1967
        %v2192 = vpack.c.b16 %v1976, %v1968
        %v2193 = vpack.c.b16 %v1977, %v1969
        %v2194 = vpack.c.b16 %v1978, %v1970
        %v2195 = vpack.c.b16 %v1979, %v1971
        %v2196 = vpack.c.b16 %v1988, %v1980
        %v2197 = vpack.c.b16 %v1989, %v1981
        %v2198 = vpack.c.b16 %v1990, %v1982
        %v2199 = vpack.c.b16 %v1991, %v1983
        %v2200 = vpack.c.b16 %v1992, %v1984
        %v2201 = vpack.c.b16 %v1993, %v1985
        %v2202 = vpack.c.b16 %v1994, %v1986
        %v2203 = vpack.c.b16 %v1995, %v1987
        %v2204 = vpack.c.b16 %v2004, %v1996
        %v2205 = vpack.c.b16 %v2005, %v1997
        %v2206 = vpack.c.b16 %v2006, %v1998
        %v2207 = vpack.c.b16 %v2007, %v1999
        %v2208 = vpack.c.b16 %v2008, %v2000
        %v2209 = vpack.c.b16 %v2009, %v2001
        %v2210 = vpack.c.b16 %v2010, %v2002
        %v2211 = vpack.c.b16 %v2011, %v2003
        %v2212 = vpack.c.b16 %v2020, %v2012
        %v2213 = vpack.c.b16 %v2021, %v2013
        %v2214 = vpack.c.b16 %v2022, %v2014
        %v2215 = vpack.c.b16 %v2023, %v2015
        %v2216 = vpack.c.b16 %v2024, %v2016
        %v2217 = vpack.c.b16 %v2025, %v2017
        %v2218 = vpack.c.b16 %v2026, %v2018
        %v2219 = vpack.c.b16 %v2027, %v2019
        %v2220 = vpack.c.b16 %v2036, %v2028
        %v2221 = vpack.c.b16 %v2037, %v2029
        %v2222 = vpack.c.b16 %v2038, %v2030
        %v2223 = vpack.c.b16 %v2039, %v2031
        %v2224 = vpack.c.b16 %v2040, %v2032
        %v2225 = vpack.c.b16 %v2041, %v2033
        %v2226 = vpack.c.b16 %v2042, %v2034
        %v2227 = vpack.c.b16 %v2043, %v2035
        %v2228 = vpack.c.b16 %v2052, %v2044
        %v2229 = vpack.c.b16 %v2053, %v2045
        %v2230 = vpack.c.b16 %v2054, %v2046
        %v2231 = vpack.c.b16 %v2055, %v2047
        %v2232 = vpack.c.b16 %v2056, %v2048
        %v2233 = vpack.c.b16 %v2057, %v2049
        %v2234 = vpack.c.b16 %v2058, %v2050
        %v2235 = vpack.c.b16 %v2059, %v2051
        %v2236 = vpack.c.b16 %v2068, %v2060
        %v2237 = vpack.c.b16 %v2069, %v2061
        %v2238 = vpack.c.b16 %v2070, %v2062
        %v2239 = vpack.c.b16 %v2071, %v2063
        %v2240 = vpack.c.b16 %v2072, %v2064
        %v2241 = vpack.c.b16 %v2073, %v2065
        %v2242 = vpack.c.b16 %v2074, %v2066
        %v2243 = vpack.c.b16 %v2075, %v2067
        %v2244 = vpack.c.b16 %v2084, %v2076
        %v2245 = vpack.c.b16 %v2085, %v2077
        %v2246 = vpack.c.b16 %v2086, %v2078
        %v2247 = vpack.c.b16 %v2087, %v2079
        %v2248 = vpack.c.b16 %v2088, %v2080
        %v2249 = vpack.c.b16 %v2089, %v2081
        %v2250 = vpack.c.b16 %v2090, %v2082
        %v2251 = vpack.c.b16 %v2091, %v2083
        %v2252 = vpack.c.b16 %v2100, %v2092
        %v2253 = vpack.c.b16 %v2101, %v2093
        %v2254 = vpack.c.b16 %v2102, %v2094
        %v2255 = vpack.c.b16 %v2103, %v2095
        %v2256 = vpack.c.b16 %v2104, %v2096
        %v2257 = vpack.c.b16 %v2105, %v2097
        %v2258 = vpack.c.b16 %v2106, %v2098
        %v2259 = vpack.c.b16 %v2107, %v2099
        %v2260 = vpack.c.b16 %v2116, %v2108
        %v2261 = vpack.c.b16 %v2117, %v2109
        %v2262 = vpack.c.b16 %v2118, %v2110
        %v2263 = vpack.c.b16 %v2119, %v2111
        %v2264 = vpack.c.b16 %v2120, %v2112
        %v2265 = vpack.c.b16 %v2121, %v2113
        %v2266 = vpack.c.b16 %v2122, %v2114
        %v2267 = vpack.c.b16 %v2123, %v2115
        %v2268 = vpack.c.b16 %v2132, %v2124
        %v2269 = vpack.c.b16 %v2133, %v2125
        %v2270 = vpack.c.b16 %v2134, %v2126
        %v2271 = vpack.c.b16 %v2135, %v2127
        %v2272 = vpack.c.b16 %v2136, %v2128
        %v2273 = vpack.c.b16 %v2137, %v2129
        %v2274 = vpack.c.b16 %v2138, %v2130
        %v2275 = vpack.c.b16 %v2139, %v2131
        %v2276 = vpack.c.b16 %v2148, %v2140
        %v2277 = vpack.c.b16 %v2149, %v2141
        %v2278 = vpack.c.b16 %v2150, %v2142
        %v2279 = vpack.c.b16 %v2151, %v2143
        %v2280 = vpack.c.b16 %v2152, %v2144
        %v2281 = vpack.c.b16 %v2153, %v2145
        %v2282 = vpack.c.b16 %v2154, %v2146
        %v2283 = vpack.c.b16 %v2155, %v2147
        %2412 = vmatpush.bf16.msra.mxu0 %v2212
        %2413 = vmatpush.bf16.msra.mxu0 %v2204
        %2414 = vmatpush.bf16.msra.mxu0 %v2196
        %2415 = vmatpush.bf16.msra.mxu0 %v2188
        %2416 = vmatpush.bf16.msra.mxu0 %v2180
        %2417 = vmatpush.bf16.msra.mxu0 %v2172
        %2418 = vmatpush.bf16.msra.mxu0 %v2164
        %2419 = vmatpush.bf16.msra.mxu0 %v2156
        %2420 = vmatmul.bf16.gmra.mxu0 %v1757
        %v2421 = vpop.f32.mrf.mxu0
        %v2422 = vadd.f32 0.0, %v2421
        %v2423 = vpop.f32.mrf.mxu0
        %v2424 = vadd.f32 0.0, %v2423
        %2425 = vdwg.mxu0
        %2426 = vmatpush.bf16.msra.mxu0 %v2276
        %2427 = vmatpush.bf16.msra.mxu0 %v2268
        %2428 = vmatpush.bf16.msra.mxu0 %v2260
        %2429 = vmatpush.bf16.msra.mxu0 %v2252
        %2430 = vmatpush.bf16.msra.mxu0 %v2244
        %2431 = vmatpush.bf16.msra.mxu0 %v2236
        %2432 = vmatpush.bf16.msra.mxu0 %v2228
        %2433 = vmatpush.bf16.msra.mxu0 %v2220
        %2434 = vmatmul.bf16.gmra.mxu0 %v1769
        %v2435 = vpop.f32.mrf.mxu0
        %v2436 = vadd.f32 %v2422, %v2435
        %v2437 = vpop.f32.mrf.mxu0
        %v2438 = vadd.f32 %v2424, %v2437
        %2439 = vdwg.mxu0
        %2440 = vmatpush.bf16.msra.mxu0 %v2213
        %2441 = vmatpush.bf16.msra.mxu0 %v2205
        %2442 = vmatpush.bf16.msra.mxu0 %v2197
        %2443 = vmatpush.bf16.msra.mxu0 %v2189
        %2444 = vmatpush.bf16.msra.mxu0 %v2181
        %2445 = vmatpush.bf16.msra.mxu0 %v2173
        %2446 = vmatpush.bf16.msra.mxu0 %v2165
        %2447 = vmatpush.bf16.msra.mxu0 %v2157
        %2448 = vmatmul.bf16.gmra.mxu0 %v1757
        %v2449 = vpop.f32.mrf.mxu0
        %v2450 = vadd.f32 0.0, %v2449
        %v2451 = vpop.f32.mrf.mxu0
        %v2452 = vadd.f32 0.0, %v2451
        %2453 = vdwg.mxu0
        %2454 = vmatpush.bf16.msra.mxu0 %v2277
        %2455 = vmatpush.bf16.msra.mxu0 %v2269
        %2456 = vmatpush.bf16.msra.mxu0 %v2261
        %2457 = vmatpush.bf16.msra.mxu0 %v2253
        %2458 = vmatpush.bf16.msra.mxu0 %v2245
        %2459 = vmatpush.bf16.msra.mxu0 %v2237
        %2460 = vmatpush.bf16.msra.mxu0 %v2229
        %2461 = vmatpush.bf16.msra.mxu0 %v2221
        %2462 = vmatmul.bf16.gmra.mxu0 %v1769
        %v2463 = vpop.f32.mrf.mxu0
        %v2464 = vadd.f32 %v2450, %v2463
        %v2465 = vpop.f32.mrf.mxu0
        %v2466 = vadd.f32 %v2452, %v2465
        %2467 = vdwg.mxu0
        %2468 = vmatpush.bf16.msra.mxu0 %v2214
        %2469 = vmatpush.bf16.msra.mxu0 %v2206
        %2470 = vmatpush.bf16.msra.mxu0 %v2198
        %2471 = vmatpush.bf16.msra.mxu0 %v2190
        %2472 = vmatpush.bf16.msra.mxu0 %v2182
        %2473 = vmatpush.bf16.msra.mxu0 %v2174
        %2474 = vmatpush.bf16.msra.mxu0 %v2166
        %2475 = vmatpush.bf16.msra.mxu0 %v2158
        %2476 = vmatmul.bf16.gmra.mxu0 %v1757
        %v2477 = vpop.f32.mrf.mxu0
        %v2478 = vadd.f32 0.0, %v2477
        %v2479 = vpop.f32.mrf.mxu0
        %v2480 = vadd.f32 0.0, %v2479
        %2481 = vdwg.mxu0
        %2482 = vmatpush.bf16.msra.mxu0 %v2278
        %2483 = vmatpush.bf16.msra.mxu0 %v2270
        %2484 = vmatpush.bf16.msra.mxu0 %v2262
        %2485 = vmatpush.bf16.msra.mxu0 %v2254
        %2486 = vmatpush.bf16.msra.mxu0 %v2246
        %2487 = vmatpush.bf16.msra.mxu0 %v2238
        %2488 = vmatpush.bf16.msra.mxu0 %v2230
        %2489 = vmatpush.bf16.msra.mxu0 %v2222
        %2490 = vmatmul.bf16.gmra.mxu0 %v1769
        %v2491 = vpop.f32.mrf.mxu0
        %v2492 = vadd.f32 %v2478, %v2491
        %v2493 = vpop.f32.mrf.mxu0
        %v2494 = vadd.f32 %v2480, %v2493
        %2495 = vdwg.mxu0
        %2496 = vmatpush.bf16.msra.mxu0 %v2215
        %2497 = vmatpush.bf16.msra.mxu0 %v2207
        %2498 = vmatpush.bf16.msra.mxu0 %v2199
        %2499 = vmatpush.bf16.msra.mxu0 %v2191
        %2500 = vmatpush.bf16.msra.mxu0 %v2183
        %2501 = vmatpush.bf16.msra.mxu0 %v2175
        %2502 = vmatpush.bf16.msra.mxu0 %v2167
        %2503 = vmatpush.bf16.msra.mxu0 %v2159
        %2504 = vmatmul.bf16.gmra.mxu0 %v1757
        %v2505 = vpop.f32.mrf.mxu0
        %v2506 = vadd.f32 0.0, %v2505
        %v2507 = vpop.f32.mrf.mxu0
        %v2508 = vadd.f32 0.0, %v2507
        %2509 = vdwg.mxu0
        %2510 = vmatpush.bf16.msra.mxu0 %v2279
        %2511 = vmatpush.bf16.msra.mxu0 %v2271
        %2512 = vmatpush.bf16.msra.mxu0 %v2263
        %2513 = vmatpush.bf16.msra.mxu0 %v2255
        %2514 = vmatpush.bf16.msra.mxu0 %v2247
        %2515 = vmatpush.bf16.msra.mxu0 %v2239
        %2516 = vmatpush.bf16.msra.mxu0 %v2231
        %2517 = vmatpush.bf16.msra.mxu0 %v2223
        %2518 = vmatmul.bf16.gmra.mxu0 %v1769
        %v2519 = vpop.f32.mrf.mxu0
        %v2520 = vadd.f32 %v2506, %v2519
        %v2521 = vpop.f32.mrf.mxu0
        %v2522 = vadd.f32 %v2508, %v2521
        %2523 = vdwg.mxu0
        %2524 = vmatpush.bf16.msra.mxu0 %v2216
        %2525 = vmatpush.bf16.msra.mxu0 %v2208
        %2526 = vmatpush.bf16.msra.mxu0 %v2200
        %2527 = vmatpush.bf16.msra.mxu0 %v2192
        %2528 = vmatpush.bf16.msra.mxu0 %v2184
        %2529 = vmatpush.bf16.msra.mxu0 %v2176
        %2530 = vmatpush.bf16.msra.mxu0 %v2168
        %2531 = vmatpush.bf16.msra.mxu0 %v2160
        %2532 = vmatmul.bf16.gmra.mxu0 %v1757
        %v2533 = vpop.f32.mrf.mxu0
        %v2534 = vadd.f32 0.0, %v2533
        %v2535 = vpop.f32.mrf.mxu0
        %v2536 = vadd.f32 0.0, %v2535
        %2537 = vdwg.mxu0
        %2538 = vmatpush.bf16.msra.mxu0 %v2280
        %2539 = vmatpush.bf16.msra.mxu0 %v2272
        %2540 = vmatpush.bf16.msra.mxu0 %v2264
        %2541 = vmatpush.bf16.msra.mxu0 %v2256
        %2542 = vmatpush.bf16.msra.mxu0 %v2248
        %2543 = vmatpush.bf16.msra.mxu0 %v2240
        %2544 = vmatpush.bf16.msra.mxu0 %v2232
        %2545 = vmatpush.bf16.msra.mxu0 %v2224
        %2546 = vmatmul.bf16.gmra.mxu0 %v1769
        %v2547 = vpop.f32.mrf.mxu0
        %v2548 = vadd.f32 %v2534, %v2547
        %v2549 = vpop.f32.mrf.mxu0
        %v2550 = vadd.f32 %v2536, %v2549
        %2551 = vdwg.mxu0
        %2552 = vmatpush.bf16.msra.mxu0 %v2217
        %2553 = vmatpush.bf16.msra.mxu0 %v2209
        %2554 = vmatpush.bf16.msra.mxu0 %v2201
        %2555 = vmatpush.bf16.msra.mxu0 %v2193
        %2556 = vmatpush.bf16.msra.mxu0 %v2185
        %2557 = vmatpush.bf16.msra.mxu0 %v2177
        %2558 = vmatpush.bf16.msra.mxu0 %v2169
        %2559 = vmatpush.bf16.msra.mxu0 %v2161
        %2560 = vmatmul.bf16.gmra.mxu0 %v1757
        %v2561 = vpop.f32.mrf.mxu0
        %v2562 = vadd.f32 0.0, %v2561
        %v2563 = vpop.f32.mrf.mxu0
        %v2564 = vadd.f32 0.0, %v2563
        %2565 = vdwg.mxu0
        %2566 = vmatpush.bf16.msra.mxu0 %v2281
        %2567 = vmatpush.bf16.msra.mxu0 %v2273
        %2568 = vmatpush.bf16.msra.mxu0 %v2265
        %2569 = vmatpush.bf16.msra.mxu0 %v2257
        %2570 = vmatpush.bf16.msra.mxu0 %v2249
        %2571 = vmatpush.bf16.msra.mxu0 %v2241
        %2572 = vmatpush.bf16.msra.mxu0 %v2233
        %2573 = vmatpush.bf16.msra.mxu0 %v2225
        %2574 = vmatmul.bf16.gmra.mxu0 %v1769
        %v2575 = vpop.f32.mrf.mxu0
        %v2576 = vadd.f32 %v2562, %v2575
        %v2577 = vpop.f32.mrf.mxu0
        %v2578 = vadd.f32 %v2564, %v2577
        %2579 = vdwg.mxu0
        %2580 = vmatpush.bf16.msra.mxu0 %v2218
        %2581 = vmatpush.bf16.msra.mxu0 %v2210
        %2582 = vmatpush.bf16.msra.mxu0 %v2202
        %2583 = vmatpush.bf16.msra.mxu0 %v2194
        %2584 = vmatpush.bf16.msra.mxu0 %v2186
        %2585 = vmatpush.bf16.msra.mxu0 %v2178
        %2586 = vmatpush.bf16.msra.mxu0 %v2170
        %2587 = vmatpush.bf16.msra.mxu0 %v2162
        %2588 = vmatmul.bf16.gmra.mxu0 %v1757
        %v2589 = vpop.f32.mrf.mxu0
        %v2590 = vadd.f32 0.0, %v2589
        %v2591 = vpop.f32.mrf.mxu0
        %v2592 = vadd.f32 0.0, %v2591
        %2593 = vdwg.mxu0
        %2594 = vmatpush.bf16.msra.mxu0 %v2282
        %2595 = vmatpush.bf16.msra.mxu0 %v2274
        %2596 = vmatpush.bf16.msra.mxu0 %v2266
        %2597 = vmatpush.bf16.msra.mxu0 %v2258
        %2598 = vmatpush.bf16.msra.mxu0 %v2250
        %2599 = vmatpush.bf16.msra.mxu0 %v2242
        %2600 = vmatpush.bf16.msra.mxu0 %v2234
        %2601 = vmatpush.bf16.msra.mxu0 %v2226
        %2602 = vmatmul.bf16.gmra.mxu0 %v1769
        %v2603 = vpop.f32.mrf.mxu0
        %v2604 = vadd.f32 %v2590, %v2603
        %v2605 = vpop.f32.mrf.mxu0
        %v2606 = vadd.f32 %v2592, %v2605
        %2607 = vdwg.mxu0
        %2608 = vmatpush.bf16.msra.mxu0 %v2219
        %2609 = vmatpush.bf16.msra.mxu0 %v2211
        %2610 = vmatpush.bf16.msra.mxu0 %v2203
        %2611 = vmatpush.bf16.msra.mxu0 %v2195
        %2612 = vmatpush.bf16.msra.mxu0 %v2187
        %2613 = vmatpush.bf16.msra.mxu0 %v2179
        %2614 = vmatpush.bf16.msra.mxu0 %v2171
        %2615 = vmatpush.bf16.msra.mxu0 %v2163
        %2616 = vmatmul.bf16.gmra.mxu0 %v1757
        %v2617 = vpop.f32.mrf.mxu0
        %v2618 = vadd.f32 0.0, %v2617
        %v2619 = vpop.f32.mrf.mxu0
        %v2620 = vadd.f32 0.0, %v2619
        %2621 = vdwg.mxu0
        %2622 = vmatpush.bf16.msra.mxu0 %v2283
        %2623 = vmatpush.bf16.msra.mxu0 %v2275
        %2624 = vmatpush.bf16.msra.mxu0 %v2267
        %2625 = vmatpush.bf16.msra.mxu0 %v2259
        %2626 = vmatpush.bf16.msra.mxu0 %v2251
        %2627 = vmatpush.bf16.msra.mxu0 %v2243
        %2628 = vmatpush.bf16.msra.mxu0 %v2235
        %2629 = vmatpush.bf16.msra.mxu0 %v2227
        %2630 = vmatmul.bf16.gmra.mxu0 %v1769
        %v2631 = vpop.f32.mrf.mxu0
        %v2632 = vadd.f32 %v2618, %v2631
        %v2633 = vpop.f32.mrf.mxu0
        %v2634 = vadd.f32 %v2620, %v2633
        %2635 = vdwg.mxu0
        %v2764 = vunpack.c.l.b16 %v1484
        %v2765 = vunpack.c.h.b16 %v1484
        %v2766 = vunpack.c.l.b16 %v1485
        %v2767 = vunpack.c.h.b16 %v1485
        %v2768 = vunpack.c.l.b16 %v1486
        %v2769 = vunpack.c.h.b16 %v1486
        %v2770 = vunpack.c.l.b16 %v1487
        %v2771 = vunpack.c.h.b16 %v1487
        %v2772 = vunpack.c.l.b16 %v1488
        %v2773 = vunpack.c.h.b16 %v1488
        %v2774 = vunpack.c.l.b16 %v1489
        %v2775 = vunpack.c.h.b16 %v1489
        %v2776 = vunpack.c.l.b16 %v1490
        %v2777 = vunpack.c.h.b16 %v1490
        %v2778 = vunpack.c.l.b16 %v1491
        %v2779 = vunpack.c.h.b16 %v1491
        %v2780 = vunpack.c.l.b16 %v1492
        %v2781 = vunpack.c.h.b16 %v1492
        %v2782 = vunpack.c.l.b16 %v1493
        %v2783 = vunpack.c.h.b16 %v1493
        %v2784 = vunpack.c.l.b16 %v1494
        %v2785 = vunpack.c.h.b16 %v1494
        %v2786 = vunpack.c.l.b16 %v1495
        %v2787 = vunpack.c.h.b16 %v1495
        %v2788 = vunpack.c.l.b16 %v1496
        %v2789 = vunpack.c.h.b16 %v1496
        %v2790 = vunpack.c.l.b16 %v1497
        %v2791 = vunpack.c.h.b16 %v1497
        %v2792 = vunpack.c.l.b16 %v1498
        %v2793 = vunpack.c.h.b16 %v1498
        %v2794 = vunpack.c.l.b16 %v1499
        %v2795 = vunpack.c.h.b16 %v1499
        %v2796 = vunpack.c.l.b16 %v1500
        %v2797 = vunpack.c.h.b16 %v1500
        %v2798 = vunpack.c.l.b16 %v1501
        %v2799 = vunpack.c.h.b16 %v1501
        %v2800 = vunpack.c.l.b16 %v1502
        %v2801 = vunpack.c.h.b16 %v1502
        %v2802 = vunpack.c.l.b16 %v1503
        %v2803 = vunpack.c.h.b16 %v1503
        %v2804 = vunpack.c.l.b16 %v1504
        %v2805 = vunpack.c.h.b16 %v1504
        %v2806 = vunpack.c.l.b16 %v1505
        %v2807 = vunpack.c.h.b16 %v1505
        %v2808 = vunpack.c.l.b16 %v1506
        %v2809 = vunpack.c.h.b16 %v1506
        %v2810 = vunpack.c.l.b16 %v1507
        %v2811 = vunpack.c.h.b16 %v1507
        %v2812 = vunpack.c.l.b16 %v1508
        %v2813 = vunpack.c.h.b16 %v1508
        %v2814 = vunpack.c.l.b16 %v1509
        %v2815 = vunpack.c.h.b16 %v1509
        %v2816 = vunpack.c.l.b16 %v1510
        %v2817 = vunpack.c.h.b16 %v1510
        %v2818 = vunpack.c.l.b16 %v1511
        %v2819 = vunpack.c.h.b16 %v1511
        %v2820 = vunpack.c.l.b16 %v1512
        %v2821 = vunpack.c.h.b16 %v1512
        %v2822 = vunpack.c.l.b16 %v1513
        %v2823 = vunpack.c.h.b16 %v1513
        %v2824 = vunpack.c.l.b16 %v1514
        %v2825 = vunpack.c.h.b16 %v1514
        %v2826 = vunpack.c.l.b16 %v1515
        %v2827 = vunpack.c.h.b16 %v1515
        %v2828 = vunpack.c.l.b16 %v1516
        %v2829 = vunpack.c.h.b16 %v1516
        %v2830 = vunpack.c.l.b16 %v1517
        %v2831 = vunpack.c.h.b16 %v1517
        %v2832 = vunpack.c.l.b16 %v1518
        %v2833 = vunpack.c.h.b16 %v1518
        %v2834 = vunpack.c.l.b16 %v1519
        %v2835 = vunpack.c.h.b16 %v1519
        %v2836 = vunpack.c.l.b16 %v1520
        %v2837 = vunpack.c.h.b16 %v1520
        %v2838 = vunpack.c.l.b16 %v1521
        %v2839 = vunpack.c.h.b16 %v1521
        %v2840 = vunpack.c.l.b16 %v1522
        %v2841 = vunpack.c.h.b16 %v1522
        %v2842 = vunpack.c.l.b16 %v1523
        %v2843 = vunpack.c.h.b16 %v1523
        %v2844 = vunpack.c.l.b16 %v1524
        %v2845 = vunpack.c.h.b16 %v1524
        %v2846 = vunpack.c.l.b16 %v1525
        %v2847 = vunpack.c.h.b16 %v1525
        %v2848 = vunpack.c.l.b16 %v1526
        %v2849 = vunpack.c.h.b16 %v1526
        %v2850 = vunpack.c.l.b16 %v1527
        %v2851 = vunpack.c.h.b16 %v1527
        %v2852 = vunpack.c.l.b16 %v1528
        %v2853 = vunpack.c.h.b16 %v1528
        %v2854 = vunpack.c.l.b16 %v1529
        %v2855 = vunpack.c.h.b16 %v1529
        %v2856 = vunpack.c.l.b16 %v1530
        %v2857 = vunpack.c.h.b16 %v1530
        %v2858 = vunpack.c.l.b16 %v1531
        %v2859 = vunpack.c.h.b16 %v1531
        %v2860 = vunpack.c.l.b16 %v1532
        %v2861 = vunpack.c.h.b16 %v1532
        %v2862 = vunpack.c.l.b16 %v1533
        %v2863 = vunpack.c.h.b16 %v1533
        %v2864 = vunpack.c.l.b16 %v1534
        %v2865 = vunpack.c.h.b16 %v1534
        %v2866 = vunpack.c.l.b16 %v1535
        %v2867 = vunpack.c.h.b16 %v1535
        %v2868 = vunpack.c.l.b16 %v1536
        %v2869 = vunpack.c.h.b16 %v1536
        %v2870 = vunpack.c.l.b16 %v1537
        %v2871 = vunpack.c.h.b16 %v1537
        %v2872 = vunpack.c.l.b16 %v1538
        %v2873 = vunpack.c.h.b16 %v1538
        %v2874 = vunpack.c.l.b16 %v1539
        %v2875 = vunpack.c.h.b16 %v1539
        %v2876 = vunpack.c.l.b16 %v1540
        %v2877 = vunpack.c.h.b16 %v1540
        %v2878 = vunpack.c.l.b16 %v1541
        %v2879 = vunpack.c.h.b16 %v1541
        %v2880 = vunpack.c.l.b16 %v1542
        %v2881 = vunpack.c.h.b16 %v1542
        %v2882 = vunpack.c.l.b16 %v1543
        %v2883 = vunpack.c.h.b16 %v1543
        %v2884 = vunpack.c.l.b16 %v1544
        %v2885 = vunpack.c.h.b16 %v1544
        %v2886 = vunpack.c.l.b16 %v1545
        %v2887 = vunpack.c.h.b16 %v1545
        %v2888 = vunpack.c.l.b16 %v1546
        %v2889 = vunpack.c.h.b16 %v1546
        %v2890 = vunpack.c.l.b16 %v1547
        %v2891 = vunpack.c.h.b16 %v1547
        %v2892 = vunpack.c.l.b16 %v1548
        %v2893 = vunpack.c.h.b16 %v1548
        %v2894 = vunpack.c.l.b16 %v1549
        %v2895 = vunpack.c.h.b16 %v1549
        %v2896 = vunpack.c.l.b16 %v1550
        %v2897 = vunpack.c.h.b16 %v1550
        %v2898 = vunpack.c.l.b16 %v1551
        %v2899 = vunpack.c.h.b16 %v1551
        %v2900 = vunpack.c.l.b16 %v1552
        %v2901 = vunpack.c.h.b16 %v1552
        %v2902 = vunpack.c.l.b16 %v1553
        %v2903 = vunpack.c.h.b16 %v1553
        %v2904 = vunpack.c.l.b16 %v1554
        %v2905 = vunpack.c.h.b16 %v1554
        %v2906 = vunpack.c.l.b16 %v1555
        %v2907 = vunpack.c.h.b16 %v1555
        %v2908 = vunpack.c.l.b16 %v1556
        %v2909 = vunpack.c.h.b16 %v1556
        %v2910 = vunpack.c.l.b16 %v1557
        %v2911 = vunpack.c.h.b16 %v1557
        %v2912 = vunpack.c.l.b16 %v1558
        %v2913 = vunpack.c.h.b16 %v1558
        %v2914 = vunpack.c.l.b16 %v1559
        %v2915 = vunpack.c.h.b16 %v1559
        %v2916 = vunpack.c.l.b16 %v1560
        %v2917 = vunpack.c.h.b16 %v1560
        %v2918 = vunpack.c.l.b16 %v1561
        %v2919 = vunpack.c.h.b16 %v1561
        %v2920 = vunpack.c.l.b16 %v1562
        %v2921 = vunpack.c.h.b16 %v1562
        %v2922 = vunpack.c.l.b16 %v1563
        %v2923 = vunpack.c.h.b16 %v1563
        %v2924 = vunpack.c.l.b16 %v1564
        %v2925 = vunpack.c.h.b16 %v1564
        %v2926 = vunpack.c.l.b16 %v1565
        %v2927 = vunpack.c.h.b16 %v1565
        %v2928 = vunpack.c.l.b16 %v1566
        %v2929 = vunpack.c.h.b16 %v1566
        %v2930 = vunpack.c.l.b16 %v1567
        %v2931 = vunpack.c.h.b16 %v1567
        %v2932 = vunpack.c.l.b16 %v1568
        %v2933 = vunpack.c.h.b16 %v1568
        %v2934 = vunpack.c.l.b16 %v1569
        %v2935 = vunpack.c.h.b16 %v1569
        %v2936 = vunpack.c.l.b16 %v1570
        %v2937 = vunpack.c.h.b16 %v1570
        %v2938 = vunpack.c.l.b16 %v1571
        %v2939 = vunpack.c.h.b16 %v1571
        %v2940 = vunpack.c.l.b16 %v1572
        %v2941 = vunpack.c.h.b16 %v1572
        %v2942 = vunpack.c.l.b16 %v1573
        %v2943 = vunpack.c.h.b16 %v1573
        %v2944 = vunpack.c.l.b16 %v1574
        %v2945 = vunpack.c.h.b16 %v1574
        %v2946 = vunpack.c.l.b16 %v1575
        %v2947 = vunpack.c.h.b16 %v1575
        %v2948 = vunpack.c.l.b16 %v1576
        %v2949 = vunpack.c.h.b16 %v1576
        %v2950 = vunpack.c.l.b16 %v1577
        %v2951 = vunpack.c.h.b16 %v1577
        %v2952 = vunpack.c.l.b16 %v1578
        %v2953 = vunpack.c.h.b16 %v1578
        %v2954 = vunpack.c.l.b16 %v1579
        %v2955 = vunpack.c.h.b16 %v1579
        %v2956 = vunpack.c.l.b16 %v1580
        %v2957 = vunpack.c.h.b16 %v1580
        %v2958 = vunpack.c.l.b16 %v1581
        %v2959 = vunpack.c.h.b16 %v1581
        %v2960 = vunpack.c.l.b16 %v1582
        %v2961 = vunpack.c.h.b16 %v1582
        %v2962 = vunpack.c.l.b16 %v1583
        %v2963 = vunpack.c.h.b16 %v1583
        %v2964 = vunpack.c.l.b16 %v1584
        %v2965 = vunpack.c.h.b16 %v1584
        %v2966 = vunpack.c.l.b16 %v1585
        %v2967 = vunpack.c.h.b16 %v1585
        %v2968 = vunpack.c.l.b16 %v1586
        %v2969 = vunpack.c.h.b16 %v1586
        %v2970 = vunpack.c.l.b16 %v1587
        %v2971 = vunpack.c.h.b16 %v1587
        %v2972 = vunpack.c.l.b16 %v1588
        %v2973 = vunpack.c.h.b16 %v1588
        %v2974 = vunpack.c.l.b16 %v1589
        %v2975 = vunpack.c.h.b16 %v1589
        %v2976 = vunpack.c.l.b16 %v1590
        %v2977 = vunpack.c.h.b16 %v1590
        %v2978 = vunpack.c.l.b16 %v1591
        %v2979 = vunpack.c.h.b16 %v1591
        %v2980 = vunpack.c.l.b16 %v1592
        %v2981 = vunpack.c.h.b16 %v1592
        %v2982 = vunpack.c.l.b16 %v1593
        %v2983 = vunpack.c.h.b16 %v1593
        %v2984 = vunpack.c.l.b16 %v1594
        %v2985 = vunpack.c.h.b16 %v1594
        %v2986 = vunpack.c.l.b16 %v1595
        %v2987 = vunpack.c.h.b16 %v1595
        %v2988 = vunpack.c.l.b16 %v1596
        %v2989 = vunpack.c.h.b16 %v1596
        %v2990 = vunpack.c.l.b16 %v1597
        %v2991 = vunpack.c.h.b16 %v1597
        %v2992 = vunpack.c.l.b16 %v1598
        %v2993 = vunpack.c.h.b16 %v1598
        %v2994 = vunpack.c.l.b16 %v1599
        %v2995 = vunpack.c.h.b16 %v1599
        %v2996 = vunpack.c.l.b16 %v1600
        %v2997 = vunpack.c.h.b16 %v1600
        %v2998 = vunpack.c.l.b16 %v1601
        %v2999 = vunpack.c.h.b16 %v1601
        %v3000 = vunpack.c.l.b16 %v1602
        %v3001 = vunpack.c.h.b16 %v1602
        %v3002 = vunpack.c.l.b16 %v1603
        %v3003 = vunpack.c.h.b16 %v1603
        %v3004 = vunpack.c.l.b16 %v1604
        %v3005 = vunpack.c.h.b16 %v1604
        %v3006 = vunpack.c.l.b16 %v1605
        %v3007 = vunpack.c.h.b16 %v1605
        %v3008 = vunpack.c.l.b16 %v1606
        %v3009 = vunpack.c.h.b16 %v1606
        %v3010 = vunpack.c.l.b16 %v1607
        %v3011 = vunpack.c.h.b16 %v1607
        %v3012 = vunpack.c.l.b16 %v1608
        %v3013 = vunpack.c.h.b16 %v1608
        %v3014 = vunpack.c.l.b16 %v1609
        %v3015 = vunpack.c.h.b16 %v1609
        %v3016 = vunpack.c.l.b16 %v1610
        %v3017 = vunpack.c.h.b16 %v1610
        %v3018 = vunpack.c.l.b16 %v1611
        %v3019 = vunpack.c.h.b16 %v1611
        %v3020 = vpack.c.b16 %v2772, %v2764
        %v3021 = vpack.c.b16 %v2773, %v2765
        %v3022 = vpack.c.b16 %v2774, %v2766
        %v3023 = vpack.c.b16 %v2775, %v2767
        %v3024 = vpack.c.b16 %v2776, %v2768
        %v3025 = vpack.c.b16 %v2777, %v2769
        %v3026 = vpack.c.b16 %v2778, %v2770
        %v3027 = vpack.c.b16 %v2779, %v2771
        %v3028 = vpack.c.b16 %v2788, %v2780
        %v3029 = vpack.c.b16 %v2789, %v2781
        %v3030 = vpack.c.b16 %v2790, %v2782
        %v3031 = vpack.c.b16 %v2791, %v2783
        %v3032 = vpack.c.b16 %v2792, %v2784
        %v3033 = vpack.c.b16 %v2793, %v2785
        %v3034 = vpack.c.b16 %v2794, %v2786
        %v3035 = vpack.c.b16 %v2795, %v2787
        %v3036 = vpack.c.b16 %v2804, %v2796
        %v3037 = vpack.c.b16 %v2805, %v2797
        %v3038 = vpack.c.b16 %v2806, %v2798
        %v3039 = vpack.c.b16 %v2807, %v2799
        %v3040 = vpack.c.b16 %v2808, %v2800
        %v3041 = vpack.c.b16 %v2809, %v2801
        %v3042 = vpack.c.b16 %v2810, %v2802
        %v3043 = vpack.c.b16 %v2811, %v2803
        %v3044 = vpack.c.b16 %v2820, %v2812
        %v3045 = vpack.c.b16 %v2821, %v2813
        %v3046 = vpack.c.b16 %v2822, %v2814
        %v3047 = vpack.c.b16 %v2823, %v2815
        %v3048 = vpack.c.b16 %v2824, %v2816
        %v3049 = vpack.c.b16 %v2825, %v2817
        %v3050 = vpack.c.b16 %v2826, %v2818
        %v3051 = vpack.c.b16 %v2827, %v2819
        %v3052 = vpack.c.b16 %v2836, %v2828
        %v3053 = vpack.c.b16 %v2837, %v2829
        %v3054 = vpack.c.b16 %v2838, %v2830
        %v3055 = vpack.c.b16 %v2839, %v2831
        %v3056 = vpack.c.b16 %v2840, %v2832
        %v3057 = vpack.c.b16 %v2841, %v2833
        %v3058 = vpack.c.b16 %v2842, %v2834
        %v3059 = vpack.c.b16 %v2843, %v2835
        %v3060 = vpack.c.b16 %v2852, %v2844
        %v3061 = vpack.c.b16 %v2853, %v2845
        %v3062 = vpack.c.b16 %v2854, %v2846
        %v3063 = vpack.c.b16 %v2855, %v2847
        %v3064 = vpack.c.b16 %v2856, %v2848
        %v3065 = vpack.c.b16 %v2857, %v2849
        %v3066 = vpack.c.b16 %v2858, %v2850
        %v3067 = vpack.c.b16 %v2859, %v2851
        %v3068 = vpack.c.b16 %v2868, %v2860
        %v3069 = vpack.c.b16 %v2869, %v2861
        %v3070 = vpack.c.b16 %v2870, %v2862
        %v3071 = vpack.c.b16 %v2871, %v2863
        %v3072 = vpack.c.b16 %v2872, %v2864
        %v3073 = vpack.c.b16 %v2873, %v2865
        %v3074 = vpack.c.b16 %v2874, %v2866
        %v3075 = vpack.c.b16 %v2875, %v2867
        %v3076 = vpack.c.b16 %v2884, %v2876
        %v3077 = vpack.c.b16 %v2885, %v2877
        %v3078 = vpack.c.b16 %v2886, %v2878
        %v3079 = vpack.c.b16 %v2887, %v2879
        %v3080 = vpack.c.b16 %v2888, %v2880
        %v3081 = vpack.c.b16 %v2889, %v2881
        %v3082 = vpack.c.b16 %v2890, %v2882
        %v3083 = vpack.c.b16 %v2891, %v2883
        %v3084 = vpack.c.b16 %v2900, %v2892
        %v3085 = vpack.c.b16 %v2901, %v2893
        %v3086 = vpack.c.b16 %v2902, %v2894
        %v3087 = vpack.c.b16 %v2903, %v2895
        %v3088 = vpack.c.b16 %v2904, %v2896
        %v3089 = vpack.c.b16 %v2905, %v2897
        %v3090 = vpack.c.b16 %v2906, %v2898
        %v3091 = vpack.c.b16 %v2907, %v2899
        %v3092 = vpack.c.b16 %v2916, %v2908
        %v3093 = vpack.c.b16 %v2917, %v2909
        %v3094 = vpack.c.b16 %v2918, %v2910
        %v3095 = vpack.c.b16 %v2919, %v2911
        %v3096 = vpack.c.b16 %v2920, %v2912
        %v3097 = vpack.c.b16 %v2921, %v2913
        %v3098 = vpack.c.b16 %v2922, %v2914
        %v3099 = vpack.c.b16 %v2923, %v2915
        %v3100 = vpack.c.b16 %v2932, %v2924
        %v3101 = vpack.c.b16 %v2933, %v2925
        %v3102 = vpack.c.b16 %v2934, %v2926
        %v3103 = vpack.c.b16 %v2935, %v2927
        %v3104 = vpack.c.b16 %v2936, %v2928
        %v3105 = vpack.c.b16 %v2937, %v2929
        %v3106 = vpack.c.b16 %v2938, %v2930
        %v3107 = vpack.c.b16 %v2939, %v2931
        %v3108 = vpack.c.b16 %v2948, %v2940
        %v3109 = vpack.c.b16 %v2949, %v2941
        %v3110 = vpack.c.b16 %v2950, %v2942
        %v3111 = vpack.c.b16 %v2951, %v2943
        %v3112 = vpack.c.b16 %v2952, %v2944
        %v3113 = vpack.c.b16 %v2953, %v2945
        %v3114 = vpack.c.b16 %v2954, %v2946
        %v3115 = vpack.c.b16 %v2955, %v2947
        %v3116 = vpack.c.b16 %v2964, %v2956
        %v3117 = vpack.c.b16 %v2965, %v2957
        %v3118 = vpack.c.b16 %v2966, %v2958
        %v3119 = vpack.c.b16 %v2967, %v2959
        %v3120 = vpack.c.b16 %v2968, %v2960
        %v3121 = vpack.c.b16 %v2969, %v2961
        %v3122 = vpack.c.b16 %v2970, %v2962
        %v3123 = vpack.c.b16 %v2971, %v2963
        %v3124 = vpack.c.b16 %v2980, %v2972
        %v3125 = vpack.c.b16 %v2981, %v2973
        %v3126 = vpack.c.b16 %v2982, %v2974
        %v3127 = vpack.c.b16 %v2983, %v2975
        %v3128 = vpack.c.b16 %v2984, %v2976
        %v3129 = vpack.c.b16 %v2985, %v2977
        %v3130 = vpack.c.b16 %v2986, %v2978
        %v3131 = vpack.c.b16 %v2987, %v2979
        %v3132 = vpack.c.b16 %v2996, %v2988
        %v3133 = vpack.c.b16 %v2997, %v2989
        %v3134 = vpack.c.b16 %v2998, %v2990
        %v3135 = vpack.c.b16 %v2999, %v2991
        %v3136 = vpack.c.b16 %v3000, %v2992
        %v3137 = vpack.c.b16 %v3001, %v2993
        %v3138 = vpack.c.b16 %v3002, %v2994
        %v3139 = vpack.c.b16 %v3003, %v2995
        %v3140 = vpack.c.b16 %v3012, %v3004
        %v3141 = vpack.c.b16 %v3013, %v3005
        %v3142 = vpack.c.b16 %v3014, %v3006
        %v3143 = vpack.c.b16 %v3015, %v3007
        %v3144 = vpack.c.b16 %v3016, %v3008
        %v3145 = vpack.c.b16 %v3017, %v3009
        %v3146 = vpack.c.b16 %v3018, %v3010
        %v3147 = vpack.c.b16 %v3019, %v3011
        %3276 = vmatpush.bf16.msra.mxu0 %v3076
        %3277 = vmatpush.bf16.msra.mxu0 %v3068
        %3278 = vmatpush.bf16.msra.mxu0 %v3060
        %3279 = vmatpush.bf16.msra.mxu0 %v3052
        %3280 = vmatpush.bf16.msra.mxu0 %v3044
        %3281 = vmatpush.bf16.msra.mxu0 %v3036
        %3282 = vmatpush.bf16.msra.mxu0 %v3028
        %3283 = vmatpush.bf16.msra.mxu0 %v3020
        %3284 = vmatmul.bf16.gmra.mxu0 %v616
        %v3285 = vpop.f32.mrf.mxu0
        %v3286 = vadd.f32 %v2436, %v3285
        %v3287 = vpop.f32.mrf.mxu0
        %v3288 = vadd.f32 %v2438, %v3287
        %3289 = vdwg.mxu0
        %3290 = vmatpush.bf16.msra.mxu0 %v3140
        %3291 = vmatpush.bf16.msra.mxu0 %v3132
        %3292 = vmatpush.bf16.msra.mxu0 %v3124
        %3293 = vmatpush.bf16.msra.mxu0 %v3116
        %3294 = vmatpush.bf16.msra.mxu0 %v3108
        %3295 = vmatpush.bf16.msra.mxu0 %v3100
        %3296 = vmatpush.bf16.msra.mxu0 %v3092
        %3297 = vmatpush.bf16.msra.mxu0 %v3084
        %3298 = vmatmul.bf16.gmra.mxu0 %v617
        %v3299 = vpop.f32.mrf.mxu0
        %v3300 = vadd.f32 %v3286, %v3299
        %v3301 = vpop.f32.mrf.mxu0
        %v3302 = vadd.f32 %v3288, %v3301
        %3303 = vdwg.mxu0
        %3304 = vmatpush.bf16.msra.mxu0 %v3077
        %3305 = vmatpush.bf16.msra.mxu0 %v3069
        %3306 = vmatpush.bf16.msra.mxu0 %v3061
        %3307 = vmatpush.bf16.msra.mxu0 %v3053
        %3308 = vmatpush.bf16.msra.mxu0 %v3045
        %3309 = vmatpush.bf16.msra.mxu0 %v3037
        %3310 = vmatpush.bf16.msra.mxu0 %v3029
        %3311 = vmatpush.bf16.msra.mxu0 %v3021
        %3312 = vmatmul.bf16.gmra.mxu0 %v616
        %v3313 = vpop.f32.mrf.mxu0
        %v3314 = vadd.f32 %v2464, %v3313
        %v3315 = vpop.f32.mrf.mxu0
        %v3316 = vadd.f32 %v2466, %v3315
        %3317 = vdwg.mxu0
        %3318 = vmatpush.bf16.msra.mxu0 %v3141
        %3319 = vmatpush.bf16.msra.mxu0 %v3133
        %3320 = vmatpush.bf16.msra.mxu0 %v3125
        %3321 = vmatpush.bf16.msra.mxu0 %v3117
        %3322 = vmatpush.bf16.msra.mxu0 %v3109
        %3323 = vmatpush.bf16.msra.mxu0 %v3101
        %3324 = vmatpush.bf16.msra.mxu0 %v3093
        %3325 = vmatpush.bf16.msra.mxu0 %v3085
        %3326 = vmatmul.bf16.gmra.mxu0 %v617
        %v3327 = vpop.f32.mrf.mxu0
        %v3328 = vadd.f32 %v3314, %v3327
        %v3329 = vpop.f32.mrf.mxu0
        %v3330 = vadd.f32 %v3316, %v3329
        %3331 = vdwg.mxu0
        %3332 = vmatpush.bf16.msra.mxu0 %v3078
        %3333 = vmatpush.bf16.msra.mxu0 %v3070
        %3334 = vmatpush.bf16.msra.mxu0 %v3062
        %3335 = vmatpush.bf16.msra.mxu0 %v3054
        %3336 = vmatpush.bf16.msra.mxu0 %v3046
        %3337 = vmatpush.bf16.msra.mxu0 %v3038
        %3338 = vmatpush.bf16.msra.mxu0 %v3030
        %3339 = vmatpush.bf16.msra.mxu0 %v3022
        %3340 = vmatmul.bf16.gmra.mxu0 %v616
        %v3341 = vpop.f32.mrf.mxu0
        %v3342 = vadd.f32 %v2492, %v3341
        %v3343 = vpop.f32.mrf.mxu0
        %v3344 = vadd.f32 %v2494, %v3343
        %3345 = vdwg.mxu0
        %3346 = vmatpush.bf16.msra.mxu0 %v3142
        %3347 = vmatpush.bf16.msra.mxu0 %v3134
        %3348 = vmatpush.bf16.msra.mxu0 %v3126
        %3349 = vmatpush.bf16.msra.mxu0 %v3118
        %3350 = vmatpush.bf16.msra.mxu0 %v3110
        %3351 = vmatpush.bf16.msra.mxu0 %v3102
        %3352 = vmatpush.bf16.msra.mxu0 %v3094
        %3353 = vmatpush.bf16.msra.mxu0 %v3086
        %3354 = vmatmul.bf16.gmra.mxu0 %v617
        %v3355 = vpop.f32.mrf.mxu0
        %v3356 = vadd.f32 %v3342, %v3355
        %v3357 = vpop.f32.mrf.mxu0
        %v3358 = vadd.f32 %v3344, %v3357
        %3359 = vdwg.mxu0
        %3360 = vmatpush.bf16.msra.mxu0 %v3079
        %3361 = vmatpush.bf16.msra.mxu0 %v3071
        %3362 = vmatpush.bf16.msra.mxu0 %v3063
        %3363 = vmatpush.bf16.msra.mxu0 %v3055
        %3364 = vmatpush.bf16.msra.mxu0 %v3047
        %3365 = vmatpush.bf16.msra.mxu0 %v3039
        %3366 = vmatpush.bf16.msra.mxu0 %v3031
        %3367 = vmatpush.bf16.msra.mxu0 %v3023
        %3368 = vmatmul.bf16.gmra.mxu0 %v616
        %v3369 = vpop.f32.mrf.mxu0
        %v3370 = vadd.f32 %v2520, %v3369
        %v3371 = vpop.f32.mrf.mxu0
        %v3372 = vadd.f32 %v2522, %v3371
        %3373 = vdwg.mxu0
        %3374 = vmatpush.bf16.msra.mxu0 %v3143
        %3375 = vmatpush.bf16.msra.mxu0 %v3135
        %3376 = vmatpush.bf16.msra.mxu0 %v3127
        %3377 = vmatpush.bf16.msra.mxu0 %v3119
        %3378 = vmatpush.bf16.msra.mxu0 %v3111
        %3379 = vmatpush.bf16.msra.mxu0 %v3103
        %3380 = vmatpush.bf16.msra.mxu0 %v3095
        %3381 = vmatpush.bf16.msra.mxu0 %v3087
        %3382 = vmatmul.bf16.gmra.mxu0 %v617
        %v3383 = vpop.f32.mrf.mxu0
        %v3384 = vadd.f32 %v3370, %v3383
        %v3385 = vpop.f32.mrf.mxu0
        %v3386 = vadd.f32 %v3372, %v3385
        %3387 = vdwg.mxu0
        %3388 = vmatpush.bf16.msra.mxu0 %v3080
        %3389 = vmatpush.bf16.msra.mxu0 %v3072
        %3390 = vmatpush.bf16.msra.mxu0 %v3064
        %3391 = vmatpush.bf16.msra.mxu0 %v3056
        %3392 = vmatpush.bf16.msra.mxu0 %v3048
        %3393 = vmatpush.bf16.msra.mxu0 %v3040
        %3394 = vmatpush.bf16.msra.mxu0 %v3032
        %3395 = vmatpush.bf16.msra.mxu0 %v3024
        %3396 = vmatmul.bf16.gmra.mxu0 %v616
        %v3397 = vpop.f32.mrf.mxu0
        %v3398 = vadd.f32 %v2548, %v3397
        %v3399 = vpop.f32.mrf.mxu0
        %v3400 = vadd.f32 %v2550, %v3399
        %3401 = vdwg.mxu0
        %3402 = vmatpush.bf16.msra.mxu0 %v3144
        %3403 = vmatpush.bf16.msra.mxu0 %v3136
        %3404 = vmatpush.bf16.msra.mxu0 %v3128
        %3405 = vmatpush.bf16.msra.mxu0 %v3120
        %3406 = vmatpush.bf16.msra.mxu0 %v3112
        %3407 = vmatpush.bf16.msra.mxu0 %v3104
        %3408 = vmatpush.bf16.msra.mxu0 %v3096
        %3409 = vmatpush.bf16.msra.mxu0 %v3088
        %3410 = vmatmul.bf16.gmra.mxu0 %v617
        %v3411 = vpop.f32.mrf.mxu0
        %v3412 = vadd.f32 %v3398, %v3411
        %v3413 = vpop.f32.mrf.mxu0
        %v3414 = vadd.f32 %v3400, %v3413
        %3415 = vdwg.mxu0
        %3416 = vmatpush.bf16.msra.mxu0 %v3081
        %3417 = vmatpush.bf16.msra.mxu0 %v3073
        %3418 = vmatpush.bf16.msra.mxu0 %v3065
        %3419 = vmatpush.bf16.msra.mxu0 %v3057
        %3420 = vmatpush.bf16.msra.mxu0 %v3049
        %3421 = vmatpush.bf16.msra.mxu0 %v3041
        %3422 = vmatpush.bf16.msra.mxu0 %v3033
        %3423 = vmatpush.bf16.msra.mxu0 %v3025
        %3424 = vmatmul.bf16.gmra.mxu0 %v616
        %v3425 = vpop.f32.mrf.mxu0
        %v3426 = vadd.f32 %v2576, %v3425
        %v3427 = vpop.f32.mrf.mxu0
        %v3428 = vadd.f32 %v2578, %v3427
        %3429 = vdwg.mxu0
        %3430 = vmatpush.bf16.msra.mxu0 %v3145
        %3431 = vmatpush.bf16.msra.mxu0 %v3137
        %3432 = vmatpush.bf16.msra.mxu0 %v3129
        %3433 = vmatpush.bf16.msra.mxu0 %v3121
        %3434 = vmatpush.bf16.msra.mxu0 %v3113
        %3435 = vmatpush.bf16.msra.mxu0 %v3105
        %3436 = vmatpush.bf16.msra.mxu0 %v3097
        %3437 = vmatpush.bf16.msra.mxu0 %v3089
        %3438 = vmatmul.bf16.gmra.mxu0 %v617
        %v3439 = vpop.f32.mrf.mxu0
        %v3440 = vadd.f32 %v3426, %v3439
        %v3441 = vpop.f32.mrf.mxu0
        %v3442 = vadd.f32 %v3428, %v3441
        %3443 = vdwg.mxu0
        %3444 = vmatpush.bf16.msra.mxu0 %v3082
        %3445 = vmatpush.bf16.msra.mxu0 %v3074
        %3446 = vmatpush.bf16.msra.mxu0 %v3066
        %3447 = vmatpush.bf16.msra.mxu0 %v3058
        %3448 = vmatpush.bf16.msra.mxu0 %v3050
        %3449 = vmatpush.bf16.msra.mxu0 %v3042
        %3450 = vmatpush.bf16.msra.mxu0 %v3034
        %3451 = vmatpush.bf16.msra.mxu0 %v3026
        %3452 = vmatmul.bf16.gmra.mxu0 %v616
        %v3453 = vpop.f32.mrf.mxu0
        %v3454 = vadd.f32 %v2604, %v3453
        %v3455 = vpop.f32.mrf.mxu0
        %v3456 = vadd.f32 %v2606, %v3455
        %3457 = vdwg.mxu0
        %3458 = vmatpush.bf16.msra.mxu0 %v3146
        %3459 = vmatpush.bf16.msra.mxu0 %v3138
        %3460 = vmatpush.bf16.msra.mxu0 %v3130
        %3461 = vmatpush.bf16.msra.mxu0 %v3122
        %3462 = vmatpush.bf16.msra.mxu0 %v3114
        %3463 = vmatpush.bf16.msra.mxu0 %v3106
        %3464 = vmatpush.bf16.msra.mxu0 %v3098
        %3465 = vmatpush.bf16.msra.mxu0 %v3090
        %3466 = vmatmul.bf16.gmra.mxu0 %v617
        %v3467 = vpop.f32.mrf.mxu0
        %v3468 = vadd.f32 %v3454, %v3467
        %v3469 = vpop.f32.mrf.mxu0
        %v3470 = vadd.f32 %v3456, %v3469
        %3471 = vdwg.mxu0
        %3472 = vmatpush.bf16.msra.mxu0 %v3083
        %3473 = vmatpush.bf16.msra.mxu0 %v3075
        %3474 = vmatpush.bf16.msra.mxu0 %v3067
        %3475 = vmatpush.bf16.msra.mxu0 %v3059
        %3476 = vmatpush.bf16.msra.mxu0 %v3051
        %3477 = vmatpush.bf16.msra.mxu0 %v3043
        %3478 = vmatpush.bf16.msra.mxu0 %v3035
        %3479 = vmatpush.bf16.msra.mxu0 %v3027
        %3480 = vmatmul.bf16.gmra.mxu0 %v616
        %v3481 = vpop.f32.mrf.mxu0
        %v3482 = vadd.f32 %v2632, %v3481
        %v3483 = vpop.f32.mrf.mxu0
        %v3484 = vadd.f32 %v2634, %v3483
        %3485 = vdwg.mxu0
        %3486 = vmatpush.bf16.msra.mxu0 %v3147
        %3487 = vmatpush.bf16.msra.mxu0 %v3139
        %3488 = vmatpush.bf16.msra.mxu0 %v3131
        %3489 = vmatpush.bf16.msra.mxu0 %v3123
        %3490 = vmatpush.bf16.msra.mxu0 %v3115
        %3491 = vmatpush.bf16.msra.mxu0 %v3107
        %3492 = vmatpush.bf16.msra.mxu0 %v3099
        %3493 = vmatpush.bf16.msra.mxu0 %v3091
        %3494 = vmatmul.bf16.gmra.mxu0 %v617
        %v3495 = vpop.f32.mrf.mxu0
        %v3496 = vadd.f32 %v3482, %v3495
        %v3497 = vpop.f32.mrf.mxu0
        %v3498 = vadd.f32 %v3484, %v3497
        %3499 = vdwg.mxu0
        %v3501 = vperm.slane %v477, 0
        %v3502 = vperm.slane %v477, 1
        %v3505 = vadd.f32 %v1284, %v3501
        %v3506 = vadd.f32 %v1312, %v3502
        %v3507 = vadd.f32 %v1286, %v3501
        %v3508 = vadd.f32 %v1314, %v3502
        %v3509 = vmax.f32 %v3505, 0.0
        %v3510 = vmax.f32 %v3506, 0.0
        %v3511 = vmax.f32 %v3507, 0.0
        %v3512 = vmax.f32 %v3508, 0.0
        %v3513 = vadd.f32 %v1340, %v3501
        %v3514 = vadd.f32 %v1368, %v3502
        %v3515 = vadd.f32 %v1342, %v3501
        %v3516 = vadd.f32 %v1370, %v3502
        %v3517 = vmax.f32 %v3513, 0.0
        %v3518 = vmax.f32 %v3514, 0.0
        %v3519 = vmax.f32 %v3515, 0.0
        %v3520 = vmax.f32 %v3516, 0.0
        %v3521 = vadd.f32 %v1396, %v3501
        %v3522 = vadd.f32 %v1424, %v3502
        %v3523 = vadd.f32 %v1398, %v3501
        %v3524 = vadd.f32 %v1426, %v3502
        %v3525 = vmax.f32 %v3521, 0.0
        %v3526 = vmax.f32 %v3522, 0.0
        %v3527 = vmax.f32 %v3523, 0.0
        %v3528 = vmax.f32 %v3524, 0.0
        %v3529 = vadd.f32 %v1452, %v3501
        %v3530 = vadd.f32 %v1480, %v3502
        %v3531 = vadd.f32 %v1454, %v3501
        %v3532 = vadd.f32 %v1482, %v3502
        %v3533 = vmax.f32 %v3529, 0.0
        %v3534 = vmax.f32 %v3530, 0.0
        %v3535 = vmax.f32 %v3531, 0.0
        %v3536 = vmax.f32 %v3532, 0.0
        %v3537 = vmax.f32 %v3509, %v3517
        %v3538 = vmax.f32 %v3510, %v3518
        %v3539 = vmax.f32 %v3511, %v3519
        %v3540 = vmax.f32 %v3512, %v3520
        %v3541 = vmax.f32 %v3525, %v3533
        %v3542 = vmax.f32 %v3526, %v3534
        %v3543 = vmax.f32 %v3527, %v3535
        %v3544 = vmax.f32 %v3528, %v3536
        %v3545 = vmax.f32 %v3537, %v3541
        %v3546 = vmax.f32 %v3538, %v3542
        %v3547 = vmax.f32 %v3539, %v3543
        %v3548 = vmax.f32 %v3540, %v3544
        %v3549 = vpack.c.bf16 %v3546, %v3545
        %v3550 = vpack.c.bf16 %v3548, %v3547
        %v3551 = vadd.f32 %v3300, %v3501
        %v3552 = vadd.f32 %v3328, %v3502
        %v3553 = vadd.f32 %v3302, %v3501
        %v3554 = vadd.f32 %v3330, %v3502
        %v3555 = vmax.f32 %v3551, 0.0
        %v3556 = vmax.f32 %v3552, 0.0
        %v3557 = vmax.f32 %v3553, 0.0
        %v3558 = vmax.f32 %v3554, 0.0
        %v3559 = vadd.f32 %v3356, %v3501
        %v3560 = vadd.f32 %v3384, %v3502
        %v3561 = vadd.f32 %v3358, %v3501
        %v3562 = vadd.f32 %v3386, %v3502
        %v3563 = vmax.f32 %v3559, 0.0
        %v3564 = vmax.f32 %v3560, 0.0
        %v3565 = vmax.f32 %v3561, 0.0
        %v3566 = vmax.f32 %v3562, 0.0
        %v3567 = vadd.f32 %v3412, %v3501
        %v3568 = vadd.f32 %v3440, %v3502
        %v3569 = vadd.f32 %v3414, %v3501
        %v3570 = vadd.f32 %v3442, %v3502
        %v3571 = vmax.f32 %v3567, 0.0
        %v3572 = vmax.f32 %v3568, 0.0
        %v3573 = vmax.f32 %v3569, 0.0
        %v3574 = vmax.f32 %v3570, 0.0
        %v3575 = vadd.f32 %v3468, %v3501
        %v3576 = vadd.f32 %v3496, %v3502
        %v3577 = vadd.f32 %v3470, %v3501
        %v3578 = vadd.f32 %v3498, %v3502
        %v3579 = vmax.f32 %v3575, 0.0
        %v3580 = vmax.f32 %v3576, 0.0
        %v3581 = vmax.f32 %v3577, 0.0
        %v3582 = vmax.f32 %v3578, 0.0
        %v3583 = vmax.f32 %v3555, %v3563
        %v3584 = vmax.f32 %v3556, %v3564
        %v3585 = vmax.f32 %v3557, %v3565
        %v3586 = vmax.f32 %v3558, %v3566
        %v3587 = vmax.f32 %v3571, %v3579
        %v3588 = vmax.f32 %v3572, %v3580
        %v3589 = vmax.f32 %v3573, %v3581
        %v3590 = vmax.f32 %v3574, %v3582
        %v3591 = vmax.f32 %v3583, %v3587
        %v3592 = vmax.f32 %v3584, %v3588
        %v3593 = vmax.f32 %v3585, %v3589
        %v3594 = vmax.f32 %v3586, %v3590
        %v3595 = vpack.c.bf16 %v3592, %v3591
        %v3596 = vpack.c.bf16 %v3594, %v3593
        %v3599 = vunpack.c.l.b16 %v3595
        %v3600 = vunpack.c.h.b16 %v3595
        %v3601 = vunpack.c.l.b16 %v3596
        %v3602 = vunpack.c.h.b16 %v3596
        %v3603 = vpack.c.b16 %v3601, %v3599
        %v3604 = vpack.c.b16 %v3602, %v3600
        %v3606 = vshrl.u32 %v3603, 16
        %v3608 = vrot.slane %v3606, 7
        %v3609 = vshll.u32 %v3603, 16
        %v3611 = vor.u32 %v3608, %v3609
        %v3613 = vshrl.u32 %v3604, 16
        %v3615 = vrot.slane %v3613, 7
        %v3616 = vshll.u32 %v3604, 16
        %v3618 = vor.u32 %v3615, %v3616
        %vm3621 = vcmask 1040384
        %vm3622 = vsmask.f32 256
        %vm3623 = vmand %vm3621, %vm3622
        %v3624 = vsel %vm3623, 0, %v3611
        %v3625 = vsel %vm3623, 0, %v3618
        %v3628 = vunpack.c.l.b16 %v3549
        %v3629 = vunpack.c.h.b16 %v3549
        %v3630 = vunpack.c.l.b16 %v3550
        %v3631 = vunpack.c.h.b16 %v3550
        %v3632 = vpack.c.b16 %v3630, %v3628
        %v3633 = vpack.c.b16 %v3631, %v3629
        %v3635 = vshrl.u32 %v3632, 16
        %v3637 = vshll.u32 %v3632, 16
        %v3639 = vrot.slane %v3637, 1
        %v3640 = vor.u32 %v3635, %v3639
        %v3642 = vshrl.u32 %v3633, 16
        %v3644 = vshll.u32 %v3633, 16
        %v3646 = vrot.slane %v3644, 1
        %v3647 = vor.u32 %v3642, %v3646
        %vm3650 = vcmask 1047552
        %vm3651 = vmand %vm3650, %vm1745
        %v3652 = vsel %vm3651, %v3640, 0
        %v3653 = vsel %vm3651, %v3647, 0
        %v3654 = vld [vmem:[#allocation7] sm:$0xff]
        %v3655 = vld [vmem:[#allocation7 + $0x8] sm:$0xff]
        %v3656 = vld [vmem:[#allocation7 + $0x10] sm:$0xff]
        %v3657 = vld [vmem:[#allocation7 + $0x18] sm:$0xff]
        %v3658 = vld [vmem:[#allocation7 + $0x20] sm:$0xff]
        %v3659 = vld [vmem:[#allocation7 + $0x28] sm:$0xff]
        %v3660 = vld [vmem:[#allocation7 + $0x30] sm:$0xff]
        %v3661 = vld [vmem:[#allocation7 + $0x38] sm:$0xff]
        %v3662 = vld [vmem:[#allocation7 + $0x40] sm:$0xff]
        %v3663 = vld [vmem:[#allocation7 + $0x48] sm:$0xff]
        %v3664 = vld [vmem:[#allocation7 + $0x50] sm:$0xff]
        %v3665 = vld [vmem:[#allocation7 + $0x58] sm:$0xff]
        %v3666 = vld [vmem:[#allocation7 + $0x60] sm:$0xff]
        %v3667 = vld [vmem:[#allocation7 + $0x68] sm:$0xff]
        %v3668 = vld [vmem:[#allocation7 + $0x70] sm:$0xff]
        %v3669 = vld [vmem:[#allocation7 + $0x78] sm:$0xff]
        %v3670 = vld [vmem:[#allocation7 + $0x80] sm:$0xff]
        %v3671 = vld [vmem:[#allocation7 + $0x88] sm:$0xff]
        %v3672 = vld [vmem:[#allocation7 + $0x90] sm:$0xff]
        %v3673 = vld [vmem:[#allocation7 + $0x98] sm:$0xff]
        %v3674 = vld [vmem:[#allocation7 + $0xa0] sm:$0xff]
        %v3675 = vld [vmem:[#allocation7 + $0xa8] sm:$0xff]
        %v3676 = vld [vmem:[#allocation7 + $0xb0] sm:$0xff]
        %v3677 = vld [vmem:[#allocation7 + $0xb8] sm:$0xff]
        %v3678 = vld [vmem:[#allocation7 + $0xc0] sm:$0xff]
        %v3679 = vld [vmem:[#allocation7 + $0xc8] sm:$0xff]
        %v3680 = vld [vmem:[#allocation7 + $0xd0] sm:$0xff]
        %v3681 = vld [vmem:[#allocation7 + $0xd8] sm:$0xff]
        %v3682 = vld [vmem:[#allocation7 + $0xe0] sm:$0xff]
        %v3683 = vld [vmem:[#allocation7 + $0xe8] sm:$0xff]
        %v3684 = vld [vmem:[#allocation7 + $0xf0] sm:$0xff]
        %v3685 = vld [vmem:[#allocation7 + $0xf8] sm:$0xff]
        %v3686 = vld [vmem:[#allocation7 + $0x100] sm:$0xff]
        %v3687 = vld [vmem:[#allocation7 + $0x108] sm:$0xff]
        %v3688 = vld [vmem:[#allocation7 + $0x110] sm:$0xff]
        %v3689 = vld [vmem:[#allocation7 + $0x118] sm:$0xff]
        %v3690 = vld [vmem:[#allocation7 + $0x120] sm:$0xff]
        %v3691 = vld [vmem:[#allocation7 + $0x128] sm:$0xff]
        %v3692 = vld [vmem:[#allocation7 + $0x130] sm:$0xff]
        %v3693 = vld [vmem:[#allocation7 + $0x138] sm:$0xff]
        %v3694 = vld [vmem:[#allocation7 + $0x140] sm:$0xff]
        %v3695 = vld [vmem:[#allocation7 + $0x148] sm:$0xff]
        %v3696 = vld [vmem:[#allocation7 + $0x150] sm:$0xff]
        %v3697 = vld [vmem:[#allocation7 + $0x158] sm:$0xff]
        %v3698 = vld [vmem:[#allocation7 + $0x160] sm:$0xff]
        %v3699 = vld [vmem:[#allocation7 + $0x168] sm:$0xff]
        %v3700 = vld [vmem:[#allocation7 + $0x170] sm:$0xff]
        %v3701 = vld [vmem:[#allocation7 + $0x178] sm:$0xff]
        %v3702 = vld [vmem:[#allocation7 + $0x180] sm:$0xff]
        %v3703 = vld [vmem:[#allocation7 + $0x188] sm:$0xff]
        %v3704 = vld [vmem:[#allocation7 + $0x190] sm:$0xff]
        %v3705 = vld [vmem:[#allocation7 + $0x198] sm:$0xff]
        %v3706 = vld [vmem:[#allocation7 + $0x1a0] sm:$0xff]
        %v3707 = vld [vmem:[#allocation7 + $0x1a8] sm:$0xff]
        %v3708 = vld [vmem:[#allocation7 + $0x1b0] sm:$0xff]
        %v3709 = vld [vmem:[#allocation7 + $0x1b8] sm:$0xff]
        %v3710 = vld [vmem:[#allocation7 + $0x1c0] sm:$0xff]
        %v3711 = vld [vmem:[#allocation7 + $0x1c8] sm:$0xff]
        %v3712 = vld [vmem:[#allocation7 + $0x1d0] sm:$0xff]
        %v3713 = vld [vmem:[#allocation7 + $0x1d8] sm:$0xff]
        %v3714 = vld [vmem:[#allocation7 + $0x1e0] sm:$0xff]
        %v3715 = vld [vmem:[#allocation7 + $0x1e8] sm:$0xff]
        %v3716 = vld [vmem:[#allocation7 + $0x1f0] sm:$0xff]
        %v3717 = vld [vmem:[#allocation7 + $0x1f8] sm:$0xff]
        %v3718 = vld [vmem:[#allocation7 + $0x200] sm:$0xff]
        %v3719 = vld [vmem:[#allocation7 + $0x208] sm:$0xff]
        %v3720 = vld [vmem:[#allocation7 + $0x210] sm:$0xff]
        %v3721 = vld [vmem:[#allocation7 + $0x218] sm:$0xff]
        %v3722 = vld [vmem:[#allocation7 + $0x220] sm:$0xff]
        %v3723 = vld [vmem:[#allocation7 + $0x228] sm:$0xff]
        %v3724 = vld [vmem:[#allocation7 + $0x230] sm:$0xff]
        %v3725 = vld [vmem:[#allocation7 + $0x238] sm:$0xff]
        %v3726 = vld [vmem:[#allocation7 + $0x240] sm:$0xff]
        %v3727 = vld [vmem:[#allocation7 + $0x248] sm:$0xff]
        %v3728 = vld [vmem:[#allocation7 + $0x250] sm:$0xff]
        %v3729 = vld [vmem:[#allocation7 + $0x258] sm:$0xff]
        %v3730 = vld [vmem:[#allocation7 + $0x260] sm:$0xff]
        %v3731 = vld [vmem:[#allocation7 + $0x268] sm:$0xff]
        %v3732 = vld [vmem:[#allocation7 + $0x270] sm:$0xff]
        %v3733 = vld [vmem:[#allocation7 + $0x278] sm:$0xff]
        %v3734 = vld [vmem:[#allocation7 + $0x280] sm:$0xff]
        %v3735 = vld [vmem:[#allocation7 + $0x288] sm:$0xff]
        %v3736 = vld [vmem:[#allocation7 + $0x290] sm:$0xff]
        %v3737 = vld [vmem:[#allocation7 + $0x298] sm:$0xff]
        %v3738 = vld [vmem:[#allocation7 + $0x2a0] sm:$0xff]
        %v3739 = vld [vmem:[#allocation7 + $0x2a8] sm:$0xff]
        %v3740 = vld [vmem:[#allocation7 + $0x2b0] sm:$0xff]
        %v3741 = vld [vmem:[#allocation7 + $0x2b8] sm:$0xff]
        %v3742 = vld [vmem:[#allocation7 + $0x2c0] sm:$0xff]
        %v3743 = vld [vmem:[#allocation7 + $0x2c8] sm:$0xff]
        %v3744 = vld [vmem:[#allocation7 + $0x2d0] sm:$0xff]
        %v3745 = vld [vmem:[#allocation7 + $0x2d8] sm:$0xff]
        %v3746 = vld [vmem:[#allocation7 + $0x2e0] sm:$0xff]
        %v3747 = vld [vmem:[#allocation7 + $0x2e8] sm:$0xff]
        %v3748 = vld [vmem:[#allocation7 + $0x2f0] sm:$0xff]
        %v3749 = vld [vmem:[#allocation7 + $0x2f8] sm:$0xff]
        %v3750 = vld [vmem:[#allocation7 + $0x300] sm:$0xff]
        %v3751 = vld [vmem:[#allocation7 + $0x308] sm:$0xff]
        %v3752 = vld [vmem:[#allocation7 + $0x310] sm:$0xff]
        %v3753 = vld [vmem:[#allocation7 + $0x318] sm:$0xff]
        %v3754 = vld [vmem:[#allocation7 + $0x320] sm:$0xff]
        %v3755 = vld [vmem:[#allocation7 + $0x328] sm:$0xff]
        %v3756 = vld [vmem:[#allocation7 + $0x330] sm:$0xff]
        %v3757 = vld [vmem:[#allocation7 + $0x338] sm:$0xff]
        %v3758 = vld [vmem:[#allocation7 + $0x340] sm:$0xff]
        %v3759 = vld [vmem:[#allocation7 + $0x348] sm:$0xff]
        %v3760 = vld [vmem:[#allocation7 + $0x350] sm:$0xff]
        %v3761 = vld [vmem:[#allocation7 + $0x358] sm:$0xff]
        %v3762 = vld [vmem:[#allocation7 + $0x360] sm:$0xff]
        %v3763 = vld [vmem:[#allocation7 + $0x368] sm:$0xff]
        %v3764 = vld [vmem:[#allocation7 + $0x370] sm:$0xff]
        %v3765 = vld [vmem:[#allocation7 + $0x378] sm:$0xff]
        %v3766 = vld [vmem:[#allocation7 + $0x380] sm:$0xff]
        %v3767 = vld [vmem:[#allocation7 + $0x388] sm:$0xff]
        %v3768 = vld [vmem:[#allocation7 + $0x390] sm:$0xff]
        %v3769 = vld [vmem:[#allocation7 + $0x398] sm:$0xff]
        %v3770 = vld [vmem:[#allocation7 + $0x3a0] sm:$0xff]
        %v3771 = vld [vmem:[#allocation7 + $0x3a8] sm:$0xff]
        %v3772 = vld [vmem:[#allocation7 + $0x3b0] sm:$0xff]
        %v3773 = vld [vmem:[#allocation7 + $0x3b8] sm:$0xff]
        %v3774 = vld [vmem:[#allocation7 + $0x3c0] sm:$0xff]
        %v3775 = vld [vmem:[#allocation7 + $0x3c8] sm:$0xff]
        %v3776 = vld [vmem:[#allocation7 + $0x3d0] sm:$0xff]
        %v3777 = vld [vmem:[#allocation7 + $0x3d8] sm:$0xff]
        %v3778 = vld [vmem:[#allocation7 + $0x3e0] sm:$0xff]
        %v3779 = vld [vmem:[#allocation7 + $0x3e8] sm:$0xff]
        %v3780 = vld [vmem:[#allocation7 + $0x3f0] sm:$0xff]
        %v3781 = vld [vmem:[#allocation7 + $0x3f8] sm:$0xff]
        %v3782 = vld [vmem:[#allocation9] sm:$0xff]
        %v3783 = vld [vmem:[#allocation9 + $0x8] sm:$0xff]
        %v3784 = vld [vmem:[#allocation9 + $0x10] sm:$0xff]
        %v3785 = vld [vmem:[#allocation9 + $0x18] sm:$0xff]
        %v3786 = vld [vmem:[#allocation9 + $0x20] sm:$0xff]
        %v3787 = vld [vmem:[#allocation9 + $0x28] sm:$0xff]
        %v3788 = vld [vmem:[#allocation9 + $0x30] sm:$0xff]
        %v3789 = vld [vmem:[#allocation9 + $0x38] sm:$0xff]
        %v3790 = vld [vmem:[#allocation9 + $0x40] sm:$0xff]
        %v3791 = vld [vmem:[#allocation9 + $0x48] sm:$0xff]
        %v3792 = vld [vmem:[#allocation9 + $0x50] sm:$0xff]
        %v3793 = vld [vmem:[#allocation9 + $0x58] sm:$0xff]
        %v3794 = vld [vmem:[#allocation9 + $0x60] sm:$0xff]
        %v3795 = vld [vmem:[#allocation9 + $0x68] sm:$0xff]
        %v3796 = vld [vmem:[#allocation9 + $0x70] sm:$0xff]
        %v3797 = vld [vmem:[#allocation9 + $0x78] sm:$0xff]
        %v3798 = vld [vmem:[#allocation9 + $0x80] sm:$0xff]
        %v3799 = vld [vmem:[#allocation9 + $0x88] sm:$0xff]
        %v3800 = vld [vmem:[#allocation9 + $0x90] sm:$0xff]
        %v3801 = vld [vmem:[#allocation9 + $0x98] sm:$0xff]
        %v3802 = vld [vmem:[#allocation9 + $0xa0] sm:$0xff]
        %v3803 = vld [vmem:[#allocation9 + $0xa8] sm:$0xff]
        %v3804 = vld [vmem:[#allocation9 + $0xb0] sm:$0xff]
        %v3805 = vld [vmem:[#allocation9 + $0xb8] sm:$0xff]
        %v3806 = vld [vmem:[#allocation9 + $0xc0] sm:$0xff]
        %v3807 = vld [vmem:[#allocation9 + $0xc8] sm:$0xff]
        %v3808 = vld [vmem:[#allocation9 + $0xd0] sm:$0xff]
        %v3809 = vld [vmem:[#allocation9 + $0xd8] sm:$0xff]
        %v3810 = vld [vmem:[#allocation9 + $0xe0] sm:$0xff]
        %v3811 = vld [vmem:[#allocation9 + $0xe8] sm:$0xff]
        %v3812 = vld [vmem:[#allocation9 + $0xf0] sm:$0xff]
        %v3813 = vld [vmem:[#allocation9 + $0xf8] sm:$0xff]
        %v3814 = vld [vmem:[#allocation9 + $0x100] sm:$0xff]
        %v3815 = vld [vmem:[#allocation9 + $0x108] sm:$0xff]
        %v3816 = vld [vmem:[#allocation9 + $0x110] sm:$0xff]
        %v3817 = vld [vmem:[#allocation9 + $0x118] sm:$0xff]
        %v3818 = vld [vmem:[#allocation9 + $0x120] sm:$0xff]
        %v3819 = vld [vmem:[#allocation9 + $0x128] sm:$0xff]
        %v3820 = vld [vmem:[#allocation9 + $0x130] sm:$0xff]
        %v3821 = vld [vmem:[#allocation9 + $0x138] sm:$0xff]
        %v3822 = vld [vmem:[#allocation9 + $0x140] sm:$0xff]
        %v3823 = vld [vmem:[#allocation9 + $0x148] sm:$0xff]
        %v3824 = vld [vmem:[#allocation9 + $0x150] sm:$0xff]
        %v3825 = vld [vmem:[#allocation9 + $0x158] sm:$0xff]
        %v3826 = vld [vmem:[#allocation9 + $0x160] sm:$0xff]
        %v3827 = vld [vmem:[#allocation9 + $0x168] sm:$0xff]
        %v3828 = vld [vmem:[#allocation9 + $0x170] sm:$0xff]
        %v3829 = vld [vmem:[#allocation9 + $0x178] sm:$0xff]
        %v3830 = vld [vmem:[#allocation9 + $0x180] sm:$0xff]
        %v3831 = vld [vmem:[#allocation9 + $0x188] sm:$0xff]
        %v3832 = vld [vmem:[#allocation9 + $0x190] sm:$0xff]
        %v3833 = vld [vmem:[#allocation9 + $0x198] sm:$0xff]
        %v3834 = vld [vmem:[#allocation9 + $0x1a0] sm:$0xff]
        %v3835 = vld [vmem:[#allocation9 + $0x1a8] sm:$0xff]
        %v3836 = vld [vmem:[#allocation9 + $0x1b0] sm:$0xff]
        %v3837 = vld [vmem:[#allocation9 + $0x1b8] sm:$0xff]
        %v3838 = vld [vmem:[#allocation9 + $0x1c0] sm:$0xff]
        %v3839 = vld [vmem:[#allocation9 + $0x1c8] sm:$0xff]
        %v3840 = vld [vmem:[#allocation9 + $0x1d0] sm:$0xff]
        %v3841 = vld [vmem:[#allocation9 + $0x1d8] sm:$0xff]
        %v3842 = vld [vmem:[#allocation9 + $0x1e0] sm:$0xff]
        %v3843 = vld [vmem:[#allocation9 + $0x1e8] sm:$0xff]
        %v3844 = vld [vmem:[#allocation9 + $0x1f0] sm:$0xff]
        %v3845 = vld [vmem:[#allocation9 + $0x1f8] sm:$0xff]
        %v3846 = vld [vmem:[#allocation9 + $0x200] sm:$0xff]
        %v3847 = vld [vmem:[#allocation9 + $0x208] sm:$0xff]
        %v3848 = vld [vmem:[#allocation9 + $0x210] sm:$0xff]
        %v3849 = vld [vmem:[#allocation9 + $0x218] sm:$0xff]
        %v3850 = vld [vmem:[#allocation9 + $0x220] sm:$0xff]
        %v3851 = vld [vmem:[#allocation9 + $0x228] sm:$0xff]
        %v3852 = vld [vmem:[#allocation9 + $0x230] sm:$0xff]
        %v3853 = vld [vmem:[#allocation9 + $0x238] sm:$0xff]
        %v3854 = vld [vmem:[#allocation9 + $0x240] sm:$0xff]
        %v3855 = vld [vmem:[#allocation9 + $0x248] sm:$0xff]
        %v3856 = vld [vmem:[#allocation9 + $0x250] sm:$0xff]
        %v3857 = vld [vmem:[#allocation9 + $0x258] sm:$0xff]
        %v3858 = vld [vmem:[#allocation9 + $0x260] sm:$0xff]
        %v3859 = vld [vmem:[#allocation9 + $0x268] sm:$0xff]
        %v3860 = vld [vmem:[#allocation9 + $0x270] sm:$0xff]
        %v3861 = vld [vmem:[#allocation9 + $0x278] sm:$0xff]
        %v3862 = vld [vmem:[#allocation9 + $0x280] sm:$0xff]
        %v3863 = vld [vmem:[#allocation9 + $0x288] sm:$0xff]
        %v3864 = vld [vmem:[#allocation9 + $0x290] sm:$0xff]
        %v3865 = vld [vmem:[#allocation9 + $0x298] sm:$0xff]
        %v3866 = vld [vmem:[#allocation9 + $0x2a0] sm:$0xff]
        %v3867 = vld [vmem:[#allocation9 + $0x2a8] sm:$0xff]
        %v3868 = vld [vmem:[#allocation9 + $0x2b0] sm:$0xff]
        %v3869 = vld [vmem:[#allocation9 + $0x2b8] sm:$0xff]
        %v3870 = vld [vmem:[#allocation9 + $0x2c0] sm:$0xff]
        %v3871 = vld [vmem:[#allocation9 + $0x2c8] sm:$0xff]
        %v3872 = vld [vmem:[#allocation9 + $0x2d0] sm:$0xff]
        %v3873 = vld [vmem:[#allocation9 + $0x2d8] sm:$0xff]
        %v3874 = vld [vmem:[#allocation9 + $0x2e0] sm:$0xff]
        %v3875 = vld [vmem:[#allocation9 + $0x2e8] sm:$0xff]
        %v3876 = vld [vmem:[#allocation9 + $0x2f0] sm:$0xff]
        %v3877 = vld [vmem:[#allocation9 + $0x2f8] sm:$0xff]
        %v3878 = vld [vmem:[#allocation9 + $0x300] sm:$0xff]
        %v3879 = vld [vmem:[#allocation9 + $0x308] sm:$0xff]
        %v3880 = vld [vmem:[#allocation9 + $0x310] sm:$0xff]
        %v3881 = vld [vmem:[#allocation9 + $0x318] sm:$0xff]
        %v3882 = vld [vmem:[#allocation9 + $0x320] sm:$0xff]
        %v3883 = vld [vmem:[#allocation9 + $0x328] sm:$0xff]
        %v3884 = vld [vmem:[#allocation9 + $0x330] sm:$0xff]
        %v3885 = vld [vmem:[#allocation9 + $0x338] sm:$0xff]
        %v3886 = vld [vmem:[#allocation9 + $0x340] sm:$0xff]
        %v3887 = vld [vmem:[#allocation9 + $0x348] sm:$0xff]
        %v3888 = vld [vmem:[#allocation9 + $0x350] sm:$0xff]
        %v3889 = vld [vmem:[#allocation9 + $0x358] sm:$0xff]
        %v3890 = vld [vmem:[#allocation9 + $0x360] sm:$0xff]
        %v3891 = vld [vmem:[#allocation9 + $0x368] sm:$0xff]
        %v3892 = vld [vmem:[#allocation9 + $0x370] sm:$0xff]
        %v3893 = vld [vmem:[#allocation9 + $0x378] sm:$0xff]
        %v3894 = vld [vmem:[#allocation9 + $0x380] sm:$0xff]
        %v3895 = vld [vmem:[#allocation9 + $0x388] sm:$0xff]
        %v3896 = vld [vmem:[#allocation9 + $0x390] sm:$0xff]
        %v3897 = vld [vmem:[#allocation9 + $0x398] sm:$0xff]
        %v3898 = vld [vmem:[#allocation9 + $0x3a0] sm:$0xff]
        %v3899 = vld [vmem:[#allocation9 + $0x3a8] sm:$0xff]
        %v3900 = vld [vmem:[#allocation9 + $0x3b0] sm:$0xff]
        %v3901 = vld [vmem:[#allocation9 + $0x3b8] sm:$0xff]
        %v3902 = vld [vmem:[#allocation9 + $0x3c0] sm:$0xff]
        %v3903 = vld [vmem:[#allocation9 + $0x3c8] sm:$0xff]
        %v3904 = vld [vmem:[#allocation9 + $0x3d0] sm:$0xff]
        %v3905 = vld [vmem:[#allocation9 + $0x3d8] sm:$0xff]
        %v3906 = vld [vmem:[#allocation9 + $0x3e0] sm:$0xff]
        %v3907 = vld [vmem:[#allocation9 + $0x3e8] sm:$0xff]
        %v3908 = vld [vmem:[#allocation9 + $0x3f0] sm:$0xff]
        %v3909 = vld [vmem:[#allocation9 + $0x3f8] sm:$0xff]
        %v4040 = vunpack.c.l.b16 %v3782
        %v4041 = vunpack.c.h.b16 %v3782
        %v4042 = vunpack.c.l.b16 %v3783
        %v4043 = vunpack.c.h.b16 %v3783
        %v4044 = vunpack.c.l.b16 %v3784
        %v4045 = vunpack.c.h.b16 %v3784
        %v4046 = vunpack.c.l.b16 %v3785
        %v4047 = vunpack.c.h.b16 %v3785
        %v4048 = vunpack.c.l.b16 %v3786
        %v4049 = vunpack.c.h.b16 %v3786
        %v4050 = vunpack.c.l.b16 %v3787
        %v4051 = vunpack.c.h.b16 %v3787
        %v4052 = vunpack.c.l.b16 %v3788
        %v4053 = vunpack.c.h.b16 %v3788
        %v4054 = vunpack.c.l.b16 %v3789
        %v4055 = vunpack.c.h.b16 %v3789
        %v4056 = vunpack.c.l.b16 %v3790
        %v4057 = vunpack.c.h.b16 %v3790
        %v4058 = vunpack.c.l.b16 %v3791
        %v4059 = vunpack.c.h.b16 %v3791
        %v4060 = vunpack.c.l.b16 %v3792
        %v4061 = vunpack.c.h.b16 %v3792
        %v4062 = vunpack.c.l.b16 %v3793
        %v4063 = vunpack.c.h.b16 %v3793
        %v4064 = vunpack.c.l.b16 %v3794
        %v4065 = vunpack.c.h.b16 %v3794
        %v4066 = vunpack.c.l.b16 %v3795
        %v4067 = vunpack.c.h.b16 %v3795
        %v4068 = vunpack.c.l.b16 %v3796
        %v4069 = vunpack.c.h.b16 %v3796
        %v4070 = vunpack.c.l.b16 %v3797
        %v4071 = vunpack.c.h.b16 %v3797
        %v4072 = vunpack.c.l.b16 %v3798
        %v4073 = vunpack.c.h.b16 %v3798
        %v4074 = vunpack.c.l.b16 %v3799
        %v4075 = vunpack.c.h.b16 %v3799
        %v4076 = vunpack.c.l.b16 %v3800
        %v4077 = vunpack.c.h.b16 %v3800
        %v4078 = vunpack.c.l.b16 %v3801
        %v4079 = vunpack.c.h.b16 %v3801
        %v4080 = vunpack.c.l.b16 %v3802
        %v4081 = vunpack.c.h.b16 %v3802
        %v4082 = vunpack.c.l.b16 %v3803
        %v4083 = vunpack.c.h.b16 %v3803
        %v4084 = vunpack.c.l.b16 %v3804
        %v4085 = vunpack.c.h.b16 %v3804
        %v4086 = vunpack.c.l.b16 %v3805
        %v4087 = vunpack.c.h.b16 %v3805
        %v4088 = vunpack.c.l.b16 %v3806
        %v4089 = vunpack.c.h.b16 %v3806
        %v4090 = vunpack.c.l.b16 %v3807
        %v4091 = vunpack.c.h.b16 %v3807
        %v4092 = vunpack.c.l.b16 %v3808
        %v4093 = vunpack.c.h.b16 %v3808
        %v4094 = vunpack.c.l.b16 %v3809
        %v4095 = vunpack.c.h.b16 %v3809
        %v4096 = vunpack.c.l.b16 %v3810
        %v4097 = vunpack.c.h.b16 %v3810
        %v4098 = vunpack.c.l.b16 %v3811
        %v4099 = vunpack.c.h.b16 %v3811
        %v4100 = vunpack.c.l.b16 %v3812
        %v4101 = vunpack.c.h.b16 %v3812
        %v4102 = vunpack.c.l.b16 %v3813
        %v4103 = vunpack.c.h.b16 %v3813
        %v4104 = vunpack.c.l.b16 %v3814
        %v4105 = vunpack.c.h.b16 %v3814
        %v4106 = vunpack.c.l.b16 %v3815
        %v4107 = vunpack.c.h.b16 %v3815
        %v4108 = vunpack.c.l.b16 %v3816
        %v4109 = vunpack.c.h.b16 %v3816
        %v4110 = vunpack.c.l.b16 %v3817
        %v4111 = vunpack.c.h.b16 %v3817
        %v4112 = vunpack.c.l.b16 %v3818
        %v4113 = vunpack.c.h.b16 %v3818
        %v4114 = vunpack.c.l.b16 %v3819
        %v4115 = vunpack.c.h.b16 %v3819
        %v4116 = vunpack.c.l.b16 %v3820
        %v4117 = vunpack.c.h.b16 %v3820
        %v4118 = vunpack.c.l.b16 %v3821
        %v4119 = vunpack.c.h.b16 %v3821
        %v4120 = vunpack.c.l.b16 %v3822
        %v4121 = vunpack.c.h.b16 %v3822
        %v4122 = vunpack.c.l.b16 %v3823
        %v4123 = vunpack.c.h.b16 %v3823
        %v4124 = vunpack.c.l.b16 %v3824
        %v4125 = vunpack.c.h.b16 %v3824
        %v4126 = vunpack.c.l.b16 %v3825
        %v4127 = vunpack.c.h.b16 %v3825
        %v4128 = vunpack.c.l.b16 %v3826
        %v4129 = vunpack.c.h.b16 %v3826
        %v4130 = vunpack.c.l.b16 %v3827
        %v4131 = vunpack.c.h.b16 %v3827
        %v4132 = vunpack.c.l.b16 %v3828
        %v4133 = vunpack.c.h.b16 %v3828
        %v4134 = vunpack.c.l.b16 %v3829
        %v4135 = vunpack.c.h.b16 %v3829
        %v4136 = vunpack.c.l.b16 %v3830
        %v4137 = vunpack.c.h.b16 %v3830
        %v4138 = vunpack.c.l.b16 %v3831
        %v4139 = vunpack.c.h.b16 %v3831
        %v4140 = vunpack.c.l.b16 %v3832
        %v4141 = vunpack.c.h.b16 %v3832
        %v4142 = vunpack.c.l.b16 %v3833
        %v4143 = vunpack.c.h.b16 %v3833
        %v4144 = vunpack.c.l.b16 %v3834
        %v4145 = vunpack.c.h.b16 %v3834
        %v4146 = vunpack.c.l.b16 %v3835
        %v4147 = vunpack.c.h.b16 %v3835
        %v4148 = vunpack.c.l.b16 %v3836
        %v4149 = vunpack.c.h.b16 %v3836
        %v4150 = vunpack.c.l.b16 %v3837
        %v4151 = vunpack.c.h.b16 %v3837
        %v4152 = vunpack.c.l.b16 %v3838
        %v4153 = vunpack.c.h.b16 %v3838
        %v4154 = vunpack.c.l.b16 %v3839
        %v4155 = vunpack.c.h.b16 %v3839
        %v4156 = vunpack.c.l.b16 %v3840
        %v4157 = vunpack.c.h.b16 %v3840
        %v4158 = vunpack.c.l.b16 %v3841
        %v4159 = vunpack.c.h.b16 %v3841
        %v4160 = vunpack.c.l.b16 %v3842
        %v4161 = vunpack.c.h.b16 %v3842
        %v4162 = vunpack.c.l.b16 %v3843
        %v4163 = vunpack.c.h.b16 %v3843
        %v4164 = vunpack.c.l.b16 %v3844
        %v4165 = vunpack.c.h.b16 %v3844
        %v4166 = vunpack.c.l.b16 %v3845
        %v4167 = vunpack.c.h.b16 %v3845
        %v4168 = vunpack.c.l.b16 %v3846
        %v4169 = vunpack.c.h.b16 %v3846
        %v4170 = vunpack.c.l.b16 %v3847
        %v4171 = vunpack.c.h.b16 %v3847
        %v4172 = vunpack.c.l.b16 %v3848
        %v4173 = vunpack.c.h.b16 %v3848
        %v4174 = vunpack.c.l.b16 %v3849
        %v4175 = vunpack.c.h.b16 %v3849
        %v4176 = vunpack.c.l.b16 %v3850
        %v4177 = vunpack.c.h.b16 %v3850
        %v4178 = vunpack.c.l.b16 %v3851
        %v4179 = vunpack.c.h.b16 %v3851
        %v4180 = vunpack.c.l.b16 %v3852
        %v4181 = vunpack.c.h.b16 %v3852
        %v4182 = vunpack.c.l.b16 %v3853
        %v4183 = vunpack.c.h.b16 %v3853
        %v4184 = vunpack.c.l.b16 %v3854
        %v4185 = vunpack.c.h.b16 %v3854
        %v4186 = vunpack.c.l.b16 %v3855
        %v4187 = vunpack.c.h.b16 %v3855
        %v4188 = vunpack.c.l.b16 %v3856
        %v4189 = vunpack.c.h.b16 %v3856
        %v4190 = vunpack.c.l.b16 %v3857
        %v4191 = vunpack.c.h.b16 %v3857
        %v4192 = vunpack.c.l.b16 %v3858
        %v4193 = vunpack.c.h.b16 %v3858
        %v4194 = vunpack.c.l.b16 %v3859
        %v4195 = vunpack.c.h.b16 %v3859
        %v4196 = vunpack.c.l.b16 %v3860
        %v4197 = vunpack.c.h.b16 %v3860
        %v4198 = vunpack.c.l.b16 %v3861
        %v4199 = vunpack.c.h.b16 %v3861
        %v4200 = vunpack.c.l.b16 %v3862
        %v4201 = vunpack.c.h.b16 %v3862
        %v4202 = vunpack.c.l.b16 %v3863
        %v4203 = vunpack.c.h.b16 %v3863
        %v4204 = vunpack.c.l.b16 %v3864
        %v4205 = vunpack.c.h.b16 %v3864
        %v4206 = vunpack.c.l.b16 %v3865
        %v4207 = vunpack.c.h.b16 %v3865
        %v4208 = vunpack.c.l.b16 %v3866
        %v4209 = vunpack.c.h.b16 %v3866
        %v4210 = vunpack.c.l.b16 %v3867
        %v4211 = vunpack.c.h.b16 %v3867
        %v4212 = vunpack.c.l.b16 %v3868
        %v4213 = vunpack.c.h.b16 %v3868
        %v4214 = vunpack.c.l.b16 %v3869
        %v4215 = vunpack.c.h.b16 %v3869
        %v4216 = vunpack.c.l.b16 %v3870
        %v4217 = vunpack.c.h.b16 %v3870
        %v4218 = vunpack.c.l.b16 %v3871
        %v4219 = vunpack.c.h.b16 %v3871
        %v4220 = vunpack.c.l.b16 %v3872
        %v4221 = vunpack.c.h.b16 %v3872
        %v4222 = vunpack.c.l.b16 %v3873
        %v4223 = vunpack.c.h.b16 %v3873
        %v4224 = vunpack.c.l.b16 %v3874
        %v4225 = vunpack.c.h.b16 %v3874
        %v4226 = vunpack.c.l.b16 %v3875
        %v4227 = vunpack.c.h.b16 %v3875
        %v4228 = vunpack.c.l.b16 %v3876
        %v4229 = vunpack.c.h.b16 %v3876
        %v4230 = vunpack.c.l.b16 %v3877
        %v4231 = vunpack.c.h.b16 %v3877
        %v4232 = vunpack.c.l.b16 %v3878
        %v4233 = vunpack.c.h.b16 %v3878
        %v4234 = vunpack.c.l.b16 %v3879
        %v4235 = vunpack.c.h.b16 %v3879
        %v4236 = vunpack.c.l.b16 %v3880
        %v4237 = vunpack.c.h.b16 %v3880
        %v4238 = vunpack.c.l.b16 %v3881
        %v4239 = vunpack.c.h.b16 %v3881
        %v4240 = vunpack.c.l.b16 %v3882
        %v4241 = vunpack.c.h.b16 %v3882
        %v4242 = vunpack.c.l.b16 %v3883
        %v4243 = vunpack.c.h.b16 %v3883
        %v4244 = vunpack.c.l.b16 %v3884
        %v4245 = vunpack.c.h.b16 %v3884
        %v4246 = vunpack.c.l.b16 %v3885
        %v4247 = vunpack.c.h.b16 %v3885
        %v4248 = vunpack.c.l.b16 %v3886
        %v4249 = vunpack.c.h.b16 %v3886
        %v4250 = vunpack.c.l.b16 %v3887
        %v4251 = vunpack.c.h.b16 %v3887
        %v4252 = vunpack.c.l.b16 %v3888
        %v4253 = vunpack.c.h.b16 %v3888
        %v4254 = vunpack.c.l.b16 %v3889
        %v4255 = vunpack.c.h.b16 %v3889
        %v4256 = vunpack.c.l.b16 %v3890
        %v4257 = vunpack.c.h.b16 %v3890
        %v4258 = vunpack.c.l.b16 %v3891
        %v4259 = vunpack.c.h.b16 %v3891
        %v4260 = vunpack.c.l.b16 %v3892
        %v4261 = vunpack.c.h.b16 %v3892
        %v4262 = vunpack.c.l.b16 %v3893
        %v4263 = vunpack.c.h.b16 %v3893
        %v4264 = vunpack.c.l.b16 %v3894
        %v4265 = vunpack.c.h.b16 %v3894
        %v4266 = vunpack.c.l.b16 %v3895
        %v4267 = vunpack.c.h.b16 %v3895
        %v4268 = vunpack.c.l.b16 %v3896
        %v4269 = vunpack.c.h.b16 %v3896
        %v4270 = vunpack.c.l.b16 %v3897
        %v4271 = vunpack.c.h.b16 %v3897
        %v4272 = vunpack.c.l.b16 %v3898
        %v4273 = vunpack.c.h.b16 %v3898
        %v4274 = vunpack.c.l.b16 %v3899
        %v4275 = vunpack.c.h.b16 %v3899
        %v4276 = vunpack.c.l.b16 %v3900
        %v4277 = vunpack.c.h.b16 %v3900
        %v4278 = vunpack.c.l.b16 %v3901
        %v4279 = vunpack.c.h.b16 %v3901
        %v4280 = vunpack.c.l.b16 %v3902
        %v4281 = vunpack.c.h.b16 %v3902
        %v4282 = vunpack.c.l.b16 %v3903
        %v4283 = vunpack.c.h.b16 %v3903
        %v4284 = vunpack.c.l.b16 %v3904
        %v4285 = vunpack.c.h.b16 %v3904
        %v4286 = vunpack.c.l.b16 %v3905
        %v4287 = vunpack.c.h.b16 %v3905
        %v4288 = vunpack.c.l.b16 %v3906
        %v4289 = vunpack.c.h.b16 %v3906
        %v4290 = vunpack.c.l.b16 %v3907
        %v4291 = vunpack.c.h.b16 %v3907
        %v4292 = vunpack.c.l.b16 %v3908
        %v4293 = vunpack.c.h.b16 %v3908
        %v4294 = vunpack.c.l.b16 %v3909
        %v4295 = vunpack.c.h.b16 %v3909
        %v4296 = vpack.c.b16 %v4048, %v4040
        %v4297 = vpack.c.b16 %v4049, %v4041
        %v4298 = vpack.c.b16 %v4050, %v4042
        %v4299 = vpack.c.b16 %v4051, %v4043
        %v4300 = vpack.c.b16 %v4052, %v4044
        %v4301 = vpack.c.b16 %v4053, %v4045
        %v4302 = vpack.c.b16 %v4054, %v4046
        %v4303 = vpack.c.b16 %v4055, %v4047
        %v4304 = vpack.c.b16 %v4064, %v4056
        %v4305 = vpack.c.b16 %v4065, %v4057
        %v4306 = vpack.c.b16 %v4066, %v4058
        %v4307 = vpack.c.b16 %v4067, %v4059
        %v4308 = vpack.c.b16 %v4068, %v4060
        %v4309 = vpack.c.b16 %v4069, %v4061
        %v4310 = vpack.c.b16 %v4070, %v4062
        %v4311 = vpack.c.b16 %v4071, %v4063
        %v4312 = vpack.c.b16 %v4080, %v4072
        %v4313 = vpack.c.b16 %v4081, %v4073
        %v4314 = vpack.c.b16 %v4082, %v4074
        %v4315 = vpack.c.b16 %v4083, %v4075
        %v4316 = vpack.c.b16 %v4084, %v4076
        %v4317 = vpack.c.b16 %v4085, %v4077
        %v4318 = vpack.c.b16 %v4086, %v4078
        %v4319 = vpack.c.b16 %v4087, %v4079
        %v4320 = vpack.c.b16 %v4096, %v4088
        %v4321 = vpack.c.b16 %v4097, %v4089
        %v4322 = vpack.c.b16 %v4098, %v4090
        %v4323 = vpack.c.b16 %v4099, %v4091
        %v4324 = vpack.c.b16 %v4100, %v4092
        %v4325 = vpack.c.b16 %v4101, %v4093
        %v4326 = vpack.c.b16 %v4102, %v4094
        %v4327 = vpack.c.b16 %v4103, %v4095
        %v4328 = vpack.c.b16 %v4112, %v4104
        %v4329 = vpack.c.b16 %v4113, %v4105
        %v4330 = vpack.c.b16 %v4114, %v4106
        %v4331 = vpack.c.b16 %v4115, %v4107
        %v4332 = vpack.c.b16 %v4116, %v4108
        %v4333 = vpack.c.b16 %v4117, %v4109
        %v4334 = vpack.c.b16 %v4118, %v4110
        %v4335 = vpack.c.b16 %v4119, %v4111
        %v4336 = vpack.c.b16 %v4128, %v4120
        %v4337 = vpack.c.b16 %v4129, %v4121
        %v4338 = vpack.c.b16 %v4130, %v4122
        %v4339 = vpack.c.b16 %v4131, %v4123
        %v4340 = vpack.c.b16 %v4132, %v4124
        %v4341 = vpack.c.b16 %v4133, %v4125
        %v4342 = vpack.c.b16 %v4134, %v4126
        %v4343 = vpack.c.b16 %v4135, %v4127
        %v4344 = vpack.c.b16 %v4144, %v4136
        %v4345 = vpack.c.b16 %v4145, %v4137
        %v4346 = vpack.c.b16 %v4146, %v4138
        %v4347 = vpack.c.b16 %v4147, %v4139
        %v4348 = vpack.c.b16 %v4148, %v4140
        %v4349 = vpack.c.b16 %v4149, %v4141
        %v4350 = vpack.c.b16 %v4150, %v4142
        %v4351 = vpack.c.b16 %v4151, %v4143
        %v4352 = vpack.c.b16 %v4160, %v4152
        %v4353 = vpack.c.b16 %v4161, %v4153
        %v4354 = vpack.c.b16 %v4162, %v4154
        %v4355 = vpack.c.b16 %v4163, %v4155
        %v4356 = vpack.c.b16 %v4164, %v4156
        %v4357 = vpack.c.b16 %v4165, %v4157
        %v4358 = vpack.c.b16 %v4166, %v4158
        %v4359 = vpack.c.b16 %v4167, %v4159
        %v4360 = vpack.c.b16 %v4176, %v4168
        %v4361 = vpack.c.b16 %v4177, %v4169
        %v4362 = vpack.c.b16 %v4178, %v4170
        %v4363 = vpack.c.b16 %v4179, %v4171
        %v4364 = vpack.c.b16 %v4180, %v4172
        %v4365 = vpack.c.b16 %v4181, %v4173
        %v4366 = vpack.c.b16 %v4182, %v4174
        %v4367 = vpack.c.b16 %v4183, %v4175
        %v4368 = vpack.c.b16 %v4192, %v4184
        %v4369 = vpack.c.b16 %v4193, %v4185
        %v4370 = vpack.c.b16 %v4194, %v4186
        %v4371 = vpack.c.b16 %v4195, %v4187
        %v4372 = vpack.c.b16 %v4196, %v4188
        %v4373 = vpack.c.b16 %v4197, %v4189
        %v4374 = vpack.c.b16 %v4198, %v4190
        %v4375 = vpack.c.b16 %v4199, %v4191
        %v4376 = vpack.c.b16 %v4208, %v4200
        %v4377 = vpack.c.b16 %v4209, %v4201
        %v4378 = vpack.c.b16 %v4210, %v4202
        %v4379 = vpack.c.b16 %v4211, %v4203
        %v4380 = vpack.c.b16 %v4212, %v4204
        %v4381 = vpack.c.b16 %v4213, %v4205
        %v4382 = vpack.c.b16 %v4214, %v4206
        %v4383 = vpack.c.b16 %v4215, %v4207
        %v4384 = vpack.c.b16 %v4224, %v4216
        %v4385 = vpack.c.b16 %v4225, %v4217
        %v4386 = vpack.c.b16 %v4226, %v4218
        %v4387 = vpack.c.b16 %v4227, %v4219
        %v4388 = vpack.c.b16 %v4228, %v4220
        %v4389 = vpack.c.b16 %v4229, %v4221
        %v4390 = vpack.c.b16 %v4230, %v4222
        %v4391 = vpack.c.b16 %v4231, %v4223
        %v4392 = vpack.c.b16 %v4240, %v4232
        %v4393 = vpack.c.b16 %v4241, %v4233
        %v4394 = vpack.c.b16 %v4242, %v4234
        %v4395 = vpack.c.b16 %v4243, %v4235
        %v4396 = vpack.c.b16 %v4244, %v4236
        %v4397 = vpack.c.b16 %v4245, %v4237
        %v4398 = vpack.c.b16 %v4246, %v4238
        %v4399 = vpack.c.b16 %v4247, %v4239
        %v4400 = vpack.c.b16 %v4256, %v4248
        %v4401 = vpack.c.b16 %v4257, %v4249
        %v4402 = vpack.c.b16 %v4258, %v4250
        %v4403 = vpack.c.b16 %v4259, %v4251
        %v4404 = vpack.c.b16 %v4260, %v4252
        %v4405 = vpack.c.b16 %v4261, %v4253
        %v4406 = vpack.c.b16 %v4262, %v4254
        %v4407 = vpack.c.b16 %v4263, %v4255
        %v4408 = vpack.c.b16 %v4272, %v4264
        %v4409 = vpack.c.b16 %v4273, %v4265
        %v4410 = vpack.c.b16 %v4274, %v4266
        %v4411 = vpack.c.b16 %v4275, %v4267
        %v4412 = vpack.c.b16 %v4276, %v4268
        %v4413 = vpack.c.b16 %v4277, %v4269
        %v4414 = vpack.c.b16 %v4278, %v4270
        %v4415 = vpack.c.b16 %v4279, %v4271
        %v4416 = vpack.c.b16 %v4288, %v4280
        %v4417 = vpack.c.b16 %v4289, %v4281
        %v4418 = vpack.c.b16 %v4290, %v4282
        %v4419 = vpack.c.b16 %v4291, %v4283
        %v4420 = vpack.c.b16 %v4292, %v4284
        %v4421 = vpack.c.b16 %v4293, %v4285
        %v4422 = vpack.c.b16 %v4294, %v4286
        %v4423 = vpack.c.b16 %v4295, %v4287
        %4552 = vmatpush.bf16.msra.mxu0 %v4352
        %4553 = vmatpush.bf16.msra.mxu0 %v4344
        %4554 = vmatpush.bf16.msra.mxu0 %v4336
        %4555 = vmatpush.bf16.msra.mxu0 %v4328
        %4556 = vmatpush.bf16.msra.mxu0 %v4320
        %4557 = vmatpush.bf16.msra.mxu0 %v4312
        %4558 = vmatpush.bf16.msra.mxu0 %v4304
        %4559 = vmatpush.bf16.msra.mxu0 %v4296
        %4560 = vmatmul.bf16.gmra.mxu0 %v3632
        %v4561 = vpop.f32.mrf.mxu0
        %v4562 = vadd.f32 0.0, %v4561
        %v4563 = vpop.f32.mrf.mxu0
        %v4564 = vadd.f32 0.0, %v4563
        %4565 = vdwg.mxu0
        %4566 = vmatpush.bf16.msra.mxu0 %v4416
        %4567 = vmatpush.bf16.msra.mxu0 %v4408
        %4568 = vmatpush.bf16.msra.mxu0 %v4400
        %4569 = vmatpush.bf16.msra.mxu0 %v4392
        %4570 = vmatpush.bf16.msra.mxu0 %v4384
        %4571 = vmatpush.bf16.msra.mxu0 %v4376
        %4572 = vmatpush.bf16.msra.mxu0 %v4368
        %4573 = vmatpush.bf16.msra.mxu0 %v4360
        %4574 = vmatmul.bf16.gmra.mxu0 %v3633
        %v4575 = vpop.f32.mrf.mxu0
        %v4576 = vadd.f32 %v4562, %v4575
        %v4577 = vpop.f32.mrf.mxu0
        %v4578 = vadd.f32 %v4564, %v4577
        %4579 = vdwg.mxu0
        %4580 = vmatpush.bf16.msra.mxu0 %v4353
        %4581 = vmatpush.bf16.msra.mxu0 %v4345
        %4582 = vmatpush.bf16.msra.mxu0 %v4337
        %4583 = vmatpush.bf16.msra.mxu0 %v4329
        %4584 = vmatpush.bf16.msra.mxu0 %v4321
        %4585 = vmatpush.bf16.msra.mxu0 %v4313
        %4586 = vmatpush.bf16.msra.mxu0 %v4305
        %4587 = vmatpush.bf16.msra.mxu0 %v4297
        %4588 = vmatmul.bf16.gmra.mxu0 %v3632
        %v4589 = vpop.f32.mrf.mxu0
        %v4590 = vadd.f32 0.0, %v4589
        %v4591 = vpop.f32.mrf.mxu0
        %v4592 = vadd.f32 0.0, %v4591
        %4593 = vdwg.mxu0
        %4594 = vmatpush.bf16.msra.mxu0 %v4417
        %4595 = vmatpush.bf16.msra.mxu0 %v4409
        %4596 = vmatpush.bf16.msra.mxu0 %v4401
        %4597 = vmatpush.bf16.msra.mxu0 %v4393
        %4598 = vmatpush.bf16.msra.mxu0 %v4385
        %4599 = vmatpush.bf16.msra.mxu0 %v4377
        %4600 = vmatpush.bf16.msra.mxu0 %v4369
        %4601 = vmatpush.bf16.msra.mxu0 %v4361
        %4602 = vmatmul.bf16.gmra.mxu0 %v3633
        %v4603 = vpop.f32.mrf.mxu0
        %v4604 = vadd.f32 %v4590, %v4603
        %v4605 = vpop.f32.mrf.mxu0
        %v4606 = vadd.f32 %v4592, %v4605
        %4607 = vdwg.mxu0
        %4608 = vmatpush.bf16.msra.mxu0 %v4354
        %4609 = vmatpush.bf16.msra.mxu0 %v4346
        %4610 = vmatpush.bf16.msra.mxu0 %v4338
        %4611 = vmatpush.bf16.msra.mxu0 %v4330
        %4612 = vmatpush.bf16.msra.mxu0 %v4322
        %4613 = vmatpush.bf16.msra.mxu0 %v4314
        %4614 = vmatpush.bf16.msra.mxu0 %v4306
        %4615 = vmatpush.bf16.msra.mxu0 %v4298
        %4616 = vmatmul.bf16.gmra.mxu0 %v3632
        %v4617 = vpop.f32.mrf.mxu0
        %v4618 = vadd.f32 0.0, %v4617
        %v4619 = vpop.f32.mrf.mxu0
        %v4620 = vadd.f32 0.0, %v4619
        %4621 = vdwg.mxu0
        %4622 = vmatpush.bf16.msra.mxu0 %v4418
        %4623 = vmatpush.bf16.msra.mxu0 %v4410
        %4624 = vmatpush.bf16.msra.mxu0 %v4402
        %4625 = vmatpush.bf16.msra.mxu0 %v4394
        %4626 = vmatpush.bf16.msra.mxu0 %v4386
        %4627 = vmatpush.bf16.msra.mxu0 %v4378
        %4628 = vmatpush.bf16.msra.mxu0 %v4370
        %4629 = vmatpush.bf16.msra.mxu0 %v4362
        %4630 = vmatmul.bf16.gmra.mxu0 %v3633
        %v4631 = vpop.f32.mrf.mxu0
        %v4632 = vadd.f32 %v4618, %v4631
        %v4633 = vpop.f32.mrf.mxu0
        %v4634 = vadd.f32 %v4620, %v4633
        %4635 = vdwg.mxu0
        %4636 = vmatpush.bf16.msra.mxu0 %v4355
        %4637 = vmatpush.bf16.msra.mxu0 %v4347
        %4638 = vmatpush.bf16.msra.mxu0 %v4339
        %4639 = vmatpush.bf16.msra.mxu0 %v4331
        %4640 = vmatpush.bf16.msra.mxu0 %v4323
        %4641 = vmatpush.bf16.msra.mxu0 %v4315
        %4642 = vmatpush.bf16.msra.mxu0 %v4307
        %4643 = vmatpush.bf16.msra.mxu0 %v4299
        %4644 = vmatmul.bf16.gmra.mxu0 %v3632
        %v4645 = vpop.f32.mrf.mxu0
        %v4646 = vadd.f32 0.0, %v4645
        %v4647 = vpop.f32.mrf.mxu0
        %v4648 = vadd.f32 0.0, %v4647
        %4649 = vdwg.mxu0
        %4650 = vmatpush.bf16.msra.mxu0 %v4419
        %4651 = vmatpush.bf16.msra.mxu0 %v4411
        %4652 = vmatpush.bf16.msra.mxu0 %v4403
        %4653 = vmatpush.bf16.msra.mxu0 %v4395
        %4654 = vmatpush.bf16.msra.mxu0 %v4387
        %4655 = vmatpush.bf16.msra.mxu0 %v4379
        %4656 = vmatpush.bf16.msra.mxu0 %v4371
        %4657 = vmatpush.bf16.msra.mxu0 %v4363
        %4658 = vmatmul.bf16.gmra.mxu0 %v3633
        %v4659 = vpop.f32.mrf.mxu0
        %v4660 = vadd.f32 %v4646, %v4659
        %v4661 = vpop.f32.mrf.mxu0
        %v4662 = vadd.f32 %v4648, %v4661
        %4663 = vdwg.mxu0
        %4664 = vmatpush.bf16.msra.mxu0 %v4356
        %4665 = vmatpush.bf16.msra.mxu0 %v4348
        %4666 = vmatpush.bf16.msra.mxu0 %v4340
        %4667 = vmatpush.bf16.msra.mxu0 %v4332
        %4668 = vmatpush.bf16.msra.mxu0 %v4324
        %4669 = vmatpush.bf16.msra.mxu0 %v4316
        %4670 = vmatpush.bf16.msra.mxu0 %v4308
        %4671 = vmatpush.bf16.msra.mxu0 %v4300
        %4672 = vmatmul.bf16.gmra.mxu0 %v3632
        %v4673 = vpop.f32.mrf.mxu0
        %v4674 = vadd.f32 0.0, %v4673
        %v4675 = vpop.f32.mrf.mxu0
        %v4676 = vadd.f32 0.0, %v4675
        %4677 = vdwg.mxu0
        %4678 = vmatpush.bf16.msra.mxu0 %v4420
        %4679 = vmatpush.bf16.msra.mxu0 %v4412
        %4680 = vmatpush.bf16.msra.mxu0 %v4404
        %4681 = vmatpush.bf16.msra.mxu0 %v4396
        %4682 = vmatpush.bf16.msra.mxu0 %v4388
        %4683 = vmatpush.bf16.msra.mxu0 %v4380
        %4684 = vmatpush.bf16.msra.mxu0 %v4372
        %4685 = vmatpush.bf16.msra.mxu0 %v4364
        %4686 = vmatmul.bf16.gmra.mxu0 %v3633
        %v4687 = vpop.f32.mrf.mxu0
        %v4688 = vadd.f32 %v4674, %v4687
        %v4689 = vpop.f32.mrf.mxu0
        %v4690 = vadd.f32 %v4676, %v4689
        %4691 = vdwg.mxu0
        %4692 = vmatpush.bf16.msra.mxu0 %v4357
        %4693 = vmatpush.bf16.msra.mxu0 %v4349
        %4694 = vmatpush.bf16.msra.mxu0 %v4341
        %4695 = vmatpush.bf16.msra.mxu0 %v4333
        %4696 = vmatpush.bf16.msra.mxu0 %v4325
        %4697 = vmatpush.bf16.msra.mxu0 %v4317
        %4698 = vmatpush.bf16.msra.mxu0 %v4309
        %4699 = vmatpush.bf16.msra.mxu0 %v4301
        %4700 = vmatmul.bf16.gmra.mxu0 %v3632
        %v4701 = vpop.f32.mrf.mxu0
        %v4702 = vadd.f32 0.0, %v4701
        %v4703 = vpop.f32.mrf.mxu0
        %v4704 = vadd.f32 0.0, %v4703
        %4705 = vdwg.mxu0
        %4706 = vmatpush.bf16.msra.mxu0 %v4421
        %4707 = vmatpush.bf16.msra.mxu0 %v4413
        %4708 = vmatpush.bf16.msra.mxu0 %v4405
        %4709 = vmatpush.bf16.msra.mxu0 %v4397
        %4710 = vmatpush.bf16.msra.mxu0 %v4389
        %4711 = vmatpush.bf16.msra.mxu0 %v4381
        %4712 = vmatpush.bf16.msra.mxu0 %v4373
        %4713 = vmatpush.bf16.msra.mxu0 %v4365
        %4714 = vmatmul.bf16.gmra.mxu0 %v3633
        %v4715 = vpop.f32.mrf.mxu0
        %v4716 = vadd.f32 %v4702, %v4715
        %v4717 = vpop.f32.mrf.mxu0
        %v4718 = vadd.f32 %v4704, %v4717
        %4719 = vdwg.mxu0
        %4720 = vmatpush.bf16.msra.mxu0 %v4358
        %4721 = vmatpush.bf16.msra.mxu0 %v4350
        %4722 = vmatpush.bf16.msra.mxu0 %v4342
        %4723 = vmatpush.bf16.msra.mxu0 %v4334
        %4724 = vmatpush.bf16.msra.mxu0 %v4326
        %4725 = vmatpush.bf16.msra.mxu0 %v4318
        %4726 = vmatpush.bf16.msra.mxu0 %v4310
        %4727 = vmatpush.bf16.msra.mxu0 %v4302
        %4728 = vmatmul.bf16.gmra.mxu0 %v3632
        %v4729 = vpop.f32.mrf.mxu0
        %v4730 = vadd.f32 0.0, %v4729
        %v4731 = vpop.f32.mrf.mxu0
        %v4732 = vadd.f32 0.0, %v4731
        %4733 = vdwg.mxu0
        %4734 = vmatpush.bf16.msra.mxu0 %v4422
        %4735 = vmatpush.bf16.msra.mxu0 %v4414
        %4736 = vmatpush.bf16.msra.mxu0 %v4406
        %4737 = vmatpush.bf16.msra.mxu0 %v4398
        %4738 = vmatpush.bf16.msra.mxu0 %v4390
        %4739 = vmatpush.bf16.msra.mxu0 %v4382
        %4740 = vmatpush.bf16.msra.mxu0 %v4374
        %4741 = vmatpush.bf16.msra.mxu0 %v4366
        %4742 = vmatmul.bf16.gmra.mxu0 %v3633
        %v4743 = vpop.f32.mrf.mxu0
        %v4744 = vadd.f32 %v4730, %v4743
        %v4745 = vpop.f32.mrf.mxu0
        %v4746 = vadd.f32 %v4732, %v4745
        %4747 = vdwg.mxu0
        %4748 = vmatpush.bf16.msra.mxu0 %v4359
        %4749 = vmatpush.bf16.msra.mxu0 %v4351
        %4750 = vmatpush.bf16.msra.mxu0 %v4343
        %4751 = vmatpush.bf16.msra.mxu0 %v4335
        %4752 = vmatpush.bf16.msra.mxu0 %v4327
        %4753 = vmatpush.bf16.msra.mxu0 %v4319
        %4754 = vmatpush.bf16.msra.mxu0 %v4311
        %4755 = vmatpush.bf16.msra.mxu0 %v4303
        %4756 = vmatmul.bf16.gmra.mxu0 %v3632
        %v4757 = vpop.f32.mrf.mxu0
        %v4758 = vadd.f32 0.0, %v4757
        %v4759 = vpop.f32.mrf.mxu0
        %v4760 = vadd.f32 0.0, %v4759
        %4761 = vdwg.mxu0
        %4762 = vmatpush.bf16.msra.mxu0 %v4423
        %4763 = vmatpush.bf16.msra.mxu0 %v4415
        %4764 = vmatpush.bf16.msra.mxu0 %v4407
        %4765 = vmatpush.bf16.msra.mxu0 %v4399
        %4766 = vmatpush.bf16.msra.mxu0 %v4391
        %4767 = vmatpush.bf16.msra.mxu0 %v4383
        %4768 = vmatpush.bf16.msra.mxu0 %v4375
        %4769 = vmatpush.bf16.msra.mxu0 %v4367
        %4770 = vmatmul.bf16.gmra.mxu0 %v3633
        %v4771 = vpop.f32.mrf.mxu0
        %v4772 = vadd.f32 %v4758, %v4771
        %v4773 = vpop.f32.mrf.mxu0
        %v4774 = vadd.f32 %v4760, %v4773
        %4775 = vdwg.mxu0
        %v4904 = vunpack.c.l.b16 %v3654
        %v4905 = vunpack.c.h.b16 %v3654
        %v4906 = vunpack.c.l.b16 %v3655
        %v4907 = vunpack.c.h.b16 %v3655
        %v4908 = vunpack.c.l.b16 %v3656
        %v4909 = vunpack.c.h.b16 %v3656
        %v4910 = vunpack.c.l.b16 %v3657
        %v4911 = vunpack.c.h.b16 %v3657
        %v4912 = vunpack.c.l.b16 %v3658
        %v4913 = vunpack.c.h.b16 %v3658
        %v4914 = vunpack.c.l.b16 %v3659
        %v4915 = vunpack.c.h.b16 %v3659
        %v4916 = vunpack.c.l.b16 %v3660
        %v4917 = vunpack.c.h.b16 %v3660
        %v4918 = vunpack.c.l.b16 %v3661
        %v4919 = vunpack.c.h.b16 %v3661
        %v4920 = vunpack.c.l.b16 %v3662
        %v4921 = vunpack.c.h.b16 %v3662
        %v4922 = vunpack.c.l.b16 %v3663
        %v4923 = vunpack.c.h.b16 %v3663
        %v4924 = vunpack.c.l.b16 %v3664
        %v4925 = vunpack.c.h.b16 %v3664
        %v4926 = vunpack.c.l.b16 %v3665
        %v4927 = vunpack.c.h.b16 %v3665
        %v4928 = vunpack.c.l.b16 %v3666
        %v4929 = vunpack.c.h.b16 %v3666
        %v4930 = vunpack.c.l.b16 %v3667
        %v4931 = vunpack.c.h.b16 %v3667
        %v4932 = vunpack.c.l.b16 %v3668
        %v4933 = vunpack.c.h.b16 %v3668
        %v4934 = vunpack.c.l.b16 %v3669
        %v4935 = vunpack.c.h.b16 %v3669
        %v4936 = vunpack.c.l.b16 %v3670
        %v4937 = vunpack.c.h.b16 %v3670
        %v4938 = vunpack.c.l.b16 %v3671
        %v4939 = vunpack.c.h.b16 %v3671
        %v4940 = vunpack.c.l.b16 %v3672
        %v4941 = vunpack.c.h.b16 %v3672
        %v4942 = vunpack.c.l.b16 %v3673
        %v4943 = vunpack.c.h.b16 %v3673
        %v4944 = vunpack.c.l.b16 %v3674
        %v4945 = vunpack.c.h.b16 %v3674
        %v4946 = vunpack.c.l.b16 %v3675
        %v4947 = vunpack.c.h.b16 %v3675
        %v4948 = vunpack.c.l.b16 %v3676
        %v4949 = vunpack.c.h.b16 %v3676
        %v4950 = vunpack.c.l.b16 %v3677
        %v4951 = vunpack.c.h.b16 %v3677
        %v4952 = vunpack.c.l.b16 %v3678
        %v4953 = vunpack.c.h.b16 %v3678
        %v4954 = vunpack.c.l.b16 %v3679
        %v4955 = vunpack.c.h.b16 %v3679
        %v4956 = vunpack.c.l.b16 %v3680
        %v4957 = vunpack.c.h.b16 %v3680
        %v4958 = vunpack.c.l.b16 %v3681
        %v4959 = vunpack.c.h.b16 %v3681
        %v4960 = vunpack.c.l.b16 %v3682
        %v4961 = vunpack.c.h.b16 %v3682
        %v4962 = vunpack.c.l.b16 %v3683
        %v4963 = vunpack.c.h.b16 %v3683
        %v4964 = vunpack.c.l.b16 %v3684
        %v4965 = vunpack.c.h.b16 %v3684
        %v4966 = vunpack.c.l.b16 %v3685
        %v4967 = vunpack.c.h.b16 %v3685
        %v4968 = vunpack.c.l.b16 %v3686
        %v4969 = vunpack.c.h.b16 %v3686
        %v4970 = vunpack.c.l.b16 %v3687
        %v4971 = vunpack.c.h.b16 %v3687
        %v4972 = vunpack.c.l.b16 %v3688
        %v4973 = vunpack.c.h.b16 %v3688
        %v4974 = vunpack.c.l.b16 %v3689
        %v4975 = vunpack.c.h.b16 %v3689
        %v4976 = vunpack.c.l.b16 %v3690
        %v4977 = vunpack.c.h.b16 %v3690
        %v4978 = vunpack.c.l.b16 %v3691
        %v4979 = vunpack.c.h.b16 %v3691
        %v4980 = vunpack.c.l.b16 %v3692
        %v4981 = vunpack.c.h.b16 %v3692
        %v4982 = vunpack.c.l.b16 %v3693
        %v4983 = vunpack.c.h.b16 %v3693
        %v4984 = vunpack.c.l.b16 %v3694
        %v4985 = vunpack.c.h.b16 %v3694
        %v4986 = vunpack.c.l.b16 %v3695
        %v4987 = vunpack.c.h.b16 %v3695
        %v4988 = vunpack.c.l.b16 %v3696
        %v4989 = vunpack.c.h.b16 %v3696
        %v4990 = vunpack.c.l.b16 %v3697
        %v4991 = vunpack.c.h.b16 %v3697
        %v4992 = vunpack.c.l.b16 %v3698
        %v4993 = vunpack.c.h.b16 %v3698
        %v4994 = vunpack.c.l.b16 %v3699
        %v4995 = vunpack.c.h.b16 %v3699
        %v4996 = vunpack.c.l.b16 %v3700
        %v4997 = vunpack.c.h.b16 %v3700
        %v4998 = vunpack.c.l.b16 %v3701
        %v4999 = vunpack.c.h.b16 %v3701
        %v5000 = vunpack.c.l.b16 %v3702
        %v5001 = vunpack.c.h.b16 %v3702
        %v5002 = vunpack.c.l.b16 %v3703
        %v5003 = vunpack.c.h.b16 %v3703
        %v5004 = vunpack.c.l.b16 %v3704
        %v5005 = vunpack.c.h.b16 %v3704
        %v5006 = vunpack.c.l.b16 %v3705
        %v5007 = vunpack.c.h.b16 %v3705
        %v5008 = vunpack.c.l.b16 %v3706
        %v5009 = vunpack.c.h.b16 %v3706
        %v5010 = vunpack.c.l.b16 %v3707
        %v5011 = vunpack.c.h.b16 %v3707
        %v5012 = vunpack.c.l.b16 %v3708
        %v5013 = vunpack.c.h.b16 %v3708
        %v5014 = vunpack.c.l.b16 %v3709
        %v5015 = vunpack.c.h.b16 %v3709
        %v5016 = vunpack.c.l.b16 %v3710
        %v5017 = vunpack.c.h.b16 %v3710
        %v5018 = vunpack.c.l.b16 %v3711
        %v5019 = vunpack.c.h.b16 %v3711
        %v5020 = vunpack.c.l.b16 %v3712
        %v5021 = vunpack.c.h.b16 %v3712
        %v5022 = vunpack.c.l.b16 %v3713
        %v5023 = vunpack.c.h.b16 %v3713
        %v5024 = vunpack.c.l.b16 %v3714
        %v5025 = vunpack.c.h.b16 %v3714
        %v5026 = vunpack.c.l.b16 %v3715
        %v5027 = vunpack.c.h.b16 %v3715
        %v5028 = vunpack.c.l.b16 %v3716
        %v5029 = vunpack.c.h.b16 %v3716
        %v5030 = vunpack.c.l.b16 %v3717
        %v5031 = vunpack.c.h.b16 %v3717
        %v5032 = vunpack.c.l.b16 %v3718
        %v5033 = vunpack.c.h.b16 %v3718
        %v5034 = vunpack.c.l.b16 %v3719
        %v5035 = vunpack.c.h.b16 %v3719
        %v5036 = vunpack.c.l.b16 %v3720
        %v5037 = vunpack.c.h.b16 %v3720
        %v5038 = vunpack.c.l.b16 %v3721
        %v5039 = vunpack.c.h.b16 %v3721
        %v5040 = vunpack.c.l.b16 %v3722
        %v5041 = vunpack.c.h.b16 %v3722
        %v5042 = vunpack.c.l.b16 %v3723
        %v5043 = vunpack.c.h.b16 %v3723
        %v5044 = vunpack.c.l.b16 %v3724
        %v5045 = vunpack.c.h.b16 %v3724
        %v5046 = vunpack.c.l.b16 %v3725
        %v5047 = vunpack.c.h.b16 %v3725
        %v5048 = vunpack.c.l.b16 %v3726
        %v5049 = vunpack.c.h.b16 %v3726
        %v5050 = vunpack.c.l.b16 %v3727
        %v5051 = vunpack.c.h.b16 %v3727
        %v5052 = vunpack.c.l.b16 %v3728
        %v5053 = vunpack.c.h.b16 %v3728
        %v5054 = vunpack.c.l.b16 %v3729
        %v5055 = vunpack.c.h.b16 %v3729
        %v5056 = vunpack.c.l.b16 %v3730
        %v5057 = vunpack.c.h.b16 %v3730
        %v5058 = vunpack.c.l.b16 %v3731
        %v5059 = vunpack.c.h.b16 %v3731
        %v5060 = vunpack.c.l.b16 %v3732
        %v5061 = vunpack.c.h.b16 %v3732
        %v5062 = vunpack.c.l.b16 %v3733
        %v5063 = vunpack.c.h.b16 %v3733
        %v5064 = vunpack.c.l.b16 %v3734
        %v5065 = vunpack.c.h.b16 %v3734
        %v5066 = vunpack.c.l.b16 %v3735
        %v5067 = vunpack.c.h.b16 %v3735
        %v5068 = vunpack.c.l.b16 %v3736
        %v5069 = vunpack.c.h.b16 %v3736
        %v5070 = vunpack.c.l.b16 %v3737
        %v5071 = vunpack.c.h.b16 %v3737
        %v5072 = vunpack.c.l.b16 %v3738
        %v5073 = vunpack.c.h.b16 %v3738
        %v5074 = vunpack.c.l.b16 %v3739
        %v5075 = vunpack.c.h.b16 %v3739
        %v5076 = vunpack.c.l.b16 %v3740
        %v5077 = vunpack.c.h.b16 %v3740
        %v5078 = vunpack.c.l.b16 %v3741
        %v5079 = vunpack.c.h.b16 %v3741
        %v5080 = vunpack.c.l.b16 %v3742
        %v5081 = vunpack.c.h.b16 %v3742
        %v5082 = vunpack.c.l.b16 %v3743
        %v5083 = vunpack.c.h.b16 %v3743
        %v5084 = vunpack.c.l.b16 %v3744
        %v5085 = vunpack.c.h.b16 %v3744
        %v5086 = vunpack.c.l.b16 %v3745
        %v5087 = vunpack.c.h.b16 %v3745
        %v5088 = vunpack.c.l.b16 %v3746
        %v5089 = vunpack.c.h.b16 %v3746
        %v5090 = vunpack.c.l.b16 %v3747
        %v5091 = vunpack.c.h.b16 %v3747
        %v5092 = vunpack.c.l.b16 %v3748
        %v5093 = vunpack.c.h.b16 %v3748
        %v5094 = vunpack.c.l.b16 %v3749
        %v5095 = vunpack.c.h.b16 %v3749
        %v5096 = vunpack.c.l.b16 %v3750
        %v5097 = vunpack.c.h.b16 %v3750
        %v5098 = vunpack.c.l.b16 %v3751
        %v5099 = vunpack.c.h.b16 %v3751
        %v5100 = vunpack.c.l.b16 %v3752
        %v5101 = vunpack.c.h.b16 %v3752
        %v5102 = vunpack.c.l.b16 %v3753
        %v5103 = vunpack.c.h.b16 %v3753
        %v5104 = vunpack.c.l.b16 %v3754
        %v5105 = vunpack.c.h.b16 %v3754
        %v5106 = vunpack.c.l.b16 %v3755
        %v5107 = vunpack.c.h.b16 %v3755
        %v5108 = vunpack.c.l.b16 %v3756
        %v5109 = vunpack.c.h.b16 %v3756
        %v5110 = vunpack.c.l.b16 %v3757
        %v5111 = vunpack.c.h.b16 %v3757
        %v5112 = vunpack.c.l.b16 %v3758
        %v5113 = vunpack.c.h.b16 %v3758
        %v5114 = vunpack.c.l.b16 %v3759
        %v5115 = vunpack.c.h.b16 %v3759
        %v5116 = vunpack.c.l.b16 %v3760
        %v5117 = vunpack.c.h.b16 %v3760
        %v5118 = vunpack.c.l.b16 %v3761
        %v5119 = vunpack.c.h.b16 %v3761
        %v5120 = vunpack.c.l.b16 %v3762
        %v5121 = vunpack.c.h.b16 %v3762
        %v5122 = vunpack.c.l.b16 %v3763
        %v5123 = vunpack.c.h.b16 %v3763
        %v5124 = vunpack.c.l.b16 %v3764
        %v5125 = vunpack.c.h.b16 %v3764
        %v5126 = vunpack.c.l.b16 %v3765
        %v5127 = vunpack.c.h.b16 %v3765
        %v5128 = vunpack.c.l.b16 %v3766
        %v5129 = vunpack.c.h.b16 %v3766
        %v5130 = vunpack.c.l.b16 %v3767
        %v5131 = vunpack.c.h.b16 %v3767
        %v5132 = vunpack.c.l.b16 %v3768
        %v5133 = vunpack.c.h.b16 %v3768
        %v5134 = vunpack.c.l.b16 %v3769
        %v5135 = vunpack.c.h.b16 %v3769
        %v5136 = vunpack.c.l.b16 %v3770
        %v5137 = vunpack.c.h.b16 %v3770
        %v5138 = vunpack.c.l.b16 %v3771
        %v5139 = vunpack.c.h.b16 %v3771
        %v5140 = vunpack.c.l.b16 %v3772
        %v5141 = vunpack.c.h.b16 %v3772
        %v5142 = vunpack.c.l.b16 %v3773
        %v5143 = vunpack.c.h.b16 %v3773
        %v5144 = vunpack.c.l.b16 %v3774
        %v5145 = vunpack.c.h.b16 %v3774
        %v5146 = vunpack.c.l.b16 %v3775
        %v5147 = vunpack.c.h.b16 %v3775
        %v5148 = vunpack.c.l.b16 %v3776
        %v5149 = vunpack.c.h.b16 %v3776
        %v5150 = vunpack.c.l.b16 %v3777
        %v5151 = vunpack.c.h.b16 %v3777
        %v5152 = vunpack.c.l.b16 %v3778
        %v5153 = vunpack.c.h.b16 %v3778
        %v5154 = vunpack.c.l.b16 %v3779
        %v5155 = vunpack.c.h.b16 %v3779
        %v5156 = vunpack.c.l.b16 %v3780
        %v5157 = vunpack.c.h.b16 %v3780
        %v5158 = vunpack.c.l.b16 %v3781
        %v5159 = vunpack.c.h.b16 %v3781
        %v5160 = vpack.c.b16 %v4912, %v4904
        %v5161 = vpack.c.b16 %v4913, %v4905
        %v5162 = vpack.c.b16 %v4914, %v4906
        %v5163 = vpack.c.b16 %v4915, %v4907
        %v5164 = vpack.c.b16 %v4916, %v4908
        %v5165 = vpack.c.b16 %v4917, %v4909
        %v5166 = vpack.c.b16 %v4918, %v4910
        %v5167 = vpack.c.b16 %v4919, %v4911
        %v5168 = vpack.c.b16 %v4928, %v4920
        %v5169 = vpack.c.b16 %v4929, %v4921
        %v5170 = vpack.c.b16 %v4930, %v4922
        %v5171 = vpack.c.b16 %v4931, %v4923
        %v5172 = vpack.c.b16 %v4932, %v4924
        %v5173 = vpack.c.b16 %v4933, %v4925
        %v5174 = vpack.c.b16 %v4934, %v4926
        %v5175 = vpack.c.b16 %v4935, %v4927
        %v5176 = vpack.c.b16 %v4944, %v4936
        %v5177 = vpack.c.b16 %v4945, %v4937
        %v5178 = vpack.c.b16 %v4946, %v4938
        %v5179 = vpack.c.b16 %v4947, %v4939
        %v5180 = vpack.c.b16 %v4948, %v4940
        %v5181 = vpack.c.b16 %v4949, %v4941
        %v5182 = vpack.c.b16 %v4950, %v4942
        %v5183 = vpack.c.b16 %v4951, %v4943
        %v5184 = vpack.c.b16 %v4960, %v4952
        %v5185 = vpack.c.b16 %v4961, %v4953
        %v5186 = vpack.c.b16 %v4962, %v4954
        %v5187 = vpack.c.b16 %v4963, %v4955
        %v5188 = vpack.c.b16 %v4964, %v4956
        %v5189 = vpack.c.b16 %v4965, %v4957
        %v5190 = vpack.c.b16 %v4966, %v4958
        %v5191 = vpack.c.b16 %v4967, %v4959
        %v5192 = vpack.c.b16 %v4976, %v4968
        %v5193 = vpack.c.b16 %v4977, %v4969
        %v5194 = vpack.c.b16 %v4978, %v4970
        %v5195 = vpack.c.b16 %v4979, %v4971
        %v5196 = vpack.c.b16 %v4980, %v4972
        %v5197 = vpack.c.b16 %v4981, %v4973
        %v5198 = vpack.c.b16 %v4982, %v4974
        %v5199 = vpack.c.b16 %v4983, %v4975
        %v5200 = vpack.c.b16 %v4992, %v4984
        %v5201 = vpack.c.b16 %v4993, %v4985
        %v5202 = vpack.c.b16 %v4994, %v4986
        %v5203 = vpack.c.b16 %v4995, %v4987
        %v5204 = vpack.c.b16 %v4996, %v4988
        %v5205 = vpack.c.b16 %v4997, %v4989
        %v5206 = vpack.c.b16 %v4998, %v4990
        %v5207 = vpack.c.b16 %v4999, %v4991
        %v5208 = vpack.c.b16 %v5008, %v5000
        %v5209 = vpack.c.b16 %v5009, %v5001
        %v5210 = vpack.c.b16 %v5010, %v5002
        %v5211 = vpack.c.b16 %v5011, %v5003
        %v5212 = vpack.c.b16 %v5012, %v5004
        %v5213 = vpack.c.b16 %v5013, %v5005
        %v5214 = vpack.c.b16 %v5014, %v5006
        %v5215 = vpack.c.b16 %v5015, %v5007
        %v5216 = vpack.c.b16 %v5024, %v5016
        %v5217 = vpack.c.b16 %v5025, %v5017
        %v5218 = vpack.c.b16 %v5026, %v5018
        %v5219 = vpack.c.b16 %v5027, %v5019
        %v5220 = vpack.c.b16 %v5028, %v5020
        %v5221 = vpack.c.b16 %v5029, %v5021
        %v5222 = vpack.c.b16 %v5030, %v5022
        %v5223 = vpack.c.b16 %v5031, %v5023
        %v5224 = vpack.c.b16 %v5040, %v5032
        %v5225 = vpack.c.b16 %v5041, %v5033
        %v5226 = vpack.c.b16 %v5042, %v5034
        %v5227 = vpack.c.b16 %v5043, %v5035
        %v5228 = vpack.c.b16 %v5044, %v5036
        %v5229 = vpack.c.b16 %v5045, %v5037
        %v5230 = vpack.c.b16 %v5046, %v5038
        %v5231 = vpack.c.b16 %v5047, %v5039
        %v5232 = vpack.c.b16 %v5056, %v5048
        %v5233 = vpack.c.b16 %v5057, %v5049
        %v5234 = vpack.c.b16 %v5058, %v5050
        %v5235 = vpack.c.b16 %v5059, %v5051
        %v5236 = vpack.c.b16 %v5060, %v5052
        %v5237 = vpack.c.b16 %v5061, %v5053
        %v5238 = vpack.c.b16 %v5062, %v5054
        %v5239 = vpack.c.b16 %v5063, %v5055
        %v5240 = vpack.c.b16 %v5072, %v5064
        %v5241 = vpack.c.b16 %v5073, %v5065
        %v5242 = vpack.c.b16 %v5074, %v5066
        %v5243 = vpack.c.b16 %v5075, %v5067
        %v5244 = vpack.c.b16 %v5076, %v5068
        %v5245 = vpack.c.b16 %v5077, %v5069
        %v5246 = vpack.c.b16 %v5078, %v5070
        %v5247 = vpack.c.b16 %v5079, %v5071
        %v5248 = vpack.c.b16 %v5088, %v5080
        %v5249 = vpack.c.b16 %v5089, %v5081
        %v5250 = vpack.c.b16 %v5090, %v5082
        %v5251 = vpack.c.b16 %v5091, %v5083
        %v5252 = vpack.c.b16 %v5092, %v5084
        %v5253 = vpack.c.b16 %v5093, %v5085
        %v5254 = vpack.c.b16 %v5094, %v5086
        %v5255 = vpack.c.b16 %v5095, %v5087
        %v5256 = vpack.c.b16 %v5104, %v5096
        %v5257 = vpack.c.b16 %v5105, %v5097
        %v5258 = vpack.c.b16 %v5106, %v5098
        %v5259 = vpack.c.b16 %v5107, %v5099
        %v5260 = vpack.c.b16 %v5108, %v5100
        %v5261 = vpack.c.b16 %v5109, %v5101
        %v5262 = vpack.c.b16 %v5110, %v5102
        %v5263 = vpack.c.b16 %v5111, %v5103
        %v5264 = vpack.c.b16 %v5120, %v5112
        %v5265 = vpack.c.b16 %v5121, %v5113
        %v5266 = vpack.c.b16 %v5122, %v5114
        %v5267 = vpack.c.b16 %v5123, %v5115
        %v5268 = vpack.c.b16 %v5124, %v5116
        %v5269 = vpack.c.b16 %v5125, %v5117
        %v5270 = vpack.c.b16 %v5126, %v5118
        %v5271 = vpack.c.b16 %v5127, %v5119
        %v5272 = vpack.c.b16 %v5136, %v5128
        %v5273 = vpack.c.b16 %v5137, %v5129
        %v5274 = vpack.c.b16 %v5138, %v5130
        %v5275 = vpack.c.b16 %v5139, %v5131
        %v5276 = vpack.c.b16 %v5140, %v5132
        %v5277 = vpack.c.b16 %v5141, %v5133
        %v5278 = vpack.c.b16 %v5142, %v5134
        %v5279 = vpack.c.b16 %v5143, %v5135
        %v5280 = vpack.c.b16 %v5152, %v5144
        %v5281 = vpack.c.b16 %v5153, %v5145
        %v5282 = vpack.c.b16 %v5154, %v5146
        %v5283 = vpack.c.b16 %v5155, %v5147
        %v5284 = vpack.c.b16 %v5156, %v5148
        %v5285 = vpack.c.b16 %v5157, %v5149
        %v5286 = vpack.c.b16 %v5158, %v5150
        %v5287 = vpack.c.b16 %v5159, %v5151
        %5416 = vmatpush.bf16.msra.mxu0 %v5216
        %5417 = vmatpush.bf16.msra.mxu0 %v5208
        %5418 = vmatpush.bf16.msra.mxu0 %v5200
        %5419 = vmatpush.bf16.msra.mxu0 %v5192
        %5420 = vmatpush.bf16.msra.mxu0 %v5184
        %5421 = vmatpush.bf16.msra.mxu0 %v5176
        %5422 = vmatpush.bf16.msra.mxu0 %v5168
        %5423 = vmatpush.bf16.msra.mxu0 %v5160
        %5424 = vmatmul.bf16.gmra.mxu0 %v3624
        %v5425 = vpop.f32.mrf.mxu0
        %v5426 = vadd.f32 %v4576, %v5425
        %v5427 = vpop.f32.mrf.mxu0
        %v5428 = vadd.f32 %v4578, %v5427
        %5429 = vdwg.mxu0
        %5430 = vmatpush.bf16.msra.mxu0 %v5280
        %5431 = vmatpush.bf16.msra.mxu0 %v5272
        %5432 = vmatpush.bf16.msra.mxu0 %v5264
        %5433 = vmatpush.bf16.msra.mxu0 %v5256
        %5434 = vmatpush.bf16.msra.mxu0 %v5248
        %5435 = vmatpush.bf16.msra.mxu0 %v5240
        %5436 = vmatpush.bf16.msra.mxu0 %v5232
        %5437 = vmatpush.bf16.msra.mxu0 %v5224
        %5438 = vmatmul.bf16.gmra.mxu0 %v3625
        %v5439 = vpop.f32.mrf.mxu0
        %v5440 = vadd.f32 %v5426, %v5439
        %v5441 = vpop.f32.mrf.mxu0
        %v5442 = vadd.f32 %v5428, %v5441
        %5443 = vdwg.mxu0
        %5444 = vmatpush.bf16.msra.mxu0 %v5217
        %5445 = vmatpush.bf16.msra.mxu0 %v5209
        %5446 = vmatpush.bf16.msra.mxu0 %v5201
        %5447 = vmatpush.bf16.msra.mxu0 %v5193
        %5448 = vmatpush.bf16.msra.mxu0 %v5185
        %5449 = vmatpush.bf16.msra.mxu0 %v5177
        %5450 = vmatpush.bf16.msra.mxu0 %v5169
        %5451 = vmatpush.bf16.msra.mxu0 %v5161
        %5452 = vmatmul.bf16.gmra.mxu0 %v3624
        %v5453 = vpop.f32.mrf.mxu0
        %v5454 = vadd.f32 %v4604, %v5453
        %v5455 = vpop.f32.mrf.mxu0
        %v5456 = vadd.f32 %v4606, %v5455
        %5457 = vdwg.mxu0
        %5458 = vmatpush.bf16.msra.mxu0 %v5281
        %5459 = vmatpush.bf16.msra.mxu0 %v5273
        %5460 = vmatpush.bf16.msra.mxu0 %v5265
        %5461 = vmatpush.bf16.msra.mxu0 %v5257
        %5462 = vmatpush.bf16.msra.mxu0 %v5249
        %5463 = vmatpush.bf16.msra.mxu0 %v5241
        %5464 = vmatpush.bf16.msra.mxu0 %v5233
        %5465 = vmatpush.bf16.msra.mxu0 %v5225
        %5466 = vmatmul.bf16.gmra.mxu0 %v3625
        %v5467 = vpop.f32.mrf.mxu0
        %v5468 = vadd.f32 %v5454, %v5467
        %v5469 = vpop.f32.mrf.mxu0
        %v5470 = vadd.f32 %v5456, %v5469
        %5471 = vdwg.mxu0
        %5472 = vmatpush.bf16.msra.mxu0 %v5218
        %5473 = vmatpush.bf16.msra.mxu0 %v5210
        %5474 = vmatpush.bf16.msra.mxu0 %v5202
        %5475 = vmatpush.bf16.msra.mxu0 %v5194
        %5476 = vmatpush.bf16.msra.mxu0 %v5186
        %5477 = vmatpush.bf16.msra.mxu0 %v5178
        %5478 = vmatpush.bf16.msra.mxu0 %v5170
        %5479 = vmatpush.bf16.msra.mxu0 %v5162
        %5480 = vmatmul.bf16.gmra.mxu0 %v3624
        %v5481 = vpop.f32.mrf.mxu0
        %v5482 = vadd.f32 %v4632, %v5481
        %v5483 = vpop.f32.mrf.mxu0
        %v5484 = vadd.f32 %v4634, %v5483
        %5485 = vdwg.mxu0
        %5486 = vmatpush.bf16.msra.mxu0 %v5282
        %5487 = vmatpush.bf16.msra.mxu0 %v5274
        %5488 = vmatpush.bf16.msra.mxu0 %v5266
        %5489 = vmatpush.bf16.msra.mxu0 %v5258
        %5490 = vmatpush.bf16.msra.mxu0 %v5250
        %5491 = vmatpush.bf16.msra.mxu0 %v5242
        %5492 = vmatpush.bf16.msra.mxu0 %v5234
        %5493 = vmatpush.bf16.msra.mxu0 %v5226
        %5494 = vmatmul.bf16.gmra.mxu0 %v3625
        %v5495 = vpop.f32.mrf.mxu0
        %v5496 = vadd.f32 %v5482, %v5495
        %v5497 = vpop.f32.mrf.mxu0
        %v5498 = vadd.f32 %v5484, %v5497
        %5499 = vdwg.mxu0
        %5500 = vmatpush.bf16.msra.mxu0 %v5219
        %5501 = vmatpush.bf16.msra.mxu0 %v5211
        %5502 = vmatpush.bf16.msra.mxu0 %v5203
        %5503 = vmatpush.bf16.msra.mxu0 %v5195
        %5504 = vmatpush.bf16.msra.mxu0 %v5187
        %5505 = vmatpush.bf16.msra.mxu0 %v5179
        %5506 = vmatpush.bf16.msra.mxu0 %v5171
        %5507 = vmatpush.bf16.msra.mxu0 %v5163
        %5508 = vmatmul.bf16.gmra.mxu0 %v3624
        %v5509 = vpop.f32.mrf.mxu0
        %v5510 = vadd.f32 %v4660, %v5509
        %v5511 = vpop.f32.mrf.mxu0
        %v5512 = vadd.f32 %v4662, %v5511
        %5513 = vdwg.mxu0
        %5514 = vmatpush.bf16.msra.mxu0 %v5283
        %5515 = vmatpush.bf16.msra.mxu0 %v5275
        %5516 = vmatpush.bf16.msra.mxu0 %v5267
        %5517 = vmatpush.bf16.msra.mxu0 %v5259
        %5518 = vmatpush.bf16.msra.mxu0 %v5251
        %5519 = vmatpush.bf16.msra.mxu0 %v5243
        %5520 = vmatpush.bf16.msra.mxu0 %v5235
        %5521 = vmatpush.bf16.msra.mxu0 %v5227
        %5522 = vmatmul.bf16.gmra.mxu0 %v3625
        %v5523 = vpop.f32.mrf.mxu0
        %v5524 = vadd.f32 %v5510, %v5523
        %v5525 = vpop.f32.mrf.mxu0
        %v5526 = vadd.f32 %v5512, %v5525
        %5527 = vdwg.mxu0
        %5528 = vmatpush.bf16.msra.mxu0 %v5220
        %5529 = vmatpush.bf16.msra.mxu0 %v5212
        %5530 = vmatpush.bf16.msra.mxu0 %v5204
        %5531 = vmatpush.bf16.msra.mxu0 %v5196
        %5532 = vmatpush.bf16.msra.mxu0 %v5188
        %5533 = vmatpush.bf16.msra.mxu0 %v5180
        %5534 = vmatpush.bf16.msra.mxu0 %v5172
        %5535 = vmatpush.bf16.msra.mxu0 %v5164
        %5536 = vmatmul.bf16.gmra.mxu0 %v3624
        %v5537 = vpop.f32.mrf.mxu0
        %v5538 = vadd.f32 %v4688, %v5537
        %v5539 = vpop.f32.mrf.mxu0
        %v5540 = vadd.f32 %v4690, %v5539
        %5541 = vdwg.mxu0
        %5542 = vmatpush.bf16.msra.mxu0 %v5284
        %5543 = vmatpush.bf16.msra.mxu0 %v5276
        %5544 = vmatpush.bf16.msra.mxu0 %v5268
        %5545 = vmatpush.bf16.msra.mxu0 %v5260
        %5546 = vmatpush.bf16.msra.mxu0 %v5252
        %5547 = vmatpush.bf16.msra.mxu0 %v5244
        %5548 = vmatpush.bf16.msra.mxu0 %v5236
        %5549 = vmatpush.bf16.msra.mxu0 %v5228
        %5550 = vmatmul.bf16.gmra.mxu0 %v3625
        %v5551 = vpop.f32.mrf.mxu0
        %v5552 = vadd.f32 %v5538, %v5551
        %v5553 = vpop.f32.mrf.mxu0
        %v5554 = vadd.f32 %v5540, %v5553
        %5555 = vdwg.mxu0
        %5556 = vmatpush.bf16.msra.mxu0 %v5221
        %5557 = vmatpush.bf16.msra.mxu0 %v5213
        %5558 = vmatpush.bf16.msra.mxu0 %v5205
        %5559 = vmatpush.bf16.msra.mxu0 %v5197
        %5560 = vmatpush.bf16.msra.mxu0 %v5189
        %5561 = vmatpush.bf16.msra.mxu0 %v5181
        %5562 = vmatpush.bf16.msra.mxu0 %v5173
        %5563 = vmatpush.bf16.msra.mxu0 %v5165
        %5564 = vmatmul.bf16.gmra.mxu0 %v3624
        %v5565 = vpop.f32.mrf.mxu0
        %v5566 = vadd.f32 %v4716, %v5565
        %v5567 = vpop.f32.mrf.mxu0
        %v5568 = vadd.f32 %v4718, %v5567
        %5569 = vdwg.mxu0
        %5570 = vmatpush.bf16.msra.mxu0 %v5285
        %5571 = vmatpush.bf16.msra.mxu0 %v5277
        %5572 = vmatpush.bf16.msra.mxu0 %v5269
        %5573 = vmatpush.bf16.msra.mxu0 %v5261
        %5574 = vmatpush.bf16.msra.mxu0 %v5253
        %5575 = vmatpush.bf16.msra.mxu0 %v5245
        %5576 = vmatpush.bf16.msra.mxu0 %v5237
        %5577 = vmatpush.bf16.msra.mxu0 %v5229
        %5578 = vmatmul.bf16.gmra.mxu0 %v3625
        %v5579 = vpop.f32.mrf.mxu0
        %v5580 = vadd.f32 %v5566, %v5579
        %v5581 = vpop.f32.mrf.mxu0
        %v5582 = vadd.f32 %v5568, %v5581
        %5583 = vdwg.mxu0
        %5584 = vmatpush.bf16.msra.mxu0 %v5222
        %5585 = vmatpush.bf16.msra.mxu0 %v5214
        %5586 = vmatpush.bf16.msra.mxu0 %v5206
        %5587 = vmatpush.bf16.msra.mxu0 %v5198
        %5588 = vmatpush.bf16.msra.mxu0 %v5190
        %5589 = vmatpush.bf16.msra.mxu0 %v5182
        %5590 = vmatpush.bf16.msra.mxu0 %v5174
        %5591 = vmatpush.bf16.msra.mxu0 %v5166
        %5592 = vmatmul.bf16.gmra.mxu0 %v3624
        %v5593 = vpop.f32.mrf.mxu0
        %v5594 = vadd.f32 %v4744, %v5593
        %v5595 = vpop.f32.mrf.mxu0
        %v5596 = vadd.f32 %v4746, %v5595
        %5597 = vdwg.mxu0
        %5598 = vmatpush.bf16.msra.mxu0 %v5286
        %5599 = vmatpush.bf16.msra.mxu0 %v5278
        %5600 = vmatpush.bf16.msra.mxu0 %v5270
        %5601 = vmatpush.bf16.msra.mxu0 %v5262
        %5602 = vmatpush.bf16.msra.mxu0 %v5254
        %5603 = vmatpush.bf16.msra.mxu0 %v5246
        %5604 = vmatpush.bf16.msra.mxu0 %v5238
        %5605 = vmatpush.bf16.msra.mxu0 %v5230
        %5606 = vmatmul.bf16.gmra.mxu0 %v3625
        %v5607 = vpop.f32.mrf.mxu0
        %v5608 = vadd.f32 %v5594, %v5607
        %v5609 = vpop.f32.mrf.mxu0
        %v5610 = vadd.f32 %v5596, %v5609
        %5611 = vdwg.mxu0
        %5612 = vmatpush.bf16.msra.mxu0 %v5223
        %5613 = vmatpush.bf16.msra.mxu0 %v5215
        %5614 = vmatpush.bf16.msra.mxu0 %v5207
        %5615 = vmatpush.bf16.msra.mxu0 %v5199
        %5616 = vmatpush.bf16.msra.mxu0 %v5191
        %5617 = vmatpush.bf16.msra.mxu0 %v5183
        %5618 = vmatpush.bf16.msra.mxu0 %v5175
        %5619 = vmatpush.bf16.msra.mxu0 %v5167
        %5620 = vmatmul.bf16.gmra.mxu0 %v3624
        %v5621 = vpop.f32.mrf.mxu0
        %v5622 = vadd.f32 %v4772, %v5621
        %v5623 = vpop.f32.mrf.mxu0
        %v5624 = vadd.f32 %v4774, %v5623
        %5625 = vdwg.mxu0
        %5626 = vmatpush.bf16.msra.mxu0 %v5287
        %5627 = vmatpush.bf16.msra.mxu0 %v5279
        %5628 = vmatpush.bf16.msra.mxu0 %v5271
        %5629 = vmatpush.bf16.msra.mxu0 %v5263
        %5630 = vmatpush.bf16.msra.mxu0 %v5255
        %5631 = vmatpush.bf16.msra.mxu0 %v5247
        %5632 = vmatpush.bf16.msra.mxu0 %v5239
        %5633 = vmatpush.bf16.msra.mxu0 %v5231
        %5634 = vmatmul.bf16.gmra.mxu0 %v3625
        %v5635 = vpop.f32.mrf.mxu0
        %v5636 = vadd.f32 %v5622, %v5635
        %v5637 = vpop.f32.mrf.mxu0
        %v5638 = vadd.f32 %v5624, %v5637
        %5639 = vdwg.mxu0
        %v5640 = vld [vmem:[#allocation10] sm:$0xff]
        %v5641 = vld [vmem:[#allocation10 + $0x8] sm:$0xff]
        %v5642 = vld [vmem:[#allocation10 + $0x10] sm:$0xff]
        %v5643 = vld [vmem:[#allocation10 + $0x18] sm:$0xff]
        %v5644 = vld [vmem:[#allocation10 + $0x20] sm:$0xff]
        %v5645 = vld [vmem:[#allocation10 + $0x28] sm:$0xff]
        %v5646 = vld [vmem:[#allocation10 + $0x30] sm:$0xff]
        %v5647 = vld [vmem:[#allocation10 + $0x38] sm:$0xff]
        %v5648 = vld [vmem:[#allocation10 + $0x40] sm:$0xff]
        %v5649 = vld [vmem:[#allocation10 + $0x48] sm:$0xff]
        %v5650 = vld [vmem:[#allocation10 + $0x50] sm:$0xff]
        %v5651 = vld [vmem:[#allocation10 + $0x58] sm:$0xff]
        %v5652 = vld [vmem:[#allocation10 + $0x60] sm:$0xff]
        %v5653 = vld [vmem:[#allocation10 + $0x68] sm:$0xff]
        %v5654 = vld [vmem:[#allocation10 + $0x70] sm:$0xff]
        %v5655 = vld [vmem:[#allocation10 + $0x78] sm:$0xff]
        %v5656 = vld [vmem:[#allocation10 + $0x80] sm:$0xff]
        %v5657 = vld [vmem:[#allocation10 + $0x88] sm:$0xff]
        %v5658 = vld [vmem:[#allocation10 + $0x90] sm:$0xff]
        %v5659 = vld [vmem:[#allocation10 + $0x98] sm:$0xff]
        %v5660 = vld [vmem:[#allocation10 + $0xa0] sm:$0xff]
        %v5661 = vld [vmem:[#allocation10 + $0xa8] sm:$0xff]
        %v5662 = vld [vmem:[#allocation10 + $0xb0] sm:$0xff]
        %v5663 = vld [vmem:[#allocation10 + $0xb8] sm:$0xff]
        %v5664 = vld [vmem:[#allocation10 + $0xc0] sm:$0xff]
        %v5665 = vld [vmem:[#allocation10 + $0xc8] sm:$0xff]
        %v5666 = vld [vmem:[#allocation10 + $0xd0] sm:$0xff]
        %v5667 = vld [vmem:[#allocation10 + $0xd8] sm:$0xff]
        %v5668 = vld [vmem:[#allocation10 + $0xe0] sm:$0xff]
        %v5669 = vld [vmem:[#allocation10 + $0xe8] sm:$0xff]
        %v5670 = vld [vmem:[#allocation10 + $0xf0] sm:$0xff]
        %v5671 = vld [vmem:[#allocation10 + $0xf8] sm:$0xff]
        %v5672 = vld [vmem:[#allocation10 + $0x100] sm:$0xff]
        %v5673 = vld [vmem:[#allocation10 + $0x108] sm:$0xff]
        %v5674 = vld [vmem:[#allocation10 + $0x110] sm:$0xff]
        %v5675 = vld [vmem:[#allocation10 + $0x118] sm:$0xff]
        %v5676 = vld [vmem:[#allocation10 + $0x120] sm:$0xff]
        %v5677 = vld [vmem:[#allocation10 + $0x128] sm:$0xff]
        %v5678 = vld [vmem:[#allocation10 + $0x130] sm:$0xff]
        %v5679 = vld [vmem:[#allocation10 + $0x138] sm:$0xff]
        %v5680 = vld [vmem:[#allocation10 + $0x140] sm:$0xff]
        %v5681 = vld [vmem:[#allocation10 + $0x148] sm:$0xff]
        %v5682 = vld [vmem:[#allocation10 + $0x150] sm:$0xff]
        %v5683 = vld [vmem:[#allocation10 + $0x158] sm:$0xff]
        %v5684 = vld [vmem:[#allocation10 + $0x160] sm:$0xff]
        %v5685 = vld [vmem:[#allocation10 + $0x168] sm:$0xff]
        %v5686 = vld [vmem:[#allocation10 + $0x170] sm:$0xff]
        %v5687 = vld [vmem:[#allocation10 + $0x178] sm:$0xff]
        %v5688 = vld [vmem:[#allocation10 + $0x180] sm:$0xff]
        %v5689 = vld [vmem:[#allocation10 + $0x188] sm:$0xff]
        %v5690 = vld [vmem:[#allocation10 + $0x190] sm:$0xff]
        %v5691 = vld [vmem:[#allocation10 + $0x198] sm:$0xff]
        %v5692 = vld [vmem:[#allocation10 + $0x1a0] sm:$0xff]
        %v5693 = vld [vmem:[#allocation10 + $0x1a8] sm:$0xff]
        %v5694 = vld [vmem:[#allocation10 + $0x1b0] sm:$0xff]
        %v5695 = vld [vmem:[#allocation10 + $0x1b8] sm:$0xff]
        %v5696 = vld [vmem:[#allocation10 + $0x1c0] sm:$0xff]
        %v5697 = vld [vmem:[#allocation10 + $0x1c8] sm:$0xff]
        %v5698 = vld [vmem:[#allocation10 + $0x1d0] sm:$0xff]
        %v5699 = vld [vmem:[#allocation10 + $0x1d8] sm:$0xff]
        %v5700 = vld [vmem:[#allocation10 + $0x1e0] sm:$0xff]
        %v5701 = vld [vmem:[#allocation10 + $0x1e8] sm:$0xff]
        %v5702 = vld [vmem:[#allocation10 + $0x1f0] sm:$0xff]
        %v5703 = vld [vmem:[#allocation10 + $0x1f8] sm:$0xff]
        %v5704 = vld [vmem:[#allocation10 + $0x200] sm:$0xff]
        %v5705 = vld [vmem:[#allocation10 + $0x208] sm:$0xff]
        %v5706 = vld [vmem:[#allocation10 + $0x210] sm:$0xff]
        %v5707 = vld [vmem:[#allocation10 + $0x218] sm:$0xff]
        %v5708 = vld [vmem:[#allocation10 + $0x220] sm:$0xff]
        %v5709 = vld [vmem:[#allocation10 + $0x228] sm:$0xff]
        %v5710 = vld [vmem:[#allocation10 + $0x230] sm:$0xff]
        %v5711 = vld [vmem:[#allocation10 + $0x238] sm:$0xff]
        %v5712 = vld [vmem:[#allocation10 + $0x240] sm:$0xff]
        %v5713 = vld [vmem:[#allocation10 + $0x248] sm:$0xff]
        %v5714 = vld [vmem:[#allocation10 + $0x250] sm:$0xff]
        %v5715 = vld [vmem:[#allocation10 + $0x258] sm:$0xff]
        %v5716 = vld [vmem:[#allocation10 + $0x260] sm:$0xff]
        %v5717 = vld [vmem:[#allocation10 + $0x268] sm:$0xff]
        %v5718 = vld [vmem:[#allocation10 + $0x270] sm:$0xff]
        %v5719 = vld [vmem:[#allocation10 + $0x278] sm:$0xff]
        %v5720 = vld [vmem:[#allocation10 + $0x280] sm:$0xff]
        %v5721 = vld [vmem:[#allocation10 + $0x288] sm:$0xff]
        %v5722 = vld [vmem:[#allocation10 + $0x290] sm:$0xff]
        %v5723 = vld [vmem:[#allocation10 + $0x298] sm:$0xff]
        %v5724 = vld [vmem:[#allocation10 + $0x2a0] sm:$0xff]
        %v5725 = vld [vmem:[#allocation10 + $0x2a8] sm:$0xff]
        %v5726 = vld [vmem:[#allocation10 + $0x2b0] sm:$0xff]
        %v5727 = vld [vmem:[#allocation10 + $0x2b8] sm:$0xff]
        %v5728 = vld [vmem:[#allocation10 + $0x2c0] sm:$0xff]
        %v5729 = vld [vmem:[#allocation10 + $0x2c8] sm:$0xff]
        %v5730 = vld [vmem:[#allocation10 + $0x2d0] sm:$0xff]
        %v5731 = vld [vmem:[#allocation10 + $0x2d8] sm:$0xff]
        %v5732 = vld [vmem:[#allocation10 + $0x2e0] sm:$0xff]
        %v5733 = vld [vmem:[#allocation10 + $0x2e8] sm:$0xff]
        %v5734 = vld [vmem:[#allocation10 + $0x2f0] sm:$0xff]
        %v5735 = vld [vmem:[#allocation10 + $0x2f8] sm:$0xff]
        %v5736 = vld [vmem:[#allocation10 + $0x300] sm:$0xff]
        %v5737 = vld [vmem:[#allocation10 + $0x308] sm:$0xff]
        %v5738 = vld [vmem:[#allocation10 + $0x310] sm:$0xff]
        %v5739 = vld [vmem:[#allocation10 + $0x318] sm:$0xff]
        %v5740 = vld [vmem:[#allocation10 + $0x320] sm:$0xff]
        %v5741 = vld [vmem:[#allocation10 + $0x328] sm:$0xff]
        %v5742 = vld [vmem:[#allocation10 + $0x330] sm:$0xff]
        %v5743 = vld [vmem:[#allocation10 + $0x338] sm:$0xff]
        %v5744 = vld [vmem:[#allocation10 + $0x340] sm:$0xff]
        %v5745 = vld [vmem:[#allocation10 + $0x348] sm:$0xff]
        %v5746 = vld [vmem:[#allocation10 + $0x350] sm:$0xff]
        %v5747 = vld [vmem:[#allocation10 + $0x358] sm:$0xff]
        %v5748 = vld [vmem:[#allocation10 + $0x360] sm:$0xff]
        %v5749 = vld [vmem:[#allocation10 + $0x368] sm:$0xff]
        %v5750 = vld [vmem:[#allocation10 + $0x370] sm:$0xff]
        %v5751 = vld [vmem:[#allocation10 + $0x378] sm:$0xff]
        %v5752 = vld [vmem:[#allocation10 + $0x380] sm:$0xff]
        %v5753 = vld [vmem:[#allocation10 + $0x388] sm:$0xff]
        %v5754 = vld [vmem:[#allocation10 + $0x390] sm:$0xff]
        %v5755 = vld [vmem:[#allocation10 + $0x398] sm:$0xff]
        %v5756 = vld [vmem:[#allocation10 + $0x3a0] sm:$0xff]
        %v5757 = vld [vmem:[#allocation10 + $0x3a8] sm:$0xff]
        %v5758 = vld [vmem:[#allocation10 + $0x3b0] sm:$0xff]
        %v5759 = vld [vmem:[#allocation10 + $0x3b8] sm:$0xff]
        %v5760 = vld [vmem:[#allocation10 + $0x3c0] sm:$0xff]
        %v5761 = vld [vmem:[#allocation10 + $0x3c8] sm:$0xff]
        %v5762 = vld [vmem:[#allocation10 + $0x3d0] sm:$0xff]
        %v5763 = vld [vmem:[#allocation10 + $0x3d8] sm:$0xff]
        %v5764 = vld [vmem:[#allocation10 + $0x3e0] sm:$0xff]
        %v5765 = vld [vmem:[#allocation10 + $0x3e8] sm:$0xff]
        %v5766 = vld [vmem:[#allocation10 + $0x3f0] sm:$0xff]
        %v5767 = vld [vmem:[#allocation10 + $0x3f8] sm:$0xff]
        %v5898 = vunpack.c.l.b16 %v5640
        %v5899 = vunpack.c.h.b16 %v5640
        %v5900 = vunpack.c.l.b16 %v5641
        %v5901 = vunpack.c.h.b16 %v5641
        %v5902 = vunpack.c.l.b16 %v5642
        %v5903 = vunpack.c.h.b16 %v5642
        %v5904 = vunpack.c.l.b16 %v5643
        %v5905 = vunpack.c.h.b16 %v5643
        %v5906 = vunpack.c.l.b16 %v5644
        %v5907 = vunpack.c.h.b16 %v5644
        %v5908 = vunpack.c.l.b16 %v5645
        %v5909 = vunpack.c.h.b16 %v5645
        %v5910 = vunpack.c.l.b16 %v5646
        %v5911 = vunpack.c.h.b16 %v5646
        %v5912 = vunpack.c.l.b16 %v5647
        %v5913 = vunpack.c.h.b16 %v5647
        %v5914 = vunpack.c.l.b16 %v5648
        %v5915 = vunpack.c.h.b16 %v5648
        %v5916 = vunpack.c.l.b16 %v5649
        %v5917 = vunpack.c.h.b16 %v5649
        %v5918 = vunpack.c.l.b16 %v5650
        %v5919 = vunpack.c.h.b16 %v5650
        %v5920 = vunpack.c.l.b16 %v5651
        %v5921 = vunpack.c.h.b16 %v5651
        %v5922 = vunpack.c.l.b16 %v5652
        %v5923 = vunpack.c.h.b16 %v5652
        %v5924 = vunpack.c.l.b16 %v5653
        %v5925 = vunpack.c.h.b16 %v5653
        %v5926 = vunpack.c.l.b16 %v5654
        %v5927 = vunpack.c.h.b16 %v5654
        %v5928 = vunpack.c.l.b16 %v5655
        %v5929 = vunpack.c.h.b16 %v5655
        %v5930 = vunpack.c.l.b16 %v5656
        %v5931 = vunpack.c.h.b16 %v5656
        %v5932 = vunpack.c.l.b16 %v5657
        %v5933 = vunpack.c.h.b16 %v5657
        %v5934 = vunpack.c.l.b16 %v5658
        %v5935 = vunpack.c.h.b16 %v5658
        %v5936 = vunpack.c.l.b16 %v5659
        %v5937 = vunpack.c.h.b16 %v5659
        %v5938 = vunpack.c.l.b16 %v5660
        %v5939 = vunpack.c.h.b16 %v5660
        %v5940 = vunpack.c.l.b16 %v5661
        %v5941 = vunpack.c.h.b16 %v5661
        %v5942 = vunpack.c.l.b16 %v5662
        %v5943 = vunpack.c.h.b16 %v5662
        %v5944 = vunpack.c.l.b16 %v5663
        %v5945 = vunpack.c.h.b16 %v5663
        %v5946 = vunpack.c.l.b16 %v5664
        %v5947 = vunpack.c.h.b16 %v5664
        %v5948 = vunpack.c.l.b16 %v5665
        %v5949 = vunpack.c.h.b16 %v5665
        %v5950 = vunpack.c.l.b16 %v5666
        %v5951 = vunpack.c.h.b16 %v5666
        %v5952 = vunpack.c.l.b16 %v5667
        %v5953 = vunpack.c.h.b16 %v5667
        %v5954 = vunpack.c.l.b16 %v5668
        %v5955 = vunpack.c.h.b16 %v5668
        %v5956 = vunpack.c.l.b16 %v5669
        %v5957 = vunpack.c.h.b16 %v5669
        %v5958 = vunpack.c.l.b16 %v5670
        %v5959 = vunpack.c.h.b16 %v5670
        %v5960 = vunpack.c.l.b16 %v5671
        %v5961 = vunpack.c.h.b16 %v5671
        %v5962 = vunpack.c.l.b16 %v5672
        %v5963 = vunpack.c.h.b16 %v5672
        %v5964 = vunpack.c.l.b16 %v5673
        %v5965 = vunpack.c.h.b16 %v5673
        %v5966 = vunpack.c.l.b16 %v5674
        %v5967 = vunpack.c.h.b16 %v5674
        %v5968 = vunpack.c.l.b16 %v5675
        %v5969 = vunpack.c.h.b16 %v5675
        %v5970 = vunpack.c.l.b16 %v5676
        %v5971 = vunpack.c.h.b16 %v5676
        %v5972 = vunpack.c.l.b16 %v5677
        %v5973 = vunpack.c.h.b16 %v5677
        %v5974 = vunpack.c.l.b16 %v5678
        %v5975 = vunpack.c.h.b16 %v5678
        %v5976 = vunpack.c.l.b16 %v5679
        %v5977 = vunpack.c.h.b16 %v5679
        %v5978 = vunpack.c.l.b16 %v5680
        %v5979 = vunpack.c.h.b16 %v5680
        %v5980 = vunpack.c.l.b16 %v5681
        %v5981 = vunpack.c.h.b16 %v5681
        %v5982 = vunpack.c.l.b16 %v5682
        %v5983 = vunpack.c.h.b16 %v5682
        %v5984 = vunpack.c.l.b16 %v5683
        %v5985 = vunpack.c.h.b16 %v5683
        %v5986 = vunpack.c.l.b16 %v5684
        %v5987 = vunpack.c.h.b16 %v5684
        %v5988 = vunpack.c.l.b16 %v5685
        %v5989 = vunpack.c.h.b16 %v5685
        %v5990 = vunpack.c.l.b16 %v5686
        %v5991 = vunpack.c.h.b16 %v5686
        %v5992 = vunpack.c.l.b16 %v5687
        %v5993 = vunpack.c.h.b16 %v5687
        %v5994 = vunpack.c.l.b16 %v5688
        %v5995 = vunpack.c.h.b16 %v5688
        %v5996 = vunpack.c.l.b16 %v5689
        %v5997 = vunpack.c.h.b16 %v5689
        %v5998 = vunpack.c.l.b16 %v5690
        %v5999 = vunpack.c.h.b16 %v5690
        %v6000 = vunpack.c.l.b16 %v5691
        %v6001 = vunpack.c.h.b16 %v5691
        %v6002 = vunpack.c.l.b16 %v5692
        %v6003 = vunpack.c.h.b16 %v5692
        %v6004 = vunpack.c.l.b16 %v5693
        %v6005 = vunpack.c.h.b16 %v5693
        %v6006 = vunpack.c.l.b16 %v5694
        %v6007 = vunpack.c.h.b16 %v5694
        %v6008 = vunpack.c.l.b16 %v5695
        %v6009 = vunpack.c.h.b16 %v5695
        %v6010 = vunpack.c.l.b16 %v5696
        %v6011 = vunpack.c.h.b16 %v5696
        %v6012 = vunpack.c.l.b16 %v5697
        %v6013 = vunpack.c.h.b16 %v5697
        %v6014 = vunpack.c.l.b16 %v5698
        %v6015 = vunpack.c.h.b16 %v5698
        %v6016 = vunpack.c.l.b16 %v5699
        %v6017 = vunpack.c.h.b16 %v5699
        %v6018 = vunpack.c.l.b16 %v5700
        %v6019 = vunpack.c.h.b16 %v5700
        %v6020 = vunpack.c.l.b16 %v5701
        %v6021 = vunpack.c.h.b16 %v5701
        %v6022 = vunpack.c.l.b16 %v5702
        %v6023 = vunpack.c.h.b16 %v5702
        %v6024 = vunpack.c.l.b16 %v5703
        %v6025 = vunpack.c.h.b16 %v5703
        %v6026 = vunpack.c.l.b16 %v5704
        %v6027 = vunpack.c.h.b16 %v5704
        %v6028 = vunpack.c.l.b16 %v5705
        %v6029 = vunpack.c.h.b16 %v5705
        %v6030 = vunpack.c.l.b16 %v5706
        %v6031 = vunpack.c.h.b16 %v5706
        %v6032 = vunpack.c.l.b16 %v5707
        %v6033 = vunpack.c.h.b16 %v5707
        %v6034 = vunpack.c.l.b16 %v5708
        %v6035 = vunpack.c.h.b16 %v5708
        %v6036 = vunpack.c.l.b16 %v5709
        %v6037 = vunpack.c.h.b16 %v5709
        %v6038 = vunpack.c.l.b16 %v5710
        %v6039 = vunpack.c.h.b16 %v5710
        %v6040 = vunpack.c.l.b16 %v5711
        %v6041 = vunpack.c.h.b16 %v5711
        %v6042 = vunpack.c.l.b16 %v5712
        %v6043 = vunpack.c.h.b16 %v5712
        %v6044 = vunpack.c.l.b16 %v5713
        %v6045 = vunpack.c.h.b16 %v5713
        %v6046 = vunpack.c.l.b16 %v5714
        %v6047 = vunpack.c.h.b16 %v5714
        %v6048 = vunpack.c.l.b16 %v5715
        %v6049 = vunpack.c.h.b16 %v5715
        %v6050 = vunpack.c.l.b16 %v5716
        %v6051 = vunpack.c.h.b16 %v5716
        %v6052 = vunpack.c.l.b16 %v5717
        %v6053 = vunpack.c.h.b16 %v5717
        %v6054 = vunpack.c.l.b16 %v5718
        %v6055 = vunpack.c.h.b16 %v5718
        %v6056 = vunpack.c.l.b16 %v5719
        %v6057 = vunpack.c.h.b16 %v5719
        %v6058 = vunpack.c.l.b16 %v5720
        %v6059 = vunpack.c.h.b16 %v5720
        %v6060 = vunpack.c.l.b16 %v5721
        %v6061 = vunpack.c.h.b16 %v5721
        %v6062 = vunpack.c.l.b16 %v5722
        %v6063 = vunpack.c.h.b16 %v5722
        %v6064 = vunpack.c.l.b16 %v5723
        %v6065 = vunpack.c.h.b16 %v5723
        %v6066 = vunpack.c.l.b16 %v5724
        %v6067 = vunpack.c.h.b16 %v5724
        %v6068 = vunpack.c.l.b16 %v5725
        %v6069 = vunpack.c.h.b16 %v5725
        %v6070 = vunpack.c.l.b16 %v5726
        %v6071 = vunpack.c.h.b16 %v5726
        %v6072 = vunpack.c.l.b16 %v5727
        %v6073 = vunpack.c.h.b16 %v5727
        %v6074 = vunpack.c.l.b16 %v5728
        %v6075 = vunpack.c.h.b16 %v5728
        %v6076 = vunpack.c.l.b16 %v5729
        %v6077 = vunpack.c.h.b16 %v5729
        %v6078 = vunpack.c.l.b16 %v5730
        %v6079 = vunpack.c.h.b16 %v5730
        %v6080 = vunpack.c.l.b16 %v5731
        %v6081 = vunpack.c.h.b16 %v5731
        %v6082 = vunpack.c.l.b16 %v5732
        %v6083 = vunpack.c.h.b16 %v5732
        %v6084 = vunpack.c.l.b16 %v5733
        %v6085 = vunpack.c.h.b16 %v5733
        %v6086 = vunpack.c.l.b16 %v5734
        %v6087 = vunpack.c.h.b16 %v5734
        %v6088 = vunpack.c.l.b16 %v5735
        %v6089 = vunpack.c.h.b16 %v5735
        %v6090 = vunpack.c.l.b16 %v5736
        %v6091 = vunpack.c.h.b16 %v5736
        %v6092 = vunpack.c.l.b16 %v5737
        %v6093 = vunpack.c.h.b16 %v5737
        %v6094 = vunpack.c.l.b16 %v5738
        %v6095 = vunpack.c.h.b16 %v5738
        %v6096 = vunpack.c.l.b16 %v5739
        %v6097 = vunpack.c.h.b16 %v5739
        %v6098 = vunpack.c.l.b16 %v5740
        %v6099 = vunpack.c.h.b16 %v5740
        %v6100 = vunpack.c.l.b16 %v5741
        %v6101 = vunpack.c.h.b16 %v5741
        %v6102 = vunpack.c.l.b16 %v5742
        %v6103 = vunpack.c.h.b16 %v5742
        %v6104 = vunpack.c.l.b16 %v5743
        %v6105 = vunpack.c.h.b16 %v5743
        %v6106 = vunpack.c.l.b16 %v5744
        %v6107 = vunpack.c.h.b16 %v5744
        %v6108 = vunpack.c.l.b16 %v5745
        %v6109 = vunpack.c.h.b16 %v5745
        %v6110 = vunpack.c.l.b16 %v5746
        %v6111 = vunpack.c.h.b16 %v5746
        %v6112 = vunpack.c.l.b16 %v5747
        %v6113 = vunpack.c.h.b16 %v5747
        %v6114 = vunpack.c.l.b16 %v5748
        %v6115 = vunpack.c.h.b16 %v5748
        %v6116 = vunpack.c.l.b16 %v5749
        %v6117 = vunpack.c.h.b16 %v5749
        %v6118 = vunpack.c.l.b16 %v5750
        %v6119 = vunpack.c.h.b16 %v5750
        %v6120 = vunpack.c.l.b16 %v5751
        %v6121 = vunpack.c.h.b16 %v5751
        %v6122 = vunpack.c.l.b16 %v5752
        %v6123 = vunpack.c.h.b16 %v5752
        %v6124 = vunpack.c.l.b16 %v5753
        %v6125 = vunpack.c.h.b16 %v5753
        %v6126 = vunpack.c.l.b16 %v5754
        %v6127 = vunpack.c.h.b16 %v5754
        %v6128 = vunpack.c.l.b16 %v5755
        %v6129 = vunpack.c.h.b16 %v5755
        %v6130 = vunpack.c.l.b16 %v5756
        %v6131 = vunpack.c.h.b16 %v5756
        %v6132 = vunpack.c.l.b16 %v5757
        %v6133 = vunpack.c.h.b16 %v5757
        %v6134 = vunpack.c.l.b16 %v5758
        %v6135 = vunpack.c.h.b16 %v5758
        %v6136 = vunpack.c.l.b16 %v5759
        %v6137 = vunpack.c.h.b16 %v5759
        %v6138 = vunpack.c.l.b16 %v5760
        %v6139 = vunpack.c.h.b16 %v5760
        %v6140 = vunpack.c.l.b16 %v5761
        %v6141 = vunpack.c.h.b16 %v5761
        %v6142 = vunpack.c.l.b16 %v5762
        %v6143 = vunpack.c.h.b16 %v5762
        %v6144 = vunpack.c.l.b16 %v5763
        %v6145 = vunpack.c.h.b16 %v5763
        %v6146 = vunpack.c.l.b16 %v5764
        %v6147 = vunpack.c.h.b16 %v5764
        %v6148 = vunpack.c.l.b16 %v5765
        %v6149 = vunpack.c.h.b16 %v5765
        %v6150 = vunpack.c.l.b16 %v5766
        %v6151 = vunpack.c.h.b16 %v5766
        %v6152 = vunpack.c.l.b16 %v5767
        %v6153 = vunpack.c.h.b16 %v5767
        %v6154 = vpack.c.b16 %v5906, %v5898
        %v6155 = vpack.c.b16 %v5907, %v5899
        %v6156 = vpack.c.b16 %v5908, %v5900
        %v6157 = vpack.c.b16 %v5909, %v5901
        %v6158 = vpack.c.b16 %v5910, %v5902
        %v6159 = vpack.c.b16 %v5911, %v5903
        %v6160 = vpack.c.b16 %v5912, %v5904
        %v6161 = vpack.c.b16 %v5913, %v5905
        %v6162 = vpack.c.b16 %v5922, %v5914
        %v6163 = vpack.c.b16 %v5923, %v5915
        %v6164 = vpack.c.b16 %v5924, %v5916
        %v6165 = vpack.c.b16 %v5925, %v5917
        %v6166 = vpack.c.b16 %v5926, %v5918
        %v6167 = vpack.c.b16 %v5927, %v5919
        %v6168 = vpack.c.b16 %v5928, %v5920
        %v6169 = vpack.c.b16 %v5929, %v5921
        %v6170 = vpack.c.b16 %v5938, %v5930
        %v6171 = vpack.c.b16 %v5939, %v5931
        %v6172 = vpack.c.b16 %v5940, %v5932
        %v6173 = vpack.c.b16 %v5941, %v5933
        %v6174 = vpack.c.b16 %v5942, %v5934
        %v6175 = vpack.c.b16 %v5943, %v5935
        %v6176 = vpack.c.b16 %v5944, %v5936
        %v6177 = vpack.c.b16 %v5945, %v5937
        %v6178 = vpack.c.b16 %v5954, %v5946
        %v6179 = vpack.c.b16 %v5955, %v5947
        %v6180 = vpack.c.b16 %v5956, %v5948
        %v6181 = vpack.c.b16 %v5957, %v5949
        %v6182 = vpack.c.b16 %v5958, %v5950
        %v6183 = vpack.c.b16 %v5959, %v5951
        %v6184 = vpack.c.b16 %v5960, %v5952
        %v6185 = vpack.c.b16 %v5961, %v5953
        %v6186 = vpack.c.b16 %v5970, %v5962
        %v6187 = vpack.c.b16 %v5971, %v5963
        %v6188 = vpack.c.b16 %v5972, %v5964
        %v6189 = vpack.c.b16 %v5973, %v5965
        %v6190 = vpack.c.b16 %v5974, %v5966
        %v6191 = vpack.c.b16 %v5975, %v5967
        %v6192 = vpack.c.b16 %v5976, %v5968
        %v6193 = vpack.c.b16 %v5977, %v5969
        %v6194 = vpack.c.b16 %v5986, %v5978
        %v6195 = vpack.c.b16 %v5987, %v5979
        %v6196 = vpack.c.b16 %v5988, %v5980
        %v6197 = vpack.c.b16 %v5989, %v5981
        %v6198 = vpack.c.b16 %v5990, %v5982
        %v6199 = vpack.c.b16 %v5991, %v5983
        %v6200 = vpack.c.b16 %v5992, %v5984
        %v6201 = vpack.c.b16 %v5993, %v5985
        %v6202 = vpack.c.b16 %v6002, %v5994
        %v6203 = vpack.c.b16 %v6003, %v5995
        %v6204 = vpack.c.b16 %v6004, %v5996
        %v6205 = vpack.c.b16 %v6005, %v5997
        %v6206 = vpack.c.b16 %v6006, %v5998
        %v6207 = vpack.c.b16 %v6007, %v5999
        %v6208 = vpack.c.b16 %v6008, %v6000
        %v6209 = vpack.c.b16 %v6009, %v6001
        %v6210 = vpack.c.b16 %v6018, %v6010
        %v6211 = vpack.c.b16 %v6019, %v6011
        %v6212 = vpack.c.b16 %v6020, %v6012
        %v6213 = vpack.c.b16 %v6021, %v6013
        %v6214 = vpack.c.b16 %v6022, %v6014
        %v6215 = vpack.c.b16 %v6023, %v6015
        %v6216 = vpack.c.b16 %v6024, %v6016
        %v6217 = vpack.c.b16 %v6025, %v6017
        %v6218 = vpack.c.b16 %v6034, %v6026
        %v6219 = vpack.c.b16 %v6035, %v6027
        %v6220 = vpack.c.b16 %v6036, %v6028
        %v6221 = vpack.c.b16 %v6037, %v6029
        %v6222 = vpack.c.b16 %v6038, %v6030
        %v6223 = vpack.c.b16 %v6039, %v6031
        %v6224 = vpack.c.b16 %v6040, %v6032
        %v6225 = vpack.c.b16 %v6041, %v6033
        %v6226 = vpack.c.b16 %v6050, %v6042
        %v6227 = vpack.c.b16 %v6051, %v6043
        %v6228 = vpack.c.b16 %v6052, %v6044
        %v6229 = vpack.c.b16 %v6053, %v6045
        %v6230 = vpack.c.b16 %v6054, %v6046
        %v6231 = vpack.c.b16 %v6055, %v6047
        %v6232 = vpack.c.b16 %v6056, %v6048
        %v6233 = vpack.c.b16 %v6057, %v6049
        %v6234 = vpack.c.b16 %v6066, %v6058
        %v6235 = vpack.c.b16 %v6067, %v6059
        %v6236 = vpack.c.b16 %v6068, %v6060
        %v6237 = vpack.c.b16 %v6069, %v6061
        %v6238 = vpack.c.b16 %v6070, %v6062
        %v6239 = vpack.c.b16 %v6071, %v6063
        %v6240 = vpack.c.b16 %v6072, %v6064
        %v6241 = vpack.c.b16 %v6073, %v6065
        %v6242 = vpack.c.b16 %v6082, %v6074
        %v6243 = vpack.c.b16 %v6083, %v6075
        %v6244 = vpack.c.b16 %v6084, %v6076
        %v6245 = vpack.c.b16 %v6085, %v6077
        %v6246 = vpack.c.b16 %v6086, %v6078
        %v6247 = vpack.c.b16 %v6087, %v6079
        %v6248 = vpack.c.b16 %v6088, %v6080
        %v6249 = vpack.c.b16 %v6089, %v6081
        %v6250 = vpack.c.b16 %v6098, %v6090
        %v6251 = vpack.c.b16 %v6099, %v6091
        %v6252 = vpack.c.b16 %v6100, %v6092
        %v6253 = vpack.c.b16 %v6101, %v6093
        %v6254 = vpack.c.b16 %v6102, %v6094
        %v6255 = vpack.c.b16 %v6103, %v6095
        %v6256 = vpack.c.b16 %v6104, %v6096
        %v6257 = vpack.c.b16 %v6105, %v6097
        %v6258 = vpack.c.b16 %v6114, %v6106
        %v6259 = vpack.c.b16 %v6115, %v6107
        %v6260 = vpack.c.b16 %v6116, %v6108
        %v6261 = vpack.c.b16 %v6117, %v6109
        %v6262 = vpack.c.b16 %v6118, %v6110
        %v6263 = vpack.c.b16 %v6119, %v6111
        %v6264 = vpack.c.b16 %v6120, %v6112
        %v6265 = vpack.c.b16 %v6121, %v6113
        %v6266 = vpack.c.b16 %v6130, %v6122
        %v6267 = vpack.c.b16 %v6131, %v6123
        %v6268 = vpack.c.b16 %v6132, %v6124
        %v6269 = vpack.c.b16 %v6133, %v6125
        %v6270 = vpack.c.b16 %v6134, %v6126
        %v6271 = vpack.c.b16 %v6135, %v6127
        %v6272 = vpack.c.b16 %v6136, %v6128
        %v6273 = vpack.c.b16 %v6137, %v6129
        %v6274 = vpack.c.b16 %v6146, %v6138
        %v6275 = vpack.c.b16 %v6147, %v6139
        %v6276 = vpack.c.b16 %v6148, %v6140
        %v6277 = vpack.c.b16 %v6149, %v6141
        %v6278 = vpack.c.b16 %v6150, %v6142
        %v6279 = vpack.c.b16 %v6151, %v6143
        %v6280 = vpack.c.b16 %v6152, %v6144
        %v6281 = vpack.c.b16 %v6153, %v6145
        %6410 = vmatpush.bf16.msra.mxu0 %v6210
        %6411 = vmatpush.bf16.msra.mxu0 %v6202
        %6412 = vmatpush.bf16.msra.mxu0 %v6194
        %6413 = vmatpush.bf16.msra.mxu0 %v6186
        %6414 = vmatpush.bf16.msra.mxu0 %v6178
        %6415 = vmatpush.bf16.msra.mxu0 %v6170
        %6416 = vmatpush.bf16.msra.mxu0 %v6162
        %6417 = vmatpush.bf16.msra.mxu0 %v6154
        %6418 = vmatmul.bf16.gmra.mxu0 %v3603
        %v6419 = vpop.f32.mrf.mxu0
        %v6420 = vadd.f32 0.0, %v6419
        %v6421 = vpop.f32.mrf.mxu0
        %v6422 = vadd.f32 0.0, %v6421
        %6423 = vdwg.mxu0
        %6424 = vmatpush.bf16.msra.mxu0 %v6274
        %6425 = vmatpush.bf16.msra.mxu0 %v6266
        %6426 = vmatpush.bf16.msra.mxu0 %v6258
        %6427 = vmatpush.bf16.msra.mxu0 %v6250
        %6428 = vmatpush.bf16.msra.mxu0 %v6242
        %6429 = vmatpush.bf16.msra.mxu0 %v6234
        %6430 = vmatpush.bf16.msra.mxu0 %v6226
        %6431 = vmatpush.bf16.msra.mxu0 %v6218
        %6432 = vmatmul.bf16.gmra.mxu0 %v3604
        %v6433 = vpop.f32.mrf.mxu0
        %v6434 = vadd.f32 %v6420, %v6433
        %v6435 = vpop.f32.mrf.mxu0
        %v6436 = vadd.f32 %v6422, %v6435
        %6437 = vdwg.mxu0
        %6438 = vmatpush.bf16.msra.mxu0 %v6211
        %6439 = vmatpush.bf16.msra.mxu0 %v6203
        %6440 = vmatpush.bf16.msra.mxu0 %v6195
        %6441 = vmatpush.bf16.msra.mxu0 %v6187
        %6442 = vmatpush.bf16.msra.mxu0 %v6179
        %6443 = vmatpush.bf16.msra.mxu0 %v6171
        %6444 = vmatpush.bf16.msra.mxu0 %v6163
        %6445 = vmatpush.bf16.msra.mxu0 %v6155
        %6446 = vmatmul.bf16.gmra.mxu0 %v3603
        %v6447 = vpop.f32.mrf.mxu0
        %v6448 = vadd.f32 0.0, %v6447
        %v6449 = vpop.f32.mrf.mxu0
        %v6450 = vadd.f32 0.0, %v6449
        %6451 = vdwg.mxu0
        %6452 = vmatpush.bf16.msra.mxu0 %v6275
        %6453 = vmatpush.bf16.msra.mxu0 %v6267
        %6454 = vmatpush.bf16.msra.mxu0 %v6259
        %6455 = vmatpush.bf16.msra.mxu0 %v6251
        %6456 = vmatpush.bf16.msra.mxu0 %v6243
        %6457 = vmatpush.bf16.msra.mxu0 %v6235
        %6458 = vmatpush.bf16.msra.mxu0 %v6227
        %6459 = vmatpush.bf16.msra.mxu0 %v6219
        %6460 = vmatmul.bf16.gmra.mxu0 %v3604
        %v6461 = vpop.f32.mrf.mxu0
        %v6462 = vadd.f32 %v6448, %v6461
        %v6463 = vpop.f32.mrf.mxu0
        %v6464 = vadd.f32 %v6450, %v6463
        %6465 = vdwg.mxu0
        %6466 = vmatpush.bf16.msra.mxu0 %v6212
        %6467 = vmatpush.bf16.msra.mxu0 %v6204
        %6468 = vmatpush.bf16.msra.mxu0 %v6196
        %6469 = vmatpush.bf16.msra.mxu0 %v6188
        %6470 = vmatpush.bf16.msra.mxu0 %v6180
        %6471 = vmatpush.bf16.msra.mxu0 %v6172
        %6472 = vmatpush.bf16.msra.mxu0 %v6164
        %6473 = vmatpush.bf16.msra.mxu0 %v6156
        %6474 = vmatmul.bf16.gmra.mxu0 %v3603
        %v6475 = vpop.f32.mrf.mxu0
        %v6476 = vadd.f32 0.0, %v6475
        %v6477 = vpop.f32.mrf.mxu0
        %v6478 = vadd.f32 0.0, %v6477
        %6479 = vdwg.mxu0
        %6480 = vmatpush.bf16.msra.mxu0 %v6276
        %6481 = vmatpush.bf16.msra.mxu0 %v6268
        %6482 = vmatpush.bf16.msra.mxu0 %v6260
        %6483 = vmatpush.bf16.msra.mxu0 %v6252
        %6484 = vmatpush.bf16.msra.mxu0 %v6244
        %6485 = vmatpush.bf16.msra.mxu0 %v6236
        %6486 = vmatpush.bf16.msra.mxu0 %v6228
        %6487 = vmatpush.bf16.msra.mxu0 %v6220
        %6488 = vmatmul.bf16.gmra.mxu0 %v3604
        %v6489 = vpop.f32.mrf.mxu0
        %v6490 = vadd.f32 %v6476, %v6489
        %v6491 = vpop.f32.mrf.mxu0
        %v6492 = vadd.f32 %v6478, %v6491
        %6493 = vdwg.mxu0
        %6494 = vmatpush.bf16.msra.mxu0 %v6213
        %6495 = vmatpush.bf16.msra.mxu0 %v6205
        %6496 = vmatpush.bf16.msra.mxu0 %v6197
        %6497 = vmatpush.bf16.msra.mxu0 %v6189
        %6498 = vmatpush.bf16.msra.mxu0 %v6181
        %6499 = vmatpush.bf16.msra.mxu0 %v6173
        %6500 = vmatpush.bf16.msra.mxu0 %v6165
        %6501 = vmatpush.bf16.msra.mxu0 %v6157
        %6502 = vmatmul.bf16.gmra.mxu0 %v3603
        %v6503 = vpop.f32.mrf.mxu0
        %v6504 = vadd.f32 0.0, %v6503
        %v6505 = vpop.f32.mrf.mxu0
        %v6506 = vadd.f32 0.0, %v6505
        %6507 = vdwg.mxu0
        %6508 = vmatpush.bf16.msra.mxu0 %v6277
        %6509 = vmatpush.bf16.msra.mxu0 %v6269
        %6510 = vmatpush.bf16.msra.mxu0 %v6261
        %6511 = vmatpush.bf16.msra.mxu0 %v6253
        %6512 = vmatpush.bf16.msra.mxu0 %v6245
        %6513 = vmatpush.bf16.msra.mxu0 %v6237
        %6514 = vmatpush.bf16.msra.mxu0 %v6229
        %6515 = vmatpush.bf16.msra.mxu0 %v6221
        %6516 = vmatmul.bf16.gmra.mxu0 %v3604
        %v6517 = vpop.f32.mrf.mxu0
        %v6518 = vadd.f32 %v6504, %v6517
        %v6519 = vpop.f32.mrf.mxu0
        %v6520 = vadd.f32 %v6506, %v6519
        %6521 = vdwg.mxu0
        %6522 = vmatpush.bf16.msra.mxu0 %v6214
        %6523 = vmatpush.bf16.msra.mxu0 %v6206
        %6524 = vmatpush.bf16.msra.mxu0 %v6198
        %6525 = vmatpush.bf16.msra.mxu0 %v6190
        %6526 = vmatpush.bf16.msra.mxu0 %v6182
        %6527 = vmatpush.bf16.msra.mxu0 %v6174
        %6528 = vmatpush.bf16.msra.mxu0 %v6166
        %6529 = vmatpush.bf16.msra.mxu0 %v6158
        %6530 = vmatmul.bf16.gmra.mxu0 %v3603
        %v6531 = vpop.f32.mrf.mxu0
        %v6532 = vadd.f32 0.0, %v6531
        %v6533 = vpop.f32.mrf.mxu0
        %v6534 = vadd.f32 0.0, %v6533
        %6535 = vdwg.mxu0
        %6536 = vmatpush.bf16.msra.mxu0 %v6278
        %6537 = vmatpush.bf16.msra.mxu0 %v6270
        %6538 = vmatpush.bf16.msra.mxu0 %v6262
        %6539 = vmatpush.bf16.msra.mxu0 %v6254
        %6540 = vmatpush.bf16.msra.mxu0 %v6246
        %6541 = vmatpush.bf16.msra.mxu0 %v6238
        %6542 = vmatpush.bf16.msra.mxu0 %v6230
        %6543 = vmatpush.bf16.msra.mxu0 %v6222
        %6544 = vmatmul.bf16.gmra.mxu0 %v3604
        %v6545 = vpop.f32.mrf.mxu0
        %v6546 = vadd.f32 %v6532, %v6545
        %v6547 = vpop.f32.mrf.mxu0
        %v6548 = vadd.f32 %v6534, %v6547
        %6549 = vdwg.mxu0
        %6550 = vmatpush.bf16.msra.mxu0 %v6215
        %6551 = vmatpush.bf16.msra.mxu0 %v6207
        %6552 = vmatpush.bf16.msra.mxu0 %v6199
        %6553 = vmatpush.bf16.msra.mxu0 %v6191
        %6554 = vmatpush.bf16.msra.mxu0 %v6183
        %6555 = vmatpush.bf16.msra.mxu0 %v6175
        %6556 = vmatpush.bf16.msra.mxu0 %v6167
        %6557 = vmatpush.bf16.msra.mxu0 %v6159
        %6558 = vmatmul.bf16.gmra.mxu0 %v3603
        %v6559 = vpop.f32.mrf.mxu0
        %v6560 = vadd.f32 0.0, %v6559
        %v6561 = vpop.f32.mrf.mxu0
        %v6562 = vadd.f32 0.0, %v6561
        %6563 = vdwg.mxu0
        %6564 = vmatpush.bf16.msra.mxu0 %v6279
        %6565 = vmatpush.bf16.msra.mxu0 %v6271
        %6566 = vmatpush.bf16.msra.mxu0 %v6263
        %6567 = vmatpush.bf16.msra.mxu0 %v6255
        %6568 = vmatpush.bf16.msra.mxu0 %v6247
        %6569 = vmatpush.bf16.msra.mxu0 %v6239
        %6570 = vmatpush.bf16.msra.mxu0 %v6231
        %6571 = vmatpush.bf16.msra.mxu0 %v6223
        %6572 = vmatmul.bf16.gmra.mxu0 %v3604
        %v6573 = vpop.f32.mrf.mxu0
        %v6574 = vadd.f32 %v6560, %v6573
        %v6575 = vpop.f32.mrf.mxu0
        %v6576 = vadd.f32 %v6562, %v6575
        %6577 = vdwg.mxu0
        %6578 = vmatpush.bf16.msra.mxu0 %v6216
        %6579 = vmatpush.bf16.msra.mxu0 %v6208
        %6580 = vmatpush.bf16.msra.mxu0 %v6200
        %6581 = vmatpush.bf16.msra.mxu0 %v6192
        %6582 = vmatpush.bf16.msra.mxu0 %v6184
        %6583 = vmatpush.bf16.msra.mxu0 %v6176
        %6584 = vmatpush.bf16.msra.mxu0 %v6168
        %6585 = vmatpush.bf16.msra.mxu0 %v6160
        %6586 = vmatmul.bf16.gmra.mxu0 %v3603
        %v6587 = vpop.f32.mrf.mxu0
        %v6588 = vadd.f32 0.0, %v6587
        %v6589 = vpop.f32.mrf.mxu0
        %v6590 = vadd.f32 0.0, %v6589
        %6591 = vdwg.mxu0
        %6592 = vmatpush.bf16.msra.mxu0 %v6280
        %6593 = vmatpush.bf16.msra.mxu0 %v6272
        %6594 = vmatpush.bf16.msra.mxu0 %v6264
        %6595 = vmatpush.bf16.msra.mxu0 %v6256
        %6596 = vmatpush.bf16.msra.mxu0 %v6248
        %6597 = vmatpush.bf16.msra.mxu0 %v6240
        %6598 = vmatpush.bf16.msra.mxu0 %v6232
        %6599 = vmatpush.bf16.msra.mxu0 %v6224
        %6600 = vmatmul.bf16.gmra.mxu0 %v3604
        %v6601 = vpop.f32.mrf.mxu0
        %v6602 = vadd.f32 %v6588, %v6601
        %v6603 = vpop.f32.mrf.mxu0
        %v6604 = vadd.f32 %v6590, %v6603
        %6605 = vdwg.mxu0
        %6606 = vmatpush.bf16.msra.mxu0 %v6217
        %6607 = vmatpush.bf16.msra.mxu0 %v6209
        %6608 = vmatpush.bf16.msra.mxu0 %v6201
        %6609 = vmatpush.bf16.msra.mxu0 %v6193
        %6610 = vmatpush.bf16.msra.mxu0 %v6185
        %6611 = vmatpush.bf16.msra.mxu0 %v6177
        %6612 = vmatpush.bf16.msra.mxu0 %v6169
        %6613 = vmatpush.bf16.msra.mxu0 %v6161
        %6614 = vmatmul.bf16.gmra.mxu0 %v3603
        %v6615 = vpop.f32.mrf.mxu0
        %v6616 = vadd.f32 0.0, %v6615
        %v6617 = vpop.f32.mrf.mxu0
        %v6618 = vadd.f32 0.0, %v6617
        %6619 = vdwg.mxu0
        %6620 = vmatpush.bf16.msra.mxu0 %v6281
        %6621 = vmatpush.bf16.msra.mxu0 %v6273
        %6622 = vmatpush.bf16.msra.mxu0 %v6265
        %6623 = vmatpush.bf16.msra.mxu0 %v6257
        %6624 = vmatpush.bf16.msra.mxu0 %v6249
        %6625 = vmatpush.bf16.msra.mxu0 %v6241
        %6626 = vmatpush.bf16.msra.mxu0 %v6233
        %6627 = vmatpush.bf16.msra.mxu0 %v6225
        %6628 = vmatmul.bf16.gmra.mxu0 %v3604
        %v6629 = vpop.f32.mrf.mxu0
        %v6630 = vadd.f32 %v6616, %v6629
        %v6631 = vpop.f32.mrf.mxu0
        %v6632 = vadd.f32 %v6618, %v6631
        %6633 = vdwg.mxu0
        %v6634 = vadd.f32 %v5440, %v6434
        %v6635 = vadd.f32 %v5468, %v6462
        %v6636 = vadd.f32 %v5496, %v6490
        %v6637 = vadd.f32 %v5524, %v6518
        %v6638 = vadd.f32 %v5552, %v6546
        %v6639 = vadd.f32 %v5580, %v6574
        %v6640 = vadd.f32 %v5608, %v6602
        %v6641 = vadd.f32 %v5636, %v6630
        %v6642 = vadd.f32 %v5442, %v6436
        %v6643 = vadd.f32 %v5470, %v6464
        %v6644 = vadd.f32 %v5498, %v6492
        %v6645 = vadd.f32 %v5526, %v6520
        %v6646 = vadd.f32 %v5554, %v6548
        %v6647 = vadd.f32 %v5582, %v6576
        %v6648 = vadd.f32 %v5610, %v6604
        %v6649 = vadd.f32 %v5638, %v6632
        %v6650 = vld [vmem:[#allocation12] sm:$0xff]
        %v6651 = vld [vmem:[#allocation12 + $0x8] sm:$0xff]
        %v6652 = vld [vmem:[#allocation12 + $0x10] sm:$0xff]
        %v6653 = vld [vmem:[#allocation12 + $0x18] sm:$0xff]
        %v6654 = vld [vmem:[#allocation12 + $0x20] sm:$0xff]
        %v6655 = vld [vmem:[#allocation12 + $0x28] sm:$0xff]
        %v6656 = vld [vmem:[#allocation12 + $0x30] sm:$0xff]
        %v6657 = vld [vmem:[#allocation12 + $0x38] sm:$0xff]
        %v6658 = vld [vmem:[#allocation12 + $0x40] sm:$0xff]
        %v6659 = vld [vmem:[#allocation12 + $0x48] sm:$0xff]
        %v6660 = vld [vmem:[#allocation12 + $0x50] sm:$0xff]
        %v6661 = vld [vmem:[#allocation12 + $0x58] sm:$0xff]
        %v6662 = vld [vmem:[#allocation12 + $0x60] sm:$0xff]
        %v6663 = vld [vmem:[#allocation12 + $0x68] sm:$0xff]
        %v6664 = vld [vmem:[#allocation12 + $0x70] sm:$0xff]
        %v6665 = vld [vmem:[#allocation12 + $0x78] sm:$0xff]
        %v6666 = vld [vmem:[#allocation12 + $0x80] sm:$0xff]
        %v6667 = vld [vmem:[#allocation12 + $0x88] sm:$0xff]
        %v6668 = vld [vmem:[#allocation12 + $0x90] sm:$0xff]
        %v6669 = vld [vmem:[#allocation12 + $0x98] sm:$0xff]
        %v6670 = vld [vmem:[#allocation12 + $0xa0] sm:$0xff]
        %v6671 = vld [vmem:[#allocation12 + $0xa8] sm:$0xff]
        %v6672 = vld [vmem:[#allocation12 + $0xb0] sm:$0xff]
        %v6673 = vld [vmem:[#allocation12 + $0xb8] sm:$0xff]
        %v6674 = vld [vmem:[#allocation12 + $0xc0] sm:$0xff]
        %v6675 = vld [vmem:[#allocation12 + $0xc8] sm:$0xff]
        %v6676 = vld [vmem:[#allocation12 + $0xd0] sm:$0xff]
        %v6677 = vld [vmem:[#allocation12 + $0xd8] sm:$0xff]
        %v6678 = vld [vmem:[#allocation12 + $0xe0] sm:$0xff]
        %v6679 = vld [vmem:[#allocation12 + $0xe8] sm:$0xff]
        %v6680 = vld [vmem:[#allocation12 + $0xf0] sm:$0xff]
        %v6681 = vld [vmem:[#allocation12 + $0xf8] sm:$0xff]
        %v6682 = vld [vmem:[#allocation12 + $0x100] sm:$0xff]
        %v6683 = vld [vmem:[#allocation12 + $0x108] sm:$0xff]
        %v6684 = vld [vmem:[#allocation12 + $0x110] sm:$0xff]
        %v6685 = vld [vmem:[#allocation12 + $0x118] sm:$0xff]
        %v6686 = vld [vmem:[#allocation12 + $0x120] sm:$0xff]
        %v6687 = vld [vmem:[#allocation12 + $0x128] sm:$0xff]
        %v6688 = vld [vmem:[#allocation12 + $0x130] sm:$0xff]
        %v6689 = vld [vmem:[#allocation12 + $0x138] sm:$0xff]
        %v6690 = vld [vmem:[#allocation12 + $0x140] sm:$0xff]
        %v6691 = vld [vmem:[#allocation12 + $0x148] sm:$0xff]
        %v6692 = vld [vmem:[#allocation12 + $0x150] sm:$0xff]
        %v6693 = vld [vmem:[#allocation12 + $0x158] sm:$0xff]
        %v6694 = vld [vmem:[#allocation12 + $0x160] sm:$0xff]
        %v6695 = vld [vmem:[#allocation12 + $0x168] sm:$0xff]
        %v6696 = vld [vmem:[#allocation12 + $0x170] sm:$0xff]
        %v6697 = vld [vmem:[#allocation12 + $0x178] sm:$0xff]
        %v6698 = vld [vmem:[#allocation12 + $0x180] sm:$0xff]
        %v6699 = vld [vmem:[#allocation12 + $0x188] sm:$0xff]
        %v6700 = vld [vmem:[#allocation12 + $0x190] sm:$0xff]
        %v6701 = vld [vmem:[#allocation12 + $0x198] sm:$0xff]
        %v6702 = vld [vmem:[#allocation12 + $0x1a0] sm:$0xff]
        %v6703 = vld [vmem:[#allocation12 + $0x1a8] sm:$0xff]
        %v6704 = vld [vmem:[#allocation12 + $0x1b0] sm:$0xff]
        %v6705 = vld [vmem:[#allocation12 + $0x1b8] sm:$0xff]
        %v6706 = vld [vmem:[#allocation12 + $0x1c0] sm:$0xff]
        %v6707 = vld [vmem:[#allocation12 + $0x1c8] sm:$0xff]
        %v6708 = vld [vmem:[#allocation12 + $0x1d0] sm:$0xff]
        %v6709 = vld [vmem:[#allocation12 + $0x1d8] sm:$0xff]
        %v6710 = vld [vmem:[#allocation12 + $0x1e0] sm:$0xff]
        %v6711 = vld [vmem:[#allocation12 + $0x1e8] sm:$0xff]
        %v6712 = vld [vmem:[#allocation12 + $0x1f0] sm:$0xff]
        %v6713 = vld [vmem:[#allocation12 + $0x1f8] sm:$0xff]
        %v6714 = vld [vmem:[#allocation12 + $0x200] sm:$0xff]
        %v6715 = vld [vmem:[#allocation12 + $0x208] sm:$0xff]
        %v6716 = vld [vmem:[#allocation12 + $0x210] sm:$0xff]
        %v6717 = vld [vmem:[#allocation12 + $0x218] sm:$0xff]
        %v6718 = vld [vmem:[#allocation12 + $0x220] sm:$0xff]
        %v6719 = vld [vmem:[#allocation12 + $0x228] sm:$0xff]
        %v6720 = vld [vmem:[#allocation12 + $0x230] sm:$0xff]
        %v6721 = vld [vmem:[#allocation12 + $0x238] sm:$0xff]
        %v6722 = vld [vmem:[#allocation12 + $0x240] sm:$0xff]
        %v6723 = vld [vmem:[#allocation12 + $0x248] sm:$0xff]
        %v6724 = vld [vmem:[#allocation12 + $0x250] sm:$0xff]
        %v6725 = vld [vmem:[#allocation12 + $0x258] sm:$0xff]
        %v6726 = vld [vmem:[#allocation12 + $0x260] sm:$0xff]
        %v6727 = vld [vmem:[#allocation12 + $0x268] sm:$0xff]
        %v6728 = vld [vmem:[#allocation12 + $0x270] sm:$0xff]
        %v6729 = vld [vmem:[#allocation12 + $0x278] sm:$0xff]
        %v6730 = vld [vmem:[#allocation12 + $0x280] sm:$0xff]
        %v6731 = vld [vmem:[#allocation12 + $0x288] sm:$0xff]
        %v6732 = vld [vmem:[#allocation12 + $0x290] sm:$0xff]
        %v6733 = vld [vmem:[#allocation12 + $0x298] sm:$0xff]
        %v6734 = vld [vmem:[#allocation12 + $0x2a0] sm:$0xff]
        %v6735 = vld [vmem:[#allocation12 + $0x2a8] sm:$0xff]
        %v6736 = vld [vmem:[#allocation12 + $0x2b0] sm:$0xff]
        %v6737 = vld [vmem:[#allocation12 + $0x2b8] sm:$0xff]
        %v6738 = vld [vmem:[#allocation12 + $0x2c0] sm:$0xff]
        %v6739 = vld [vmem:[#allocation12 + $0x2c8] sm:$0xff]
        %v6740 = vld [vmem:[#allocation12 + $0x2d0] sm:$0xff]
        %v6741 = vld [vmem:[#allocation12 + $0x2d8] sm:$0xff]
        %v6742 = vld [vmem:[#allocation12 + $0x2e0] sm:$0xff]
        %v6743 = vld [vmem:[#allocation12 + $0x2e8] sm:$0xff]
        %v6744 = vld [vmem:[#allocation12 + $0x2f0] sm:$0xff]
        %v6745 = vld [vmem:[#allocation12 + $0x2f8] sm:$0xff]
        %v6746 = vld [vmem:[#allocation12 + $0x300] sm:$0xff]
        %v6747 = vld [vmem:[#allocation12 + $0x308] sm:$0xff]
        %v6748 = vld [vmem:[#allocation12 + $0x310] sm:$0xff]
        %v6749 = vld [vmem:[#allocation12 + $0x318] sm:$0xff]
        %v6750 = vld [vmem:[#allocation12 + $0x320] sm:$0xff]
        %v6751 = vld [vmem:[#allocation12 + $0x328] sm:$0xff]
        %v6752 = vld [vmem:[#allocation12 + $0x330] sm:$0xff]
        %v6753 = vld [vmem:[#allocation12 + $0x338] sm:$0xff]
        %v6754 = vld [vmem:[#allocation12 + $0x340] sm:$0xff]
        %v6755 = vld [vmem:[#allocation12 + $0x348] sm:$0xff]
        %v6756 = vld [vmem:[#allocation12 + $0x350] sm:$0xff]
        %v6757 = vld [vmem:[#allocation12 + $0x358] sm:$0xff]
        %v6758 = vld [vmem:[#allocation12 + $0x360] sm:$0xff]
        %v6759 = vld [vmem:[#allocation12 + $0x368] sm:$0xff]
        %v6760 = vld [vmem:[#allocation12 + $0x370] sm:$0xff]
        %v6761 = vld [vmem:[#allocation12 + $0x378] sm:$0xff]
        %v6762 = vld [vmem:[#allocation12 + $0x380] sm:$0xff]
        %v6763 = vld [vmem:[#allocation12 + $0x388] sm:$0xff]
        %v6764 = vld [vmem:[#allocation12 + $0x390] sm:$0xff]
        %v6765 = vld [vmem:[#allocation12 + $0x398] sm:$0xff]
        %v6766 = vld [vmem:[#allocation12 + $0x3a0] sm:$0xff]
        %v6767 = vld [vmem:[#allocation12 + $0x3a8] sm:$0xff]
        %v6768 = vld [vmem:[#allocation12 + $0x3b0] sm:$0xff]
        %v6769 = vld [vmem:[#allocation12 + $0x3b8] sm:$0xff]
        %v6770 = vld [vmem:[#allocation12 + $0x3c0] sm:$0xff]
        %v6771 = vld [vmem:[#allocation12 + $0x3c8] sm:$0xff]
        %v6772 = vld [vmem:[#allocation12 + $0x3d0] sm:$0xff]
        %v6773 = vld [vmem:[#allocation12 + $0x3d8] sm:$0xff]
        %v6774 = vld [vmem:[#allocation12 + $0x3e0] sm:$0xff]
        %v6775 = vld [vmem:[#allocation12 + $0x3e8] sm:$0xff]
        %v6776 = vld [vmem:[#allocation12 + $0x3f0] sm:$0xff]
        %v6777 = vld [vmem:[#allocation12 + $0x3f8] sm:$0xff]
        %v6906 = vunpack.c.l.b16 %v6650
        %v6907 = vunpack.c.h.b16 %v6650
        %v6908 = vunpack.c.l.b16 %v6651
        %v6909 = vunpack.c.h.b16 %v6651
        %v6910 = vunpack.c.l.b16 %v6652
        %v6911 = vunpack.c.h.b16 %v6652
        %v6912 = vunpack.c.l.b16 %v6653
        %v6913 = vunpack.c.h.b16 %v6653
        %v6914 = vunpack.c.l.b16 %v6654
        %v6915 = vunpack.c.h.b16 %v6654
        %v6916 = vunpack.c.l.b16 %v6655
        %v6917 = vunpack.c.h.b16 %v6655
        %v6918 = vunpack.c.l.b16 %v6656
        %v6919 = vunpack.c.h.b16 %v6656
        %v6920 = vunpack.c.l.b16 %v6657
        %v6921 = vunpack.c.h.b16 %v6657
        %v6922 = vunpack.c.l.b16 %v6658
        %v6923 = vunpack.c.h.b16 %v6658
        %v6924 = vunpack.c.l.b16 %v6659
        %v6925 = vunpack.c.h.b16 %v6659
        %v6926 = vunpack.c.l.b16 %v6660
        %v6927 = vunpack.c.h.b16 %v6660
        %v6928 = vunpack.c.l.b16 %v6661
        %v6929 = vunpack.c.h.b16 %v6661
        %v6930 = vunpack.c.l.b16 %v6662
        %v6931 = vunpack.c.h.b16 %v6662
        %v6932 = vunpack.c.l.b16 %v6663
        %v6933 = vunpack.c.h.b16 %v6663
        %v6934 = vunpack.c.l.b16 %v6664
        %v6935 = vunpack.c.h.b16 %v6664
        %v6936 = vunpack.c.l.b16 %v6665
        %v6937 = vunpack.c.h.b16 %v6665
        %v6938 = vunpack.c.l.b16 %v6666
        %v6939 = vunpack.c.h.b16 %v6666
        %v6940 = vunpack.c.l.b16 %v6667
        %v6941 = vunpack.c.h.b16 %v6667
        %v6942 = vunpack.c.l.b16 %v6668
        %v6943 = vunpack.c.h.b16 %v6668
        %v6944 = vunpack.c.l.b16 %v6669
        %v6945 = vunpack.c.h.b16 %v6669
        %v6946 = vunpack.c.l.b16 %v6670
        %v6947 = vunpack.c.h.b16 %v6670
        %v6948 = vunpack.c.l.b16 %v6671
        %v6949 = vunpack.c.h.b16 %v6671
        %v6950 = vunpack.c.l.b16 %v6672
        %v6951 = vunpack.c.h.b16 %v6672
        %v6952 = vunpack.c.l.b16 %v6673
        %v6953 = vunpack.c.h.b16 %v6673
        %v6954 = vunpack.c.l.b16 %v6674
        %v6955 = vunpack.c.h.b16 %v6674
        %v6956 = vunpack.c.l.b16 %v6675
        %v6957 = vunpack.c.h.b16 %v6675
        %v6958 = vunpack.c.l.b16 %v6676
        %v6959 = vunpack.c.h.b16 %v6676
        %v6960 = vunpack.c.l.b16 %v6677
        %v6961 = vunpack.c.h.b16 %v6677
        %v6962 = vunpack.c.l.b16 %v6678
        %v6963 = vunpack.c.h.b16 %v6678
        %v6964 = vunpack.c.l.b16 %v6679
        %v6965 = vunpack.c.h.b16 %v6679
        %v6966 = vunpack.c.l.b16 %v6680
        %v6967 = vunpack.c.h.b16 %v6680
        %v6968 = vunpack.c.l.b16 %v6681
        %v6969 = vunpack.c.h.b16 %v6681
        %v6970 = vunpack.c.l.b16 %v6682
        %v6971 = vunpack.c.h.b16 %v6682
        %v6972 = vunpack.c.l.b16 %v6683
        %v6973 = vunpack.c.h.b16 %v6683
        %v6974 = vunpack.c.l.b16 %v6684
        %v6975 = vunpack.c.h.b16 %v6684
        %v6976 = vunpack.c.l.b16 %v6685
        %v6977 = vunpack.c.h.b16 %v6685
        %v6978 = vunpack.c.l.b16 %v6686
        %v6979 = vunpack.c.h.b16 %v6686
        %v6980 = vunpack.c.l.b16 %v6687
        %v6981 = vunpack.c.h.b16 %v6687
        %v6982 = vunpack.c.l.b16 %v6688
        %v6983 = vunpack.c.h.b16 %v6688
        %v6984 = vunpack.c.l.b16 %v6689
        %v6985 = vunpack.c.h.b16 %v6689
        %v6986 = vunpack.c.l.b16 %v6690
        %v6987 = vunpack.c.h.b16 %v6690
        %v6988 = vunpack.c.l.b16 %v6691
        %v6989 = vunpack.c.h.b16 %v6691
        %v6990 = vunpack.c.l.b16 %v6692
        %v6991 = vunpack.c.h.b16 %v6692
        %v6992 = vunpack.c.l.b16 %v6693
        %v6993 = vunpack.c.h.b16 %v6693
        %v6994 = vunpack.c.l.b16 %v6694
        %v6995 = vunpack.c.h.b16 %v6694
        %v6996 = vunpack.c.l.b16 %v6695
        %v6997 = vunpack.c.h.b16 %v6695
        %v6998 = vunpack.c.l.b16 %v6696
        %v6999 = vunpack.c.h.b16 %v6696
        %v7000 = vunpack.c.l.b16 %v6697
        %v7001 = vunpack.c.h.b16 %v6697
        %v7002 = vunpack.c.l.b16 %v6698
        %v7003 = vunpack.c.h.b16 %v6698
        %v7004 = vunpack.c.l.b16 %v6699
        %v7005 = vunpack.c.h.b16 %v6699
        %v7006 = vunpack.c.l.b16 %v6700
        %v7007 = vunpack.c.h.b16 %v6700
        %v7008 = vunpack.c.l.b16 %v6701
        %v7009 = vunpack.c.h.b16 %v6701
        %v7010 = vunpack.c.l.b16 %v6702
        %v7011 = vunpack.c.h.b16 %v6702
        %v7012 = vunpack.c.l.b16 %v6703
        %v7013 = vunpack.c.h.b16 %v6703
        %v7014 = vunpack.c.l.b16 %v6704
        %v7015 = vunpack.c.h.b16 %v6704
        %v7016 = vunpack.c.l.b16 %v6705
        %v7017 = vunpack.c.h.b16 %v6705
        %v7018 = vunpack.c.l.b16 %v6706
        %v7019 = vunpack.c.h.b16 %v6706
        %v7020 = vunpack.c.l.b16 %v6707
        %v7021 = vunpack.c.h.b16 %v6707
        %v7022 = vunpack.c.l.b16 %v6708
        %v7023 = vunpack.c.h.b16 %v6708
        %v7024 = vunpack.c.l.b16 %v6709
        %v7025 = vunpack.c.h.b16 %v6709
        %v7026 = vunpack.c.l.b16 %v6710
        %v7027 = vunpack.c.h.b16 %v6710
        %v7028 = vunpack.c.l.b16 %v6711
        %v7029 = vunpack.c.h.b16 %v6711
        %v7030 = vunpack.c.l.b16 %v6712
        %v7031 = vunpack.c.h.b16 %v6712
        %v7032 = vunpack.c.l.b16 %v6713
        %v7033 = vunpack.c.h.b16 %v6713
        %v7034 = vunpack.c.l.b16 %v6714
        %v7035 = vunpack.c.h.b16 %v6714
        %v7036 = vunpack.c.l.b16 %v6715
        %v7037 = vunpack.c.h.b16 %v6715
        %v7038 = vunpack.c.l.b16 %v6716
        %v7039 = vunpack.c.h.b16 %v6716
        %v7040 = vunpack.c.l.b16 %v6717
        %v7041 = vunpack.c.h.b16 %v6717
        %v7042 = vunpack.c.l.b16 %v6718
        %v7043 = vunpack.c.h.b16 %v6718
        %v7044 = vunpack.c.l.b16 %v6719
        %v7045 = vunpack.c.h.b16 %v6719
        %v7046 = vunpack.c.l.b16 %v6720
        %v7047 = vunpack.c.h.b16 %v6720
        %v7048 = vunpack.c.l.b16 %v6721
        %v7049 = vunpack.c.h.b16 %v6721
        %v7050 = vunpack.c.l.b16 %v6722
        %v7051 = vunpack.c.h.b16 %v6722
        %v7052 = vunpack.c.l.b16 %v6723
        %v7053 = vunpack.c.h.b16 %v6723
        %v7054 = vunpack.c.l.b16 %v6724
        %v7055 = vunpack.c.h.b16 %v6724
        %v7056 = vunpack.c.l.b16 %v6725
        %v7057 = vunpack.c.h.b16 %v6725
        %v7058 = vunpack.c.l.b16 %v6726
        %v7059 = vunpack.c.h.b16 %v6726
        %v7060 = vunpack.c.l.b16 %v6727
        %v7061 = vunpack.c.h.b16 %v6727
        %v7062 = vunpack.c.l.b16 %v6728
        %v7063 = vunpack.c.h.b16 %v6728
        %v7064 = vunpack.c.l.b16 %v6729
        %v7065 = vunpack.c.h.b16 %v6729
        %v7066 = vunpack.c.l.b16 %v6730
        %v7067 = vunpack.c.h.b16 %v6730
        %v7068 = vunpack.c.l.b16 %v6731
        %v7069 = vunpack.c.h.b16 %v6731
        %v7070 = vunpack.c.l.b16 %v6732
        %v7071 = vunpack.c.h.b16 %v6732
        %v7072 = vunpack.c.l.b16 %v6733
        %v7073 = vunpack.c.h.b16 %v6733
        %v7074 = vunpack.c.l.b16 %v6734
        %v7075 = vunpack.c.h.b16 %v6734
        %v7076 = vunpack.c.l.b16 %v6735
        %v7077 = vunpack.c.h.b16 %v6735
        %v7078 = vunpack.c.l.b16 %v6736
        %v7079 = vunpack.c.h.b16 %v6736
        %v7080 = vunpack.c.l.b16 %v6737
        %v7081 = vunpack.c.h.b16 %v6737
        %v7082 = vunpack.c.l.b16 %v6738
        %v7083 = vunpack.c.h.b16 %v6738
        %v7084 = vunpack.c.l.b16 %v6739
        %v7085 = vunpack.c.h.b16 %v6739
        %v7086 = vunpack.c.l.b16 %v6740
        %v7087 = vunpack.c.h.b16 %v6740
        %v7088 = vunpack.c.l.b16 %v6741
        %v7089 = vunpack.c.h.b16 %v6741
        %v7090 = vunpack.c.l.b16 %v6742
        %v7091 = vunpack.c.h.b16 %v6742
        %v7092 = vunpack.c.l.b16 %v6743
        %v7093 = vunpack.c.h.b16 %v6743
        %v7094 = vunpack.c.l.b16 %v6744
        %v7095 = vunpack.c.h.b16 %v6744
        %v7096 = vunpack.c.l.b16 %v6745
        %v7097 = vunpack.c.h.b16 %v6745
        %v7098 = vunpack.c.l.b16 %v6746
        %v7099 = vunpack.c.h.b16 %v6746
        %v7100 = vunpack.c.l.b16 %v6747
        %v7101 = vunpack.c.h.b16 %v6747
        %v7102 = vunpack.c.l.b16 %v6748
        %v7103 = vunpack.c.h.b16 %v6748
        %v7104 = vunpack.c.l.b16 %v6749
        %v7105 = vunpack.c.h.b16 %v6749
        %v7106 = vunpack.c.l.b16 %v6750
        %v7107 = vunpack.c.h.b16 %v6750
        %v7108 = vunpack.c.l.b16 %v6751
        %v7109 = vunpack.c.h.b16 %v6751
        %v7110 = vunpack.c.l.b16 %v6752
        %v7111 = vunpack.c.h.b16 %v6752
        %v7112 = vunpack.c.l.b16 %v6753
        %v7113 = vunpack.c.h.b16 %v6753
        %v7114 = vunpack.c.l.b16 %v6754
        %v7115 = vunpack.c.h.b16 %v6754
        %v7116 = vunpack.c.l.b16 %v6755
        %v7117 = vunpack.c.h.b16 %v6755
        %v7118 = vunpack.c.l.b16 %v6756
        %v7119 = vunpack.c.h.b16 %v6756
        %v7120 = vunpack.c.l.b16 %v6757
        %v7121 = vunpack.c.h.b16 %v6757
        %v7122 = vunpack.c.l.b16 %v6758
        %v7123 = vunpack.c.h.b16 %v6758
        %v7124 = vunpack.c.l.b16 %v6759
        %v7125 = vunpack.c.h.b16 %v6759
        %v7126 = vunpack.c.l.b16 %v6760
        %v7127 = vunpack.c.h.b16 %v6760
        %v7128 = vunpack.c.l.b16 %v6761
        %v7129 = vunpack.c.h.b16 %v6761
        %v7130 = vunpack.c.l.b16 %v6762
        %v7131 = vunpack.c.h.b16 %v6762
        %v7132 = vunpack.c.l.b16 %v6763
        %v7133 = vunpack.c.h.b16 %v6763
        %v7134 = vunpack.c.l.b16 %v6764
        %v7135 = vunpack.c.h.b16 %v6764
        %v7136 = vunpack.c.l.b16 %v6765
        %v7137 = vunpack.c.h.b16 %v6765
        %v7138 = vunpack.c.l.b16 %v6766
        %v7139 = vunpack.c.h.b16 %v6766
        %v7140 = vunpack.c.l.b16 %v6767
        %v7141 = vunpack.c.h.b16 %v6767
        %v7142 = vunpack.c.l.b16 %v6768
        %v7143 = vunpack.c.h.b16 %v6768
        %v7144 = vunpack.c.l.b16 %v6769
        %v7145 = vunpack.c.h.b16 %v6769
        %v7146 = vunpack.c.l.b16 %v6770
        %v7147 = vunpack.c.h.b16 %v6770
        %v7148 = vunpack.c.l.b16 %v6771
        %v7149 = vunpack.c.h.b16 %v6771
        %v7150 = vunpack.c.l.b16 %v6772
        %v7151 = vunpack.c.h.b16 %v6772
        %v7152 = vunpack.c.l.b16 %v6773
        %v7153 = vunpack.c.h.b16 %v6773
        %v7154 = vunpack.c.l.b16 %v6774
        %v7155 = vunpack.c.h.b16 %v6774
        %v7156 = vunpack.c.l.b16 %v6775
        %v7157 = vunpack.c.h.b16 %v6775
        %v7158 = vunpack.c.l.b16 %v6776
        %v7159 = vunpack.c.h.b16 %v6776
        %v7160 = vunpack.c.l.b16 %v6777
        %v7161 = vunpack.c.h.b16 %v6777
        %v7162 = vpack.c.b16 %v6914, %v6906
        %v7163 = vpack.c.b16 %v6915, %v6907
        %v7164 = vpack.c.b16 %v6916, %v6908
        %v7165 = vpack.c.b16 %v6917, %v6909
        %v7166 = vpack.c.b16 %v6918, %v6910
        %v7167 = vpack.c.b16 %v6919, %v6911
        %v7168 = vpack.c.b16 %v6920, %v6912
        %v7169 = vpack.c.b16 %v6921, %v6913
        %v7170 = vpack.c.b16 %v6930, %v6922
        %v7171 = vpack.c.b16 %v6931, %v6923
        %v7172 = vpack.c.b16 %v6932, %v6924
        %v7173 = vpack.c.b16 %v6933, %v6925
        %v7174 = vpack.c.b16 %v6934, %v6926
        %v7175 = vpack.c.b16 %v6935, %v6927
        %v7176 = vpack.c.b16 %v6936, %v6928
        %v7177 = vpack.c.b16 %v6937, %v6929
        %v7178 = vpack.c.b16 %v6946, %v6938
        %v7179 = vpack.c.b16 %v6947, %v6939
        %v7180 = vpack.c.b16 %v6948, %v6940
        %v7181 = vpack.c.b16 %v6949, %v6941
        %v7182 = vpack.c.b16 %v6950, %v6942
        %v7183 = vpack.c.b16 %v6951, %v6943
        %v7184 = vpack.c.b16 %v6952, %v6944
        %v7185 = vpack.c.b16 %v6953, %v6945
        %v7186 = vpack.c.b16 %v6962, %v6954
        %v7187 = vpack.c.b16 %v6963, %v6955
        %v7188 = vpack.c.b16 %v6964, %v6956
        %v7189 = vpack.c.b16 %v6965, %v6957
        %v7190 = vpack.c.b16 %v6966, %v6958
        %v7191 = vpack.c.b16 %v6967, %v6959
        %v7192 = vpack.c.b16 %v6968, %v6960
        %v7193 = vpack.c.b16 %v6969, %v6961
        %v7194 = vpack.c.b16 %v6978, %v6970
        %v7195 = vpack.c.b16 %v6979, %v6971
        %v7196 = vpack.c.b16 %v6980, %v6972
        %v7197 = vpack.c.b16 %v6981, %v6973
        %v7198 = vpack.c.b16 %v6982, %v6974
        %v7199 = vpack.c.b16 %v6983, %v6975
        %v7200 = vpack.c.b16 %v6984, %v6976
        %v7201 = vpack.c.b16 %v6985, %v6977
        %v7202 = vpack.c.b16 %v6994, %v6986
        %v7203 = vpack.c.b16 %v6995, %v6987
        %v7204 = vpack.c.b16 %v6996, %v6988
        %v7205 = vpack.c.b16 %v6997, %v6989
        %v7206 = vpack.c.b16 %v6998, %v6990
        %v7207 = vpack.c.b16 %v6999, %v6991
        %v7208 = vpack.c.b16 %v7000, %v6992
        %v7209 = vpack.c.b16 %v7001, %v6993
        %v7210 = vpack.c.b16 %v7010, %v7002
        %v7211 = vpack.c.b16 %v7011, %v7003
        %v7212 = vpack.c.b16 %v7012, %v7004
        %v7213 = vpack.c.b16 %v7013, %v7005
        %v7214 = vpack.c.b16 %v7014, %v7006
        %v7215 = vpack.c.b16 %v7015, %v7007
        %v7216 = vpack.c.b16 %v7016, %v7008
        %v7217 = vpack.c.b16 %v7017, %v7009
        %v7218 = vpack.c.b16 %v7026, %v7018
        %v7219 = vpack.c.b16 %v7027, %v7019
        %v7220 = vpack.c.b16 %v7028, %v7020
        %v7221 = vpack.c.b16 %v7029, %v7021
        %v7222 = vpack.c.b16 %v7030, %v7022
        %v7223 = vpack.c.b16 %v7031, %v7023
        %v7224 = vpack.c.b16 %v7032, %v7024
        %v7225 = vpack.c.b16 %v7033, %v7025
        %v7226 = vpack.c.b16 %v7042, %v7034
        %v7227 = vpack.c.b16 %v7043, %v7035
        %v7228 = vpack.c.b16 %v7044, %v7036
        %v7229 = vpack.c.b16 %v7045, %v7037
        %v7230 = vpack.c.b16 %v7046, %v7038
        %v7231 = vpack.c.b16 %v7047, %v7039
        %v7232 = vpack.c.b16 %v7048, %v7040
        %v7233 = vpack.c.b16 %v7049, %v7041
        %v7234 = vpack.c.b16 %v7058, %v7050
        %v7235 = vpack.c.b16 %v7059, %v7051
        %v7236 = vpack.c.b16 %v7060, %v7052
        %v7237 = vpack.c.b16 %v7061, %v7053
        %v7238 = vpack.c.b16 %v7062, %v7054
        %v7239 = vpack.c.b16 %v7063, %v7055
        %v7240 = vpack.c.b16 %v7064, %v7056
        %v7241 = vpack.c.b16 %v7065, %v7057
        %v7242 = vpack.c.b16 %v7074, %v7066
        %v7243 = vpack.c.b16 %v7075, %v7067
        %v7244 = vpack.c.b16 %v7076, %v7068
        %v7245 = vpack.c.b16 %v7077, %v7069
        %v7246 = vpack.c.b16 %v7078, %v7070
        %v7247 = vpack.c.b16 %v7079, %v7071
        %v7248 = vpack.c.b16 %v7080, %v7072
        %v7249 = vpack.c.b16 %v7081, %v7073
        %v7250 = vpack.c.b16 %v7090, %v7082
        %v7251 = vpack.c.b16 %v7091, %v7083
        %v7252 = vpack.c.b16 %v7092, %v7084
        %v7253 = vpack.c.b16 %v7093, %v7085
        %v7254 = vpack.c.b16 %v7094, %v7086
        %v7255 = vpack.c.b16 %v7095, %v7087
        %v7256 = vpack.c.b16 %v7096, %v7088
        %v7257 = vpack.c.b16 %v7097, %v7089
        %v7258 = vpack.c.b16 %v7106, %v7098
        %v7259 = vpack.c.b16 %v7107, %v7099
        %v7260 = vpack.c.b16 %v7108, %v7100
        %v7261 = vpack.c.b16 %v7109, %v7101
        %v7262 = vpack.c.b16 %v7110, %v7102
        %v7263 = vpack.c.b16 %v7111, %v7103
        %v7264 = vpack.c.b16 %v7112, %v7104
        %v7265 = vpack.c.b16 %v7113, %v7105
        %v7266 = vpack.c.b16 %v7122, %v7114
        %v7267 = vpack.c.b16 %v7123, %v7115
        %v7268 = vpack.c.b16 %v7124, %v7116
        %v7269 = vpack.c.b16 %v7125, %v7117
        %v7270 = vpack.c.b16 %v7126, %v7118
        %v7271 = vpack.c.b16 %v7127, %v7119
        %v7272 = vpack.c.b16 %v7128, %v7120
        %v7273 = vpack.c.b16 %v7129, %v7121
        %v7274 = vpack.c.b16 %v7138, %v7130
        %v7275 = vpack.c.b16 %v7139, %v7131
        %v7276 = vpack.c.b16 %v7140, %v7132
        %v7277 = vpack.c.b16 %v7141, %v7133
        %v7278 = vpack.c.b16 %v7142, %v7134
        %v7279 = vpack.c.b16 %v7143, %v7135
        %v7280 = vpack.c.b16 %v7144, %v7136
        %v7281 = vpack.c.b16 %v7145, %v7137
        %v7282 = vpack.c.b16 %v7154, %v7146
        %v7283 = vpack.c.b16 %v7155, %v7147
        %v7284 = vpack.c.b16 %v7156, %v7148
        %v7285 = vpack.c.b16 %v7157, %v7149
        %v7286 = vpack.c.b16 %v7158, %v7150
        %v7287 = vpack.c.b16 %v7159, %v7151
        %v7288 = vpack.c.b16 %v7160, %v7152
        %v7289 = vpack.c.b16 %v7161, %v7153
        %7418 = vmatpush.bf16.msra.mxu0 %v7218
        %7419 = vmatpush.bf16.msra.mxu0 %v7210
        %7420 = vmatpush.bf16.msra.mxu0 %v7202
        %7421 = vmatpush.bf16.msra.mxu0 %v7194
        %7422 = vmatpush.bf16.msra.mxu0 %v7186
        %7423 = vmatpush.bf16.msra.mxu0 %v7178
        %7424 = vmatpush.bf16.msra.mxu0 %v7170
        %7425 = vmatpush.bf16.msra.mxu0 %v7162
        %7426 = vmatmul.bf16.gmra.mxu0 %v3652
        %v7427 = vpop.f32.mrf.mxu0
        %v7428 = vadd.f32 0.0, %v7427
        %v7429 = vpop.f32.mrf.mxu0
        %v7430 = vadd.f32 0.0, %v7429
        %7431 = vdwg.mxu0
        %7432 = vmatpush.bf16.msra.mxu0 %v7282
        %7433 = vmatpush.bf16.msra.mxu0 %v7274
        %7434 = vmatpush.bf16.msra.mxu0 %v7266
        %7435 = vmatpush.bf16.msra.mxu0 %v7258
        %7436 = vmatpush.bf16.msra.mxu0 %v7250
        %7437 = vmatpush.bf16.msra.mxu0 %v7242
        %7438 = vmatpush.bf16.msra.mxu0 %v7234
        %7439 = vmatpush.bf16.msra.mxu0 %v7226
        %7440 = vmatmul.bf16.gmra.mxu0 %v3653
        %v7441 = vpop.f32.mrf.mxu0
        %v7442 = vadd.f32 %v7428, %v7441
        %v7443 = vpop.f32.mrf.mxu0
        %v7444 = vadd.f32 %v7430, %v7443
        %7445 = vdwg.mxu0
        %7446 = vmatpush.bf16.msra.mxu0 %v7219
        %7447 = vmatpush.bf16.msra.mxu0 %v7211
        %7448 = vmatpush.bf16.msra.mxu0 %v7203
        %7449 = vmatpush.bf16.msra.mxu0 %v7195
        %7450 = vmatpush.bf16.msra.mxu0 %v7187
        %7451 = vmatpush.bf16.msra.mxu0 %v7179
        %7452 = vmatpush.bf16.msra.mxu0 %v7171
        %7453 = vmatpush.bf16.msra.mxu0 %v7163
        %7454 = vmatmul.bf16.gmra.mxu0 %v3652
        %v7455 = vpop.f32.mrf.mxu0
        %v7456 = vadd.f32 0.0, %v7455
        %v7457 = vpop.f32.mrf.mxu0
        %v7458 = vadd.f32 0.0, %v7457
        %7459 = vdwg.mxu0
        %7460 = vmatpush.bf16.msra.mxu0 %v7283
        %7461 = vmatpush.bf16.msra.mxu0 %v7275
        %7462 = vmatpush.bf16.msra.mxu0 %v7267
        %7463 = vmatpush.bf16.msra.mxu0 %v7259
        %7464 = vmatpush.bf16.msra.mxu0 %v7251
        %7465 = vmatpush.bf16.msra.mxu0 %v7243
        %7466 = vmatpush.bf16.msra.mxu0 %v7235
        %7467 = vmatpush.bf16.msra.mxu0 %v7227
        %7468 = vmatmul.bf16.gmra.mxu0 %v3653
        %v7469 = vpop.f32.mrf.mxu0
        %v7470 = vadd.f32 %v7456, %v7469
        %v7471 = vpop.f32.mrf.mxu0
        %v7472 = vadd.f32 %v7458, %v7471
        %7473 = vdwg.mxu0
        %7474 = vmatpush.bf16.msra.mxu0 %v7220
        %7475 = vmatpush.bf16.msra.mxu0 %v7212
        %7476 = vmatpush.bf16.msra.mxu0 %v7204
        %7477 = vmatpush.bf16.msra.mxu0 %v7196
        %7478 = vmatpush.bf16.msra.mxu0 %v7188
        %7479 = vmatpush.bf16.msra.mxu0 %v7180
        %7480 = vmatpush.bf16.msra.mxu0 %v7172
        %7481 = vmatpush.bf16.msra.mxu0 %v7164
        %7482 = vmatmul.bf16.gmra.mxu0 %v3652
        %v7483 = vpop.f32.mrf.mxu0
        %v7484 = vadd.f32 0.0, %v7483
        %v7485 = vpop.f32.mrf.mxu0
        %v7486 = vadd.f32 0.0, %v7485
        %7487 = vdwg.mxu0
        %7488 = vmatpush.bf16.msra.mxu0 %v7284
        %7489 = vmatpush.bf16.msra.mxu0 %v7276
        %7490 = vmatpush.bf16.msra.mxu0 %v7268
        %7491 = vmatpush.bf16.msra.mxu0 %v7260
        %7492 = vmatpush.bf16.msra.mxu0 %v7252
        %7493 = vmatpush.bf16.msra.mxu0 %v7244
        %7494 = vmatpush.bf16.msra.mxu0 %v7236
        %7495 = vmatpush.bf16.msra.mxu0 %v7228
        %7496 = vmatmul.bf16.gmra.mxu0 %v3653
        %v7497 = vpop.f32.mrf.mxu0
        %v7498 = vadd.f32 %v7484, %v7497
        %v7499 = vpop.f32.mrf.mxu0
        %v7500 = vadd.f32 %v7486, %v7499
        %7501 = vdwg.mxu0
        %7502 = vmatpush.bf16.msra.mxu0 %v7221
        %7503 = vmatpush.bf16.msra.mxu0 %v7213
        %7504 = vmatpush.bf16.msra.mxu0 %v7205
        %7505 = vmatpush.bf16.msra.mxu0 %v7197
        %7506 = vmatpush.bf16.msra.mxu0 %v7189
        %7507 = vmatpush.bf16.msra.mxu0 %v7181
        %7508 = vmatpush.bf16.msra.mxu0 %v7173
        %7509 = vmatpush.bf16.msra.mxu0 %v7165
        %7510 = vmatmul.bf16.gmra.mxu0 %v3652
        %v7511 = vpop.f32.mrf.mxu0
        %v7512 = vadd.f32 0.0, %v7511
        %v7513 = vpop.f32.mrf.mxu0
        %v7514 = vadd.f32 0.0, %v7513
        %7515 = vdwg.mxu0
        %7516 = vmatpush.bf16.msra.mxu0 %v7285
        %7517 = vmatpush.bf16.msra.mxu0 %v7277
        %7518 = vmatpush.bf16.msra.mxu0 %v7269
        %7519 = vmatpush.bf16.msra.mxu0 %v7261
        %7520 = vmatpush.bf16.msra.mxu0 %v7253
        %7521 = vmatpush.bf16.msra.mxu0 %v7245
        %7522 = vmatpush.bf16.msra.mxu0 %v7237
        %7523 = vmatpush.bf16.msra.mxu0 %v7229
        %7524 = vmatmul.bf16.gmra.mxu0 %v3653
        %v7525 = vpop.f32.mrf.mxu0
        %v7526 = vadd.f32 %v7512, %v7525
        %v7527 = vpop.f32.mrf.mxu0
        %v7528 = vadd.f32 %v7514, %v7527
        %7529 = vdwg.mxu0
        %7530 = vmatpush.bf16.msra.mxu0 %v7222
        %7531 = vmatpush.bf16.msra.mxu0 %v7214
        %7532 = vmatpush.bf16.msra.mxu0 %v7206
        %7533 = vmatpush.bf16.msra.mxu0 %v7198
        %7534 = vmatpush.bf16.msra.mxu0 %v7190
        %7535 = vmatpush.bf16.msra.mxu0 %v7182
        %7536 = vmatpush.bf16.msra.mxu0 %v7174
        %7537 = vmatpush.bf16.msra.mxu0 %v7166
        %7538 = vmatmul.bf16.gmra.mxu0 %v3652
        %v7539 = vpop.f32.mrf.mxu0
        %v7540 = vadd.f32 0.0, %v7539
        %v7541 = vpop.f32.mrf.mxu0
        %v7542 = vadd.f32 0.0, %v7541
        %7543 = vdwg.mxu0
        %7544 = vmatpush.bf16.msra.mxu0 %v7286
        %7545 = vmatpush.bf16.msra.mxu0 %v7278
        %7546 = vmatpush.bf16.msra.mxu0 %v7270
        %7547 = vmatpush.bf16.msra.mxu0 %v7262
        %7548 = vmatpush.bf16.msra.mxu0 %v7254
        %7549 = vmatpush.bf16.msra.mxu0 %v7246
        %7550 = vmatpush.bf16.msra.mxu0 %v7238
        %7551 = vmatpush.bf16.msra.mxu0 %v7230
        %7552 = vmatmul.bf16.gmra.mxu0 %v3653
        %v7553 = vpop.f32.mrf.mxu0
        %v7554 = vadd.f32 %v7540, %v7553
        %v7555 = vpop.f32.mrf.mxu0
        %v7556 = vadd.f32 %v7542, %v7555
        %7557 = vdwg.mxu0
        %7558 = vmatpush.bf16.msra.mxu0 %v7223
        %7559 = vmatpush.bf16.msra.mxu0 %v7215
        %7560 = vmatpush.bf16.msra.mxu0 %v7207
        %7561 = vmatpush.bf16.msra.mxu0 %v7199
        %7562 = vmatpush.bf16.msra.mxu0 %v7191
        %7563 = vmatpush.bf16.msra.mxu0 %v7183
        %7564 = vmatpush.bf16.msra.mxu0 %v7175
        %7565 = vmatpush.bf16.msra.mxu0 %v7167
        %7566 = vmatmul.bf16.gmra.mxu0 %v3652
        %v7567 = vpop.f32.mrf.mxu0
        %v7568 = vadd.f32 0.0, %v7567
        %v7569 = vpop.f32.mrf.mxu0
        %v7570 = vadd.f32 0.0, %v7569
        %7571 = vdwg.mxu0
        %7572 = vmatpush.bf16.msra.mxu0 %v7287
        %7573 = vmatpush.bf16.msra.mxu0 %v7279
        %7574 = vmatpush.bf16.msra.mxu0 %v7271
        %7575 = vmatpush.bf16.msra.mxu0 %v7263
        %7576 = vmatpush.bf16.msra.mxu0 %v7255
        %7577 = vmatpush.bf16.msra.mxu0 %v7247
        %7578 = vmatpush.bf16.msra.mxu0 %v7239
        %7579 = vmatpush.bf16.msra.mxu0 %v7231
        %7580 = vmatmul.bf16.gmra.mxu0 %v3653
        %v7581 = vpop.f32.mrf.mxu0
        %v7582 = vadd.f32 %v7568, %v7581
        %v7583 = vpop.f32.mrf.mxu0
        %v7584 = vadd.f32 %v7570, %v7583
        %7585 = vdwg.mxu0
        %7586 = vmatpush.bf16.msra.mxu0 %v7224
        %7587 = vmatpush.bf16.msra.mxu0 %v7216
        %7588 = vmatpush.bf16.msra.mxu0 %v7208
        %7589 = vmatpush.bf16.msra.mxu0 %v7200
        %7590 = vmatpush.bf16.msra.mxu0 %v7192
        %7591 = vmatpush.bf16.msra.mxu0 %v7184
        %7592 = vmatpush.bf16.msra.mxu0 %v7176
        %7593 = vmatpush.bf16.msra.mxu0 %v7168
        %7594 = vmatmul.bf16.gmra.mxu0 %v3652
        %v7595 = vpop.f32.mrf.mxu0
        %v7596 = vadd.f32 0.0, %v7595
        %v7597 = vpop.f32.mrf.mxu0
        %v7598 = vadd.f32 0.0, %v7597
        %7599 = vdwg.mxu0
        %7600 = vmatpush.bf16.msra.mxu0 %v7288
        %7601 = vmatpush.bf16.msra.mxu0 %v7280
        %7602 = vmatpush.bf16.msra.mxu0 %v7272
        %7603 = vmatpush.bf16.msra.mxu0 %v7264
        %7604 = vmatpush.bf16.msra.mxu0 %v7256
        %7605 = vmatpush.bf16.msra.mxu0 %v7248
        %7606 = vmatpush.bf16.msra.mxu0 %v7240
        %7607 = vmatpush.bf16.msra.mxu0 %v7232
        %7608 = vmatmul.bf16.gmra.mxu0 %v3653
        %v7609 = vpop.f32.mrf.mxu0
        %v7610 = vadd.f32 %v7596, %v7609
        %v7611 = vpop.f32.mrf.mxu0
        %v7612 = vadd.f32 %v7598, %v7611
        %7613 = vdwg.mxu0
        %7614 = vmatpush.bf16.msra.mxu0 %v7225
        %7615 = vmatpush.bf16.msra.mxu0 %v7217
        %7616 = vmatpush.bf16.msra.mxu0 %v7209
        %7617 = vmatpush.bf16.msra.mxu0 %v7201
        %7618 = vmatpush.bf16.msra.mxu0 %v7193
        %7619 = vmatpush.bf16.msra.mxu0 %v7185
        %7620 = vmatpush.bf16.msra.mxu0 %v7177
        %7621 = vmatpush.bf16.msra.mxu0 %v7169
        %7622 = vmatmul.bf16.gmra.mxu0 %v3652
        %v7623 = vpop.f32.mrf.mxu0
        %v7624 = vadd.f32 0.0, %v7623
        %v7625 = vpop.f32.mrf.mxu0
        %v7626 = vadd.f32 0.0, %v7625
        %7627 = vdwg.mxu0
        %7628 = vmatpush.bf16.msra.mxu0 %v7289
        %7629 = vmatpush.bf16.msra.mxu0 %v7281
        %7630 = vmatpush.bf16.msra.mxu0 %v7273
        %7631 = vmatpush.bf16.msra.mxu0 %v7265
        %7632 = vmatpush.bf16.msra.mxu0 %v7257
        %7633 = vmatpush.bf16.msra.mxu0 %v7249
        %7634 = vmatpush.bf16.msra.mxu0 %v7241
        %7635 = vmatpush.bf16.msra.mxu0 %v7233
        %7636 = vmatmul.bf16.gmra.mxu0 %v3653
        %v7637 = vpop.f32.mrf.mxu0
        %v7638 = vadd.f32 %v7624, %v7637
        %v7639 = vpop.f32.mrf.mxu0
        %v7640 = vadd.f32 %v7626, %v7639
        %7641 = vdwg.mxu0
        %v7642 = vadd.f32 %v6634, %v7442
        %v7643 = vadd.f32 %v6635, %v7470
        %v7644 = vadd.f32 %v6636, %v7498
        %v7645 = vadd.f32 %v6637, %v7526
        %v7646 = vadd.f32 %v6638, %v7554
        %v7647 = vadd.f32 %v6639, %v7582
        %v7648 = vadd.f32 %v6640, %v7610
        %v7649 = vadd.f32 %v6641, %v7638
        %v7650 = vadd.f32 %v6642, %v7444
        %v7651 = vadd.f32 %v6643, %v7472
        %v7652 = vadd.f32 %v6644, %v7500
        %v7653 = vadd.f32 %v6645, %v7528
        %v7654 = vadd.f32 %v6646, %v7556
        %v7655 = vadd.f32 %v6647, %v7584
        %v7656 = vadd.f32 %v6648, %v7612
        %v7657 = vadd.f32 %v6649, %v7640
        %v7659 = vperm.slane %v478, 0
        %v7660 = vperm.slane %v478, 1
        %v7663 = vadd.f32 %v7642, %v7659
        %v7664 = vadd.f32 %v7643, %v7660
        %v7665 = vadd.f32 %v7650, %v7659
        %v7666 = vadd.f32 %v7651, %v7660
        %v7667 = vmax.f32 %v7663, 0.0
        %v7668 = vmax.f32 %v7664, 0.0
        %v7669 = vmax.f32 %v7665, 0.0
        %v7670 = vmax.f32 %v7666, 0.0
        %v7671 = vadd.f32 %v7644, %v7659
        %v7672 = vadd.f32 %v7645, %v7660
        %v7673 = vadd.f32 %v7652, %v7659
        %v7674 = vadd.f32 %v7653, %v7660
        %v7675 = vmax.f32 %v7671, 0.0
        %v7676 = vmax.f32 %v7672, 0.0
        %v7677 = vmax.f32 %v7673, 0.0
        %v7678 = vmax.f32 %v7674, 0.0
        %v7679 = vadd.f32 %v7646, %v7659
        %v7680 = vadd.f32 %v7647, %v7660
        %v7681 = vadd.f32 %v7654, %v7659
        %v7682 = vadd.f32 %v7655, %v7660
        %v7683 = vmax.f32 %v7679, 0.0
        %v7684 = vmax.f32 %v7680, 0.0
        %v7685 = vmax.f32 %v7681, 0.0
        %v7686 = vmax.f32 %v7682, 0.0
        %v7687 = vadd.f32 %v7648, %v7659
        %v7688 = vadd.f32 %v7649, %v7660
        %v7689 = vadd.f32 %v7656, %v7659
        %v7690 = vadd.f32 %v7657, %v7660
        %v7691 = vmax.f32 %v7687, 0.0
        %v7692 = vmax.f32 %v7688, 0.0
        %v7693 = vmax.f32 %v7689, 0.0
        %v7694 = vmax.f32 %v7690, 0.0
        %v7695 = vmax.f32 %v7667, %v7675
        %v7696 = vmax.f32 %v7668, %v7676
        %v7697 = vmax.f32 %v7669, %v7677
        %v7698 = vmax.f32 %v7670, %v7678
        %v7699 = vmax.f32 %v7683, %v7691
        %v7700 = vmax.f32 %v7684, %v7692
        %v7701 = vmax.f32 %v7685, %v7693
        %v7702 = vmax.f32 %v7686, %v7694
        %v7703 = vmax.f32 %v7695, %v7699
        %v7704 = vmax.f32 %v7696, %v7700
        %v7705 = vmax.f32 %v7697, %v7701
        %v7706 = vmax.f32 %v7698, %v7702
        %v7707 = vpack.c.bf16 %v7704, %v7703
        %v7708 = vpack.c.bf16 %v7706, %v7705
        %7709 = vst [vmem:[%s475] sm:$0xff] %v7707
        %7710 = vst [vmem:[%s475 + $0x8] sm:$0xff] %v7708
        %p7711 = scmp.lt.s32.totalorder %s25, 1
        %s7712 = scalar_select %p7711, %s25, 1
        %s7713 = smul.addr %s7712, 4
        %s7714 = smul.addr %s7713, 4
        %s7715 = scalar_lea.vmem %s10, %s7714
        // Predicated region
        $region89: #{cnn_forward.2} parent=59 // pred_check
          %p7716 = pneg %p258
        $region90: #{cnn_forward.2} parent=59 // pred_check_branch
          %7718 = sbr.rel (%p7716) target = $region92
        $region91: #{cnn_forward.2} parent=59 // pred_region
          _
        $region92: #{cnn_forward.2} parent=59 // pred_fallthru
          _
      $region60: #{cnn_forward.2} parent=5 // pred_fallthru
        _
      %p7719 = scmp.le.s32.totalorder 2, %s20
      // Predicated region
      $region93: #{cnn_forward.2} parent=5 // pred_check
        %p7720 = pneg %p7719
      $region94: #{cnn_forward.2} parent=5 // pred_check_branch
        %7722 = sbr.rel (%p7720) target = $region96
      $region95: #{cnn_forward.2} parent=5 // pred_region
        %s7723 = ssub.s32 %s20, 2
        // Predicated region
        $region97: #{cnn_forward.2} parent=95 // pred_check
          %p7724 = pneg %p264
        $region98: #{cnn_forward.2} parent=95 // pred_check_branch
          %7726 = sbr.rel (%p7724) target = $region100
        $region99: #{cnn_forward.2} parent=95 // pred_region
          %p7727 = scmp.lt.s32.totalorder %s26, 1
          %s7728 = scalar_select %p7727, %s26, 1
          %s7729 = smul.addr %s7728, 4
          %s7730 = smul.addr %s7729, 4
          %s7731 = scalar_lea.vmem %s10, %s7730
        $region100: #{cnn_forward.2} parent=95 // pred_fallthru
          _
      $region96: #{cnn_forward.2} parent=5 // pred_fallthru
        _
    $region6: #{cnn_forward.2} parent=1 // loop_footer
      %s24 = sadd.s32 1, %s20
    $region7: #{cnn_forward.2} parent=1 // loop_footer_branch
      %19 = sbr.rel target = $region3
    $region8: #{cnn_forward.2} parent=1 // loop_exit
      _
    %7732 = vsyncpa [#allocation3], 1
    %s7733 = scalar_lea.sflag [#allocation3], 1
    %7734 = vsyncpa %s7733, 1
    %7735 = vsyncpa [#allocation5], 1
    %7736 = vsyncpa [#allocation8], 1
    %7737 = vsyncpa [#allocation11], 1

</llo_original>
